<compile_context>
chip_gen: v5e
topology: v5e:2x2
jax: 0.10.0
libtpu: 0.0.40
codegen_flags: <defaults>
</compile_context>

<pallas_src>
import jax
import jax.numpy as jnp
from jax import lax
from jax.experimental import pallas as pl
from jax.experimental.pallas import tpu as pltpu


_POOL_K = 5
_POOL_P = _POOL_K // 2  # = 2


def _sppf_kernel(x_ref, w1_ref, b1_ref, w2_ref, b2_ref, o_ref, pad_ref):
    """Fused SPPF for one batch element; whole H x W tile resident in VMEM."""
    _, H, W, C1 = x_ref.shape
    C_ = w1_ref.shape[1]
    C2 = w2_ref.shape[1]

    # ---- cv1: 1x1 conv (BN scale pre-folded into w1) + bias + SiLU --------
    x2d = x_ref[...].reshape(H * W, C1)
    t = jnp.dot(x2d, w1_ref[...], preferred_element_type=jnp.float32)
    t = t + b1_ref[...]
    t = t * jax.nn.sigmoid(t)                                  # SiLU (f32)

    # ---- cv2 accumulated per concat chunk (concat never materialized) -----
    w2 = w2_ref[...]                                           # (4*C_, C2)
    acc = jnp.dot(t, w2[0:C_, :], preferred_element_type=jnp.float32)

    # ---- three chained MaxPool(k=5, s=1, p=2), each feeding a w2 chunk ----
    pad_ref[...] = jnp.full((H + 2 * _POOL_P, W + 2 * _POOL_P, C_),
                            -jnp.inf, dtype=jnp.float32)
    cur = t.reshape(H, W, C_)
    for chunk in range(1, 4):
        pad_ref[_POOL_P:_POOL_P + H, _POOL_P:_POOL_P + W, :] = cur
        m = pad_ref[0:H, 0:W, :]
        for di in range(_POOL_K):
            for dj in range(_POOL_K):
                if di == 0 and dj == 0:
                    continue
                m = jnp.maximum(m, pad_ref[di:di + H, dj:dj + W, :])
        acc = acc + jnp.dot(m.reshape(H * W, C_),
                            w2[chunk * C_:(chunk + 1) * C_, :],
                            preferred_element_type=jnp.float32)
        cur = m

    # ---- cv2 epilogue: bias + SiLU ----------------------------------------
    y = acc + b2_ref[...]
    y = y * jax.nn.sigmoid(y)
    o_ref[...] = y.reshape(1, H, W, C2).astype(o_ref.dtype)


def sppf_forward(x_nchw, w_cv1, g1, b1, rm1, rv1, w_cv2, g2, b2, rm2, rv2,
                 eps=1e-5):
    """SPPF forward.  x_nchw: (N, C1, H, W) f32.  Returns (N, C2, H, W) f32.

    w_cv1: (C_, C1, 1, 1)   PyTorch Conv2d weight of cv1 (C_ = C1 // 2)
    w_cv2: (C2, 4*C_, 1, 1) PyTorch Conv2d weight of cv2
    g/b/rm/rv: BatchNorm2d gamma / beta / running_mean / running_var.
    """
    N, C1, H, W = x_nchw.shape
    C_ = w_cv1.shape[0]
    C2 = w_cv2.shape[0]
    assert w_cv1.shape == (C_, C1, 1, 1)
    assert w_cv2.shape == (C2, 4 * C_, 1, 1)

    # Boundary layout glue only (hot path is NHWC).
    x_nhwc = jnp.transpose(x_nchw, (0, 2, 3, 1))

    # Fold BatchNorm (eval) into the 1x1 conv weights; keep only a bias add.
    s1 = g1 / jnp.sqrt(rv1 + eps)
    s2 = g2 / jnp.sqrt(rv2 + eps)
    w1m = jnp.transpose(w_cv1[:, :, 0, 0]) * s1[None, :]       # (C1, C_)
    w2m = jnp.transpose(w_cv2[:, :, 0, 0]) * s2[None, :]       # (4*C_, C2)
    bias1 = (b1 - rm1 * s1).reshape(1, C_)
    bias2 = (b2 - rm2 * s2).reshape(1, C2)

    flops = 2 * N * H * W * (C1 * C_ + 4 * C_ * C2) + 3 * 25 * N * H * W * C_
    transcendentals = N * H * W * (C_ + C2)                    # sigmoids
    bytes_accessed = 4 * (N * H * W * (C1 + C2)
                          + C1 * C_ + 4 * C_ * C2 + C_ + C2)

    # VMEM budget: double-buffered in/out blocks + resident weights + scratch.
    vmem_bytes = 4 * (2 * H * W * (C1 + C2)
                      + C1 * C_ + 4 * C_ * C2 + C_ + C2
                      + (H + 2 * _POOL_P) * (W + 2 * _POOL_P) * C_)
    vmem_limit = int(min(max(4 * vmem_bytes, 8 * 1024 * 1024),
                         64 * 1024 * 1024))

    out_nhwc = pl.pallas_call(
        _sppf_kernel,
        out_shape=jax.ShapeDtypeStruct((N, H, W, C2), jnp.float32),
        grid_spec=pltpu.PrefetchScalarGridSpec(
            num_scalar_prefetch=0,
            grid=(N,),
            in_specs=[
                pl.BlockSpec((1, H, W, C1), lambda n: (n, 0, 0, 0)),
                pl.BlockSpec((C1, C_), lambda n: (0, 0)),
                pl.BlockSpec((1, C_), lambda n: (0, 0)),
                pl.BlockSpec((4 * C_, C2), lambda n: (0, 0)),
                pl.BlockSpec((1, C2), lambda n: (0, 0)),
            ],
            out_specs=pl.BlockSpec((1, H, W, C2), lambda n: (n, 0, 0, 0)),
            scratch_shapes=[
                pltpu.VMEM((H + 2 * _POOL_P, W + 2 * _POOL_P, C_),
                           jnp.float32),
            ],
        ),
        compiler_params=pltpu.CompilerParams(
            dimension_semantics=("parallel",),
            vmem_limit_bytes=vmem_limit,
        ),
        cost_estimate=pl.CostEstimate(
            flops=int(flops),
            transcendentals=int(transcendentals),
            bytes_accessed=int(bytes_accessed),
        ),
    )(x_nhwc, w1m, bias1, w2m, bias2)

    return jnp.transpose(out_nhwc, (0, 3, 1, 2))


def _reference(x_nchw, w_cv1, g1, b1, rm1, rv1, w_cv2, g2, b2, rm2, rv2,
               eps=1e-5):
    """Pure-JAX reference with identical (eval-mode) semantics."""
    s1 = g1 / jnp.sqrt(rv1 + eps)
    s2 = g2 / jnp.sqrt(rv2 + eps)
    w1_eff = w_cv1[:, :, 0, 0] * s1[:, None]                   # (C_, C1)
    w2_eff = w_cv2[:, :, 0, 0] * s2[:, None]                   # (C2, 4*C_)
    bias1 = b1 - rm1 * s1
    bias2 = b2 - rm2 * s2

    def silu(v):
        return v * jax.nn.sigmoid(v)

    def maxpool5(v):  # NCHW, k=5, s=1, p=2 (implicit -inf padding)
        return lax.reduce_window(v, -jnp.inf, lax.max,
                                 (1, 1, 5, 5), (1, 1, 1, 1),
                                 ((0, 0), (0, 0), (2, 2), (2, 2)))

    t = jnp.einsum("nchw,oc->nohw", x_nchw, w1_eff) + bias1[None, :, None, None]
    t = silu(t)
    y1 = maxpool5(t)
    y2 = maxpool5(y1)
    y3 = maxpool5(y2)
    cat = jnp.concatenate([t, y1, y2, y3], axis=1)
    out = jnp.einsum("nchw,oc->nohw", cat, w2_eff) + bias2[None, :, None, None]
    return silu(out)


if __name__ == "__main__":
    key = jax.random.PRNGKey(0)
    ks = jax.random.split(key, 11)

    N, C1, C2, H, W = 2, 32, 32, 16, 16
    C_ = C1 // 2

    x = jax.random.normal(ks[0], (N, C1, H, W), dtype=jnp.float32)
    w_cv1 = 0.2 * jax.random.normal(ks[1], (C_, C1, 1, 1), dtype=jnp.float32)
    g1 = 1.0 + 0.1 * jax.random.normal(ks[2], (C_,), dtype=jnp.float32)
    b1 = 0.1 * jax.random.normal(ks[3], (C_,), dtype=jnp.float32)
    rm1 = 0.05 * jax.random.normal(ks[4], (C_,), dtype=jnp.float32)
    rv1 = jnp.abs(1.0 + 0.1 * jax.random.normal(ks[5], (C_,), dtype=jnp.float32))

    w_cv2 = 0.2 * jax.random.normal(ks[6], (C2, 4 * C_, 1, 1), dtype=jnp.float32)
    g2 = 1.0 + 0.1 * jax.random.normal(ks[7], (C2,), dtype=jnp.float32)
    b2 = 0.1 * jax.random.normal(ks[8], (C2,), dtype=jnp.float32)
    rm2 = 0.05 * jax.random.normal(ks[9], (C2,), dtype=jnp.float32)
    rv2 = jnp.abs(1.0 + 0.1 * jax.random.normal(ks[10], (C2,), dtype=jnp.float32))

    out = sppf_forward(x, w_cv1, g1, b1, rm1, rv1, w_cv2, g2, b2, rm2, rv2)
    out = jax.block_until_ready(out)

    ref = _reference(x, w_cv1, g1, b1, rm1, rv1, w_cv2, g2, b2, rm2, rv2)
    assert out.shape == (N, C2, H, W), out.shape
    max_err = float(jnp.max(jnp.abs(out - ref)))
    assert jnp.allclose(out, ref, atol=1e-4, rtol=1e-4), max_err

    print("KERNEL_OK")
</pallas_src>

<mosaic_0001>
module attributes {stable_mosaic.version = 11 : i64} {
  func.func @_sppf_kernel(%arg0: i32, %arg1: memref<1x16x16x32xf32, #tpu.memory_space<vmem>>, %arg2: memref<32x16xf32, #tpu.memory_space<vmem>>, %arg3: memref<1x16xf32, #tpu.memory_space<vmem>>, %arg4: memref<64x32xf32, #tpu.memory_space<vmem>>, %arg5: memref<1x32xf32, #tpu.memory_space<vmem>>, %arg6: memref<1x16x16x32xf32, #tpu.memory_space<vmem>>, %arg7: memref<20x20x16xf32, #tpu.memory_space<vmem>>) attributes {dimension_semantics = [#tpu.dimension_semantics<parallel>], iteration_bounds = array<i64: 2>, scalar_prefetch = 0 : i64, scratch_operands = 1 : i64, tpu.core_type = #tpu.core_type<tc>, window_params = [{transform_indices = @transform_0, window_bounds = array<i64: 1, 16, 16, 32>}, {pipeline_mode = #tpu.pipeline_mode<synchronous>, transform_indices = @transform_1, window_bounds = array<i64: 32, 16>}, {pipeline_mode = #tpu.pipeline_mode<synchronous>, transform_indices = @transform_2, window_bounds = array<i64: 1, 16>}, {pipeline_mode = #tpu.pipeline_mode<synchronous>, transform_indices = @transform_3, window_bounds = array<i64: 64, 32>}, {pipeline_mode = #tpu.pipeline_mode<synchronous>, transform_indices = @transform_4, window_bounds = array<i64: 1, 32>}, {transform_indices = @transform_5, window_bounds = array<i64: 1, 16, 16, 32>}]} {
    %c0 = arith.constant 0 : index
    %c0_0 = arith.constant 0 : index
    %c0_1 = arith.constant 0 : index
    %c0_2 = arith.constant 0 : index
    %0 = vector.load %arg1[%c0, %c0_0, %c0_1, %c0_2] : memref<1x16x16x32xf32, #tpu.memory_space<vmem>>, vector<1x16x16x32xf32>
    %1 = vector.shape_cast %0 : vector<1x16x16x32xf32> to vector<256x32xf32>
    %c0_3 = arith.constant 0 : index
    %c0_4 = arith.constant 0 : index
    %2 = vector.load %arg2[%c0_3, %c0_4] : memref<32x16xf32, #tpu.memory_space<vmem>>, vector<32x16xf32>
    %cst = arith.constant dense<0.000000e+00> : vector<256x16xf32>
    %3 = tpu.matmul %1, %2, %cst {dimension_numbers = #tpu.dot_dimension_numbers<[1], [0], [0], [1], [0, 0, 1, 1], [], []>} : vector<256x32xf32>, vector<32x16xf32>, vector<256x16xf32> -> vector<256x16xf32>
    %c0_5 = arith.constant 0 : index
    %c0_6 = arith.constant 0 : index
    %4 = vector.load %arg3[%c0_5, %c0_6] : memref<1x16xf32, #tpu.memory_space<vmem>>, vector<1x16xf32>
    %5 = vector.broadcast %4 : vector<1x16xf32> to vector<256x16xf32>
    %6 = arith.addf %3, %5 : vector<256x16xf32>
    %7 = arith.negf %6 : vector<256x16xf32>
    %8 = math.exp %7 : vector<256x16xf32>
    %cst_7 = arith.constant 1.000000e+00 : f32
    %9 = vector.broadcast %cst_7 : f32 to vector<256x16xf32>
    %10 = arith.addf %9, %8 : vector<256x16xf32>
    %11 = arith.divf %9, %10 : vector<256x16xf32>
    %12 = arith.mulf %6, %11 : vector<256x16xf32>
    %c0_8 = arith.constant 0 : index
    %c0_9 = arith.constant 0 : index
    %13 = vector.load %arg4[%c0_8, %c0_9] : memref<64x32xf32, #tpu.memory_space<vmem>>, vector<64x32xf32>
    %14 = vector.extract_strided_slice %13 {offsets = [0, 0], sizes = [16, 32], strides = [1, 1]} : vector<64x32xf32> to vector<16x32xf32>
    %cst_10 = arith.constant dense<0.000000e+00> : vector<256x32xf32>
    %15 = tpu.matmul %12, %14, %cst_10 {dimension_numbers = #tpu.dot_dimension_numbers<[1], [0], [0], [1], [0, 0, 1, 1], [], []>} : vector<256x16xf32>, vector<16x32xf32>, vector<256x32xf32> -> vector<256x32xf32>
    %cst_11 = arith.constant 0xFF800000 : f32
    %16 = vector.broadcast %cst_11 : f32 to vector<20x20x16xf32>
    %c0_12 = arith.constant 0 : index
    %c0_13 = arith.constant 0 : index
    %c0_14 = arith.constant 0 : index
    %17 = vector.load %arg7[%c0_12, %c0_13, %c0_14] : memref<20x20x16xf32, #tpu.memory_space<vmem>>, vector<20x20x16xf32>
    tpu.vector_store %arg7[%c0_12, %c0_13, %c0_14], %16 {strides = array<i32>} : memref<20x20x16xf32, #tpu.memory_space<vmem>>, vector<20x20x16xf32>,
    %18 = vector.shape_cast %12 : vector<256x16xf32> to vector<16x16x16xf32>
    %c2 = arith.constant 2 : index
    %c2_15 = arith.constant 2 : index
    %c0_16 = arith.constant 0 : index
    %19 = vector.load %arg7[%c2, %c2_15, %c0_16] : memref<20x20x16xf32, #tpu.memory_space<vmem>>, vector<16x16x16xf32>
    tpu.vector_store %arg7[%c2, %c2_15, %c0_16], %18 {strides = array<i32>} : memref<20x20x16xf32, #tpu.memory_space<vmem>>, vector<16x16x16xf32>,
    %c0_17 = arith.constant 0 : index
    %c0_18 = arith.constant 0 : index
    %c0_19 = arith.constant 0 : index
    %20 = vector.load %arg7[%c0_17, %c0_18, %c0_19] : memref<20x20x16xf32, #tpu.memory_space<vmem>>, vector<16x16x16xf32>
    %c0_20 = arith.constant 0 : index
    %c1 = arith.constant 1 : index
    %c0_21 = arith.constant 0 : index
    %21 = vector.load %arg7[%c0_20, %c1, %c0_21] : memref<20x20x16xf32, #tpu.memory_space<vmem>>, vector<16x16x16xf32>
    %22 = arith.maximumf %20, %21 : vector<16x16x16xf32>
    %c0_22 = arith.constant 0 : index
    %c2_23 = arith.constant 2 : index
    %c0_24 = arith.constant 0 : index
    %23 = vector.load %arg7[%c0_22, %c2_23, %c0_24] : memref<20x20x16xf32, #tpu.memory_space<vmem>>, vector<16x16x16xf32>
    %24 = arith.maximumf %22, %23 : vector<16x16x16xf32>
    %c0_25 = arith.constant 0 : index
    %c3 = arith.constant 3 : index
    %c0_26 = arith.constant 0 : index
    %25 = vector.load %arg7[%c0_25, %c3, %c0_26] : memref<20x20x16xf32, #tpu.memory_space<vmem>>, vector<16x16x16xf32>
    %26 = arith.maximumf %24, %25 : vector<16x16x16xf32>
    %c0_27 = arith.constant 0 : index
    %c4 = arith.constant 4 : index
    %c0_28 = arith.constant 0 : index
    %27 = vector.load %arg7[%c0_27, %c4, %c0_28] : memref<20x20x16xf32, #tpu.memory_space<vmem>>, vector<16x16x16xf32>
    %28 = arith.maximumf %26, %27 : vector<16x16x16xf32>
    %c1_29 = arith.constant 1 : index
    %c0_30 = arith.constant 0 : index
    %c0_31 = arith.constant 0 : index
    %29 = vector.load %arg7[%c1_29, %c0_30, %c0_31] : memref<20x20x16xf32, #tpu.memory_space<vmem>>, vector<16x16x16xf32>
    %30 = arith.maximumf %28, %29 : vector<16x16x16xf32>
    %c1_32 = arith.constant 1 : index
    %c1_33 = arith.constant 1 : index
    %c0_34 = arith.constant 0 : index
    %31 = vector.load %arg7[%c1_32, %c1_33, %c0_34] : memref<20x20x16xf32, #tpu.memory_space<vmem>>, vector<16x16x16xf32>
    %32 = arith.maximumf %30, %31 : vector<16x16x16xf32>
    %c1_35 = arith.constant 1 : index
    %c2_36 = arith.constant 2 : index
    %c0_37 = arith.constant 0 : index
    %33 = vector.load %arg7[%c1_35, %c2_36, %c0_37] : memref<20x20x16xf32, #tpu.memory_space<vmem>>, vector<16x16x16xf32>
    %34 = arith.maximumf %32, %33 : vector<16x16x16xf32>
    %c1_38 = arith.constant 1 : index
    %c3_39 = arith.constant 3 : index
    %c0_40 = arith.constant 0 : index
    %35 = vector.load %arg7[%c1_38, %c3_39, %c0_40] : memref<20x20x16xf32, #tpu.memory_space<vmem>>, vector<16x16x16xf32>
    %36 = arith.maximumf %34, %35 : vector<16x16x16xf32>
    %c1_41 = arith.constant 1 : index
    %c4_42 = arith.constant 4 : index
    %c0_43 = arith.constant 0 : index
    %37 = vector.load %arg7[%c1_41, %c4_42, %c0_43] : memref<20x20x16xf32, #tpu.memory_space<vmem>>, vector<16x16x16xf32>
    %38 = arith.maximumf %36, %37 : vector<16x16x16xf32>
    %c2_44 = arith.constant 2 : index
    %c0_45 = arith.constant 0 : index
    %c0_46 = arith.constant 0 : index
    %39 = vector.load %arg7[%c2_44, %c0_45, %c0_46] : memref<20x20x16xf32, #tpu.memory_space<vmem>>, vector<16x16x16xf32>
    %40 = arith.maximumf %38, %39 : vector<16x16x16xf32>
    %c2_47 = arith.constant 2 : index
    %c1_48 = arith.constant 1 : index
    %c0_49 = arith.constant 0 : index
    %41 = vector.load %arg7[%c2_47, %c1_48, %c0_49] : memref<20x20x16xf32, #tpu.memory_space<vmem>>, vector<16x16x16xf32>
    %42 = arith.maximumf %40, %41 : vector<16x16x16xf32>
    %c2_50 = arith.constant 2 : index
    %c2_51 = arith.constant 2 : index
    %c0_52 = arith.constant 0 : index
    %43 = vector.load %arg7[%c2_50, %c2_51, %c0_52] : memref<20x20x16xf32, #tpu.memory_space<vmem>>, vector<16x16x16xf32>
    %44 = arith.maximumf %42, %43 : vector<16x16x16xf32>
    %c2_53 = arith.constant 2 : index
    %c3_54 = arith.constant 3 : index
    %c0_55 = arith.constant 0 : index
    %45 = vector.load %arg7[%c2_53, %c3_54, %c0_55] : memref<20x20x16xf32, #tpu.memory_space<vmem>>, vector<16x16x16xf32>
    %46 = arith.maximumf %44, %45 : vector<16x16x16xf32>
    %c2_56 = arith.constant 2 : index
    %c4_57 = arith.constant 4 : index
    %c0_58 = arith.constant 0 : index
    %47 = vector.load %arg7[%c2_56, %c4_57, %c0_58] : memref<20x20x16xf32, #tpu.memory_space<vmem>>, vector<16x16x16xf32>
    %48 = arith.maximumf %46, %47 : vector<16x16x16xf32>
    %c3_59 = arith.constant 3 : index
    %c0_60 = arith.constant 0 : index
    %c0_61 = arith.constant 0 : index
    %49 = vector.load %arg7[%c3_59, %c0_60, %c0_61] : memref<20x20x16xf32, #tpu.memory_space<vmem>>, vector<16x16x16xf32>
    %50 = arith.maximumf %48, %49 : vector<16x16x16xf32>
    %c3_62 = arith.constant 3 : index
    %c1_63 = arith.constant 1 : index
    %c0_64 = arith.constant 0 : index
    %51 = vector.load %arg7[%c3_62, %c1_63, %c0_64] : memref<20x20x16xf32, #tpu.memory_space<vmem>>, vector<16x16x16xf32>
    %52 = arith.maximumf %50, %51 : vector<16x16x16xf32>
    %c3_65 = arith.constant 3 : index
    %c2_66 = arith.constant 2 : index
    %c0_67 = arith.constant 0 : index
    %53 = vector.load %arg7[%c3_65, %c2_66, %c0_67] : memref<20x20x16xf32, #tpu.memory_space<vmem>>, vector<16x16x16xf32>
    %54 = arith.maximumf %52, %53 : vector<16x16x16xf32>
    %c3_68 = arith.constant 3 : index
    %c3_69 = arith.constant 3 : index
    %c0_70 = arith.constant 0 : index
    %55 = vector.load %arg7[%c3_68, %c3_69, %c0_70] : memref<20x20x16xf32, #tpu.memory_space<vmem>>, vector<16x16x16xf32>
    %56 = arith.maximumf %54, %55 : vector<16x16x16xf32>
    %c3_71 = arith.constant 3 : index
    %c4_72 = arith.constant 4 : index
    %c0_73 = arith.constant 0 : index
    %57 = vector.load %arg7[%c3_71, %c4_72, %c0_73] : memref<20x20x16xf32, #tpu.memory_space<vmem>>, vector<16x16x16xf32>
    %58 = arith.maximumf %56, %57 : vector<16x16x16xf32>
    %c4_74 = arith.constant 4 : index
    %c0_75 = arith.constant 0 : index
    %c0_76 = arith.constant 0 : index
    %59 = vector.load %arg7[%c4_74, %c0_75, %c0_76] : memref<20x20x16xf32, #tpu.memory_space<vmem>>, vector<16x16x16xf32>
    %60 = arith.maximumf %58, %59 : vector<16x16x16xf32>
    %c4_77 = arith.constant 4 : index
    %c1_78 = arith.constant 1 : index
    %c0_79 = arith.constant 0 : index
    %61 = vector.load %arg7[%c4_77, %c1_78, %c0_79] : memref<20x20x16xf32, #tpu.memory_space<vmem>>, vector<16x16x16xf32>
    %62 = arith.maximumf %60, %61 : vector<16x16x16xf32>
    %c4_80 = arith.constant 4 : index
    %c2_81 = arith.constant 2 : index
    %c0_82 = arith.constant 0 : index
    %63 = vector.load %arg7[%c4_80, %c2_81, %c0_82] : memref<20x20x16xf32, #tpu.memory_space<vmem>>, vector<16x16x16xf32>
    %64 = arith.maximumf %62, %63 : vector<16x16x16xf32>
    %c4_83 = arith.constant 4 : index
    %c3_84 = arith.constant 3 : index
    %c0_85 = arith.constant 0 : index
    %65 = vector.load %arg7[%c4_83, %c3_84, %c0_85] : memref<20x20x16xf32, #tpu.memory_space<vmem>>, vector<16x16x16xf32>
    %66 = arith.maximumf %64, %65 : vector<16x16x16xf32>
    %c4_86 = arith.constant 4 : index
    %c4_87 = arith.constant 4 : index
    %c0_88 = arith.constant 0 : index
    %67 = vector.load %arg7[%c4_86, %c4_87, %c0_88] : memref<20x20x16xf32, #tpu.memory_space<vmem>>, vector<16x16x16xf32>
    %68 = arith.maximumf %66, %67 : vector<16x16x16xf32>
    %69 = vector.shape_cast %68 : vector<16x16x16xf32> to vector<256x16xf32>
    %70 = vector.extract_strided_slice %13 {offsets = [16, 0], sizes = [16, 32], strides = [1, 1]} : vector<64x32xf32> to vector<16x32xf32>
    %cst_89 = arith.constant dense<0.000000e+00> : vector<256x32xf32>
    %71 = tpu.matmul %69, %70, %cst_89 {dimension_numbers = #tpu.dot_dimension_numbers<[1], [0], [0], [1], [0, 0, 1, 1], [], []>} : vector<256x16xf32>, vector<16x32xf32>, vector<256x32xf32> -> vector<256x32xf32>
    %72 = arith.addf %15, %71 : vector<256x32xf32>
    %c2_90 = arith.constant 2 : index
    %c2_91 = arith.constant 2 : index
    %c0_92 = arith.constant 0 : index
    %73 = vector.load %arg7[%c2_90, %c2_91, %c0_92] : memref<20x20x16xf32, #tpu.memory_space<vmem>>, vector<16x16x16xf32>
    tpu.vector_store %arg7[%c2_90, %c2_91, %c0_92], %68 {strides = array<i32>} : memref<20x20x16xf32, #tpu.memory_space<vmem>>, vector<16x16x16xf32>,
    %c0_93 = arith.constant 0 : index
    %c0_94 = arith.constant 0 : index
    %c0_95 = arith.constant 0 : index
    %74 = vector.load %arg7[%c0_93, %c0_94, %c0_95] : memref<20x20x16xf32, #tpu.memory_space<vmem>>, vector<16x16x16xf32>
    %c0_96 = arith.constant 0 : index
    %c1_97 = arith.constant 1 : index
    %c0_98 = arith.constant 0 : index
    %75 = vector.load %arg7[%c0_96, %c1_97, %c0_98] : memref<20x20x16xf32, #tpu.memory_space<vmem>>, vector<16x16x16xf32>
    %76 = arith.maximumf %74, %75 : vector<16x16x16xf32>
    %c0_99 = arith.constant 0 : index
    %c2_100 = arith.constant 2 : index
    %c0_101 = arith.constant 0 : index
    %77 = vector.load %arg7[%c0_99, %c2_100, %c0_101] : memref<20x20x16xf32, #tpu.memory_space<vmem>>, vector<16x16x16xf32>
    %78 = arith.maximumf %76, %77 : vector<16x16x16xf32>
    %c0_102 = arith.constant 0 : index
    %c3_103 = arith.constant 3 : index
    %c0_104 = arith.constant 0 : index
    %79 = vector.load %arg7[%c0_102, %c3_103, %c0_104] : memref<20x20x16xf32, #tpu.memory_space<vmem>>, vector<16x16x16xf32>
    %80 = arith.maximumf %78, %79 : vector<16x16x16xf32>
    %c0_105 = arith.constant 0 : index
    %c4_106 = arith.constant 4 : index
    %c0_107 = arith.constant 0 : index
    %81 = vector.load %arg7[%c0_105, %c4_106, %c0_107] : memref<20x20x16xf32, #tpu.memory_space<vmem>>, vector<16x16x16xf32>
    %82 = arith.maximumf %80, %81 : vector<16x16x16xf32>
    %c1_108 = arith.constant 1 : index
    %c0_109 = arith.constant 0 : index
    %c0_110 = arith.constant 0 : index
    %83 = vector.load %arg7[%c1_108, %c0_109, %c0_110] : memref<20x20x16xf32, #tpu.memory_space<vmem>>, vector<16x16x16xf32>
    %84 = arith.maximumf %82, %83 : vector<16x16x16xf32>
    %c1_111 = arith.constant 1 : index
    %c1_112 = arith.constant 1 : index
    %c0_113 = arith.constant 0 : index
    %85 = vector.load %arg7[%c1_111, %c1_112, %c0_113] : memref<20x20x16xf32, #tpu.memory_space<vmem>>, vector<16x16x16xf32>
    %86 = arith.maximumf %84, %85 : vector<16x16x16xf32>
    %c1_114 = arith.constant 1 : index
    %c2_115 = arith.constant 2 : index
    %c0_116 = arith.constant 0 : index
    %87 = vector.load %arg7[%c1_114, %c2_115, %c0_116] : memref<20x20x16xf32, #tpu.memory_space<vmem>>, vector<16x16x16xf32>
    %88 = arith.maximumf %86, %87 : vector<16x16x16xf32>
    %c1_117 = arith.constant 1 : index
    %c3_118 = arith.constant 3 : index
    %c0_119 = arith.constant 0 : index
    %89 = vector.load %arg7[%c1_117, %c3_118, %c0_119] : memref<20x20x16xf32, #tpu.memory_space<vmem>>, vector<16x16x16xf32>
    %90 = arith.maximumf %88, %89 : vector<16x16x16xf32>
    %c1_120 = arith.constant 1 : index
    %c4_121 = arith.constant 4 : index
    %c0_122 = arith.constant 0 : index
    %91 = vector.load %arg7[%c1_120, %c4_121, %c0_122] : memref<20x20x16xf32, #tpu.memory_space<vmem>>, vector<16x16x16xf32>
    %92 = arith.maximumf %90, %91 : vector<16x16x16xf32>
    %c2_123 = arith.constant 2 : index
    %c0_124 = arith.constant 0 : index
    %c0_125 = arith.constant 0 : index
    %93 = vector.load %arg7[%c2_123, %c0_124, %c0_125] : memref<20x20x16xf32, #tpu.memory_space<vmem>>, vector<16x16x16xf32>
    %94 = arith.maximumf %92, %93 : vector<16x16x16xf32>
    %c2_126 = arith.constant 2 : index
    %c1_127 = arith.constant 1 : index
    %c0_128 = arith.constant 0 : index
    %95 = vector.load %arg7[%c2_126, %c1_127, %c0_128] : memref<20x20x16xf32, #tpu.memory_space<vmem>>, vector<16x16x16xf32>
    %96 = arith.maximumf %94, %95 : vector<16x16x16xf32>
    %c2_129 = arith.constant 2 : index
    %c2_130 = arith.constant 2 : index
    %c0_131 = arith.constant 0 : index
    %97 = vector.load %arg7[%c2_129, %c2_130, %c0_131] : memref<20x20x16xf32, #tpu.memory_space<vmem>>, vector<16x16x16xf32>
    %98 = arith.maximumf %96, %97 : vector<16x16x16xf32>
    %c2_132 = arith.constant 2 : index
    %c3_133 = arith.constant 3 : index
    %c0_134 = arith.constant 0 : index
    %99 = vector.load %arg7[%c2_132, %c3_133, %c0_134] : memref<20x20x16xf32, #tpu.memory_space<vmem>>, vector<16x16x16xf32>
    %100 = arith.maximumf %98, %99 : vector<16x16x16xf32>
    %c2_135 = arith.constant 2 : index
    %c4_136 = arith.constant 4 : index
    %c0_137 = arith.constant 0 : index
    %101 = vector.load %arg7[%c2_135, %c4_136, %c0_137] : memref<20x20x16xf32, #tpu.memory_space<vmem>>, vector<16x16x16xf32>
    %102 = arith.maximumf %100, %101 : vector<16x16x16xf32>
    %c3_138 = arith.constant 3 : index
    %c0_139 = arith.constant 0 : index
    %c0_140 = arith.constant 0 : index
    %103 = vector.load %arg7[%c3_138, %c0_139, %c0_140] : memref<20x20x16xf32, #tpu.memory_space<vmem>>, vector<16x16x16xf32>
    %104 = arith.maximumf %102, %103 : vector<16x16x16xf32>
    %c3_141 = arith.constant 3 : index
    %c1_142 = arith.constant 1 : index
    %c0_143 = arith.constant 0 : index
    %105 = vector.load %arg7[%c3_141, %c1_142, %c0_143] : memref<20x20x16xf32, #tpu.memory_space<vmem>>, vector<16x16x16xf32>
    %106 = arith.maximumf %104, %105 : vector<16x16x16xf32>
    %c3_144 = arith.constant 3 : index
    %c2_145 = arith.constant 2 : index
    %c0_146 = arith.constant 0 : index
    %107 = vector.load %arg7[%c3_144, %c2_145, %c0_146] : memref<20x20x16xf32, #tpu.memory_space<vmem>>, vector<16x16x16xf32>
    %108 = arith.maximumf %106, %107 : vector<16x16x16xf32>
    %c3_147 = arith.constant 3 : index
    %c3_148 = arith.constant 3 : index
    %c0_149 = arith.constant 0 : index
    %109 = vector.load %arg7[%c3_147, %c3_148, %c0_149] : memref<20x20x16xf32, #tpu.memory_space<vmem>>, vector<16x16x16xf32>
    %110 = arith.maximumf %108, %109 : vector<16x16x16xf32>
    %c3_150 = arith.constant 3 : index
    %c4_151 = arith.constant 4 : index
    %c0_152 = arith.constant 0 : index
    %111 = vector.load %arg7[%c3_150, %c4_151, %c0_152] : memref<20x20x16xf32, #tpu.memory_space<vmem>>, vector<16x16x16xf32>
    %112 = arith.maximumf %110, %111 : vector<16x16x16xf32>
    %c4_153 = arith.constant 4 : index
    %c0_154 = arith.constant 0 : index
    %c0_155 = arith.constant 0 : index
    %113 = vector.load %arg7[%c4_153, %c0_154, %c0_155] : memref<20x20x16xf32, #tpu.memory_space<vmem>>, vector<16x16x16xf32>
    %114 = arith.maximumf %112, %113 : vector<16x16x16xf32>
    %c4_156 = arith.constant 4 : index
    %c1_157 = arith.constant 1 : index
    %c0_158 = arith.constant 0 : index
    %115 = vector.load %arg7[%c4_156, %c1_157, %c0_158] : memref<20x20x16xf32, #tpu.memory_space<vmem>>, vector<16x16x16xf32>
    %116 = arith.maximumf %114, %115 : vector<16x16x16xf32>
    %c4_159 = arith.constant 4 : index
    %c2_160 = arith.constant 2 : index
    %c0_161 = arith.constant 0 : index
    %117 = vector.load %arg7[%c4_159, %c2_160, %c0_161] : memref<20x20x16xf32, #tpu.memory_space<vmem>>, vector<16x16x16xf32>
    %118 = arith.maximumf %116, %117 : vector<16x16x16xf32>
    %c4_162 = arith.constant 4 : index
    %c3_163 = arith.constant 3 : index
    %c0_164 = arith.constant 0 : index
    %119 = vector.load %arg7[%c4_162, %c3_163, %c0_164] : memref<20x20x16xf32, #tpu.memory_space<vmem>>, vector<16x16x16xf32>
    %120 = arith.maximumf %118, %119 : vector<16x16x16xf32>
    %c4_165 = arith.constant 4 : index
    %c4_166 = arith.constant 4 : index
    %c0_167 = arith.constant 0 : index
    %121 = vector.load %arg7[%c4_165, %c4_166, %c0_167] : memref<20x20x16xf32, #tpu.memory_space<vmem>>, vector<16x16x16xf32>
    %122 = arith.maximumf %120, %121 : vector<16x16x16xf32>
    %123 = vector.shape_cast %122 : vector<16x16x16xf32> to vector<256x16xf32>
    %124 = vector.extract_strided_slice %13 {offsets = [32, 0], sizes = [16, 32], strides = [1, 1]} : vector<64x32xf32> to vector<16x32xf32>
    %cst_168 = arith.constant dense<0.000000e+00> : vector<256x32xf32>
    %125 = tpu.matmul %123, %124, %cst_168 {dimension_numbers = #tpu.dot_dimension_numbers<[1], [0], [0], [1], [0, 0, 1, 1], [], []>} : vector<256x16xf32>, vector<16x32xf32>, vector<256x32xf32> -> vector<256x32xf32>
    %126 = arith.addf %72, %125 : vector<256x32xf32>
    %c2_169 = arith.constant 2 : index
    %c2_170 = arith.constant 2 : index
    %c0_171 = arith.constant 0 : index
    %127 = vector.load %arg7[%c2_169, %c2_170, %c0_171] : memref<20x20x16xf32, #tpu.memory_space<vmem>>, vector<16x16x16xf32>
    tpu.vector_store %arg7[%c2_169, %c2_170, %c0_171], %122 {strides = array<i32>} : memref<20x20x16xf32, #tpu.memory_space<vmem>>, vector<16x16x16xf32>,
    %c0_172 = arith.constant 0 : index
    %c0_173 = arith.constant 0 : index
    %c0_174 = arith.constant 0 : index
    %128 = vector.load %arg7[%c0_172, %c0_173, %c0_174] : memref<20x20x16xf32, #tpu.memory_space<vmem>>, vector<16x16x16xf32>
    %c0_175 = arith.constant 0 : index
    %c1_176 = arith.constant 1 : index
    %c0_177 = arith.constant 0 : index
    %129 = vector.load %arg7[%c0_175, %c1_176, %c0_177] : memref<20x20x16xf32, #tpu.memory_space<vmem>>, vector<16x16x16xf32>
    %130 = arith.maximumf %128, %129 : vector<16x16x16xf32>
    %c0_178 = arith.constant 0 : index
    %c2_179 = arith.constant 2 : index
    %c0_180 = arith.constant 0 : index
    %131 = vector.load %arg7[%c0_178, %c2_179, %c0_180] : memref<20x20x16xf32, #tpu.memory_space<vmem>>, vector<16x16x16xf32>
    %132 = arith.maximumf %130, %131 : vector<16x16x16xf32>
    %c0_181 = arith.constant 0 : index
    %c3_182 = arith.constant 3 : index
    %c0_183 = arith.constant 0 : index
    %133 = vector.load %arg7[%c0_181, %c3_182, %c0_183] : memref<20x20x16xf32, #tpu.memory_space<vmem>>, vector<16x16x16xf32>
    %134 = arith.maximumf %132, %133 : vector<16x16x16xf32>
    %c0_184 = arith.constant 0 : index
    %c4_185 = arith.constant 4 : index
    %c0_186 = arith.constant 0 : index
    %135 = vector.load %arg7[%c0_184, %c4_185, %c0_186] : memref<20x20x16xf32, #tpu.memory_space<vmem>>, vector<16x16x16xf32>
    %136 = arith.maximumf %134, %135 : vector<16x16x16xf32>
    %c1_187 = arith.constant 1 : index
    %c0_188 = arith.constant 0 : index
    %c0_189 = arith.constant 0 : index
    %137 = vector.load %arg7[%c1_187, %c0_188, %c0_189] : memref<20x20x16xf32, #tpu.memory_space<vmem>>, vector<16x16x16xf32>
    %138 = arith.maximumf %136, %137 : vector<16x16x16xf32>
    %c1_190 = arith.constant 1 : index
    %c1_191 = arith.constant 1 : index
    %c0_192 = arith.constant 0 : index
    %139 = vector.load %arg7[%c1_190, %c1_191, %c0_192] : memref<20x20x16xf32, #tpu.memory_space<vmem>>, vector<16x16x16xf32>
    %140 = arith.maximumf %138, %139 : vector<16x16x16xf32>
    %c1_193 = arith.constant 1 : index
    %c2_194 = arith.constant 2 : index
    %c0_195 = arith.constant 0 : index
    %141 = vector.load %arg7[%c1_193, %c2_194, %c0_195] : memref<20x20x16xf32, #tpu.memory_space<vmem>>, vector<16x16x16xf32>
    %142 = arith.maximumf %140, %141 : vector<16x16x16xf32>
    %c1_196 = arith.constant 1 : index
    %c3_197 = arith.constant 3 : index
    %c0_198 = arith.constant 0 : index
    %143 = vector.load %arg7[%c1_196, %c3_197, %c0_198] : memref<20x20x16xf32, #tpu.memory_space<vmem>>, vector<16x16x16xf32>
    %144 = arith.maximumf %142, %143 : vector<16x16x16xf32>
    %c1_199 = arith.constant 1 : index
    %c4_200 = arith.constant 4 : index
    %c0_201 = arith.constant 0 : index
    %145 = vector.load %arg7[%c1_199, %c4_200, %c0_201] : memref<20x20x16xf32, #tpu.memory_space<vmem>>, vector<16x16x16xf32>
    %146 = arith.maximumf %144, %145 : vector<16x16x16xf32>
    %c2_202 = arith.constant 2 : index
    %c0_203 = arith.constant 0 : index
    %c0_204 = arith.constant 0 : index
    %147 = vector.load %arg7[%c2_202, %c0_203, %c0_204] : memref<20x20x16xf32, #tpu.memory_space<vmem>>, vector<16x16x16xf32>
    %148 = arith.maximumf %146, %147 : vector<16x16x16xf32>
    %c2_205 = arith.constant 2 : index
    %c1_206 = arith.constant 1 : index
    %c0_207 = arith.constant 0 : index
    %149 = vector.load %arg7[%c2_205, %c1_206, %c0_207] : memref<20x20x16xf32, #tpu.memory_space<vmem>>, vector<16x16x16xf32>
    %150 = arith.maximumf %148, %149 : vector<16x16x16xf32>
    %c2_208 = arith.constant 2 : index
    %c2_209 = arith.constant 2 : index
    %c0_210 = arith.constant 0 : index
    %151 = vector.load %arg7[%c2_208, %c2_209, %c0_210] : memref<20x20x16xf32, #tpu.memory_space<vmem>>, vector<16x16x16xf32>
    %152 = arith.maximumf %150, %151 : vector<16x16x16xf32>
    %c2_211 = arith.constant 2 : index
    %c3_212 = arith.constant 3 : index
    %c0_213 = arith.constant 0 : index
    %153 = vector.load %arg7[%c2_211, %c3_212, %c0_213] : memref<20x20x16xf32, #tpu.memory_space<vmem>>, vector<16x16x16xf32>
    %154 = arith.maximumf %152, %153 : vector<16x16x16xf32>
    %c2_214 = arith.constant 2 : index
    %c4_215 = arith.constant 4 : index
    %c0_216 = arith.constant 0 : index
    %155 = vector.load %arg7[%c2_214, %c4_215, %c0_216] : memref<20x20x16xf32, #tpu.memory_space<vmem>>, vector<16x16x16xf32>
    %156 = arith.maximumf %154, %155 : vector<16x16x16xf32>
    %c3_217 = arith.constant 3 : index
    %c0_218 = arith.constant 0 : index
    %c0_219 = arith.constant 0 : index
    %157 = vector.load %arg7[%c3_217, %c0_218, %c0_219] : memref<20x20x16xf32, #tpu.memory_space<vmem>>, vector<16x16x16xf32>
    %158 = arith.maximumf %156, %157 : vector<16x16x16xf32>
    %c3_220 = arith.constant 3 : index
    %c1_221 = arith.constant 1 : index
    %c0_222 = arith.constant 0 : index
    %159 = vector.load %arg7[%c3_220, %c1_221, %c0_222] : memref<20x20x16xf32, #tpu.memory_space<vmem>>, vector<16x16x16xf32>
    %160 = arith.maximumf %158, %159 : vector<16x16x16xf32>
    %c3_223 = arith.constant 3 : index
    %c2_224 = arith.constant 2 : index
    %c0_225 = arith.constant 0 : index
    %161 = vector.load %arg7[%c3_223, %c2_224, %c0_225] : memref<20x20x16xf32, #tpu.memory_space<vmem>>, vector<16x16x16xf32>
    %162 = arith.maximumf %160, %161 : vector<16x16x16xf32>
    %c3_226 = arith.constant 3 : index
    %c3_227 = arith.constant 3 : index
    %c0_228 = arith.constant 0 : index
    %163 = vector.load %arg7[%c3_226, %c3_227, %c0_228] : memref<20x20x16xf32, #tpu.memory_space<vmem>>, vector<16x16x16xf32>
    %164 = arith.maximumf %162, %163 : vector<16x16x16xf32>
    %c3_229 = arith.constant 3 : index
    %c4_230 = arith.constant 4 : index
    %c0_231 = arith.constant 0 : index
    %165 = vector.load %arg7[%c3_229, %c4_230, %c0_231] : memref<20x20x16xf32, #tpu.memory_space<vmem>>, vector<16x16x16xf32>
    %166 = arith.maximumf %164, %165 : vector<16x16x16xf32>
    %c4_232 = arith.constant 4 : index
    %c0_233 = arith.constant 0 : index
    %c0_234 = arith.constant 0 : index
    %167 = vector.load %arg7[%c4_232, %c0_233, %c0_234] : memref<20x20x16xf32, #tpu.memory_space<vmem>>, vector<16x16x16xf32>
    %168 = arith.maximumf %166, %167 : vector<16x16x16xf32>
    %c4_235 = arith.constant 4 : index
    %c1_236 = arith.constant 1 : index
    %c0_237 = arith.constant 0 : index
    %169 = vector.load %arg7[%c4_235, %c1_236, %c0_237] : memref<20x20x16xf32, #tpu.memory_space<vmem>>, vector<16x16x16xf32>
    %170 = arith.maximumf %168, %169 : vector<16x16x16xf32>
    %c4_238 = arith.constant 4 : index
    %c2_239 = arith.constant 2 : index
    %c0_240 = arith.constant 0 : index
    %171 = vector.load %arg7[%c4_238, %c2_239, %c0_240] : memref<20x20x16xf32, #tpu.memory_space<vmem>>, vector<16x16x16xf32>
    %172 = arith.maximumf %170, %171 : vector<16x16x16xf32>
    %c4_241 = arith.constant 4 : index
    %c3_242 = arith.constant 3 : index
    %c0_243 = arith.constant 0 : index
    %173 = vector.load %arg7[%c4_241, %c3_242, %c0_243] : memref<20x20x16xf32, #tpu.memory_space<vmem>>, vector<16x16x16xf32>
    %174 = arith.maximumf %172, %173 : vector<16x16x16xf32>
    %c4_244 = arith.constant 4 : index
    %c4_245 = arith.constant 4 : index
    %c0_246 = arith.constant 0 : index
    %175 = vector.load %arg7[%c4_244, %c4_245, %c0_246] : memref<20x20x16xf32, #tpu.memory_space<vmem>>, vector<16x16x16xf32>
    %176 = arith.maximumf %174, %175 : vector<16x16x16xf32>
    %177 = vector.shape_cast %176 : vector<16x16x16xf32> to vector<256x16xf32>
    %178 = vector.extract_strided_slice %13 {offsets = [48, 0], sizes = [16, 32], strides = [1, 1]} : vector<64x32xf32> to vector<16x32xf32>
    %cst_247 = arith.constant dense<0.000000e+00> : vector<256x32xf32>
    %179 = tpu.matmul %177, %178, %cst_247 {dimension_numbers = #tpu.dot_dimension_numbers<[1], [0], [0], [1], [0, 0, 1, 1], [], []>} : vector<256x16xf32>, vector<16x32xf32>, vector<256x32xf32> -> vector<256x32xf32>
    %180 = arith.addf %126, %179 : vector<256x32xf32>
    %c0_248 = arith.constant 0 : index
    %c0_249 = arith.constant 0 : index
    %181 = vector.load %arg5[%c0_248, %c0_249] : memref<1x32xf32, #tpu.memory_space<vmem>>, vector<1x32xf32>
    %182 = vector.broadcast %181 : vector<1x32xf32> to vector<256x32xf32>
    %183 = arith.addf %180, %182 : vector<256x32xf32>
    %184 = arith.negf %183 : vector<256x32xf32>
    %185 = math.exp %184 : vector<256x32xf32>
    %cst_250 = arith.constant 1.000000e+00 : f32
    %186 = vector.broadcast %cst_250 : f32 to vector<256x32xf32>
    %187 = arith.addf %186, %185 : vector<256x32xf32>
    %188 = arith.divf %186, %187 : vector<256x32xf32>
    %189 = arith.mulf %183, %188 : vector<256x32xf32>
    %190 = vector.shape_cast %189 : vector<256x32xf32> to vector<1x16x16x32xf32>
    %c0_251 = arith.constant 0 : index
    %c0_252 = arith.constant 0 : index
    %c0_253 = arith.constant 0 : index
    %c0_254 = arith.constant 0 : index
    %191 = vector.load %arg6[%c0_251, %c0_252, %c0_253, %c0_254] : memref<1x16x16x32xf32, #tpu.memory_space<vmem>>, vector<1x16x16x32xf32>
    tpu.vector_store %arg6[%c0_251, %c0_252, %c0_253, %c0_254], %190 {strides = array<i32>} : memref<1x16x16x32xf32, #tpu.memory_space<vmem>>, vector<1x16x16x32xf32>,
    return
  }
  func.func @transform_0(%arg0: i32) -> (i32, i32, i32, i32) {
    %c0_i32 = arith.constant 0 : i32
    %c0_i32_0 = arith.constant 0 : i32
    %c0_i32_1 = arith.constant 0 : i32
    %c0_i32_2 = arith.constant 0 : i32
    return %arg0, %c0_i32, %c0_i32_0, %c0_i32_1 : i32, i32, i32, i32
  }
  func.func @transform_1(%arg0: i32) -> (i32, i32) {
    %c0_i32 = arith.constant 0 : i32
    %c0_i32_0 = arith.constant 0 : i32
    %c0_i32_1 = arith.constant 0 : i32
    return %c0_i32, %c0_i32_0 : i32, i32
  }
  func.func @transform_2(%arg0: i32) -> (i32, i32) {
    %c0_i32 = arith.constant 0 : i32
    %c0_i32_0 = arith.constant 0 : i32
    %c0_i32_1 = arith.constant 0 : i32
    return %c0_i32, %c0_i32_0 : i32, i32
  }
  func.func @transform_3(%arg0: i32) -> (i32, i32) {
    %c0_i32 = arith.constant 0 : i32
    %c0_i32_0 = arith.constant 0 : i32
    %c0_i32_1 = arith.constant 0 : i32
    return %c0_i32, %c0_i32_0 : i32, i32
  }
  func.func @transform_4(%arg0: i32) -> (i32, i32) {
    %c0_i32 = arith.constant 0 : i32
    %c0_i32_0 = arith.constant 0 : i32
    %c0_i32_1 = arith.constant 0 : i32
    return %c0_i32, %c0_i32_0 : i32, i32
  }
  func.func @transform_5(%arg0: i32) -> (i32, i32, i32, i32) {
    %c0_i32 = arith.constant 0 : i32
    %c0_i32_0 = arith.constant 0 : i32
    %c0_i32_1 = arith.constant 0 : i32
    %c0_i32_2 = arith.constant 0 : i32
    return %arg0, %c0_i32, %c0_i32_0, %c0_i32_1 : i32, i32, i32, i32
  }
}

</mosaic_0001>

<llo_original>
// kernel: tpu_custom_call.1
$region0: #{tpu_custom_call.1}
  #allocation0 [shape = 'u32[]', space=smem, size = 0x4, offset = 0x4, fixed_abs, tag = 'smem constant byte address 0x4 - core index']
  #allocation1 [shape = 'u32[72,128]{1,0:T(1,128)}', space=vmem, size = 0x9000, scoped, tag = 'internal scratch']
  #allocation2 [shape = 'f32[20,20,16]{2,1,0:T(8,128)}', space=vmem, size = 0x3c000, scoped, tag = 'scratch operand']
  %s0 = inlined_call_operand.hbm [shape: f32[2,16,16,32], index: 0, kind: input, shape index: {}]
  %s1 = inlined_call_operand.vmem [shape: f32[32,16], index: 1, kind: input, shape index: {}]
  %s2 = inlined_call_operand.vmem [shape: f32[1,16], index: 2, kind: input, shape index: {}]
  %s3 = inlined_call_operand.vmem [shape: f32[64,32], index: 3, kind: input, shape index: {}]
  %s4 = inlined_call_operand.vmem [shape: f32[1,32], index: 4, kind: input, shape index: {}]
  %s5 = inlined_call_operand.hbm [shape: f32[2,16,16,32], index: 5, kind: output, shape index: {}]
  %s6 = sld [smem:[#allocation0]]
  $region57: #{tpu_custom_call.1} parent=0
    _
  %s8 = ssub.s32 1, %s6
  %s9 = scalar_select 0, %s8, %s6
  $region1: #{tpu_custom_call.1} parent=0
    #allocation3 [shape = 'u8[262144]{0}', space=vmem, size = 0x40000, scoped, tag = 'input window, operand 0']
    #allocation4 [shape = 's32[2]{0}', space=sflag, size = 0x8, scoped, tag = 'scoped memory for tpu_custom_call.1']
    #allocation5 [shape = 's32[2]{0}', space=sflag, size = 0x8, scoped, tag = 'scoped memory for tpu_custom_call.1']
    #allocation6 [shape = 'u8[262144]{0}', space=vmem, size = 0x40000, scoped, tag = 'output window, operand 0']
    %10 = vsyncpa [#allocation4], 0
    %s11 = scalar_lea.sflag [#allocation4], 1
    %12 = vsyncpa %s11, 0
    %13 = vsyncpa [#allocation5], 0
    %s14 = scalar_lea.sflag [#allocation5], 1
    %15 = vsyncpa %s14, 0
    loop: start=0, step=1, limit=4
    $region2: #{tpu_custom_call.1} parent=1 // loop_pre_header
      _
    $region3: #{tpu_custom_call.1} parent=1 // loop_header
      %s17 = sphi 0, %s21
      %p18 = scmp.ge.s32.totalorder %s17, 4
      %s27 = sphi 0, %s29
      %s30 = sphi 0, %s27
      %s31 = sphi 0, %s30
      %s47 = sphi 0, %s31
      %s51 = sphi 0, %s51
      %s53 = sphi 0, %s51
      %s54 = sphi 0, %s53
      %s68 = sphi 0, %s54
      %s72 = sphi 0, %s72
      %s74 = sphi 0, %s72
      %s75 = sphi 0, %s74
      %s89 = sphi 0, %s75
      %s93 = sphi 0, %s93
      %s95 = sphi 0, %s93
      %s96 = sphi 0, %s95
      %s110 = sphi 0, %s96
      %s114 = sphi 0, %s114
      %s116 = sphi 0, %s114
      %s117 = sphi 0, %s116
      %s131 = sphi 0, %s117
      %s137 = sphi 0, %s139
      %s140 = sphi 0, %s137
      %s141 = sphi 0, %s140
      %s157 = sphi 0, %s141
    $region4: #{tpu_custom_call.1} parent=1 // loop_header_branch
      %20 = sbr.rel (%p18) target = $region8
    $region5: #{tpu_custom_call.1} parent=1 // loop_body
      %s22 = ssub.s32 %s17, 1
      %s23 = ssub.s32 %s17, 2
      %s24 = sadd.s32 %s17, 1
      %s25 = ssub.s32 %s17, %s24
      %p26 = scmp.eq.s32.totalorder %s25, 0
      %s28 = sadd.s32 %s27, 1
      %s29 = scalar_select %p26, %s27, %s28
      %p32 = pneg %p26
      %p33 = scmp.eq.s32.totalorder %s17, 1
      %p34 = por %p32, %p33
      %p35 = scmp.ne.s32.totalorder %s27, %s30
      %p36 = scmp.eq.s32.totalorder %s17, 0
      %p37 = por %p35, %p36
      %p38 = scmp.ne.s32.totalorder %s27, %s30
      %p39 = scmp.eq.s32.totalorder %s22, 1
      %p40 = por %p38, %p39
      %p41 = scmp.ne.s32.totalorder %s30, %s31
      %p42 = scmp.eq.s32.totalorder %s22, 0
      %p43 = por %p41, %p42
      %p44 = scmp.ne.s32.totalorder %s30, %s31
      %p45 = scmp.eq.s32.totalorder %s23, 1
      %p46 = por %p44, %p45
      %p48 = scmp.ne.s32.totalorder %s31, %s47
      %p49 = scmp.eq.s32.totalorder %s23, 0
      %p50 = por %p48, %p49
      %s52 = sadd.s32 %s51, 1
      %p55 = scmp.eq.s32.totalorder %s17, 1
      %p56 = scmp.ne.s32.totalorder %s51, %s53
      %p57 = scmp.eq.s32.totalorder %s17, 0
      %p58 = por %p56, %p57
      %p59 = scmp.ne.s32.totalorder %s51, %s53
      %p60 = scmp.eq.s32.totalorder %s22, 1
      %p61 = por %p59, %p60
      %p62 = scmp.ne.s32.totalorder %s53, %s54
      %p63 = scmp.eq.s32.totalorder %s22, 0
      %p64 = por %p62, %p63
      %p65 = scmp.ne.s32.totalorder %s53, %s54
      %p66 = scmp.eq.s32.totalorder %s23, 1
      %p67 = por %p65, %p66
      %p69 = scmp.ne.s32.totalorder %s54, %s68
      %p70 = scmp.eq.s32.totalorder %s23, 0
      %p71 = por %p69, %p70
      %s73 = sadd.s32 %s72, 1
      %p76 = scmp.eq.s32.totalorder %s17, 1
      %p77 = scmp.ne.s32.totalorder %s72, %s74
      %p78 = scmp.eq.s32.totalorder %s17, 0
      %p79 = por %p77, %p78
      %p80 = scmp.ne.s32.totalorder %s72, %s74
      %p81 = scmp.eq.s32.totalorder %s22, 1
      %p82 = por %p80, %p81
      %p83 = scmp.ne.s32.totalorder %s74, %s75
      %p84 = scmp.eq.s32.totalorder %s22, 0
      %p85 = por %p83, %p84
      %p86 = scmp.ne.s32.totalorder %s74, %s75
      %p87 = scmp.eq.s32.totalorder %s23, 1
      %p88 = por %p86, %p87
      %p90 = scmp.ne.s32.totalorder %s75, %s89
      %p91 = scmp.eq.s32.totalorder %s23, 0
      %p92 = por %p90, %p91
      %s94 = sadd.s32 %s93, 1
      %p97 = scmp.eq.s32.totalorder %s17, 1
      %p98 = scmp.ne.s32.totalorder %s93, %s95
      %p99 = scmp.eq.s32.totalorder %s17, 0
      %p100 = por %p98, %p99
      %p101 = scmp.ne.s32.totalorder %s93, %s95
      %p102 = scmp.eq.s32.totalorder %s22, 1
      %p103 = por %p101, %p102
      %p104 = scmp.ne.s32.totalorder %s95, %s96
      %p105 = scmp.eq.s32.totalorder %s22, 0
      %p106 = por %p104, %p105
      %p107 = scmp.ne.s32.totalorder %s95, %s96
      %p108 = scmp.eq.s32.totalorder %s23, 1
      %p109 = por %p107, %p108
      %p111 = scmp.ne.s32.totalorder %s96, %s110
      %p112 = scmp.eq.s32.totalorder %s23, 0
      %p113 = por %p111, %p112
      %s115 = sadd.s32 %s114, 1
      %p118 = scmp.eq.s32.totalorder %s17, 1
      %p119 = scmp.ne.s32.totalorder %s114, %s116
      %p120 = scmp.eq.s32.totalorder %s17, 0
      %p121 = por %p119, %p120
      %p122 = scmp.ne.s32.totalorder %s114, %s116
      %p123 = scmp.eq.s32.totalorder %s22, 1
      %p124 = por %p122, %p123
      %p125 = scmp.ne.s32.totalorder %s116, %s117
      %p126 = scmp.eq.s32.totalorder %s22, 0
      %p127 = por %p125, %p126
      %p128 = scmp.ne.s32.totalorder %s116, %s117
      %p129 = scmp.eq.s32.totalorder %s23, 1
      %p130 = por %p128, %p129
      %p132 = scmp.ne.s32.totalorder %s117, %s131
      %p133 = scmp.eq.s32.totalorder %s23, 0
      %p134 = por %p132, %p133
      %s135 = ssub.s32 %s17, %s24
      %p136 = scmp.eq.s32.totalorder %s135, 0
      %s138 = sadd.s32 %s137, 1
      %s139 = scalar_select %p136, %s137, %s138
      %p142 = pneg %p136
      %p143 = scmp.eq.s32.totalorder %s17, 1
      %p144 = por %p142, %p143
      %p145 = scmp.ne.s32.totalorder %s137, %s140
      %p146 = scmp.eq.s32.totalorder %s17, 0
      %p147 = por %p145, %p146
      %p148 = scmp.ne.s32.totalorder %s137, %s140
      %p149 = scmp.eq.s32.totalorder %s22, 1
      %p150 = por %p148, %p149
      %p151 = scmp.ne.s32.totalorder %s140, %s141
      %p152 = scmp.eq.s32.totalorder %s22, 0
      %p153 = por %p151, %p152
      %p154 = scmp.ne.s32.totalorder %s140, %s141
      %p155 = scmp.eq.s32.totalorder %s23, 1
      %p156 = por %p154, %p155
      %p158 = scmp.ne.s32.totalorder %s141, %s157
      %p159 = scmp.eq.s32.totalorder %s23, 0
      %p160 = por %p158, %p159
      %p161 = scmp.le.s32.totalorder 1, %s17
      %p162 = scmp.lt.s32.totalorder %s17, 3
      %p163 = pnand %p161, %p162
      %p164 = pneg %p163
      // Predicated region
      $region9: #{tpu_custom_call.1} parent=5 // pred_check
        _
      $region10: #{tpu_custom_call.1} parent=5 // pred_check_branch
        %166 = sbr.rel (%p163) target = $region12
      $region11: #{tpu_custom_call.1} parent=5 // pred_region
        %s167 = ssub.s32 %s17, 1
        // Predicated region
        $region13: #{tpu_custom_call.1} parent=11 // pred_check
          %p168 = pneg %p64
        $region14: #{tpu_custom_call.1} parent=11 // pred_check_branch
          %170 = sbr.rel (%p168) target = $region16
        $region15: #{tpu_custom_call.1} parent=11 // pred_region
          _
        $region16: #{tpu_custom_call.1} parent=11 // pred_fallthru
          _
        // Predicated region
        $region17: #{tpu_custom_call.1} parent=11 // pred_check
          %p171 = pneg %p85
        $region18: #{tpu_custom_call.1} parent=11 // pred_check_branch
          %173 = sbr.rel (%p171) target = $region20
        $region19: #{tpu_custom_call.1} parent=11 // pred_region
          _
        $region20: #{tpu_custom_call.1} parent=11 // pred_fallthru
          _
        // Predicated region
        $region21: #{tpu_custom_call.1} parent=11 // pred_check
          %p174 = pneg %p106
        $region22: #{tpu_custom_call.1} parent=11 // pred_check_branch
          %176 = sbr.rel (%p174) target = $region24
        $region23: #{tpu_custom_call.1} parent=11 // pred_region
          _
        $region24: #{tpu_custom_call.1} parent=11 // pred_fallthru
          _
        // Predicated region
        $region25: #{tpu_custom_call.1} parent=11 // pred_check
          %p177 = pneg %p127
        $region26: #{tpu_custom_call.1} parent=11 // pred_check_branch
          %179 = sbr.rel (%p177) target = $region28
        $region27: #{tpu_custom_call.1} parent=11 // pred_region
          _
        $region28: #{tpu_custom_call.1} parent=11 // pred_fallthru
          _
      $region12: #{tpu_custom_call.1} parent=5 // pred_fallthru
        _
      %p180 = scmp.lt.s32.totalorder %s17, 2
      // Predicated region
      $region29: #{tpu_custom_call.1} parent=5 // pred_check
        %p181 = pneg %p180
      $region30: #{tpu_custom_call.1} parent=5 // pred_check_branch
        %183 = sbr.rel (%p181) target = $region32
      $region31: #{tpu_custom_call.1} parent=5 // pred_region
        // Predicated region
        $region33: #{tpu_custom_call.1} parent=31 // pred_check
          %p184 = pneg %p37
        $region34: #{tpu_custom_call.1} parent=31 // pred_check_branch
          %186 = sbr.rel (%p184) target = $region36
        $region35: #{tpu_custom_call.1} parent=31 // pred_region
          %s187 = sand.u32 %s27, 1
          %s188 = scalar_lea.sflag [#allocation4], %s187
          %s189 = sand.u32 %s27, 1
          %s190 = smul.addr %s189, 256
          %s191 = scalar_lea.vmem [#allocation3], %s190
          %193 = vsyncadd %s188, 0
          %s194 = smul.addr %s17, 32
          %s195 = smul.addr %s194, 8
          %s196 = scalar_lea.hbm %s0, %s195
          %s197 = sshll.u32 %s196, 4
          %s198 = int_to_ptr.hbm [resolvable:$true] %s197
          %s199 = sshll.u32 %s191, 4
          %s200 = int_to_ptr.vmem [resolvable:$true] %s199
          %205 = dma.hbm_to_vmem [thread:$0]  %s198, 4096, %s200, %s188, 128, 128, 8
        $region36: #{tpu_custom_call.1} parent=31 // pred_fallthru
          _
      $region32: #{tpu_custom_call.1} parent=5 // pred_fallthru
        _
      %p206 = scmp.le.s32.totalorder 1, %s17
      %p207 = scmp.lt.s32.totalorder %s17, 3
      %p208 = pnand %p206, %p207
      %p209 = pneg %p208
      // Predicated region
      $region37: #{tpu_custom_call.1} parent=5 // pred_check
        _
      $region38: #{tpu_custom_call.1} parent=5 // pred_check_branch
        %211 = sbr.rel (%p208) target = $region40
      $region39: #{tpu_custom_call.1} parent=5 // pred_region
        %s212 = ssub.s32 %s17, 1
        %s213 = sand.u32 %s30, 1
        %s214 = scalar_lea.sflag [#allocation4], %s213
        %s215 = sand.u32 %s30, 1
        %s216 = smul.addr %s215, 256
        %s217 = scalar_lea.vmem [#allocation3], %s216
        // Predicated region
        $region41: #{tpu_custom_call.1} parent=39 // pred_check
          %p218 = pneg %p43
        $region42: #{tpu_custom_call.1} parent=39 // pred_check_branch
          %220 = sbr.rel (%p218) target = $region44
        $region43: #{tpu_custom_call.1} parent=39 // pred_region
          %222 = dma.done %s214, 4096
        $region44: #{tpu_custom_call.1} parent=39 // pred_fallthru
          _
        %s223 = sand.u32 %s30, 1
        %s224 = scalar_lea.sflag [#allocation4], %s223
        %s225 = sand.u32 %s30, 1
        %s226 = smul.addr %s225, 256
        %s227 = scalar_lea.vmem [#allocation3], %s226
        %p228 = pneg %p43
        %p229 = pneg %p40
        %p230 = pneg %p64
        %p231 = pneg %p61
        %p232 = pneg %p85
        %p233 = pneg %p82
        %p234 = pneg %p106
        %p235 = pneg %p103
        %p236 = pneg %p127
        %p237 = pneg %p124
        %p238 = pneg %p153
        %p239 = pneg %p150
        %s240 = sand.u32 %s140, 1
        %s241 = scalar_lea.sflag [#allocation5], %s240
        %s242 = sand.u32 %s140, 1
        %s243 = smul.addr %s242, 256
        %s244 = scalar_lea.vmem [#allocation6], %s243
        %v245 = vld [vmem:[%s217] sm:$0xff]
        %v246 = vld [vmem:[%s217 + $0x8] sm:$0xff]
        %v247 = vld [vmem:[%s217 + $0x10] sm:$0xff]
        %v248 = vld [vmem:[%s217 + $0x18] sm:$0xff]
        %v249 = vld [vmem:[%s217 + $0x20] sm:$0xff]
        %v250 = vld [vmem:[%s217 + $0x28] sm:$0xff]
        %v251 = vld [vmem:[%s217 + $0x30] sm:$0xff]
        %v252 = vld [vmem:[%s217 + $0x38] sm:$0xff]
        %v253 = vld [vmem:[%s217 + $0x40] sm:$0xff]
        %v254 = vld [vmem:[%s217 + $0x48] sm:$0xff]
        %v255 = vld [vmem:[%s217 + $0x50] sm:$0xff]
        %v256 = vld [vmem:[%s217 + $0x58] sm:$0xff]
        %v257 = vld [vmem:[%s217 + $0x60] sm:$0xff]
        %v258 = vld [vmem:[%s217 + $0x68] sm:$0xff]
        %v259 = vld [vmem:[%s217 + $0x70] sm:$0xff]
        %v260 = vld [vmem:[%s217 + $0x78] sm:$0xff]
        %v261 = vld [vmem:[%s217 + $0x80] sm:$0xff]
        %v262 = vld [vmem:[%s217 + $0x88] sm:$0xff]
        %v263 = vld [vmem:[%s217 + $0x90] sm:$0xff]
        %v264 = vld [vmem:[%s217 + $0x98] sm:$0xff]
        %v265 = vld [vmem:[%s217 + $0xa0] sm:$0xff]
        %v266 = vld [vmem:[%s217 + $0xa8] sm:$0xff]
        %v267 = vld [vmem:[%s217 + $0xb0] sm:$0xff]
        %v268 = vld [vmem:[%s217 + $0xb8] sm:$0xff]
        %v269 = vld [vmem:[%s217 + $0xc0] sm:$0xff]
        %v270 = vld [vmem:[%s217 + $0xc8] sm:$0xff]
        %v271 = vld [vmem:[%s217 + $0xd0] sm:$0xff]
        %v272 = vld [vmem:[%s217 + $0xd8] sm:$0xff]
        %v273 = vld [vmem:[%s217 + $0xe0] sm:$0xff]
        %v274 = vld [vmem:[%s217 + $0xe8] sm:$0xff]
        %v275 = vld [vmem:[%s217 + $0xf0] sm:$0xff]
        %v276 = vld [vmem:[%s217 + $0xf8] sm:$0xff]
        %v277 = vld [vmem:[%s1] sm:$0xff]
        %v278 = vld [vmem:[%s1 + $0x8] sm:$0xff]
        %v279 = vld [vmem:[%s1 + $0x10] sm:$0xff]
        %v280 = vld [vmem:[%s1 + $0x18] sm:$0xff]
        %v281 = vld [vmem:[%s2] sm:$0x1]
        %v283 = vperm.slane %v281, 0
        %vm285 = vcmask 261120
        %v287 = vsel %vm285, %v245, 0
        %v290 = vsel %vm285, %v246, 0
        %v293 = vsel %vm285, %v247, 0
        %v296 = vsel %vm285, %v248, 0
        %v299 = vsel %vm285, %v249, 0
        %v302 = vsel %vm285, %v250, 0
        %v305 = vsel %vm285, %v251, 0
        %v308 = vsel %vm285, %v252, 0
        %v311 = vsel %vm285, %v253, 0
        %v314 = vsel %vm285, %v254, 0
        %v317 = vsel %vm285, %v255, 0
        %v320 = vsel %vm285, %v256, 0
        %v323 = vsel %vm285, %v257, 0
        %v326 = vsel %vm285, %v258, 0
        %v329 = vsel %vm285, %v259, 0
        %v332 = vsel %vm285, %v260, 0
        %v335 = vsel %vm285, %v261, 0
        %v338 = vsel %vm285, %v262, 0
        %v341 = vsel %vm285, %v263, 0
        %v344 = vsel %vm285, %v264, 0
        %v347 = vsel %vm285, %v265, 0
        %v350 = vsel %vm285, %v266, 0
        %v353 = vsel %vm285, %v267, 0
        %v356 = vsel %vm285, %v268, 0
        %v359 = vsel %vm285, %v269, 0
        %v362 = vsel %vm285, %v270, 0
        %v365 = vsel %vm285, %v271, 0
        %v368 = vsel %vm285, %v272, 0
        %v371 = vsel %vm285, %v273, 0
        %v374 = vsel %vm285, %v274, 0
        %v377 = vsel %vm285, %v275, 0
        %v380 = vsel %vm285, %v276, 0
        %382 = vmatpush.msra.mxu0 0.0
        %383 = vmatpush.msra.mxu0 0.0
        %384 = vmatpush.msra.mxu0 0.0
        %385 = vmatpush.msra.mxu0 0.0
        %386 = vmatpush.msra.mxu0 0.0
        %387 = vmatpush.msra.mxu0 0.0
        %388 = vmatpush.msra.mxu0 0.0
        %389 = vmatpush.msra.mxu0 0.0
        %390 = vmatpush.msra.mxu0 0.0
        %391 = vmatpush.msra.mxu0 0.0
        %392 = vmatpush.msra.mxu0 0.0
        %393 = vmatpush.msra.mxu0 0.0
        %394 = vmatpush.msra.mxu0 %v280
        %395 = vmatpush.msra.mxu0 %v279
        %396 = vmatpush.msra.mxu0 %v278
        %397 = vmatpush.msra.mxu0 %v277
        %398 = vmatmul.f32.gmra.mxu0 %v287
        %v399 = vpop.f32.mrf.mxu0
        %v400 = vadd.f32 %v283, %v399
        %401 = vmatmul.f32.gmra.mxu0 %v290
        %v402 = vpop.f32.mrf.mxu0
        %v403 = vadd.f32 %v283, %v402
        %404 = vmatmul.f32.gmra.mxu0 %v293
        %v405 = vpop.f32.mrf.mxu0
        %v406 = vadd.f32 %v283, %v405
        %407 = vmatmul.f32.gmra.mxu0 %v296
        %v408 = vpop.f32.mrf.mxu0
        %v409 = vadd.f32 %v283, %v408
        %410 = vmatmul.f32.gmra.mxu0 %v299
        %v411 = vpop.f32.mrf.mxu0
        %v412 = vadd.f32 %v283, %v411
        %413 = vmatmul.f32.gmra.mxu0 %v302
        %v414 = vpop.f32.mrf.mxu0
        %v415 = vadd.f32 %v283, %v414
        %416 = vmatmul.f32.gmra.mxu0 %v305
        %v417 = vpop.f32.mrf.mxu0
        %v418 = vadd.f32 %v283, %v417
        %419 = vmatmul.f32.gmra.mxu0 %v308
        %v420 = vpop.f32.mrf.mxu0
        %v421 = vadd.f32 %v283, %v420
        %422 = vmatmul.f32.gmra.mxu0 %v311
        %v423 = vpop.f32.mrf.mxu0
        %v424 = vadd.f32 %v283, %v423
        %425 = vmatmul.f32.gmra.mxu0 %v314
        %v426 = vpop.f32.mrf.mxu0
        %v427 = vadd.f32 %v283, %v426
        %428 = vmatmul.f32.gmra.mxu0 %v317
        %v429 = vpop.f32.mrf.mxu0
        %v430 = vadd.f32 %v283, %v429
        %431 = vmatmul.f32.gmra.mxu0 %v320
        %v432 = vpop.f32.mrf.mxu0
        %v433 = vadd.f32 %v283, %v432
        %434 = vmatmul.f32.gmra.mxu0 %v323
        %v435 = vpop.f32.mrf.mxu0
        %v436 = vadd.f32 %v283, %v435
        %437 = vmatmul.f32.gmra.mxu0 %v326
        %v438 = vpop.f32.mrf.mxu0
        %v439 = vadd.f32 %v283, %v438
        %440 = vmatmul.f32.gmra.mxu0 %v329
        %v441 = vpop.f32.mrf.mxu0
        %v442 = vadd.f32 %v283, %v441
        %443 = vmatmul.f32.gmra.mxu0 %v332
        %v444 = vpop.f32.mrf.mxu0
        %v445 = vadd.f32 %v283, %v444
        %446 = vmatmul.f32.gmra.mxu0 %v335
        %v447 = vpop.f32.mrf.mxu0
        %v448 = vadd.f32 %v283, %v447
        %449 = vmatmul.f32.gmra.mxu0 %v338
        %v450 = vpop.f32.mrf.mxu0
        %v451 = vadd.f32 %v283, %v450
        %452 = vmatmul.f32.gmra.mxu0 %v341
        %v453 = vpop.f32.mrf.mxu0
        %v454 = vadd.f32 %v283, %v453
        %455 = vmatmul.f32.gmra.mxu0 %v344
        %v456 = vpop.f32.mrf.mxu0
        %v457 = vadd.f32 %v283, %v456
        %458 = vmatmul.f32.gmra.mxu0 %v347
        %v459 = vpop.f32.mrf.mxu0
        %v460 = vadd.f32 %v283, %v459
        %461 = vmatmul.f32.gmra.mxu0 %v350
        %v462 = vpop.f32.mrf.mxu0
        %v463 = vadd.f32 %v283, %v462
        %464 = vmatmul.f32.gmra.mxu0 %v353
        %v465 = vpop.f32.mrf.mxu0
        %v466 = vadd.f32 %v283, %v465
        %467 = vmatmul.f32.gmra.mxu0 %v356
        %v468 = vpop.f32.mrf.mxu0
        %v469 = vadd.f32 %v283, %v468
        %470 = vmatmul.f32.gmra.mxu0 %v359
        %v471 = vpop.f32.mrf.mxu0
        %v472 = vadd.f32 %v283, %v471
        %473 = vmatmul.f32.gmra.mxu0 %v362
        %v474 = vpop.f32.mrf.mxu0
        %v475 = vadd.f32 %v283, %v474
        %476 = vmatmul.f32.gmra.mxu0 %v365
        %v477 = vpop.f32.mrf.mxu0
        %v478 = vadd.f32 %v283, %v477
        %479 = vmatmul.f32.gmra.mxu0 %v368
        %v480 = vpop.f32.mrf.mxu0
        %v481 = vadd.f32 %v283, %v480
        %482 = vmatmul.f32.gmra.mxu0 %v371
        %v483 = vpop.f32.mrf.mxu0
        %v484 = vadd.f32 %v283, %v483
        %485 = vmatmul.f32.gmra.mxu0 %v374
        %v486 = vpop.f32.mrf.mxu0
        %v487 = vadd.f32 %v283, %v486
        %488 = vmatmul.f32.gmra.mxu0 %v377
        %v489 = vpop.f32.mrf.mxu0
        %v490 = vadd.f32 %v283, %v489
        %491 = vmatmul.f32.gmra.mxu0 %v380
        %v492 = vpop.f32.mrf.mxu0
        %v493 = vadd.f32 %v283, %v492
        %494 = vdwg.mxu0
        %v495 = vxor.u32 %v400, 2147483648
        %v496 = vxor.u32 %v403, 2147483648
        %v497 = vxor.u32 %v406, 2147483648
        %v498 = vxor.u32 %v409, 2147483648
        %v499 = vxor.u32 %v412, 2147483648
        %v500 = vxor.u32 %v415, 2147483648
        %v501 = vxor.u32 %v418, 2147483648
        %v502 = vxor.u32 %v421, 2147483648
        %v503 = vxor.u32 %v424, 2147483648
        %v504 = vxor.u32 %v427, 2147483648
        %v505 = vxor.u32 %v430, 2147483648
        %v506 = vxor.u32 %v433, 2147483648
        %v507 = vxor.u32 %v436, 2147483648
        %v508 = vxor.u32 %v439, 2147483648
        %v509 = vxor.u32 %v442, 2147483648
        %v510 = vxor.u32 %v445, 2147483648
        %v511 = vxor.u32 %v448, 2147483648
        %v512 = vxor.u32 %v451, 2147483648
        %v513 = vxor.u32 %v454, 2147483648
        %v514 = vxor.u32 %v457, 2147483648
        %v515 = vxor.u32 %v460, 2147483648
        %v516 = vxor.u32 %v463, 2147483648
        %v517 = vxor.u32 %v466, 2147483648
        %v518 = vxor.u32 %v469, 2147483648
        %v519 = vxor.u32 %v472, 2147483648
        %v520 = vxor.u32 %v475, 2147483648
        %v521 = vxor.u32 %v478, 2147483648
        %v522 = vxor.u32 %v481, 2147483648
        %v523 = vxor.u32 %v484, 2147483648
        %v524 = vxor.u32 %v487, 2147483648
        %v525 = vxor.u32 %v490, 2147483648
        %v526 = vxor.u32 %v493, 2147483648
        %v527 = vmul.f32 %v495, 1.442695
        %v528 = vpow.pop %v527
        %v529 = vmul.f32 %v496, 1.442695
        %v530 = vpow.pop %v529
        %v531 = vmul.f32 %v497, 1.442695
        %v532 = vpow.pop %v531
        %v533 = vmul.f32 %v498, 1.442695
        %v534 = vpow.pop %v533
        %v535 = vmul.f32 %v499, 1.442695
        %v536 = vpow.pop %v535
        %v537 = vmul.f32 %v500, 1.442695
        %v538 = vpow.pop %v537
        %v539 = vmul.f32 %v501, 1.442695
        %v540 = vpow.pop %v539
        %v541 = vmul.f32 %v502, 1.442695
        %v542 = vpow.pop %v541
        %v543 = vmul.f32 %v503, 1.442695
        %v544 = vpow.pop %v543
        %v545 = vmul.f32 %v504, 1.442695
        %v546 = vpow.pop %v545
        %v547 = vmul.f32 %v505, 1.442695
        %v548 = vpow.pop %v547
        %v549 = vmul.f32 %v506, 1.442695
        %v550 = vpow.pop %v549
        %v551 = vmul.f32 %v507, 1.442695
        %v552 = vpow.pop %v551
        %v553 = vmul.f32 %v508, 1.442695
        %v554 = vpow.pop %v553
        %v555 = vmul.f32 %v509, 1.442695
        %v556 = vpow.pop %v555
        %v557 = vmul.f32 %v510, 1.442695
        %v558 = vpow.pop %v557
        %v559 = vmul.f32 %v511, 1.442695
        %v560 = vpow.pop %v559
        %v561 = vmul.f32 %v512, 1.442695
        %v562 = vpow.pop %v561
        %v563 = vmul.f32 %v513, 1.442695
        %v564 = vpow.pop %v563
        %v565 = vmul.f32 %v514, 1.442695
        %v566 = vpow.pop %v565
        %v567 = vmul.f32 %v515, 1.442695
        %v568 = vpow.pop %v567
        %v569 = vmul.f32 %v516, 1.442695
        %v570 = vpow.pop %v569
        %v571 = vmul.f32 %v517, 1.442695
        %v572 = vpow.pop %v571
        %v573 = vmul.f32 %v518, 1.442695
        %v574 = vpow.pop %v573
        %v575 = vmul.f32 %v519, 1.442695
        %v576 = vpow.pop %v575
        %v577 = vmul.f32 %v520, 1.442695
        %v578 = vpow.pop %v577
        %v579 = vmul.f32 %v521, 1.442695
        %v580 = vpow.pop %v579
        %v581 = vmul.f32 %v522, 1.442695
        %v582 = vpow.pop %v581
        %v583 = vmul.f32 %v523, 1.442695
        %v584 = vpow.pop %v583
        %v585 = vmul.f32 %v524, 1.442695
        %v586 = vpow.pop %v585
        %v587 = vmul.f32 %v525, 1.442695
        %v588 = vpow.pop %v587
        %v589 = vmul.f32 %v526, 1.442695
        %v590 = vpow.pop %v589
        %v591 = vadd.f32 %v528, 1.0
        %v592 = vadd.f32 %v530, 1.0
        %v593 = vadd.f32 %v532, 1.0
        %v594 = vadd.f32 %v534, 1.0
        %v595 = vadd.f32 %v536, 1.0
        %v596 = vadd.f32 %v538, 1.0
        %v597 = vadd.f32 %v540, 1.0
        %v598 = vadd.f32 %v542, 1.0
        %v599 = vadd.f32 %v544, 1.0
        %v600 = vadd.f32 %v546, 1.0
        %v601 = vadd.f32 %v548, 1.0
        %v602 = vadd.f32 %v550, 1.0
        %v603 = vadd.f32 %v552, 1.0
        %v604 = vadd.f32 %v554, 1.0
        %v605 = vadd.f32 %v556, 1.0
        %v606 = vadd.f32 %v558, 1.0
        %v607 = vadd.f32 %v560, 1.0
        %v608 = vadd.f32 %v562, 1.0
        %v609 = vadd.f32 %v564, 1.0
        %v610 = vadd.f32 %v566, 1.0
        %v611 = vadd.f32 %v568, 1.0
        %v612 = vadd.f32 %v570, 1.0
        %v613 = vadd.f32 %v572, 1.0
        %v614 = vadd.f32 %v574, 1.0
        %v615 = vadd.f32 %v576, 1.0
        %v616 = vadd.f32 %v578, 1.0
        %v617 = vadd.f32 %v580, 1.0
        %v618 = vadd.f32 %v582, 1.0
        %v619 = vadd.f32 %v584, 1.0
        %v620 = vadd.f32 %v586, 1.0
        %v621 = vadd.f32 %v588, 1.0
        %v622 = vadd.f32 %v590, 1.0
        %v623 = vrcp.pop %v591
        %v624 = vmul.f32 %v591, %v623
        %v625 = vsub.f32 1.0, %v624
        %v626 = vmul.f32 %v623, %v625
        %v627 = vadd.f32 %v623, %v626
        %vm628 = vweird.f32 %v591
        %vm629 = vweird.f32 %v623
        %vm630 = vmor %vm628, %vm629
        %v631 = vsel %vm630, %v623, %v627
        %v632 = vand.u32 2147483647, %v591
        %vm633 = vcmp.eq.f32.partialorder %v632, 8.507059e+37
        %v634 = vand.u32 %v591, 2147483648
        %v635 = vor.u32 1.1754944e-38, %v634
        %v636 = vsel %vm633, %v635, %v631
        %v637 = vmul.f32 1.0, %v636
        %v638 = vrcp.pop %v592
        %v639 = vmul.f32 %v592, %v638
        %v640 = vsub.f32 1.0, %v639
        %v641 = vmul.f32 %v638, %v640
        %v642 = vadd.f32 %v638, %v641
        %vm643 = vweird.f32 %v592
        %vm644 = vweird.f32 %v638
        %vm645 = vmor %vm643, %vm644
        %v646 = vsel %vm645, %v638, %v642
        %v647 = vand.u32 2147483647, %v592
        %vm648 = vcmp.eq.f32.partialorder %v647, 8.507059e+37
        %v649 = vand.u32 %v592, 2147483648
        %v650 = vor.u32 1.1754944e-38, %v649
        %v651 = vsel %vm648, %v650, %v646
        %v652 = vmul.f32 1.0, %v651
        %v653 = vrcp.pop %v593
        %v654 = vmul.f32 %v593, %v653
        %v655 = vsub.f32 1.0, %v654
        %v656 = vmul.f32 %v653, %v655
        %v657 = vadd.f32 %v653, %v656
        %vm658 = vweird.f32 %v593
        %vm659 = vweird.f32 %v653
        %vm660 = vmor %vm658, %vm659
        %v661 = vsel %vm660, %v653, %v657
        %v662 = vand.u32 2147483647, %v593
        %vm663 = vcmp.eq.f32.partialorder %v662, 8.507059e+37
        %v664 = vand.u32 %v593, 2147483648
        %v665 = vor.u32 1.1754944e-38, %v664
        %v666 = vsel %vm663, %v665, %v661
        %v667 = vmul.f32 1.0, %v666
        %v668 = vrcp.pop %v594
        %v669 = vmul.f32 %v594, %v668
        %v670 = vsub.f32 1.0, %v669
        %v671 = vmul.f32 %v668, %v670
        %v672 = vadd.f32 %v668, %v671
        %vm673 = vweird.f32 %v594
        %vm674 = vweird.f32 %v668
        %vm675 = vmor %vm673, %vm674
        %v676 = vsel %vm675, %v668, %v672
        %v677 = vand.u32 2147483647, %v594
        %vm678 = vcmp.eq.f32.partialorder %v677, 8.507059e+37
        %v679 = vand.u32 %v594, 2147483648
        %v680 = vor.u32 1.1754944e-38, %v679
        %v681 = vsel %vm678, %v680, %v676
        %v682 = vmul.f32 1.0, %v681
        %v683 = vrcp.pop %v595
        %v684 = vmul.f32 %v595, %v683
        %v685 = vsub.f32 1.0, %v684
        %v686 = vmul.f32 %v683, %v685
        %v687 = vadd.f32 %v683, %v686
        %vm688 = vweird.f32 %v595
        %vm689 = vweird.f32 %v683
        %vm690 = vmor %vm688, %vm689
        %v691 = vsel %vm690, %v683, %v687
        %v692 = vand.u32 2147483647, %v595
        %vm693 = vcmp.eq.f32.partialorder %v692, 8.507059e+37
        %v694 = vand.u32 %v595, 2147483648
        %v695 = vor.u32 1.1754944e-38, %v694
        %v696 = vsel %vm693, %v695, %v691
        %v697 = vmul.f32 1.0, %v696
        %v698 = vrcp.pop %v596
        %v699 = vmul.f32 %v596, %v698
        %v700 = vsub.f32 1.0, %v699
        %v701 = vmul.f32 %v698, %v700
        %v702 = vadd.f32 %v698, %v701
        %vm703 = vweird.f32 %v596
        %vm704 = vweird.f32 %v698
        %vm705 = vmor %vm703, %vm704
        %v706 = vsel %vm705, %v698, %v702
        %v707 = vand.u32 2147483647, %v596
        %vm708 = vcmp.eq.f32.partialorder %v707, 8.507059e+37
        %v709 = vand.u32 %v596, 2147483648
        %v710 = vor.u32 1.1754944e-38, %v709
        %v711 = vsel %vm708, %v710, %v706
        %v712 = vmul.f32 1.0, %v711
        %v713 = vrcp.pop %v597
        %v714 = vmul.f32 %v597, %v713
        %v715 = vsub.f32 1.0, %v714
        %v716 = vmul.f32 %v713, %v715
        %v717 = vadd.f32 %v713, %v716
        %vm718 = vweird.f32 %v597
        %vm719 = vweird.f32 %v713
        %vm720 = vmor %vm718, %vm719
        %v721 = vsel %vm720, %v713, %v717
        %v722 = vand.u32 2147483647, %v597
        %vm723 = vcmp.eq.f32.partialorder %v722, 8.507059e+37
        %v724 = vand.u32 %v597, 2147483648
        %v725 = vor.u32 1.1754944e-38, %v724
        %v726 = vsel %vm723, %v725, %v721
        %v727 = vmul.f32 1.0, %v726
        %v728 = vrcp.pop %v598
        %v729 = vmul.f32 %v598, %v728
        %v730 = vsub.f32 1.0, %v729
        %v731 = vmul.f32 %v728, %v730
        %v732 = vadd.f32 %v728, %v731
        %vm733 = vweird.f32 %v598
        %vm734 = vweird.f32 %v728
        %vm735 = vmor %vm733, %vm734
        %v736 = vsel %vm735, %v728, %v732
        %v737 = vand.u32 2147483647, %v598
        %vm738 = vcmp.eq.f32.partialorder %v737, 8.507059e+37
        %v739 = vand.u32 %v598, 2147483648
        %v740 = vor.u32 1.1754944e-38, %v739
        %v741 = vsel %vm738, %v740, %v736
        %v742 = vmul.f32 1.0, %v741
        %v743 = vrcp.pop %v599
        %v744 = vmul.f32 %v599, %v743
        %v745 = vsub.f32 1.0, %v744
        %v746 = vmul.f32 %v743, %v745
        %v747 = vadd.f32 %v743, %v746
        %vm748 = vweird.f32 %v599
        %vm749 = vweird.f32 %v743
        %vm750 = vmor %vm748, %vm749
        %v751 = vsel %vm750, %v743, %v747
        %v752 = vand.u32 2147483647, %v599
        %vm753 = vcmp.eq.f32.partialorder %v752, 8.507059e+37
        %v754 = vand.u32 %v599, 2147483648
        %v755 = vor.u32 1.1754944e-38, %v754
        %v756 = vsel %vm753, %v755, %v751
        %v757 = vmul.f32 1.0, %v756
        %v758 = vrcp.pop %v600
        %v759 = vmul.f32 %v600, %v758
        %v760 = vsub.f32 1.0, %v759
        %v761 = vmul.f32 %v758, %v760
        %v762 = vadd.f32 %v758, %v761
        %vm763 = vweird.f32 %v600
        %vm764 = vweird.f32 %v758
        %vm765 = vmor %vm763, %vm764
        %v766 = vsel %vm765, %v758, %v762
        %v767 = vand.u32 2147483647, %v600
        %vm768 = vcmp.eq.f32.partialorder %v767, 8.507059e+37
        %v769 = vand.u32 %v600, 2147483648
        %v770 = vor.u32 1.1754944e-38, %v769
        %v771 = vsel %vm768, %v770, %v766
        %v772 = vmul.f32 1.0, %v771
        %v773 = vrcp.pop %v601
        %v774 = vmul.f32 %v601, %v773
        %v775 = vsub.f32 1.0, %v774
        %v776 = vmul.f32 %v773, %v775
        %v777 = vadd.f32 %v773, %v776
        %vm778 = vweird.f32 %v601
        %vm779 = vweird.f32 %v773
        %vm780 = vmor %vm778, %vm779
        %v781 = vsel %vm780, %v773, %v777
        %v782 = vand.u32 2147483647, %v601
        %vm783 = vcmp.eq.f32.partialorder %v782, 8.507059e+37
        %v784 = vand.u32 %v601, 2147483648
        %v785 = vor.u32 1.1754944e-38, %v784
        %v786 = vsel %vm783, %v785, %v781
        %v787 = vmul.f32 1.0, %v786
        %v788 = vrcp.pop %v602
        %v789 = vmul.f32 %v602, %v788
        %v790 = vsub.f32 1.0, %v789
        %v791 = vmul.f32 %v788, %v790
        %v792 = vadd.f32 %v788, %v791
        %vm793 = vweird.f32 %v602
        %vm794 = vweird.f32 %v788
        %vm795 = vmor %vm793, %vm794
        %v796 = vsel %vm795, %v788, %v792
        %v797 = vand.u32 2147483647, %v602
        %vm798 = vcmp.eq.f32.partialorder %v797, 8.507059e+37
        %v799 = vand.u32 %v602, 2147483648
        %v800 = vor.u32 1.1754944e-38, %v799
        %v801 = vsel %vm798, %v800, %v796
        %v802 = vmul.f32 1.0, %v801
        %v803 = vrcp.pop %v603
        %v804 = vmul.f32 %v603, %v803
        %v805 = vsub.f32 1.0, %v804
        %v806 = vmul.f32 %v803, %v805
        %v807 = vadd.f32 %v803, %v806
        %vm808 = vweird.f32 %v603
        %vm809 = vweird.f32 %v803
        %vm810 = vmor %vm808, %vm809
        %v811 = vsel %vm810, %v803, %v807
        %v812 = vand.u32 2147483647, %v603
        %vm813 = vcmp.eq.f32.partialorder %v812, 8.507059e+37
        %v814 = vand.u32 %v603, 2147483648
        %v815 = vor.u32 1.1754944e-38, %v814
        %v816 = vsel %vm813, %v815, %v811
        %v817 = vmul.f32 1.0, %v816
        %v818 = vrcp.pop %v604
        %v819 = vmul.f32 %v604, %v818
        %v820 = vsub.f32 1.0, %v819
        %v821 = vmul.f32 %v818, %v820
        %v822 = vadd.f32 %v818, %v821
        %vm823 = vweird.f32 %v604
        %vm824 = vweird.f32 %v818
        %vm825 = vmor %vm823, %vm824
        %v826 = vsel %vm825, %v818, %v822
        %v827 = vand.u32 2147483647, %v604
        %vm828 = vcmp.eq.f32.partialorder %v827, 8.507059e+37
        %v829 = vand.u32 %v604, 2147483648
        %v830 = vor.u32 1.1754944e-38, %v829
        %v831 = vsel %vm828, %v830, %v826
        %v832 = vmul.f32 1.0, %v831
        %v833 = vrcp.pop %v605
        %v834 = vmul.f32 %v605, %v833
        %v835 = vsub.f32 1.0, %v834
        %v836 = vmul.f32 %v833, %v835
        %v837 = vadd.f32 %v833, %v836
        %vm838 = vweird.f32 %v605
        %vm839 = vweird.f32 %v833
        %vm840 = vmor %vm838, %vm839
        %v841 = vsel %vm840, %v833, %v837
        %v842 = vand.u32 2147483647, %v605
        %vm843 = vcmp.eq.f32.partialorder %v842, 8.507059e+37
        %v844 = vand.u32 %v605, 2147483648
        %v845 = vor.u32 1.1754944e-38, %v844
        %v846 = vsel %vm843, %v845, %v841
        %v847 = vmul.f32 1.0, %v846
        %v848 = vrcp.pop %v606
        %v849 = vmul.f32 %v606, %v848
        %v850 = vsub.f32 1.0, %v849
        %v851 = vmul.f32 %v848, %v850
        %v852 = vadd.f32 %v848, %v851
        %vm853 = vweird.f32 %v606
        %vm854 = vweird.f32 %v848
        %vm855 = vmor %vm853, %vm854
        %v856 = vsel %vm855, %v848, %v852
        %v857 = vand.u32 2147483647, %v606
        %vm858 = vcmp.eq.f32.partialorder %v857, 8.507059e+37
        %v859 = vand.u32 %v606, 2147483648
        %v860 = vor.u32 1.1754944e-38, %v859
        %v861 = vsel %vm858, %v860, %v856
        %v862 = vmul.f32 1.0, %v861
        %v863 = vrcp.pop %v607
        %v864 = vmul.f32 %v607, %v863
        %v865 = vsub.f32 1.0, %v864
        %v866 = vmul.f32 %v863, %v865
        %v867 = vadd.f32 %v863, %v866
        %vm868 = vweird.f32 %v607
        %vm869 = vweird.f32 %v863
        %vm870 = vmor %vm868, %vm869
        %v871 = vsel %vm870, %v863, %v867
        %v872 = vand.u32 2147483647, %v607
        %vm873 = vcmp.eq.f32.partialorder %v872, 8.507059e+37
        %v874 = vand.u32 %v607, 2147483648
        %v875 = vor.u32 1.1754944e-38, %v874
        %v876 = vsel %vm873, %v875, %v871
        %v877 = vmul.f32 1.0, %v876
        %v878 = vrcp.pop %v608
        %v879 = vmul.f32 %v608, %v878
        %v880 = vsub.f32 1.0, %v879
        %v881 = vmul.f32 %v878, %v880
        %v882 = vadd.f32 %v878, %v881
        %vm883 = vweird.f32 %v608
        %vm884 = vweird.f32 %v878
        %vm885 = vmor %vm883, %vm884
        %v886 = vsel %vm885, %v878, %v882
        %v887 = vand.u32 2147483647, %v608
        %vm888 = vcmp.eq.f32.partialorder %v887, 8.507059e+37
        %v889 = vand.u32 %v608, 2147483648
        %v890 = vor.u32 1.1754944e-38, %v889
        %v891 = vsel %vm888, %v890, %v886
        %v892 = vmul.f32 1.0, %v891
        %v893 = vrcp.pop %v609
        %v894 = vmul.f32 %v609, %v893
        %v895 = vsub.f32 1.0, %v894
        %v896 = vmul.f32 %v893, %v895
        %v897 = vadd.f32 %v893, %v896
        %vm898 = vweird.f32 %v609
        %vm899 = vweird.f32 %v893
        %vm900 = vmor %vm898, %vm899
        %v901 = vsel %vm900, %v893, %v897
        %v902 = vand.u32 2147483647, %v609
        %vm903 = vcmp.eq.f32.partialorder %v902, 8.507059e+37
        %v904 = vand.u32 %v609, 2147483648
        %v905 = vor.u32 1.1754944e-38, %v904
        %v906 = vsel %vm903, %v905, %v901
        %v907 = vmul.f32 1.0, %v906
        %v908 = vrcp.pop %v610
        %v909 = vmul.f32 %v610, %v908
        %v910 = vsub.f32 1.0, %v909
        %v911 = vmul.f32 %v908, %v910
        %v912 = vadd.f32 %v908, %v911
        %vm913 = vweird.f32 %v610
        %vm914 = vweird.f32 %v908
        %vm915 = vmor %vm913, %vm914
        %v916 = vsel %vm915, %v908, %v912
        %v917 = vand.u32 2147483647, %v610
        %vm918 = vcmp.eq.f32.partialorder %v917, 8.507059e+37
        %v919 = vand.u32 %v610, 2147483648
        %v920 = vor.u32 1.1754944e-38, %v919
        %v921 = vsel %vm918, %v920, %v916
        %v922 = vmul.f32 1.0, %v921
        %v923 = vrcp.pop %v611
        %v924 = vmul.f32 %v611, %v923
        %v925 = vsub.f32 1.0, %v924
        %v926 = vmul.f32 %v923, %v925
        %v927 = vadd.f32 %v923, %v926
        %vm928 = vweird.f32 %v611
        %vm929 = vweird.f32 %v923
        %vm930 = vmor %vm928, %vm929
        %v931 = vsel %vm930, %v923, %v927
        %v932 = vand.u32 2147483647, %v611
        %vm933 = vcmp.eq.f32.partialorder %v932, 8.507059e+37
        %v934 = vand.u32 %v611, 2147483648
        %v935 = vor.u32 1.1754944e-38, %v934
        %v936 = vsel %vm933, %v935, %v931
        %v937 = vmul.f32 1.0, %v936
        %v938 = vrcp.pop %v612
        %v939 = vmul.f32 %v612, %v938
        %v940 = vsub.f32 1.0, %v939
        %v941 = vmul.f32 %v938, %v940
        %v942 = vadd.f32 %v938, %v941
        %vm943 = vweird.f32 %v612
        %vm944 = vweird.f32 %v938
        %vm945 = vmor %vm943, %vm944
        %v946 = vsel %vm945, %v938, %v942
        %v947 = vand.u32 2147483647, %v612
        %vm948 = vcmp.eq.f32.partialorder %v947, 8.507059e+37
        %v949 = vand.u32 %v612, 2147483648
        %v950 = vor.u32 1.1754944e-38, %v949
        %v951 = vsel %vm948, %v950, %v946
        %v952 = vmul.f32 1.0, %v951
        %v953 = vrcp.pop %v613
        %v954 = vmul.f32 %v613, %v953
        %v955 = vsub.f32 1.0, %v954
        %v956 = vmul.f32 %v953, %v955
        %v957 = vadd.f32 %v953, %v956
        %vm958 = vweird.f32 %v613
        %vm959 = vweird.f32 %v953
        %vm960 = vmor %vm958, %vm959
        %v961 = vsel %vm960, %v953, %v957
        %v962 = vand.u32 2147483647, %v613
        %vm963 = vcmp.eq.f32.partialorder %v962, 8.507059e+37
        %v964 = vand.u32 %v613, 2147483648
        %v965 = vor.u32 1.1754944e-38, %v964
        %v966 = vsel %vm963, %v965, %v961
        %v967 = vmul.f32 1.0, %v966
        %v968 = vrcp.pop %v614
        %v969 = vmul.f32 %v614, %v968
        %v970 = vsub.f32 1.0, %v969
        %v971 = vmul.f32 %v968, %v970
        %v972 = vadd.f32 %v968, %v971
        %vm973 = vweird.f32 %v614
        %vm974 = vweird.f32 %v968
        %vm975 = vmor %vm973, %vm974
        %v976 = vsel %vm975, %v968, %v972
        %v977 = vand.u32 2147483647, %v614
        %vm978 = vcmp.eq.f32.partialorder %v977, 8.507059e+37
        %v979 = vand.u32 %v614, 2147483648
        %v980 = vor.u32 1.1754944e-38, %v979
        %v981 = vsel %vm978, %v980, %v976
        %v982 = vmul.f32 1.0, %v981
        %v983 = vrcp.pop %v615
        %v984 = vmul.f32 %v615, %v983
        %v985 = vsub.f32 1.0, %v984
        %v986 = vmul.f32 %v983, %v985
        %v987 = vadd.f32 %v983, %v986
        %vm988 = vweird.f32 %v615
        %vm989 = vweird.f32 %v983
        %vm990 = vmor %vm988, %vm989
        %v991 = vsel %vm990, %v983, %v987
        %v992 = vand.u32 2147483647, %v615
        %vm993 = vcmp.eq.f32.partialorder %v992, 8.507059e+37
        %v994 = vand.u32 %v615, 2147483648
        %v995 = vor.u32 1.1754944e-38, %v994
        %v996 = vsel %vm993, %v995, %v991
        %v997 = vmul.f32 1.0, %v996
        %v998 = vrcp.pop %v616
        %v999 = vmul.f32 %v616, %v998
        %v1000 = vsub.f32 1.0, %v999
        %v1001 = vmul.f32 %v998, %v1000
        %v1002 = vadd.f32 %v998, %v1001
        %vm1003 = vweird.f32 %v616
        %vm1004 = vweird.f32 %v998
        %vm1005 = vmor %vm1003, %vm1004
        %v1006 = vsel %vm1005, %v998, %v1002
        %v1007 = vand.u32 2147483647, %v616
        %vm1008 = vcmp.eq.f32.partialorder %v1007, 8.507059e+37
        %v1009 = vand.u32 %v616, 2147483648
        %v1010 = vor.u32 1.1754944e-38, %v1009
        %v1011 = vsel %vm1008, %v1010, %v1006
        %v1012 = vmul.f32 1.0, %v1011
        %v1013 = vrcp.pop %v617
        %v1014 = vmul.f32 %v617, %v1013
        %v1015 = vsub.f32 1.0, %v1014
        %v1016 = vmul.f32 %v1013, %v1015
        %v1017 = vadd.f32 %v1013, %v1016
        %vm1018 = vweird.f32 %v617
        %vm1019 = vweird.f32 %v1013
        %vm1020 = vmor %vm1018, %vm1019
        %v1021 = vsel %vm1020, %v1013, %v1017
        %v1022 = vand.u32 2147483647, %v617
        %vm1023 = vcmp.eq.f32.partialorder %v1022, 8.507059e+37
        %v1024 = vand.u32 %v617, 2147483648
        %v1025 = vor.u32 1.1754944e-38, %v1024
        %v1026 = vsel %vm1023, %v1025, %v1021
        %v1027 = vmul.f32 1.0, %v1026
        %v1028 = vrcp.pop %v618
        %v1029 = vmul.f32 %v618, %v1028
        %v1030 = vsub.f32 1.0, %v1029
        %v1031 = vmul.f32 %v1028, %v1030
        %v1032 = vadd.f32 %v1028, %v1031
        %vm1033 = vweird.f32 %v618
        %vm1034 = vweird.f32 %v1028
        %vm1035 = vmor %vm1033, %vm1034
        %v1036 = vsel %vm1035, %v1028, %v1032
        %v1037 = vand.u32 2147483647, %v618
        %vm1038 = vcmp.eq.f32.partialorder %v1037, 8.507059e+37
        %v1039 = vand.u32 %v618, 2147483648
        %v1040 = vor.u32 1.1754944e-38, %v1039
        %v1041 = vsel %vm1038, %v1040, %v1036
        %v1042 = vmul.f32 1.0, %v1041
        %v1043 = vrcp.pop %v619
        %v1044 = vmul.f32 %v619, %v1043
        %v1045 = vsub.f32 1.0, %v1044
        %v1046 = vmul.f32 %v1043, %v1045
        %v1047 = vadd.f32 %v1043, %v1046
        %vm1048 = vweird.f32 %v619
        %vm1049 = vweird.f32 %v1043
        %vm1050 = vmor %vm1048, %vm1049
        %v1051 = vsel %vm1050, %v1043, %v1047
        %v1052 = vand.u32 2147483647, %v619
        %vm1053 = vcmp.eq.f32.partialorder %v1052, 8.507059e+37
        %v1054 = vand.u32 %v619, 2147483648
        %v1055 = vor.u32 1.1754944e-38, %v1054
        %v1056 = vsel %vm1053, %v1055, %v1051
        %v1057 = vmul.f32 1.0, %v1056
        %v1058 = vrcp.pop %v620
        %v1059 = vmul.f32 %v620, %v1058
        %v1060 = vsub.f32 1.0, %v1059
        %v1061 = vmul.f32 %v1058, %v1060
        %v1062 = vadd.f32 %v1058, %v1061
        %vm1063 = vweird.f32 %v620
        %vm1064 = vweird.f32 %v1058
        %vm1065 = vmor %vm1063, %vm1064
        %v1066 = vsel %vm1065, %v1058, %v1062
        %v1067 = vand.u32 2147483647, %v620
        %vm1068 = vcmp.eq.f32.partialorder %v1067, 8.507059e+37
        %v1069 = vand.u32 %v620, 2147483648
        %v1070 = vor.u32 1.1754944e-38, %v1069
        %v1071 = vsel %vm1068, %v1070, %v1066
        %v1072 = vmul.f32 1.0, %v1071
        %v1073 = vrcp.pop %v621
        %v1074 = vmul.f32 %v621, %v1073
        %v1075 = vsub.f32 1.0, %v1074
        %v1076 = vmul.f32 %v1073, %v1075
        %v1077 = vadd.f32 %v1073, %v1076
        %vm1078 = vweird.f32 %v621
        %vm1079 = vweird.f32 %v1073
        %vm1080 = vmor %vm1078, %vm1079
        %v1081 = vsel %vm1080, %v1073, %v1077
        %v1082 = vand.u32 2147483647, %v621
        %vm1083 = vcmp.eq.f32.partialorder %v1082, 8.507059e+37
        %v1084 = vand.u32 %v621, 2147483648
        %v1085 = vor.u32 1.1754944e-38, %v1084
        %v1086 = vsel %vm1083, %v1085, %v1081
        %v1087 = vmul.f32 1.0, %v1086
        %v1088 = vrcp.pop %v622
        %v1089 = vmul.f32 %v622, %v1088
        %v1090 = vsub.f32 1.0, %v1089
        %v1091 = vmul.f32 %v1088, %v1090
        %v1092 = vadd.f32 %v1088, %v1091
        %vm1093 = vweird.f32 %v622
        %vm1094 = vweird.f32 %v1088
        %vm1095 = vmor %vm1093, %vm1094
        %v1096 = vsel %vm1095, %v1088, %v1092
        %v1097 = vand.u32 2147483647, %v622
        %vm1098 = vcmp.eq.f32.partialorder %v1097, 8.507059e+37
        %v1099 = vand.u32 %v622, 2147483648
        %v1100 = vor.u32 1.1754944e-38, %v1099
        %v1101 = vsel %vm1098, %v1100, %v1096
        %v1102 = vmul.f32 1.0, %v1101
        %v1103 = vmul.f32 %v400, %v637
        %v1104 = vmul.f32 %v403, %v652
        %v1105 = vmul.f32 %v406, %v667
        %v1106 = vmul.f32 %v409, %v682
        %v1107 = vmul.f32 %v412, %v697
        %v1108 = vmul.f32 %v415, %v712
        %v1109 = vmul.f32 %v418, %v727
        %v1110 = vmul.f32 %v421, %v742
        %v1111 = vmul.f32 %v424, %v757
        %v1112 = vmul.f32 %v427, %v772
        %v1113 = vmul.f32 %v430, %v787
        %v1114 = vmul.f32 %v433, %v802
        %v1115 = vmul.f32 %v436, %v817
        %v1116 = vmul.f32 %v439, %v832
        %v1117 = vmul.f32 %v442, %v847
        %v1118 = vmul.f32 %v445, %v862
        %v1119 = vmul.f32 %v448, %v877
        %v1120 = vmul.f32 %v451, %v892
        %v1121 = vmul.f32 %v454, %v907
        %v1122 = vmul.f32 %v457, %v922
        %v1123 = vmul.f32 %v460, %v937
        %v1124 = vmul.f32 %v463, %v952
        %v1125 = vmul.f32 %v466, %v967
        %v1126 = vmul.f32 %v469, %v982
        %v1127 = vmul.f32 %v472, %v997
        %v1128 = vmul.f32 %v475, %v1012
        %v1129 = vmul.f32 %v478, %v1027
        %v1130 = vmul.f32 %v481, %v1042
        %v1131 = vmul.f32 %v484, %v1057
        %v1132 = vmul.f32 %v487, %v1072
        %v1133 = vmul.f32 %v490, %v1087
        %v1134 = vmul.f32 %v493, %v1102
        %v1135 = vld [vmem:[%s3] sm:$0xff]
        %v1136 = vld [vmem:[%s3 + $0x8] sm:$0xff]
        %v1137 = vld [vmem:[%s3 + $0x10] sm:$0xff]
        %v1138 = vld [vmem:[%s3 + $0x18] sm:$0xff]
        %v1139 = vld [vmem:[%s3 + $0x20] sm:$0xff]
        %v1140 = vld [vmem:[%s3 + $0x28] sm:$0xff]
        %v1141 = vld [vmem:[%s3 + $0x30] sm:$0xff]
        %v1142 = vld [vmem:[%s3 + $0x38] sm:$0xff]
        %vm1143 = vcmask 130048
        %1144 = vst.msk [vmem:[#allocation2] sm:$0xff] %vm1143, -inf
        %1145 = vst.msk [vmem:[#allocation2 + $0x8] sm:$0xff] %vm1143, -inf
        %vm1146 = vcmask 125952
        %1147 = vst.msk [vmem:[#allocation2 + $0x10] sm:$0xf] %vm1146, -inf
        %1148 = vst.msk [vmem:[#allocation2 + $0x18] sm:$0xff] %vm1143, -inf
        %1149 = vst.msk [vmem:[#allocation2 + $0x20] sm:$0xff] %vm1143, -inf
        %1150 = vst.msk [vmem:[#allocation2 + $0x28] sm:$0xf] %vm1146, -inf
        %1151 = vst.msk [vmem:[#allocation2 + $0x30] sm:$0xff] %vm1143, -inf
        %1152 = vst.msk [vmem:[#allocation2 + $0x38] sm:$0xff] %vm1143, -inf
        %1153 = vst.msk [vmem:[#allocation2 + $0x40] sm:$0xf] %vm1146, -inf
        %1154 = vst.msk [vmem:[#allocation2 + $0x48] sm:$0xff] %vm1143, -inf
        %1155 = vst.msk [vmem:[#allocation2 + $0x50] sm:$0xff] %vm1143, -inf
        %1156 = vst.msk [vmem:[#allocation2 + $0x58] sm:$0xf] %vm1146, -inf
        %1157 = vst.msk [vmem:[#allocation2 + $0x60] sm:$0xff] %vm1143, -inf
        %1158 = vst.msk [vmem:[#allocation2 + $0x68] sm:$0xff] %vm1143, -inf
        %1159 = vst.msk [vmem:[#allocation2 + $0x70] sm:$0xf] %vm1146, -inf
        %1160 = vst.msk [vmem:[#allocation2 + $0x78] sm:$0xff] %vm1143, -inf
        %1161 = vst.msk [vmem:[#allocation2 + $0x80] sm:$0xff] %vm1143, -inf
        %1162 = vst.msk [vmem:[#allocation2 + $0x88] sm:$0xf] %vm1146, -inf
        %1163 = vst.msk [vmem:[#allocation2 + $0x90] sm:$0xff] %vm1143, -inf
        %1164 = vst.msk [vmem:[#allocation2 + $0x98] sm:$0xff] %vm1143, -inf
        %1165 = vst.msk [vmem:[#allocation2 + $0xa0] sm:$0xf] %vm1146, -inf
        %1166 = vst.msk [vmem:[#allocation2 + $0xa8] sm:$0xff] %vm1143, -inf
        %1167 = vst.msk [vmem:[#allocation2 + $0xb0] sm:$0xff] %vm1143, -inf
        %1168 = vst.msk [vmem:[#allocation2 + $0xb8] sm:$0xf] %vm1146, -inf
        %1169 = vst.msk [vmem:[#allocation2 + $0xc0] sm:$0xff] %vm1143, -inf
        %1170 = vst.msk [vmem:[#allocation2 + $0xc8] sm:$0xff] %vm1143, -inf
        %1171 = vst.msk [vmem:[#allocation2 + $0xd0] sm:$0xf] %vm1146, -inf
        %1172 = vst.msk [vmem:[#allocation2 + $0xd8] sm:$0xff] %vm1143, -inf
        %1173 = vst.msk [vmem:[#allocation2 + $0xe0] sm:$0xff] %vm1143, -inf
        %1174 = vst.msk [vmem:[#allocation2 + $0xe8] sm:$0xf] %vm1146, -inf
        %1175 = vst.msk [vmem:[#allocation2 + $0xf0] sm:$0xff] %vm1143, -inf
        %1176 = vst.msk [vmem:[#allocation2 + $0xf8] sm:$0xff] %vm1143, -inf
        %1177 = vst.msk [vmem:[#allocation2 + $0x100] sm:$0xf] %vm1146, -inf
        %1178 = vst.msk [vmem:[#allocation2 + $0x108] sm:$0xff] %vm1143, -inf
        %1179 = vst.msk [vmem:[#allocation2 + $0x110] sm:$0xff] %vm1143, -inf
        %1180 = vst.msk [vmem:[#allocation2 + $0x118] sm:$0xf] %vm1146, -inf
        %1181 = vst.msk [vmem:[#allocation2 + $0x120] sm:$0xff] %vm1143, -inf
        %1182 = vst.msk [vmem:[#allocation2 + $0x128] sm:$0xff] %vm1143, -inf
        %1183 = vst.msk [vmem:[#allocation2 + $0x130] sm:$0xf] %vm1146, -inf
        %1184 = vst.msk [vmem:[#allocation2 + $0x138] sm:$0xff] %vm1143, -inf
        %1185 = vst.msk [vmem:[#allocation2 + $0x140] sm:$0xff] %vm1143, -inf
        %1186 = vst.msk [vmem:[#allocation2 + $0x148] sm:$0xf] %vm1146, -inf
        %1187 = vst.msk [vmem:[#allocation2 + $0x150] sm:$0xff] %vm1143, -inf
        %1188 = vst.msk [vmem:[#allocation2 + $0x158] sm:$0xff] %vm1143, -inf
        %1189 = vst.msk [vmem:[#allocation2 + $0x160] sm:$0xf] %vm1146, -inf
        %1190 = vst.msk [vmem:[#allocation2 + $0x168] sm:$0xff] %vm1143, -inf
        %1191 = vst.msk [vmem:[#allocation2 + $0x170] sm:$0xff] %vm1143, -inf
        %1192 = vst.msk [vmem:[#allocation2 + $0x178] sm:$0xf] %vm1146, -inf
        %1193 = vst.msk [vmem:[#allocation2 + $0x180] sm:$0xff] %vm1143, -inf
        %1194 = vst.msk [vmem:[#allocation2 + $0x188] sm:$0xff] %vm1143, -inf
        %1195 = vst.msk [vmem:[#allocation2 + $0x190] sm:$0xf] %vm1146, -inf
        %1196 = vst.msk [vmem:[#allocation2 + $0x198] sm:$0xff] %vm1143, -inf
        %1197 = vst.msk [vmem:[#allocation2 + $0x1a0] sm:$0xff] %vm1143, -inf
        %1198 = vst.msk [vmem:[#allocation2 + $0x1a8] sm:$0xf] %vm1146, -inf
        %1199 = vst.msk [vmem:[#allocation2 + $0x1b0] sm:$0xff] %vm1143, -inf
        %1200 = vst.msk [vmem:[#allocation2 + $0x1b8] sm:$0xff] %vm1143, -inf
        %1201 = vst.msk [vmem:[#allocation2 + $0x1c0] sm:$0xf] %vm1146, -inf
        %1202 = vst.msk [vmem:[#allocation2 + $0x1c8] sm:$0xff] %vm1143, -inf
        %1203 = vst.msk [vmem:[#allocation2 + $0x1d0] sm:$0xff] %vm1143, -inf
        %1204 = vst.msk [vmem:[#allocation2 + $0x1d8] sm:$0xf] %vm1146, -inf
        %s1205 = scalar_lea.vmem [#allocation2], 48
        %1206 = vst.msk [vmem:[%s1205 + $0x2] sm:$0xff] %vm1143, %v1103
        %1207 = vst.msk [vmem:[%s1205 + $0xa] sm:$0xff] %vm1143, %v1104
        %1208 = vst.msk [vmem:[%s1205 + $0x1a] sm:$0xff] %vm1143, %v1105
        %1209 = vst.msk [vmem:[%s1205 + $0x22] sm:$0xff] %vm1143, %v1106
        %1210 = vst.msk [vmem:[%s1205 + $0x32] sm:$0xff] %vm1143, %v1107
        %1211 = vst.msk [vmem:[%s1205 + $0x3a] sm:$0xff] %vm1143, %v1108
        %1212 = vst.msk [vmem:[%s1205 + $0x4a] sm:$0xff] %vm1143, %v1109
        %1213 = vst.msk [vmem:[%s1205 + $0x52] sm:$0xff] %vm1143, %v1110
        %1214 = vst.msk [vmem:[%s1205 + $0x62] sm:$0xff] %vm1143, %v1111
        %1215 = vst.msk [vmem:[%s1205 + $0x6a] sm:$0xff] %vm1143, %v1112
        %1216 = vst.msk [vmem:[%s1205 + $0x7a] sm:$0xff] %vm1143, %v1113
        %1217 = vst.msk [vmem:[%s1205 + $0x82] sm:$0xff] %vm1143, %v1114
        %1218 = vst.msk [vmem:[%s1205 + $0x92] sm:$0xff] %vm1143, %v1115
        %1219 = vst.msk [vmem:[%s1205 + $0x9a] sm:$0xff] %vm1143, %v1116
        %1220 = vst.msk [vmem:[%s1205 + $0xaa] sm:$0xff] %vm1143, %v1117
        %1221 = vst.msk [vmem:[%s1205 + $0xb2] sm:$0xff] %vm1143, %v1118
        %1222 = vst.msk [vmem:[%s1205 + $0xc2] sm:$0xff] %vm1143, %v1119
        %1223 = vst.msk [vmem:[%s1205 + $0xca] sm:$0xff] %vm1143, %v1120
        %1224 = vst.msk [vmem:[%s1205 + $0xda] sm:$0xff] %vm1143, %v1121
        %1225 = vst.msk [vmem:[%s1205 + $0xe2] sm:$0xff] %vm1143, %v1122
        %1226 = vst.msk [vmem:[%s1205 + $0xf2] sm:$0xff] %vm1143, %v1123
        %1227 = vst.msk [vmem:[%s1205 + $0xfa] sm:$0xff] %vm1143, %v1124
        %1228 = vst.msk [vmem:[%s1205 + $0x10a] sm:$0xff] %vm1143, %v1125
        %1229 = vst.msk [vmem:[%s1205 + $0x112] sm:$0xff] %vm1143, %v1126
        %1230 = vst.msk [vmem:[%s1205 + $0x122] sm:$0xff] %vm1143, %v1127
        %1231 = vst.msk [vmem:[%s1205 + $0x12a] sm:$0xff] %vm1143, %v1128
        %1232 = vst.msk [vmem:[%s1205 + $0x13a] sm:$0xff] %vm1143, %v1129
        %1233 = vst.msk [vmem:[%s1205 + $0x142] sm:$0xff] %vm1143, %v1130
        %1234 = vst.msk [vmem:[%s1205 + $0x152] sm:$0xff] %vm1143, %v1131
        %1235 = vst.msk [vmem:[%s1205 + $0x15a] sm:$0xff] %vm1143, %v1132
        %1236 = vst.msk [vmem:[%s1205 + $0x16a] sm:$0xff] %vm1143, %v1133
        %1237 = vst.msk [vmem:[%s1205 + $0x172] sm:$0xff] %vm1143, %v1134
        %v1238 = vld [vmem:[#allocation2] sm:$0xff]
        %v1239 = vld [vmem:[#allocation2 + $0x8] sm:$0xff]
        %v1240 = vld [vmem:[#allocation2 + $0x18] sm:$0xff]
        %v1241 = vld [vmem:[#allocation2 + $0x20] sm:$0xff]
        %v1242 = vld [vmem:[#allocation2 + $0x30] sm:$0xff]
        %v1243 = vld [vmem:[#allocation2 + $0x38] sm:$0xff]
        %v1244 = vld [vmem:[#allocation2 + $0x48] sm:$0xff]
        %v1245 = vld [vmem:[#allocation2 + $0x50] sm:$0xff]
        %v1246 = vld [vmem:[#allocation2 + $0x60] sm:$0xff]
        %v1247 = vld [vmem:[#allocation2 + $0x68] sm:$0xff]
        %v1248 = vld [vmem:[#allocation2 + $0x78] sm:$0xff]
        %v1249 = vld [vmem:[#allocation2 + $0x80] sm:$0xff]
        %v1250 = vld [vmem:[#allocation2 + $0x90] sm:$0xff]
        %v1251 = vld [vmem:[#allocation2 + $0x98] sm:$0xff]
        %v1252 = vld [vmem:[#allocation2 + $0xa8] sm:$0xff]
        %v1253 = vld [vmem:[#allocation2 + $0xb0] sm:$0xff]
        %v1254 = vld [vmem:[#allocation2 + $0xc0] sm:$0xff]
        %v1255 = vld [vmem:[#allocation2 + $0xc8] sm:$0xff]
        %v1256 = vld [vmem:[#allocation2 + $0xd8] sm:$0xff]
        %v1257 = vld [vmem:[#allocation2 + $0xe0] sm:$0xff]
        %v1258 = vld [vmem:[#allocation2 + $0xf0] sm:$0xff]
        %v1259 = vld [vmem:[#allocation2 + $0xf8] sm:$0xff]
        %v1260 = vld [vmem:[#allocation2 + $0x108] sm:$0xff]
        %v1261 = vld [vmem:[#allocation2 + $0x110] sm:$0xff]
        %v1262 = vld [vmem:[#allocation2 + $0x120] sm:$0xff]
        %v1263 = vld [vmem:[#allocation2 + $0x128] sm:$0xff]
        %v1264 = vld [vmem:[#allocation2 + $0x138] sm:$0xff]
        %v1265 = vld [vmem:[#allocation2 + $0x140] sm:$0xff]
        %v1266 = vld [vmem:[#allocation2 + $0x150] sm:$0xff]
        %v1267 = vld [vmem:[#allocation2 + $0x158] sm:$0xff]
        %v1268 = vld [vmem:[#allocation2 + $0x168] sm:$0xff]
        %v1269 = vld [vmem:[#allocation2 + $0x170] sm:$0xff]
        %v1270 = vld [vmem:[#allocation2 + $0x1] sm:$0xff]
        %v1271 = vld [vmem:[#allocation2 + $0x9] sm:$0xff]
        %v1272 = vld [vmem:[#allocation2 + $0x19] sm:$0xff]
        %v1273 = vld [vmem:[#allocation2 + $0x21] sm:$0xff]
        %v1274 = vld [vmem:[#allocation2 + $0x31] sm:$0xff]
        %v1275 = vld [vmem:[#allocation2 + $0x39] sm:$0xff]
        %v1276 = vld [vmem:[#allocation2 + $0x49] sm:$0xff]
        %v1277 = vld [vmem:[#allocation2 + $0x51] sm:$0xff]
        %v1278 = vld [vmem:[#allocation2 + $0x61] sm:$0xff]
        %v1279 = vld [vmem:[#allocation2 + $0x69] sm:$0xff]
        %v1280 = vld [vmem:[#allocation2 + $0x79] sm:$0xff]
        %v1281 = vld [vmem:[#allocation2 + $0x81] sm:$0xff]
        %v1282 = vld [vmem:[#allocation2 + $0x91] sm:$0xff]
        %v1283 = vld [vmem:[#allocation2 + $0x99] sm:$0xff]
        %v1284 = vld [vmem:[#allocation2 + $0xa9] sm:$0xff]
        %v1285 = vld [vmem:[#allocation2 + $0xb1] sm:$0xff]
        %v1286 = vld [vmem:[#allocation2 + $0xc1] sm:$0xff]
        %v1287 = vld [vmem:[#allocation2 + $0xc9] sm:$0xff]
        %v1288 = vld [vmem:[#allocation2 + $0xd9] sm:$0xff]
        %v1289 = vld [vmem:[#allocation2 + $0xe1] sm:$0xff]
        %v1290 = vld [vmem:[#allocation2 + $0xf1] sm:$0xff]
        %v1291 = vld [vmem:[#allocation2 + $0xf9] sm:$0xff]
        %v1292 = vld [vmem:[#allocation2 + $0x109] sm:$0xff]
        %v1293 = vld [vmem:[#allocation2 + $0x111] sm:$0xff]
        %v1294 = vld [vmem:[#allocation2 + $0x121] sm:$0xff]
        %v1295 = vld [vmem:[#allocation2 + $0x129] sm:$0xff]
        %v1296 = vld [vmem:[#allocation2 + $0x139] sm:$0xff]
        %v1297 = vld [vmem:[#allocation2 + $0x141] sm:$0xff]
        %v1298 = vld [vmem:[#allocation2 + $0x151] sm:$0xff]
        %v1299 = vld [vmem:[#allocation2 + $0x159] sm:$0xff]
        %v1300 = vld [vmem:[#allocation2 + $0x169] sm:$0xff]
        %v1301 = vld [vmem:[#allocation2 + $0x171] sm:$0xff]
        %v1302 = vmax.f32 %v1238, %v1270
        %v1303 = vmax.f32 %v1239, %v1271
        %v1304 = vmax.f32 %v1240, %v1272
        %v1305 = vmax.f32 %v1241, %v1273
        %v1306 = vmax.f32 %v1242, %v1274
        %v1307 = vmax.f32 %v1243, %v1275
        %v1308 = vmax.f32 %v1244, %v1276
        %v1309 = vmax.f32 %v1245, %v1277
        %v1310 = vmax.f32 %v1246, %v1278
        %v1311 = vmax.f32 %v1247, %v1279
        %v1312 = vmax.f32 %v1248, %v1280
        %v1313 = vmax.f32 %v1249, %v1281
        %v1314 = vmax.f32 %v1250, %v1282
        %v1315 = vmax.f32 %v1251, %v1283
        %v1316 = vmax.f32 %v1252, %v1284
        %v1317 = vmax.f32 %v1253, %v1285
        %v1318 = vmax.f32 %v1254, %v1286
        %v1319 = vmax.f32 %v1255, %v1287
        %v1320 = vmax.f32 %v1256, %v1288
        %v1321 = vmax.f32 %v1257, %v1289
        %v1322 = vmax.f32 %v1258, %v1290
        %v1323 = vmax.f32 %v1259, %v1291
        %v1324 = vmax.f32 %v1260, %v1292
        %v1325 = vmax.f32 %v1261, %v1293
        %v1326 = vmax.f32 %v1262, %v1294
        %v1327 = vmax.f32 %v1263, %v1295
        %v1328 = vmax.f32 %v1264, %v1296
        %v1329 = vmax.f32 %v1265, %v1297
        %v1330 = vmax.f32 %v1266, %v1298
        %v1331 = vmax.f32 %v1267, %v1299
        %v1332 = vmax.f32 %v1268, %v1300
        %v1333 = vmax.f32 %v1269, %v1301
        %v1334 = vld [vmem:[#allocation2 + $0x2] sm:$0xff]
        %v1335 = vld [vmem:[#allocation2 + $0xa] sm:$0xff]
        %v1336 = vld [vmem:[#allocation2 + $0x1a] sm:$0xff]
        %v1337 = vld [vmem:[#allocation2 + $0x22] sm:$0xff]
        %v1338 = vld [vmem:[#allocation2 + $0x32] sm:$0xff]
        %v1339 = vld [vmem:[#allocation2 + $0x3a] sm:$0xff]
        %v1340 = vld [vmem:[#allocation2 + $0x4a] sm:$0xff]
        %v1341 = vld [vmem:[#allocation2 + $0x52] sm:$0xff]
        %v1342 = vld [vmem:[#allocation2 + $0x62] sm:$0xff]
        %v1343 = vld [vmem:[#allocation2 + $0x6a] sm:$0xff]
        %v1344 = vld [vmem:[#allocation2 + $0x7a] sm:$0xff]
        %v1345 = vld [vmem:[#allocation2 + $0x82] sm:$0xff]
        %v1346 = vld [vmem:[#allocation2 + $0x92] sm:$0xff]
        %v1347 = vld [vmem:[#allocation2 + $0x9a] sm:$0xff]
        %v1348 = vld [vmem:[#allocation2 + $0xaa] sm:$0xff]
        %v1349 = vld [vmem:[#allocation2 + $0xb2] sm:$0xff]
        %v1350 = vld [vmem:[#allocation2 + $0xc2] sm:$0xff]
        %v1351 = vld [vmem:[#allocation2 + $0xca] sm:$0xff]
        %v1352 = vld [vmem:[#allocation2 + $0xda] sm:$0xff]
        %v1353 = vld [vmem:[#allocation2 + $0xe2] sm:$0xff]
        %v1354 = vld [vmem:[#allocation2 + $0xf2] sm:$0xff]
        %v1355 = vld [vmem:[#allocation2 + $0xfa] sm:$0xff]
        %v1356 = vld [vmem:[#allocation2 + $0x10a] sm:$0xff]
        %v1357 = vld [vmem:[#allocation2 + $0x112] sm:$0xff]
        %v1358 = vld [vmem:[#allocation2 + $0x122] sm:$0xff]
        %v1359 = vld [vmem:[#allocation2 + $0x12a] sm:$0xff]
        %v1360 = vld [vmem:[#allocation2 + $0x13a] sm:$0xff]
        %v1361 = vld [vmem:[#allocation2 + $0x142] sm:$0xff]
        %v1362 = vld [vmem:[#allocation2 + $0x152] sm:$0xff]
        %v1363 = vld [vmem:[#allocation2 + $0x15a] sm:$0xff]
        %v1364 = vld [vmem:[#allocation2 + $0x16a] sm:$0xff]
        %v1365 = vld [vmem:[#allocation2 + $0x172] sm:$0xff]
        %v1366 = vmax.f32 %v1302, %v1334
        %v1367 = vmax.f32 %v1303, %v1335
        %v1368 = vmax.f32 %v1304, %v1336
        %v1369 = vmax.f32 %v1305, %v1337
        %v1370 = vmax.f32 %v1306, %v1338
        %v1371 = vmax.f32 %v1307, %v1339
        %v1372 = vmax.f32 %v1308, %v1340
        %v1373 = vmax.f32 %v1309, %v1341
        %v1374 = vmax.f32 %v1310, %v1342
        %v1375 = vmax.f32 %v1311, %v1343
        %v1376 = vmax.f32 %v1312, %v1344
        %v1377 = vmax.f32 %v1313, %v1345
        %v1378 = vmax.f32 %v1314, %v1346
        %v1379 = vmax.f32 %v1315, %v1347
        %v1380 = vmax.f32 %v1316, %v1348
        %v1381 = vmax.f32 %v1317, %v1349
        %v1382 = vmax.f32 %v1318, %v1350
        %v1383 = vmax.f32 %v1319, %v1351
        %v1384 = vmax.f32 %v1320, %v1352
        %v1385 = vmax.f32 %v1321, %v1353
        %v1386 = vmax.f32 %v1322, %v1354
        %v1387 = vmax.f32 %v1323, %v1355
        %v1388 = vmax.f32 %v1324, %v1356
        %v1389 = vmax.f32 %v1325, %v1357
        %v1390 = vmax.f32 %v1326, %v1358
        %v1391 = vmax.f32 %v1327, %v1359
        %v1392 = vmax.f32 %v1328, %v1360
        %v1393 = vmax.f32 %v1329, %v1361
        %v1394 = vmax.f32 %v1330, %v1362
        %v1395 = vmax.f32 %v1331, %v1363
        %v1396 = vmax.f32 %v1332, %v1364
        %v1397 = vmax.f32 %v1333, %v1365
        %v1398 = vld [vmem:[#allocation2 + $0x3] sm:$0xff]
        %v1399 = vld [vmem:[#allocation2 + $0xb] sm:$0xff]
        %v1400 = vld [vmem:[#allocation2 + $0x1b] sm:$0xff]
        %v1401 = vld [vmem:[#allocation2 + $0x23] sm:$0xff]
        %v1402 = vld [vmem:[#allocation2 + $0x33] sm:$0xff]
        %v1403 = vld [vmem:[#allocation2 + $0x3b] sm:$0xff]
        %v1404 = vld [vmem:[#allocation2 + $0x4b] sm:$0xff]
        %v1405 = vld [vmem:[#allocation2 + $0x53] sm:$0xff]
        %v1406 = vld [vmem:[#allocation2 + $0x63] sm:$0xff]
        %v1407 = vld [vmem:[#allocation2 + $0x6b] sm:$0xff]
        %v1408 = vld [vmem:[#allocation2 + $0x7b] sm:$0xff]
        %v1409 = vld [vmem:[#allocation2 + $0x83] sm:$0xff]
        %v1410 = vld [vmem:[#allocation2 + $0x93] sm:$0xff]
        %v1411 = vld [vmem:[#allocation2 + $0x9b] sm:$0xff]
        %v1412 = vld [vmem:[#allocation2 + $0xab] sm:$0xff]
        %v1413 = vld [vmem:[#allocation2 + $0xb3] sm:$0xff]
        %v1414 = vld [vmem:[#allocation2 + $0xc3] sm:$0xff]
        %v1415 = vld [vmem:[#allocation2 + $0xcb] sm:$0xff]
        %v1416 = vld [vmem:[#allocation2 + $0xdb] sm:$0xff]
        %v1417 = vld [vmem:[#allocation2 + $0xe3] sm:$0xff]
        %v1418 = vld [vmem:[#allocation2 + $0xf3] sm:$0xff]
        %v1419 = vld [vmem:[#allocation2 + $0xfb] sm:$0xff]
        %v1420 = vld [vmem:[#allocation2 + $0x10b] sm:$0xff]
        %v1421 = vld [vmem:[#allocation2 + $0x113] sm:$0xff]
        %v1422 = vld [vmem:[#allocation2 + $0x123] sm:$0xff]
        %v1423 = vld [vmem:[#allocation2 + $0x12b] sm:$0xff]
        %v1424 = vld [vmem:[#allocation2 + $0x13b] sm:$0xff]
        %v1425 = vld [vmem:[#allocation2 + $0x143] sm:$0xff]
        %v1426 = vld [vmem:[#allocation2 + $0x153] sm:$0xff]
        %v1427 = vld [vmem:[#allocation2 + $0x15b] sm:$0xff]
        %v1428 = vld [vmem:[#allocation2 + $0x16b] sm:$0xff]
        %v1429 = vld [vmem:[#allocation2 + $0x173] sm:$0xff]
        %v1430 = vmax.f32 %v1366, %v1398
        %v1431 = vmax.f32 %v1367, %v1399
        %v1432 = vmax.f32 %v1368, %v1400
        %v1433 = vmax.f32 %v1369, %v1401
        %v1434 = vmax.f32 %v1370, %v1402
        %v1435 = vmax.f32 %v1371, %v1403
        %v1436 = vmax.f32 %v1372, %v1404
        %v1437 = vmax.f32 %v1373, %v1405
        %v1438 = vmax.f32 %v1374, %v1406
        %v1439 = vmax.f32 %v1375, %v1407
        %v1440 = vmax.f32 %v1376, %v1408
        %v1441 = vmax.f32 %v1377, %v1409
        %v1442 = vmax.f32 %v1378, %v1410
        %v1443 = vmax.f32 %v1379, %v1411
        %v1444 = vmax.f32 %v1380, %v1412
        %v1445 = vmax.f32 %v1381, %v1413
        %v1446 = vmax.f32 %v1382, %v1414
        %v1447 = vmax.f32 %v1383, %v1415
        %v1448 = vmax.f32 %v1384, %v1416
        %v1449 = vmax.f32 %v1385, %v1417
        %v1450 = vmax.f32 %v1386, %v1418
        %v1451 = vmax.f32 %v1387, %v1419
        %v1452 = vmax.f32 %v1388, %v1420
        %v1453 = vmax.f32 %v1389, %v1421
        %v1454 = vmax.f32 %v1390, %v1422
        %v1455 = vmax.f32 %v1391, %v1423
        %v1456 = vmax.f32 %v1392, %v1424
        %v1457 = vmax.f32 %v1393, %v1425
        %v1458 = vmax.f32 %v1394, %v1426
        %v1459 = vmax.f32 %v1395, %v1427
        %v1460 = vmax.f32 %v1396, %v1428
        %v1461 = vmax.f32 %v1397, %v1429
        %v1462 = vld [vmem:[#allocation2 + $0x4] sm:$0xff]
        %v1463 = vld [vmem:[#allocation2 + $0xc] sm:$0xff]
        %v1464 = vld [vmem:[#allocation2 + $0x1c] sm:$0xff]
        %v1465 = vld [vmem:[#allocation2 + $0x24] sm:$0xff]
        %v1466 = vld [vmem:[#allocation2 + $0x34] sm:$0xff]
        %v1467 = vld [vmem:[#allocation2 + $0x3c] sm:$0xff]
        %v1468 = vld [vmem:[#allocation2 + $0x4c] sm:$0xff]
        %v1469 = vld [vmem:[#allocation2 + $0x54] sm:$0xff]
        %v1470 = vld [vmem:[#allocation2 + $0x64] sm:$0xff]
        %v1471 = vld [vmem:[#allocation2 + $0x6c] sm:$0xff]
        %v1472 = vld [vmem:[#allocation2 + $0x7c] sm:$0xff]
        %v1473 = vld [vmem:[#allocation2 + $0x84] sm:$0xff]
        %v1474 = vld [vmem:[#allocation2 + $0x94] sm:$0xff]
        %v1475 = vld [vmem:[#allocation2 + $0x9c] sm:$0xff]
        %v1476 = vld [vmem:[#allocation2 + $0xac] sm:$0xff]
        %v1477 = vld [vmem:[#allocation2 + $0xb4] sm:$0xff]
        %v1478 = vld [vmem:[#allocation2 + $0xc4] sm:$0xff]
        %v1479 = vld [vmem:[#allocation2 + $0xcc] sm:$0xff]
        %v1480 = vld [vmem:[#allocation2 + $0xdc] sm:$0xff]
        %v1481 = vld [vmem:[#allocation2 + $0xe4] sm:$0xff]
        %v1482 = vld [vmem:[#allocation2 + $0xf4] sm:$0xff]
        %v1483 = vld [vmem:[#allocation2 + $0xfc] sm:$0xff]
        %v1484 = vld [vmem:[#allocation2 + $0x10c] sm:$0xff]
        %v1485 = vld [vmem:[#allocation2 + $0x114] sm:$0xff]
        %v1486 = vld [vmem:[#allocation2 + $0x124] sm:$0xff]
        %v1487 = vld [vmem:[#allocation2 + $0x12c] sm:$0xff]
        %v1488 = vld [vmem:[#allocation2 + $0x13c] sm:$0xff]
        %v1489 = vld [vmem:[#allocation2 + $0x144] sm:$0xff]
        %v1490 = vld [vmem:[#allocation2 + $0x154] sm:$0xff]
        %v1491 = vld [vmem:[#allocation2 + $0x15c] sm:$0xff]
        %v1492 = vld [vmem:[#allocation2 + $0x16c] sm:$0xff]
        %v1493 = vld [vmem:[#allocation2 + $0x174] sm:$0xff]
        %v1494 = vmax.f32 %v1430, %v1462
        %v1495 = vmax.f32 %v1431, %v1463
        %v1496 = vmax.f32 %v1432, %v1464
        %v1497 = vmax.f32 %v1433, %v1465
        %v1498 = vmax.f32 %v1434, %v1466
        %v1499 = vmax.f32 %v1435, %v1467
        %v1500 = vmax.f32 %v1436, %v1468
        %v1501 = vmax.f32 %v1437, %v1469
        %v1502 = vmax.f32 %v1438, %v1470
        %v1503 = vmax.f32 %v1439, %v1471
        %v1504 = vmax.f32 %v1440, %v1472
        %v1505 = vmax.f32 %v1441, %v1473
        %v1506 = vmax.f32 %v1442, %v1474
        %v1507 = vmax.f32 %v1443, %v1475
        %v1508 = vmax.f32 %v1444, %v1476
        %v1509 = vmax.f32 %v1445, %v1477
        %v1510 = vmax.f32 %v1446, %v1478
        %v1511 = vmax.f32 %v1447, %v1479
        %v1512 = vmax.f32 %v1448, %v1480
        %v1513 = vmax.f32 %v1449, %v1481
        %v1514 = vmax.f32 %v1450, %v1482
        %v1515 = vmax.f32 %v1451, %v1483
        %v1516 = vmax.f32 %v1452, %v1484
        %v1517 = vmax.f32 %v1453, %v1485
        %v1518 = vmax.f32 %v1454, %v1486
        %v1519 = vmax.f32 %v1455, %v1487
        %v1520 = vmax.f32 %v1456, %v1488
        %v1521 = vmax.f32 %v1457, %v1489
        %v1522 = vmax.f32 %v1458, %v1490
        %v1523 = vmax.f32 %v1459, %v1491
        %v1524 = vmax.f32 %v1460, %v1492
        %v1525 = vmax.f32 %v1461, %v1493
        %s1526 = scalar_lea.vmem [#allocation2], 24
        %v1527 = vld [vmem:[%s1526] sm:$0xff]
        %v1528 = vld [vmem:[%s1526 + $0x8] sm:$0xff]
        %v1529 = vld [vmem:[%s1526 + $0x18] sm:$0xff]
        %v1530 = vld [vmem:[%s1526 + $0x20] sm:$0xff]
        %v1531 = vld [vmem:[%s1526 + $0x30] sm:$0xff]
        %v1532 = vld [vmem:[%s1526 + $0x38] sm:$0xff]
        %v1533 = vld [vmem:[%s1526 + $0x48] sm:$0xff]
        %v1534 = vld [vmem:[%s1526 + $0x50] sm:$0xff]
        %v1535 = vld [vmem:[%s1526 + $0x60] sm:$0xff]
        %v1536 = vld [vmem:[%s1526 + $0x68] sm:$0xff]
        %v1537 = vld [vmem:[%s1526 + $0x78] sm:$0xff]
        %v1538 = vld [vmem:[%s1526 + $0x80] sm:$0xff]
        %v1539 = vld [vmem:[%s1526 + $0x90] sm:$0xff]
        %v1540 = vld [vmem:[%s1526 + $0x98] sm:$0xff]
        %v1541 = vld [vmem:[%s1526 + $0xa8] sm:$0xff]
        %v1542 = vld [vmem:[%s1526 + $0xb0] sm:$0xff]
        %v1543 = vld [vmem:[%s1526 + $0xc0] sm:$0xff]
        %v1544 = vld [vmem:[%s1526 + $0xc8] sm:$0xff]
        %v1545 = vld [vmem:[%s1526 + $0xd8] sm:$0xff]
        %v1546 = vld [vmem:[%s1526 + $0xe0] sm:$0xff]
        %v1547 = vld [vmem:[%s1526 + $0xf0] sm:$0xff]
        %v1548 = vld [vmem:[%s1526 + $0xf8] sm:$0xff]
        %v1549 = vld [vmem:[%s1526 + $0x108] sm:$0xff]
        %v1550 = vld [vmem:[%s1526 + $0x110] sm:$0xff]
        %v1551 = vld [vmem:[%s1526 + $0x120] sm:$0xff]
        %v1552 = vld [vmem:[%s1526 + $0x128] sm:$0xff]
        %v1553 = vld [vmem:[%s1526 + $0x138] sm:$0xff]
        %v1554 = vld [vmem:[%s1526 + $0x140] sm:$0xff]
        %v1555 = vld [vmem:[%s1526 + $0x150] sm:$0xff]
        %v1556 = vld [vmem:[%s1526 + $0x158] sm:$0xff]
        %v1557 = vld [vmem:[%s1526 + $0x168] sm:$0xff]
        %v1558 = vld [vmem:[%s1526 + $0x170] sm:$0xff]
        %v1559 = vmax.f32 %v1494, %v1527
        %v1560 = vmax.f32 %v1495, %v1528
        %v1561 = vmax.f32 %v1496, %v1529
        %v1562 = vmax.f32 %v1497, %v1530
        %v1563 = vmax.f32 %v1498, %v1531
        %v1564 = vmax.f32 %v1499, %v1532
        %v1565 = vmax.f32 %v1500, %v1533
        %v1566 = vmax.f32 %v1501, %v1534
        %v1567 = vmax.f32 %v1502, %v1535
        %v1568 = vmax.f32 %v1503, %v1536
        %v1569 = vmax.f32 %v1504, %v1537
        %v1570 = vmax.f32 %v1505, %v1538
        %v1571 = vmax.f32 %v1506, %v1539
        %v1572 = vmax.f32 %v1507, %v1540
        %v1573 = vmax.f32 %v1508, %v1541
        %v1574 = vmax.f32 %v1509, %v1542
        %v1575 = vmax.f32 %v1510, %v1543
        %v1576 = vmax.f32 %v1511, %v1544
        %v1577 = vmax.f32 %v1512, %v1545
        %v1578 = vmax.f32 %v1513, %v1546
        %v1579 = vmax.f32 %v1514, %v1547
        %v1580 = vmax.f32 %v1515, %v1548
        %v1581 = vmax.f32 %v1516, %v1549
        %v1582 = vmax.f32 %v1517, %v1550
        %v1583 = vmax.f32 %v1518, %v1551
        %v1584 = vmax.f32 %v1519, %v1552
        %v1585 = vmax.f32 %v1520, %v1553
        %v1586 = vmax.f32 %v1521, %v1554
        %v1587 = vmax.f32 %v1522, %v1555
        %v1588 = vmax.f32 %v1523, %v1556
        %v1589 = vmax.f32 %v1524, %v1557
        %v1590 = vmax.f32 %v1525, %v1558
        %v1591 = vld [vmem:[%s1526 + $0x1] sm:$0xff]
        %v1592 = vld [vmem:[%s1526 + $0x9] sm:$0xff]
        %v1593 = vld [vmem:[%s1526 + $0x19] sm:$0xff]
        %v1594 = vld [vmem:[%s1526 + $0x21] sm:$0xff]
        %v1595 = vld [vmem:[%s1526 + $0x31] sm:$0xff]
        %v1596 = vld [vmem:[%s1526 + $0x39] sm:$0xff]
        %v1597 = vld [vmem:[%s1526 + $0x49] sm:$0xff]
        %v1598 = vld [vmem:[%s1526 + $0x51] sm:$0xff]
        %v1599 = vld [vmem:[%s1526 + $0x61] sm:$0xff]
        %v1600 = vld [vmem:[%s1526 + $0x69] sm:$0xff]
        %v1601 = vld [vmem:[%s1526 + $0x79] sm:$0xff]
        %v1602 = vld [vmem:[%s1526 + $0x81] sm:$0xff]
        %v1603 = vld [vmem:[%s1526 + $0x91] sm:$0xff]
        %v1604 = vld [vmem:[%s1526 + $0x99] sm:$0xff]
        %v1605 = vld [vmem:[%s1526 + $0xa9] sm:$0xff]
        %v1606 = vld [vmem:[%s1526 + $0xb1] sm:$0xff]
        %v1607 = vld [vmem:[%s1526 + $0xc1] sm:$0xff]
        %v1608 = vld [vmem:[%s1526 + $0xc9] sm:$0xff]
        %v1609 = vld [vmem:[%s1526 + $0xd9] sm:$0xff]
        %v1610 = vld [vmem:[%s1526 + $0xe1] sm:$0xff]
        %v1611 = vld [vmem:[%s1526 + $0xf1] sm:$0xff]
        %v1612 = vld [vmem:[%s1526 + $0xf9] sm:$0xff]
        %v1613 = vld [vmem:[%s1526 + $0x109] sm:$0xff]
        %v1614 = vld [vmem:[%s1526 + $0x111] sm:$0xff]
        %v1615 = vld [vmem:[%s1526 + $0x121] sm:$0xff]
        %v1616 = vld [vmem:[%s1526 + $0x129] sm:$0xff]
        %v1617 = vld [vmem:[%s1526 + $0x139] sm:$0xff]
        %v1618 = vld [vmem:[%s1526 + $0x141] sm:$0xff]
        %v1619 = vld [vmem:[%s1526 + $0x151] sm:$0xff]
        %v1620 = vld [vmem:[%s1526 + $0x159] sm:$0xff]
        %v1621 = vld [vmem:[%s1526 + $0x169] sm:$0xff]
        %v1622 = vld [vmem:[%s1526 + $0x171] sm:$0xff]
        %v1623 = vmax.f32 %v1559, %v1591
        %v1624 = vmax.f32 %v1560, %v1592
        %v1625 = vmax.f32 %v1561, %v1593
        %v1626 = vmax.f32 %v1562, %v1594
        %v1627 = vmax.f32 %v1563, %v1595
        %v1628 = vmax.f32 %v1564, %v1596
        %v1629 = vmax.f32 %v1565, %v1597
        %v1630 = vmax.f32 %v1566, %v1598
        %v1631 = vmax.f32 %v1567, %v1599
        %v1632 = vmax.f32 %v1568, %v1600
        %v1633 = vmax.f32 %v1569, %v1601
        %v1634 = vmax.f32 %v1570, %v1602
        %v1635 = vmax.f32 %v1571, %v1603
        %v1636 = vmax.f32 %v1572, %v1604
        %v1637 = vmax.f32 %v1573, %v1605
        %v1638 = vmax.f32 %v1574, %v1606
        %v1639 = vmax.f32 %v1575, %v1607
        %v1640 = vmax.f32 %v1576, %v1608
        %v1641 = vmax.f32 %v1577, %v1609
        %v1642 = vmax.f32 %v1578, %v1610
        %v1643 = vmax.f32 %v1579, %v1611
        %v1644 = vmax.f32 %v1580, %v1612
        %v1645 = vmax.f32 %v1581, %v1613
        %v1646 = vmax.f32 %v1582, %v1614
        %v1647 = vmax.f32 %v1583, %v1615
        %v1648 = vmax.f32 %v1584, %v1616
        %v1649 = vmax.f32 %v1585, %v1617
        %v1650 = vmax.f32 %v1586, %v1618
        %v1651 = vmax.f32 %v1587, %v1619
        %v1652 = vmax.f32 %v1588, %v1620
        %v1653 = vmax.f32 %v1589, %v1621
        %v1654 = vmax.f32 %v1590, %v1622
        %v1655 = vld [vmem:[%s1526 + $0x2] sm:$0xff]
        %v1656 = vld [vmem:[%s1526 + $0xa] sm:$0xff]
        %v1657 = vld [vmem:[%s1526 + $0x1a] sm:$0xff]
        %v1658 = vld [vmem:[%s1526 + $0x22] sm:$0xff]
        %v1659 = vld [vmem:[%s1526 + $0x32] sm:$0xff]
        %v1660 = vld [vmem:[%s1526 + $0x3a] sm:$0xff]
        %v1661 = vld [vmem:[%s1526 + $0x4a] sm:$0xff]
        %v1662 = vld [vmem:[%s1526 + $0x52] sm:$0xff]
        %v1663 = vld [vmem:[%s1526 + $0x62] sm:$0xff]
        %v1664 = vld [vmem:[%s1526 + $0x6a] sm:$0xff]
        %v1665 = vld [vmem:[%s1526 + $0x7a] sm:$0xff]
        %v1666 = vld [vmem:[%s1526 + $0x82] sm:$0xff]
        %v1667 = vld [vmem:[%s1526 + $0x92] sm:$0xff]
        %v1668 = vld [vmem:[%s1526 + $0x9a] sm:$0xff]
        %v1669 = vld [vmem:[%s1526 + $0xaa] sm:$0xff]
        %v1670 = vld [vmem:[%s1526 + $0xb2] sm:$0xff]
        %v1671 = vld [vmem:[%s1526 + $0xc2] sm:$0xff]
        %v1672 = vld [vmem:[%s1526 + $0xca] sm:$0xff]
        %v1673 = vld [vmem:[%s1526 + $0xda] sm:$0xff]
        %v1674 = vld [vmem:[%s1526 + $0xe2] sm:$0xff]
        %v1675 = vld [vmem:[%s1526 + $0xf2] sm:$0xff]
        %v1676 = vld [vmem:[%s1526 + $0xfa] sm:$0xff]
        %v1677 = vld [vmem:[%s1526 + $0x10a] sm:$0xff]
        %v1678 = vld [vmem:[%s1526 + $0x112] sm:$0xff]
        %v1679 = vld [vmem:[%s1526 + $0x122] sm:$0xff]
        %v1680 = vld [vmem:[%s1526 + $0x12a] sm:$0xff]
        %v1681 = vld [vmem:[%s1526 + $0x13a] sm:$0xff]
        %v1682 = vld [vmem:[%s1526 + $0x142] sm:$0xff]
        %v1683 = vld [vmem:[%s1526 + $0x152] sm:$0xff]
        %v1684 = vld [vmem:[%s1526 + $0x15a] sm:$0xff]
        %v1685 = vld [vmem:[%s1526 + $0x16a] sm:$0xff]
        %v1686 = vld [vmem:[%s1526 + $0x172] sm:$0xff]
        %v1687 = vmax.f32 %v1623, %v1655
        %v1688 = vmax.f32 %v1624, %v1656
        %v1689 = vmax.f32 %v1625, %v1657
        %v1690 = vmax.f32 %v1626, %v1658
        %v1691 = vmax.f32 %v1627, %v1659
        %v1692 = vmax.f32 %v1628, %v1660
        %v1693 = vmax.f32 %v1629, %v1661
        %v1694 = vmax.f32 %v1630, %v1662
        %v1695 = vmax.f32 %v1631, %v1663
        %v1696 = vmax.f32 %v1632, %v1664
        %v1697 = vmax.f32 %v1633, %v1665
        %v1698 = vmax.f32 %v1634, %v1666
        %v1699 = vmax.f32 %v1635, %v1667
        %v1700 = vmax.f32 %v1636, %v1668
        %v1701 = vmax.f32 %v1637, %v1669
        %v1702 = vmax.f32 %v1638, %v1670
        %v1703 = vmax.f32 %v1639, %v1671
        %v1704 = vmax.f32 %v1640, %v1672
        %v1705 = vmax.f32 %v1641, %v1673
        %v1706 = vmax.f32 %v1642, %v1674
        %v1707 = vmax.f32 %v1643, %v1675
        %v1708 = vmax.f32 %v1644, %v1676
        %v1709 = vmax.f32 %v1645, %v1677
        %v1710 = vmax.f32 %v1646, %v1678
        %v1711 = vmax.f32 %v1647, %v1679
        %v1712 = vmax.f32 %v1648, %v1680
        %v1713 = vmax.f32 %v1649, %v1681
        %v1714 = vmax.f32 %v1650, %v1682
        %v1715 = vmax.f32 %v1651, %v1683
        %v1716 = vmax.f32 %v1652, %v1684
        %v1717 = vmax.f32 %v1653, %v1685
        %v1718 = vmax.f32 %v1654, %v1686
        %v1719 = vld [vmem:[%s1526 + $0x3] sm:$0xff]
        %v1720 = vld [vmem:[%s1526 + $0xb] sm:$0xff]
        %v1721 = vld [vmem:[%s1526 + $0x1b] sm:$0xff]
        %v1722 = vld [vmem:[%s1526 + $0x23] sm:$0xff]
        %v1723 = vld [vmem:[%s1526 + $0x33] sm:$0xff]
        %v1724 = vld [vmem:[%s1526 + $0x3b] sm:$0xff]
        %v1725 = vld [vmem:[%s1526 + $0x4b] sm:$0xff]
        %v1726 = vld [vmem:[%s1526 + $0x53] sm:$0xff]
        %v1727 = vld [vmem:[%s1526 + $0x63] sm:$0xff]
        %v1728 = vld [vmem:[%s1526 + $0x6b] sm:$0xff]
        %v1729 = vld [vmem:[%s1526 + $0x7b] sm:$0xff]
        %v1730 = vld [vmem:[%s1526 + $0x83] sm:$0xff]
        %v1731 = vld [vmem:[%s1526 + $0x93] sm:$0xff]
        %v1732 = vld [vmem:[%s1526 + $0x9b] sm:$0xff]
        %v1733 = vld [vmem:[%s1526 + $0xab] sm:$0xff]
        %v1734 = vld [vmem:[%s1526 + $0xb3] sm:$0xff]
        %v1735 = vld [vmem:[%s1526 + $0xc3] sm:$0xff]
        %v1736 = vld [vmem:[%s1526 + $0xcb] sm:$0xff]
        %v1737 = vld [vmem:[%s1526 + $0xdb] sm:$0xff]
        %v1738 = vld [vmem:[%s1526 + $0xe3] sm:$0xff]
        %v1739 = vld [vmem:[%s1526 + $0xf3] sm:$0xff]
        %v1740 = vld [vmem:[%s1526 + $0xfb] sm:$0xff]
        %v1741 = vld [vmem:[%s1526 + $0x10b] sm:$0xff]
        %v1742 = vld [vmem:[%s1526 + $0x113] sm:$0xff]
        %v1743 = vld [vmem:[%s1526 + $0x123] sm:$0xff]
        %v1744 = vld [vmem:[%s1526 + $0x12b] sm:$0xff]
        %v1745 = vld [vmem:[%s1526 + $0x13b] sm:$0xff]
        %v1746 = vld [vmem:[%s1526 + $0x143] sm:$0xff]
        %v1747 = vld [vmem:[%s1526 + $0x153] sm:$0xff]
        %v1748 = vld [vmem:[%s1526 + $0x15b] sm:$0xff]
        %v1749 = vld [vmem:[%s1526 + $0x16b] sm:$0xff]
        %v1750 = vld [vmem:[%s1526 + $0x173] sm:$0xff]
        %v1751 = vmax.f32 %v1687, %v1719
        %v1752 = vmax.f32 %v1688, %v1720
        %v1753 = vmax.f32 %v1689, %v1721
        %v1754 = vmax.f32 %v1690, %v1722
        %v1755 = vmax.f32 %v1691, %v1723
        %v1756 = vmax.f32 %v1692, %v1724
        %v1757 = vmax.f32 %v1693, %v1725
        %v1758 = vmax.f32 %v1694, %v1726
        %v1759 = vmax.f32 %v1695, %v1727
        %v1760 = vmax.f32 %v1696, %v1728
        %v1761 = vmax.f32 %v1697, %v1729
        %v1762 = vmax.f32 %v1698, %v1730
        %v1763 = vmax.f32 %v1699, %v1731
        %v1764 = vmax.f32 %v1700, %v1732
        %v1765 = vmax.f32 %v1701, %v1733
        %v1766 = vmax.f32 %v1702, %v1734
        %v1767 = vmax.f32 %v1703, %v1735
        %v1768 = vmax.f32 %v1704, %v1736
        %v1769 = vmax.f32 %v1705, %v1737
        %v1770 = vmax.f32 %v1706, %v1738
        %v1771 = vmax.f32 %v1707, %v1739
        %v1772 = vmax.f32 %v1708, %v1740
        %v1773 = vmax.f32 %v1709, %v1741
        %v1774 = vmax.f32 %v1710, %v1742
        %v1775 = vmax.f32 %v1711, %v1743
        %v1776 = vmax.f32 %v1712, %v1744
        %v1777 = vmax.f32 %v1713, %v1745
        %v1778 = vmax.f32 %v1714, %v1746
        %v1779 = vmax.f32 %v1715, %v1747
        %v1780 = vmax.f32 %v1716, %v1748
        %v1781 = vmax.f32 %v1717, %v1749
        %v1782 = vmax.f32 %v1718, %v1750
        %v1783 = vld [vmem:[%s1526 + $0x4] sm:$0xff]
        %v1784 = vld [vmem:[%s1526 + $0xc] sm:$0xff]
        %v1785 = vld [vmem:[%s1526 + $0x1c] sm:$0xff]
        %v1786 = vld [vmem:[%s1526 + $0x24] sm:$0xff]
        %v1787 = vld [vmem:[%s1526 + $0x34] sm:$0xff]
        %v1788 = vld [vmem:[%s1526 + $0x3c] sm:$0xff]
        %v1789 = vld [vmem:[%s1526 + $0x4c] sm:$0xff]
        %v1790 = vld [vmem:[%s1526 + $0x54] sm:$0xff]
        %v1791 = vld [vmem:[%s1526 + $0x64] sm:$0xff]
        %v1792 = vld [vmem:[%s1526 + $0x6c] sm:$0xff]
        %v1793 = vld [vmem:[%s1526 + $0x7c] sm:$0xff]
        %v1794 = vld [vmem:[%s1526 + $0x84] sm:$0xff]
        %v1795 = vld [vmem:[%s1526 + $0x94] sm:$0xff]
        %v1796 = vld [vmem:[%s1526 + $0x9c] sm:$0xff]
        %v1797 = vld [vmem:[%s1526 + $0xac] sm:$0xff]
        %v1798 = vld [vmem:[%s1526 + $0xb4] sm:$0xff]
        %v1799 = vld [vmem:[%s1526 + $0xc4] sm:$0xff]
        %v1800 = vld [vmem:[%s1526 + $0xcc] sm:$0xff]
        %v1801 = vld [vmem:[%s1526 + $0xdc] sm:$0xff]
        %v1802 = vld [vmem:[%s1526 + $0xe4] sm:$0xff]
        %v1803 = vld [vmem:[%s1526 + $0xf4] sm:$0xff]
        %v1804 = vld [vmem:[%s1526 + $0xfc] sm:$0xff]
        %v1805 = vld [vmem:[%s1526 + $0x10c] sm:$0xff]
        %v1806 = vld [vmem:[%s1526 + $0x114] sm:$0xff]
        %v1807 = vld [vmem:[%s1526 + $0x124] sm:$0xff]
        %v1808 = vld [vmem:[%s1526 + $0x12c] sm:$0xff]
        %v1809 = vld [vmem:[%s1526 + $0x13c] sm:$0xff]
        %v1810 = vld [vmem:[%s1526 + $0x144] sm:$0xff]
        %v1811 = vld [vmem:[%s1526 + $0x154] sm:$0xff]
        %v1812 = vld [vmem:[%s1526 + $0x15c] sm:$0xff]
        %v1813 = vld [vmem:[%s1526 + $0x16c] sm:$0xff]
        %v1814 = vld [vmem:[%s1526 + $0x174] sm:$0xff]
        %v1815 = vmax.f32 %v1751, %v1783
        %v1816 = vmax.f32 %v1752, %v1784
        %v1817 = vmax.f32 %v1753, %v1785
        %v1818 = vmax.f32 %v1754, %v1786
        %v1819 = vmax.f32 %v1755, %v1787
        %v1820 = vmax.f32 %v1756, %v1788
        %v1821 = vmax.f32 %v1757, %v1789
        %v1822 = vmax.f32 %v1758, %v1790
        %v1823 = vmax.f32 %v1759, %v1791
        %v1824 = vmax.f32 %v1760, %v1792
        %v1825 = vmax.f32 %v1761, %v1793
        %v1826 = vmax.f32 %v1762, %v1794
        %v1827 = vmax.f32 %v1763, %v1795
        %v1828 = vmax.f32 %v1764, %v1796
        %v1829 = vmax.f32 %v1765, %v1797
        %v1830 = vmax.f32 %v1766, %v1798
        %v1831 = vmax.f32 %v1767, %v1799
        %v1832 = vmax.f32 %v1768, %v1800
        %v1833 = vmax.f32 %v1769, %v1801
        %v1834 = vmax.f32 %v1770, %v1802
        %v1835 = vmax.f32 %v1771, %v1803
        %v1836 = vmax.f32 %v1772, %v1804
        %v1837 = vmax.f32 %v1773, %v1805
        %v1838 = vmax.f32 %v1774, %v1806
        %v1839 = vmax.f32 %v1775, %v1807
        %v1840 = vmax.f32 %v1776, %v1808
        %v1841 = vmax.f32 %v1777, %v1809
        %v1842 = vmax.f32 %v1778, %v1810
        %v1843 = vmax.f32 %v1779, %v1811
        %v1844 = vmax.f32 %v1780, %v1812
        %v1845 = vmax.f32 %v1781, %v1813
        %v1846 = vmax.f32 %v1782, %v1814
        %v1847 = vld [vmem:[%s1205] sm:$0xff]
        %v1848 = vld [vmem:[%s1205 + $0x8] sm:$0xff]
        %v1849 = vld [vmem:[%s1205 + $0x18] sm:$0xff]
        %v1850 = vld [vmem:[%s1205 + $0x20] sm:$0xff]
        %v1851 = vld [vmem:[%s1205 + $0x30] sm:$0xff]
        %v1852 = vld [vmem:[%s1205 + $0x38] sm:$0xff]
        %v1853 = vld [vmem:[%s1205 + $0x48] sm:$0xff]
        %v1854 = vld [vmem:[%s1205 + $0x50] sm:$0xff]
        %v1855 = vld [vmem:[%s1205 + $0x60] sm:$0xff]
        %v1856 = vld [vmem:[%s1205 + $0x68] sm:$0xff]
        %v1857 = vld [vmem:[%s1205 + $0x78] sm:$0xff]
        %v1858 = vld [vmem:[%s1205 + $0x80] sm:$0xff]
        %v1859 = vld [vmem:[%s1205 + $0x90] sm:$0xff]
        %v1860 = vld [vmem:[%s1205 + $0x98] sm:$0xff]
        %v1861 = vld [vmem:[%s1205 + $0xa8] sm:$0xff]
        %v1862 = vld [vmem:[%s1205 + $0xb0] sm:$0xff]
        %v1863 = vld [vmem:[%s1205 + $0xc0] sm:$0xff]
        %v1864 = vld [vmem:[%s1205 + $0xc8] sm:$0xff]
        %v1865 = vld [vmem:[%s1205 + $0xd8] sm:$0xff]
        %v1866 = vld [vmem:[%s1205 + $0xe0] sm:$0xff]
        %v1867 = vld [vmem:[%s1205 + $0xf0] sm:$0xff]
        %v1868 = vld [vmem:[%s1205 + $0xf8] sm:$0xff]
        %v1869 = vld [vmem:[%s1205 + $0x108] sm:$0xff]
        %v1870 = vld [vmem:[%s1205 + $0x110] sm:$0xff]
        %v1871 = vld [vmem:[%s1205 + $0x120] sm:$0xff]
        %v1872 = vld [vmem:[%s1205 + $0x128] sm:$0xff]
        %v1873 = vld [vmem:[%s1205 + $0x138] sm:$0xff]
        %v1874 = vld [vmem:[%s1205 + $0x140] sm:$0xff]
        %v1875 = vld [vmem:[%s1205 + $0x150] sm:$0xff]
        %v1876 = vld [vmem:[%s1205 + $0x158] sm:$0xff]
        %v1877 = vld [vmem:[%s1205 + $0x168] sm:$0xff]
        %v1878 = vld [vmem:[%s1205 + $0x170] sm:$0xff]
        %v1879 = vmax.f32 %v1815, %v1847
        %v1880 = vmax.f32 %v1816, %v1848
        %v1881 = vmax.f32 %v1817, %v1849
        %v1882 = vmax.f32 %v1818, %v1850
        %v1883 = vmax.f32 %v1819, %v1851
        %v1884 = vmax.f32 %v1820, %v1852
        %v1885 = vmax.f32 %v1821, %v1853
        %v1886 = vmax.f32 %v1822, %v1854
        %v1887 = vmax.f32 %v1823, %v1855
        %v1888 = vmax.f32 %v1824, %v1856
        %v1889 = vmax.f32 %v1825, %v1857
        %v1890 = vmax.f32 %v1826, %v1858
        %v1891 = vmax.f32 %v1827, %v1859
        %v1892 = vmax.f32 %v1828, %v1860
        %v1893 = vmax.f32 %v1829, %v1861
        %v1894 = vmax.f32 %v1830, %v1862
        %v1895 = vmax.f32 %v1831, %v1863
        %v1896 = vmax.f32 %v1832, %v1864
        %v1897 = vmax.f32 %v1833, %v1865
        %v1898 = vmax.f32 %v1834, %v1866
        %v1899 = vmax.f32 %v1835, %v1867
        %v1900 = vmax.f32 %v1836, %v1868
        %v1901 = vmax.f32 %v1837, %v1869
        %v1902 = vmax.f32 %v1838, %v1870
        %v1903 = vmax.f32 %v1839, %v1871
        %v1904 = vmax.f32 %v1840, %v1872
        %v1905 = vmax.f32 %v1841, %v1873
        %v1906 = vmax.f32 %v1842, %v1874
        %v1907 = vmax.f32 %v1843, %v1875
        %v1908 = vmax.f32 %v1844, %v1876
        %v1909 = vmax.f32 %v1845, %v1877
        %v1910 = vmax.f32 %v1846, %v1878
        %v1911 = vld [vmem:[%s1205 + $0x1] sm:$0xff]
        %v1912 = vld [vmem:[%s1205 + $0x9] sm:$0xff]
        %v1913 = vld [vmem:[%s1205 + $0x19] sm:$0xff]
        %v1914 = vld [vmem:[%s1205 + $0x21] sm:$0xff]
        %v1915 = vld [vmem:[%s1205 + $0x31] sm:$0xff]
        %v1916 = vld [vmem:[%s1205 + $0x39] sm:$0xff]
        %v1917 = vld [vmem:[%s1205 + $0x49] sm:$0xff]
        %v1918 = vld [vmem:[%s1205 + $0x51] sm:$0xff]
        %v1919 = vld [vmem:[%s1205 + $0x61] sm:$0xff]
        %v1920 = vld [vmem:[%s1205 + $0x69] sm:$0xff]
        %v1921 = vld [vmem:[%s1205 + $0x79] sm:$0xff]
        %v1922 = vld [vmem:[%s1205 + $0x81] sm:$0xff]
        %v1923 = vld [vmem:[%s1205 + $0x91] sm:$0xff]
        %v1924 = vld [vmem:[%s1205 + $0x99] sm:$0xff]
        %v1925 = vld [vmem:[%s1205 + $0xa9] sm:$0xff]
        %v1926 = vld [vmem:[%s1205 + $0xb1] sm:$0xff]
        %v1927 = vld [vmem:[%s1205 + $0xc1] sm:$0xff]
        %v1928 = vld [vmem:[%s1205 + $0xc9] sm:$0xff]
        %v1929 = vld [vmem:[%s1205 + $0xd9] sm:$0xff]
        %v1930 = vld [vmem:[%s1205 + $0xe1] sm:$0xff]
        %v1931 = vld [vmem:[%s1205 + $0xf1] sm:$0xff]
        %v1932 = vld [vmem:[%s1205 + $0xf9] sm:$0xff]
        %v1933 = vld [vmem:[%s1205 + $0x109] sm:$0xff]
        %v1934 = vld [vmem:[%s1205 + $0x111] sm:$0xff]
        %v1935 = vld [vmem:[%s1205 + $0x121] sm:$0xff]
        %v1936 = vld [vmem:[%s1205 + $0x129] sm:$0xff]
        %v1937 = vld [vmem:[%s1205 + $0x139] sm:$0xff]
        %v1938 = vld [vmem:[%s1205 + $0x141] sm:$0xff]
        %v1939 = vld [vmem:[%s1205 + $0x151] sm:$0xff]
        %v1940 = vld [vmem:[%s1205 + $0x159] sm:$0xff]
        %v1941 = vld [vmem:[%s1205 + $0x169] sm:$0xff]
        %v1942 = vld [vmem:[%s1205 + $0x171] sm:$0xff]
        %v1943 = vmax.f32 %v1879, %v1911
        %v1944 = vmax.f32 %v1880, %v1912
        %v1945 = vmax.f32 %v1881, %v1913
        %v1946 = vmax.f32 %v1882, %v1914
        %v1947 = vmax.f32 %v1883, %v1915
        %v1948 = vmax.f32 %v1884, %v1916
        %v1949 = vmax.f32 %v1885, %v1917
        %v1950 = vmax.f32 %v1886, %v1918
        %v1951 = vmax.f32 %v1887, %v1919
        %v1952 = vmax.f32 %v1888, %v1920
        %v1953 = vmax.f32 %v1889, %v1921
        %v1954 = vmax.f32 %v1890, %v1922
        %v1955 = vmax.f32 %v1891, %v1923
        %v1956 = vmax.f32 %v1892, %v1924
        %v1957 = vmax.f32 %v1893, %v1925
        %v1958 = vmax.f32 %v1894, %v1926
        %v1959 = vmax.f32 %v1895, %v1927
        %v1960 = vmax.f32 %v1896, %v1928
        %v1961 = vmax.f32 %v1897, %v1929
        %v1962 = vmax.f32 %v1898, %v1930
        %v1963 = vmax.f32 %v1899, %v1931
        %v1964 = vmax.f32 %v1900, %v1932
        %v1965 = vmax.f32 %v1901, %v1933
        %v1966 = vmax.f32 %v1902, %v1934
        %v1967 = vmax.f32 %v1903, %v1935
        %v1968 = vmax.f32 %v1904, %v1936
        %v1969 = vmax.f32 %v1905, %v1937
        %v1970 = vmax.f32 %v1906, %v1938
        %v1971 = vmax.f32 %v1907, %v1939
        %v1972 = vmax.f32 %v1908, %v1940
        %v1973 = vmax.f32 %v1909, %v1941
        %v1974 = vmax.f32 %v1910, %v1942
        %v1975 = vld [vmem:[%s1205 + $0x2] sm:$0xff]
        %v1976 = vld [vmem:[%s1205 + $0xa] sm:$0xff]
        %v1977 = vld [vmem:[%s1205 + $0x1a] sm:$0xff]
        %v1978 = vld [vmem:[%s1205 + $0x22] sm:$0xff]
        %v1979 = vld [vmem:[%s1205 + $0x32] sm:$0xff]
        %v1980 = vld [vmem:[%s1205 + $0x3a] sm:$0xff]
        %v1981 = vld [vmem:[%s1205 + $0x4a] sm:$0xff]
        %v1982 = vld [vmem:[%s1205 + $0x52] sm:$0xff]
        %v1983 = vld [vmem:[%s1205 + $0x62] sm:$0xff]
        %v1984 = vld [vmem:[%s1205 + $0x6a] sm:$0xff]
        %v1985 = vld [vmem:[%s1205 + $0x7a] sm:$0xff]
        %v1986 = vld [vmem:[%s1205 + $0x82] sm:$0xff]
        %v1987 = vld [vmem:[%s1205 + $0x92] sm:$0xff]
        %v1988 = vld [vmem:[%s1205 + $0x9a] sm:$0xff]
        %v1989 = vld [vmem:[%s1205 + $0xaa] sm:$0xff]
        %v1990 = vld [vmem:[%s1205 + $0xb2] sm:$0xff]
        %v1991 = vld [vmem:[%s1205 + $0xc2] sm:$0xff]
        %v1992 = vld [vmem:[%s1205 + $0xca] sm:$0xff]
        %v1993 = vld [vmem:[%s1205 + $0xda] sm:$0xff]
        %v1994 = vld [vmem:[%s1205 + $0xe2] sm:$0xff]
        %v1995 = vld [vmem:[%s1205 + $0xf2] sm:$0xff]
        %v1996 = vld [vmem:[%s1205 + $0xfa] sm:$0xff]
        %v1997 = vld [vmem:[%s1205 + $0x10a] sm:$0xff]
        %v1998 = vld [vmem:[%s1205 + $0x112] sm:$0xff]
        %v1999 = vld [vmem:[%s1205 + $0x122] sm:$0xff]
        %v2000 = vld [vmem:[%s1205 + $0x12a] sm:$0xff]
        %v2001 = vld [vmem:[%s1205 + $0x13a] sm:$0xff]
        %v2002 = vld [vmem:[%s1205 + $0x142] sm:$0xff]
        %v2003 = vld [vmem:[%s1205 + $0x152] sm:$0xff]
        %v2004 = vld [vmem:[%s1205 + $0x15a] sm:$0xff]
        %v2005 = vld [vmem:[%s1205 + $0x16a] sm:$0xff]
        %v2006 = vld [vmem:[%s1205 + $0x172] sm:$0xff]
        %v2007 = vmax.f32 %v1943, %v1975
        %v2008 = vmax.f32 %v1944, %v1976
        %v2009 = vmax.f32 %v1945, %v1977
        %v2010 = vmax.f32 %v1946, %v1978
        %v2011 = vmax.f32 %v1947, %v1979
        %v2012 = vmax.f32 %v1948, %v1980
        %v2013 = vmax.f32 %v1949, %v1981
        %v2014 = vmax.f32 %v1950, %v1982
        %v2015 = vmax.f32 %v1951, %v1983
        %v2016 = vmax.f32 %v1952, %v1984
        %v2017 = vmax.f32 %v1953, %v1985
        %v2018 = vmax.f32 %v1954, %v1986
        %v2019 = vmax.f32 %v1955, %v1987
        %v2020 = vmax.f32 %v1956, %v1988
        %v2021 = vmax.f32 %v1957, %v1989
        %v2022 = vmax.f32 %v1958, %v1990
        %v2023 = vmax.f32 %v1959, %v1991
        %v2024 = vmax.f32 %v1960, %v1992
        %v2025 = vmax.f32 %v1961, %v1993
        %v2026 = vmax.f32 %v1962, %v1994
        %v2027 = vmax.f32 %v1963, %v1995
        %v2028 = vmax.f32 %v1964, %v1996
        %v2029 = vmax.f32 %v1965, %v1997
        %v2030 = vmax.f32 %v1966, %v1998
        %v2031 = vmax.f32 %v1967, %v1999
        %v2032 = vmax.f32 %v1968, %v2000
        %v2033 = vmax.f32 %v1969, %v2001
        %v2034 = vmax.f32 %v1970, %v2002
        %v2035 = vmax.f32 %v1971, %v2003
        %v2036 = vmax.f32 %v1972, %v2004
        %v2037 = vmax.f32 %v1973, %v2005
        %v2038 = vmax.f32 %v1974, %v2006
        %v2039 = vld [vmem:[%s1205 + $0x3] sm:$0xff]
        %v2040 = vld [vmem:[%s1205 + $0xb] sm:$0xff]
        %v2041 = vld [vmem:[%s1205 + $0x1b] sm:$0xff]
        %v2042 = vld [vmem:[%s1205 + $0x23] sm:$0xff]
        %v2043 = vld [vmem:[%s1205 + $0x33] sm:$0xff]
        %v2044 = vld [vmem:[%s1205 + $0x3b] sm:$0xff]
        %v2045 = vld [vmem:[%s1205 + $0x4b] sm:$0xff]
        %v2046 = vld [vmem:[%s1205 + $0x53] sm:$0xff]
        %v2047 = vld [vmem:[%s1205 + $0x63] sm:$0xff]
        %v2048 = vld [vmem:[%s1205 + $0x6b] sm:$0xff]
        %v2049 = vld [vmem:[%s1205 + $0x7b] sm:$0xff]
        %v2050 = vld [vmem:[%s1205 + $0x83] sm:$0xff]
        %v2051 = vld [vmem:[%s1205 + $0x93] sm:$0xff]
        %v2052 = vld [vmem:[%s1205 + $0x9b] sm:$0xff]
        %v2053 = vld [vmem:[%s1205 + $0xab] sm:$0xff]
        %v2054 = vld [vmem:[%s1205 + $0xb3] sm:$0xff]
        %v2055 = vld [vmem:[%s1205 + $0xc3] sm:$0xff]
        %v2056 = vld [vmem:[%s1205 + $0xcb] sm:$0xff]
        %v2057 = vld [vmem:[%s1205 + $0xdb] sm:$0xff]
        %v2058 = vld [vmem:[%s1205 + $0xe3] sm:$0xff]
        %v2059 = vld [vmem:[%s1205 + $0xf3] sm:$0xff]
        %v2060 = vld [vmem:[%s1205 + $0xfb] sm:$0xff]
        %v2061 = vld [vmem:[%s1205 + $0x10b] sm:$0xff]
        %v2062 = vld [vmem:[%s1205 + $0x113] sm:$0xff]
        %v2063 = vld [vmem:[%s1205 + $0x123] sm:$0xff]
        %v2064 = vld [vmem:[%s1205 + $0x12b] sm:$0xff]
        %v2065 = vld [vmem:[%s1205 + $0x13b] sm:$0xff]
        %v2066 = vld [vmem:[%s1205 + $0x143] sm:$0xff]
        %v2067 = vld [vmem:[%s1205 + $0x153] sm:$0xff]
        %v2068 = vld [vmem:[%s1205 + $0x15b] sm:$0xff]
        %v2069 = vld [vmem:[%s1205 + $0x16b] sm:$0xff]
        %v2070 = vld [vmem:[%s1205 + $0x173] sm:$0xff]
        %v2071 = vmax.f32 %v2007, %v2039
        %v2072 = vmax.f32 %v2008, %v2040
        %v2073 = vmax.f32 %v2009, %v2041
        %v2074 = vmax.f32 %v2010, %v2042
        %v2075 = vmax.f32 %v2011, %v2043
        %v2076 = vmax.f32 %v2012, %v2044
        %v2077 = vmax.f32 %v2013, %v2045
        %v2078 = vmax.f32 %v2014, %v2046
        %v2079 = vmax.f32 %v2015, %v2047
        %v2080 = vmax.f32 %v2016, %v2048
        %v2081 = vmax.f32 %v2017, %v2049
        %v2082 = vmax.f32 %v2018, %v2050
        %v2083 = vmax.f32 %v2019, %v2051
        %v2084 = vmax.f32 %v2020, %v2052
        %v2085 = vmax.f32 %v2021, %v2053
        %v2086 = vmax.f32 %v2022, %v2054
        %v2087 = vmax.f32 %v2023, %v2055
        %v2088 = vmax.f32 %v2024, %v2056
        %v2089 = vmax.f32 %v2025, %v2057
        %v2090 = vmax.f32 %v2026, %v2058
        %v2091 = vmax.f32 %v2027, %v2059
        %v2092 = vmax.f32 %v2028, %v2060
        %v2093 = vmax.f32 %v2029, %v2061
        %v2094 = vmax.f32 %v2030, %v2062
        %v2095 = vmax.f32 %v2031, %v2063
        %v2096 = vmax.f32 %v2032, %v2064
        %v2097 = vmax.f32 %v2033, %v2065
        %v2098 = vmax.f32 %v2034, %v2066
        %v2099 = vmax.f32 %v2035, %v2067
        %v2100 = vmax.f32 %v2036, %v2068
        %v2101 = vmax.f32 %v2037, %v2069
        %v2102 = vmax.f32 %v2038, %v2070
        %v2103 = vld [vmem:[%s1205 + $0x4] sm:$0xff]
        %v2104 = vld [vmem:[%s1205 + $0xc] sm:$0xff]
        %v2105 = vld [vmem:[%s1205 + $0x1c] sm:$0xff]
        %v2106 = vld [vmem:[%s1205 + $0x24] sm:$0xff]
        %v2107 = vld [vmem:[%s1205 + $0x34] sm:$0xff]
        %v2108 = vld [vmem:[%s1205 + $0x3c] sm:$0xff]
        %v2109 = vld [vmem:[%s1205 + $0x4c] sm:$0xff]
        %v2110 = vld [vmem:[%s1205 + $0x54] sm:$0xff]
        %v2111 = vld [vmem:[%s1205 + $0x64] sm:$0xff]
        %v2112 = vld [vmem:[%s1205 + $0x6c] sm:$0xff]
        %v2113 = vld [vmem:[%s1205 + $0x7c] sm:$0xff]
        %v2114 = vld [vmem:[%s1205 + $0x84] sm:$0xff]
        %v2115 = vld [vmem:[%s1205 + $0x94] sm:$0xff]
        %v2116 = vld [vmem:[%s1205 + $0x9c] sm:$0xff]
        %v2117 = vld [vmem:[%s1205 + $0xac] sm:$0xff]
        %v2118 = vld [vmem:[%s1205 + $0xb4] sm:$0xff]
        %v2119 = vld [vmem:[%s1205 + $0xc4] sm:$0xff]
        %v2120 = vld [vmem:[%s1205 + $0xcc] sm:$0xff]
        %v2121 = vld [vmem:[%s1205 + $0xdc] sm:$0xff]
        %v2122 = vld [vmem:[%s1205 + $0xe4] sm:$0xff]
        %v2123 = vld [vmem:[%s1205 + $0xf4] sm:$0xff]
        %v2124 = vld [vmem:[%s1205 + $0xfc] sm:$0xff]
        %v2125 = vld [vmem:[%s1205 + $0x10c] sm:$0xff]
        %v2126 = vld [vmem:[%s1205 + $0x114] sm:$0xff]
        %v2127 = vld [vmem:[%s1205 + $0x124] sm:$0xff]
        %v2128 = vld [vmem:[%s1205 + $0x12c] sm:$0xff]
        %v2129 = vld [vmem:[%s1205 + $0x13c] sm:$0xff]
        %v2130 = vld [vmem:[%s1205 + $0x144] sm:$0xff]
        %v2131 = vld [vmem:[%s1205 + $0x154] sm:$0xff]
        %v2132 = vld [vmem:[%s1205 + $0x15c] sm:$0xff]
        %v2133 = vld [vmem:[%s1205 + $0x16c] sm:$0xff]
        %v2134 = vld [vmem:[%s1205 + $0x174] sm:$0xff]
        %v2135 = vmax.f32 %v2071, %v2103
        %v2136 = vmax.f32 %v2072, %v2104
        %v2137 = vmax.f32 %v2073, %v2105
        %v2138 = vmax.f32 %v2074, %v2106
        %v2139 = vmax.f32 %v2075, %v2107
        %v2140 = vmax.f32 %v2076, %v2108
        %v2141 = vmax.f32 %v2077, %v2109
        %v2142 = vmax.f32 %v2078, %v2110
        %v2143 = vmax.f32 %v2079, %v2111
        %v2144 = vmax.f32 %v2080, %v2112
        %v2145 = vmax.f32 %v2081, %v2113
        %v2146 = vmax.f32 %v2082, %v2114
        %v2147 = vmax.f32 %v2083, %v2115
        %v2148 = vmax.f32 %v2084, %v2116
        %v2149 = vmax.f32 %v2085, %v2117
        %v2150 = vmax.f32 %v2086, %v2118
        %v2151 = vmax.f32 %v2087, %v2119
        %v2152 = vmax.f32 %v2088, %v2120
        %v2153 = vmax.f32 %v2089, %v2121
        %v2154 = vmax.f32 %v2090, %v2122
        %v2155 = vmax.f32 %v2091, %v2123
        %v2156 = vmax.f32 %v2092, %v2124
        %v2157 = vmax.f32 %v2093, %v2125
        %v2158 = vmax.f32 %v2094, %v2126
        %v2159 = vmax.f32 %v2095, %v2127
        %v2160 = vmax.f32 %v2096, %v2128
        %v2161 = vmax.f32 %v2097, %v2129
        %v2162 = vmax.f32 %v2098, %v2130
        %v2163 = vmax.f32 %v2099, %v2131
        %v2164 = vmax.f32 %v2100, %v2132
        %v2165 = vmax.f32 %v2101, %v2133
        %v2166 = vmax.f32 %v2102, %v2134
        %s2167 = scalar_lea.vmem [#allocation2], 72
        %v2168 = vld [vmem:[%s2167] sm:$0xff]
        %v2169 = vld [vmem:[%s2167 + $0x8] sm:$0xff]
        %v2170 = vld [vmem:[%s2167 + $0x18] sm:$0xff]
        %v2171 = vld [vmem:[%s2167 + $0x20] sm:$0xff]
        %v2172 = vld [vmem:[%s2167 + $0x30] sm:$0xff]
        %v2173 = vld [vmem:[%s2167 + $0x38] sm:$0xff]
        %v2174 = vld [vmem:[%s2167 + $0x48] sm:$0xff]
        %v2175 = vld [vmem:[%s2167 + $0x50] sm:$0xff]
        %v2176 = vld [vmem:[%s2167 + $0x60] sm:$0xff]
        %v2177 = vld [vmem:[%s2167 + $0x68] sm:$0xff]
        %v2178 = vld [vmem:[%s2167 + $0x78] sm:$0xff]
        %v2179 = vld [vmem:[%s2167 + $0x80] sm:$0xff]
        %v2180 = vld [vmem:[%s2167 + $0x90] sm:$0xff]
        %v2181 = vld [vmem:[%s2167 + $0x98] sm:$0xff]
        %v2182 = vld [vmem:[%s2167 + $0xa8] sm:$0xff]
        %v2183 = vld [vmem:[%s2167 + $0xb0] sm:$0xff]
        %v2184 = vld [vmem:[%s2167 + $0xc0] sm:$0xff]
        %v2185 = vld [vmem:[%s2167 + $0xc8] sm:$0xff]
        %v2186 = vld [vmem:[%s2167 + $0xd8] sm:$0xff]
        %v2187 = vld [vmem:[%s2167 + $0xe0] sm:$0xff]
        %v2188 = vld [vmem:[%s2167 + $0xf0] sm:$0xff]
        %v2189 = vld [vmem:[%s2167 + $0xf8] sm:$0xff]
        %v2190 = vld [vmem:[%s2167 + $0x108] sm:$0xff]
        %v2191 = vld [vmem:[%s2167 + $0x110] sm:$0xff]
        %v2192 = vld [vmem:[%s2167 + $0x120] sm:$0xff]
        %v2193 = vld [vmem:[%s2167 + $0x128] sm:$0xff]
        %v2194 = vld [vmem:[%s2167 + $0x138] sm:$0xff]
        %v2195 = vld [vmem:[%s2167 + $0x140] sm:$0xff]
        %v2196 = vld [vmem:[%s2167 + $0x150] sm:$0xff]
        %v2197 = vld [vmem:[%s2167 + $0x158] sm:$0xff]
        %v2198 = vld [vmem:[%s2167 + $0x168] sm:$0xff]
        %v2199 = vld [vmem:[%s2167 + $0x170] sm:$0xff]
        %v2200 = vmax.f32 %v2135, %v2168
        %v2201 = vmax.f32 %v2136, %v2169
        %v2202 = vmax.f32 %v2137, %v2170
        %v2203 = vmax.f32 %v2138, %v2171
        %v2204 = vmax.f32 %v2139, %v2172
        %v2205 = vmax.f32 %v2140, %v2173
        %v2206 = vmax.f32 %v2141, %v2174
        %v2207 = vmax.f32 %v2142, %v2175
        %v2208 = vmax.f32 %v2143, %v2176
        %v2209 = vmax.f32 %v2144, %v2177
        %v2210 = vmax.f32 %v2145, %v2178
        %v2211 = vmax.f32 %v2146, %v2179
        %v2212 = vmax.f32 %v2147, %v2180
        %v2213 = vmax.f32 %v2148, %v2181
        %v2214 = vmax.f32 %v2149, %v2182
        %v2215 = vmax.f32 %v2150, %v2183
        %v2216 = vmax.f32 %v2151, %v2184
        %v2217 = vmax.f32 %v2152, %v2185
        %v2218 = vmax.f32 %v2153, %v2186
        %v2219 = vmax.f32 %v2154, %v2187
        %v2220 = vmax.f32 %v2155, %v2188
        %v2221 = vmax.f32 %v2156, %v2189
        %v2222 = vmax.f32 %v2157, %v2190
        %v2223 = vmax.f32 %v2158, %v2191
        %v2224 = vmax.f32 %v2159, %v2192
        %v2225 = vmax.f32 %v2160, %v2193
        %v2226 = vmax.f32 %v2161, %v2194
        %v2227 = vmax.f32 %v2162, %v2195
        %v2228 = vmax.f32 %v2163, %v2196
        %v2229 = vmax.f32 %v2164, %v2197
        %v2230 = vmax.f32 %v2165, %v2198
        %v2231 = vmax.f32 %v2166, %v2199
        %v2232 = vld [vmem:[%s2167 + $0x1] sm:$0xff]
        %v2233 = vld [vmem:[%s2167 + $0x9] sm:$0xff]
        %v2234 = vld [vmem:[%s2167 + $0x19] sm:$0xff]
        %v2235 = vld [vmem:[%s2167 + $0x21] sm:$0xff]
        %v2236 = vld [vmem:[%s2167 + $0x31] sm:$0xff]
        %v2237 = vld [vmem:[%s2167 + $0x39] sm:$0xff]
        %v2238 = vld [vmem:[%s2167 + $0x49] sm:$0xff]
        %v2239 = vld [vmem:[%s2167 + $0x51] sm:$0xff]
        %v2240 = vld [vmem:[%s2167 + $0x61] sm:$0xff]
        %v2241 = vld [vmem:[%s2167 + $0x69] sm:$0xff]
        %v2242 = vld [vmem:[%s2167 + $0x79] sm:$0xff]
        %v2243 = vld [vmem:[%s2167 + $0x81] sm:$0xff]
        %v2244 = vld [vmem:[%s2167 + $0x91] sm:$0xff]
        %v2245 = vld [vmem:[%s2167 + $0x99] sm:$0xff]
        %v2246 = vld [vmem:[%s2167 + $0xa9] sm:$0xff]
        %v2247 = vld [vmem:[%s2167 + $0xb1] sm:$0xff]
        %v2248 = vld [vmem:[%s2167 + $0xc1] sm:$0xff]
        %v2249 = vld [vmem:[%s2167 + $0xc9] sm:$0xff]
        %v2250 = vld [vmem:[%s2167 + $0xd9] sm:$0xff]
        %v2251 = vld [vmem:[%s2167 + $0xe1] sm:$0xff]
        %v2252 = vld [vmem:[%s2167 + $0xf1] sm:$0xff]
        %v2253 = vld [vmem:[%s2167 + $0xf9] sm:$0xff]
        %v2254 = vld [vmem:[%s2167 + $0x109] sm:$0xff]
        %v2255 = vld [vmem:[%s2167 + $0x111] sm:$0xff]
        %v2256 = vld [vmem:[%s2167 + $0x121] sm:$0xff]
        %v2257 = vld [vmem:[%s2167 + $0x129] sm:$0xff]
        %v2258 = vld [vmem:[%s2167 + $0x139] sm:$0xff]
        %v2259 = vld [vmem:[%s2167 + $0x141] sm:$0xff]
        %v2260 = vld [vmem:[%s2167 + $0x151] sm:$0xff]
        %v2261 = vld [vmem:[%s2167 + $0x159] sm:$0xff]
        %v2262 = vld [vmem:[%s2167 + $0x169] sm:$0xff]
        %v2263 = vld [vmem:[%s2167 + $0x171] sm:$0xff]
        %v2264 = vmax.f32 %v2200, %v2232
        %v2265 = vmax.f32 %v2201, %v2233
        %v2266 = vmax.f32 %v2202, %v2234
        %v2267 = vmax.f32 %v2203, %v2235
        %v2268 = vmax.f32 %v2204, %v2236
        %v2269 = vmax.f32 %v2205, %v2237
        %v2270 = vmax.f32 %v2206, %v2238
        %v2271 = vmax.f32 %v2207, %v2239
        %v2272 = vmax.f32 %v2208, %v2240
        %v2273 = vmax.f32 %v2209, %v2241
        %v2274 = vmax.f32 %v2210, %v2242
        %v2275 = vmax.f32 %v2211, %v2243
        %v2276 = vmax.f32 %v2212, %v2244
        %v2277 = vmax.f32 %v2213, %v2245
        %v2278 = vmax.f32 %v2214, %v2246
        %v2279 = vmax.f32 %v2215, %v2247
        %v2280 = vmax.f32 %v2216, %v2248
        %v2281 = vmax.f32 %v2217, %v2249
        %v2282 = vmax.f32 %v2218, %v2250
        %v2283 = vmax.f32 %v2219, %v2251
        %v2284 = vmax.f32 %v2220, %v2252
        %v2285 = vmax.f32 %v2221, %v2253
        %v2286 = vmax.f32 %v2222, %v2254
        %v2287 = vmax.f32 %v2223, %v2255
        %v2288 = vmax.f32 %v2224, %v2256
        %v2289 = vmax.f32 %v2225, %v2257
        %v2290 = vmax.f32 %v2226, %v2258
        %v2291 = vmax.f32 %v2227, %v2259
        %v2292 = vmax.f32 %v2228, %v2260
        %v2293 = vmax.f32 %v2229, %v2261
        %v2294 = vmax.f32 %v2230, %v2262
        %v2295 = vmax.f32 %v2231, %v2263
        %v2296 = vld [vmem:[%s2167 + $0x2] sm:$0xff]
        %v2297 = vld [vmem:[%s2167 + $0xa] sm:$0xff]
        %v2298 = vld [vmem:[%s2167 + $0x1a] sm:$0xff]
        %v2299 = vld [vmem:[%s2167 + $0x22] sm:$0xff]
        %v2300 = vld [vmem:[%s2167 + $0x32] sm:$0xff]
        %v2301 = vld [vmem:[%s2167 + $0x3a] sm:$0xff]
        %v2302 = vld [vmem:[%s2167 + $0x4a] sm:$0xff]
        %v2303 = vld [vmem:[%s2167 + $0x52] sm:$0xff]
        %v2304 = vld [vmem:[%s2167 + $0x62] sm:$0xff]
        %v2305 = vld [vmem:[%s2167 + $0x6a] sm:$0xff]
        %v2306 = vld [vmem:[%s2167 + $0x7a] sm:$0xff]
        %v2307 = vld [vmem:[%s2167 + $0x82] sm:$0xff]
        %v2308 = vld [vmem:[%s2167 + $0x92] sm:$0xff]
        %v2309 = vld [vmem:[%s2167 + $0x9a] sm:$0xff]
        %v2310 = vld [vmem:[%s2167 + $0xaa] sm:$0xff]
        %v2311 = vld [vmem:[%s2167 + $0xb2] sm:$0xff]
        %v2312 = vld [vmem:[%s2167 + $0xc2] sm:$0xff]
        %v2313 = vld [vmem:[%s2167 + $0xca] sm:$0xff]
        %v2314 = vld [vmem:[%s2167 + $0xda] sm:$0xff]
        %v2315 = vld [vmem:[%s2167 + $0xe2] sm:$0xff]
        %v2316 = vld [vmem:[%s2167 + $0xf2] sm:$0xff]
        %v2317 = vld [vmem:[%s2167 + $0xfa] sm:$0xff]
        %v2318 = vld [vmem:[%s2167 + $0x10a] sm:$0xff]
        %v2319 = vld [vmem:[%s2167 + $0x112] sm:$0xff]
        %v2320 = vld [vmem:[%s2167 + $0x122] sm:$0xff]
        %v2321 = vld [vmem:[%s2167 + $0x12a] sm:$0xff]
        %v2322 = vld [vmem:[%s2167 + $0x13a] sm:$0xff]
        %v2323 = vld [vmem:[%s2167 + $0x142] sm:$0xff]
        %v2324 = vld [vmem:[%s2167 + $0x152] sm:$0xff]
        %v2325 = vld [vmem:[%s2167 + $0x15a] sm:$0xff]
        %v2326 = vld [vmem:[%s2167 + $0x16a] sm:$0xff]
        %v2327 = vld [vmem:[%s2167 + $0x172] sm:$0xff]
        %v2328 = vmax.f32 %v2264, %v2296
        %v2329 = vmax.f32 %v2265, %v2297
        %v2330 = vmax.f32 %v2266, %v2298
        %v2331 = vmax.f32 %v2267, %v2299
        %v2332 = vmax.f32 %v2268, %v2300
        %v2333 = vmax.f32 %v2269, %v2301
        %v2334 = vmax.f32 %v2270, %v2302
        %v2335 = vmax.f32 %v2271, %v2303
        %v2336 = vmax.f32 %v2272, %v2304
        %v2337 = vmax.f32 %v2273, %v2305
        %v2338 = vmax.f32 %v2274, %v2306
        %v2339 = vmax.f32 %v2275, %v2307
        %v2340 = vmax.f32 %v2276, %v2308
        %v2341 = vmax.f32 %v2277, %v2309
        %v2342 = vmax.f32 %v2278, %v2310
        %v2343 = vmax.f32 %v2279, %v2311
        %v2344 = vmax.f32 %v2280, %v2312
        %v2345 = vmax.f32 %v2281, %v2313
        %v2346 = vmax.f32 %v2282, %v2314
        %v2347 = vmax.f32 %v2283, %v2315
        %v2348 = vmax.f32 %v2284, %v2316
        %v2349 = vmax.f32 %v2285, %v2317
        %v2350 = vmax.f32 %v2286, %v2318
        %v2351 = vmax.f32 %v2287, %v2319
        %v2352 = vmax.f32 %v2288, %v2320
        %v2353 = vmax.f32 %v2289, %v2321
        %v2354 = vmax.f32 %v2290, %v2322
        %v2355 = vmax.f32 %v2291, %v2323
        %v2356 = vmax.f32 %v2292, %v2324
        %v2357 = vmax.f32 %v2293, %v2325
        %v2358 = vmax.f32 %v2294, %v2326
        %v2359 = vmax.f32 %v2295, %v2327
        %v2360 = vld [vmem:[%s2167 + $0x3] sm:$0xff]
        %v2361 = vld [vmem:[%s2167 + $0xb] sm:$0xff]
        %v2362 = vld [vmem:[%s2167 + $0x1b] sm:$0xff]
        %v2363 = vld [vmem:[%s2167 + $0x23] sm:$0xff]
        %v2364 = vld [vmem:[%s2167 + $0x33] sm:$0xff]
        %v2365 = vld [vmem:[%s2167 + $0x3b] sm:$0xff]
        %v2366 = vld [vmem:[%s2167 + $0x4b] sm:$0xff]
        %v2367 = vld [vmem:[%s2167 + $0x53] sm:$0xff]
        %v2368 = vld [vmem:[%s2167 + $0x63] sm:$0xff]
        %v2369 = vld [vmem:[%s2167 + $0x6b] sm:$0xff]
        %v2370 = vld [vmem:[%s2167 + $0x7b] sm:$0xff]
        %v2371 = vld [vmem:[%s2167 + $0x83] sm:$0xff]
        %v2372 = vld [vmem:[%s2167 + $0x93] sm:$0xff]
        %v2373 = vld [vmem:[%s2167 + $0x9b] sm:$0xff]
        %v2374 = vld [vmem:[%s2167 + $0xab] sm:$0xff]
        %v2375 = vld [vmem:[%s2167 + $0xb3] sm:$0xff]
        %v2376 = vld [vmem:[%s2167 + $0xc3] sm:$0xff]
        %v2377 = vld [vmem:[%s2167 + $0xcb] sm:$0xff]
        %v2378 = vld [vmem:[%s2167 + $0xdb] sm:$0xff]
        %v2379 = vld [vmem:[%s2167 + $0xe3] sm:$0xff]
        %v2380 = vld [vmem:[%s2167 + $0xf3] sm:$0xff]
        %v2381 = vld [vmem:[%s2167 + $0xfb] sm:$0xff]
        %v2382 = vld [vmem:[%s2167 + $0x10b] sm:$0xff]
        %v2383 = vld [vmem:[%s2167 + $0x113] sm:$0xff]
        %v2384 = vld [vmem:[%s2167 + $0x123] sm:$0xff]
        %v2385 = vld [vmem:[%s2167 + $0x12b] sm:$0xff]
        %v2386 = vld [vmem:[%s2167 + $0x13b] sm:$0xff]
        %v2387 = vld [vmem:[%s2167 + $0x143] sm:$0xff]
        %v2388 = vld [vmem:[%s2167 + $0x153] sm:$0xff]
        %v2389 = vld [vmem:[%s2167 + $0x15b] sm:$0xff]
        %v2390 = vld [vmem:[%s2167 + $0x16b] sm:$0xff]
        %v2391 = vld [vmem:[%s2167 + $0x173] sm:$0xff]
        %v2392 = vmax.f32 %v2328, %v2360
        %v2393 = vmax.f32 %v2329, %v2361
        %v2394 = vmax.f32 %v2330, %v2362
        %v2395 = vmax.f32 %v2331, %v2363
        %v2396 = vmax.f32 %v2332, %v2364
        %v2397 = vmax.f32 %v2333, %v2365
        %v2398 = vmax.f32 %v2334, %v2366
        %v2399 = vmax.f32 %v2335, %v2367
        %v2400 = vmax.f32 %v2336, %v2368
        %v2401 = vmax.f32 %v2337, %v2369
        %v2402 = vmax.f32 %v2338, %v2370
        %v2403 = vmax.f32 %v2339, %v2371
        %v2404 = vmax.f32 %v2340, %v2372
        %v2405 = vmax.f32 %v2341, %v2373
        %v2406 = vmax.f32 %v2342, %v2374
        %v2407 = vmax.f32 %v2343, %v2375
        %v2408 = vmax.f32 %v2344, %v2376
        %v2409 = vmax.f32 %v2345, %v2377
        %v2410 = vmax.f32 %v2346, %v2378
        %v2411 = vmax.f32 %v2347, %v2379
        %v2412 = vmax.f32 %v2348, %v2380
        %v2413 = vmax.f32 %v2349, %v2381
        %v2414 = vmax.f32 %v2350, %v2382
        %v2415 = vmax.f32 %v2351, %v2383
        %v2416 = vmax.f32 %v2352, %v2384
        %v2417 = vmax.f32 %v2353, %v2385
        %v2418 = vmax.f32 %v2354, %v2386
        %v2419 = vmax.f32 %v2355, %v2387
        %v2420 = vmax.f32 %v2356, %v2388
        %v2421 = vmax.f32 %v2357, %v2389
        %v2422 = vmax.f32 %v2358, %v2390
        %v2423 = vmax.f32 %v2359, %v2391
        %v2424 = vld [vmem:[%s2167 + $0x4] sm:$0xff]
        %v2425 = vld [vmem:[%s2167 + $0xc] sm:$0xff]
        %v2426 = vld [vmem:[%s2167 + $0x1c] sm:$0xff]
        %v2427 = vld [vmem:[%s2167 + $0x24] sm:$0xff]
        %v2428 = vld [vmem:[%s2167 + $0x34] sm:$0xff]
        %v2429 = vld [vmem:[%s2167 + $0x3c] sm:$0xff]
        %v2430 = vld [vmem:[%s2167 + $0x4c] sm:$0xff]
        %v2431 = vld [vmem:[%s2167 + $0x54] sm:$0xff]
        %v2432 = vld [vmem:[%s2167 + $0x64] sm:$0xff]
        %v2433 = vld [vmem:[%s2167 + $0x6c] sm:$0xff]
        %v2434 = vld [vmem:[%s2167 + $0x7c] sm:$0xff]
        %v2435 = vld [vmem:[%s2167 + $0x84] sm:$0xff]
        %v2436 = vld [vmem:[%s2167 + $0x94] sm:$0xff]
        %v2437 = vld [vmem:[%s2167 + $0x9c] sm:$0xff]
        %v2438 = vld [vmem:[%s2167 + $0xac] sm:$0xff]
        %v2439 = vld [vmem:[%s2167 + $0xb4] sm:$0xff]
        %v2440 = vld [vmem:[%s2167 + $0xc4] sm:$0xff]
        %v2441 = vld [vmem:[%s2167 + $0xcc] sm:$0xff]
        %v2442 = vld [vmem:[%s2167 + $0xdc] sm:$0xff]
        %v2443 = vld [vmem:[%s2167 + $0xe4] sm:$0xff]
        %v2444 = vld [vmem:[%s2167 + $0xf4] sm:$0xff]
        %v2445 = vld [vmem:[%s2167 + $0xfc] sm:$0xff]
        %v2446 = vld [vmem:[%s2167 + $0x10c] sm:$0xff]
        %v2447 = vld [vmem:[%s2167 + $0x114] sm:$0xff]
        %v2448 = vld [vmem:[%s2167 + $0x124] sm:$0xff]
        %v2449 = vld [vmem:[%s2167 + $0x12c] sm:$0xff]
        %v2450 = vld [vmem:[%s2167 + $0x13c] sm:$0xff]
        %v2451 = vld [vmem:[%s2167 + $0x144] sm:$0xff]
        %v2452 = vld [vmem:[%s2167 + $0x154] sm:$0xff]
        %v2453 = vld [vmem:[%s2167 + $0x15c] sm:$0xff]
        %v2454 = vld [vmem:[%s2167 + $0x16c] sm:$0xff]
        %v2455 = vld [vmem:[%s2167 + $0x174] sm:$0xff]
        %v2456 = vmax.f32 %v2392, %v2424
        %v2457 = vmax.f32 %v2393, %v2425
        %v2458 = vmax.f32 %v2394, %v2426
        %v2459 = vmax.f32 %v2395, %v2427
        %v2460 = vmax.f32 %v2396, %v2428
        %v2461 = vmax.f32 %v2397, %v2429
        %v2462 = vmax.f32 %v2398, %v2430
        %v2463 = vmax.f32 %v2399, %v2431
        %v2464 = vmax.f32 %v2400, %v2432
        %v2465 = vmax.f32 %v2401, %v2433
        %v2466 = vmax.f32 %v2402, %v2434
        %v2467 = vmax.f32 %v2403, %v2435
        %v2468 = vmax.f32 %v2404, %v2436
        %v2469 = vmax.f32 %v2405, %v2437
        %v2470 = vmax.f32 %v2406, %v2438
        %v2471 = vmax.f32 %v2407, %v2439
        %v2472 = vmax.f32 %v2408, %v2440
        %v2473 = vmax.f32 %v2409, %v2441
        %v2474 = vmax.f32 %v2410, %v2442
        %v2475 = vmax.f32 %v2411, %v2443
        %v2476 = vmax.f32 %v2412, %v2444
        %v2477 = vmax.f32 %v2413, %v2445
        %v2478 = vmax.f32 %v2414, %v2446
        %v2479 = vmax.f32 %v2415, %v2447
        %v2480 = vmax.f32 %v2416, %v2448
        %v2481 = vmax.f32 %v2417, %v2449
        %v2482 = vmax.f32 %v2418, %v2450
        %v2483 = vmax.f32 %v2419, %v2451
        %v2484 = vmax.f32 %v2420, %v2452
        %v2485 = vmax.f32 %v2421, %v2453
        %v2486 = vmax.f32 %v2422, %v2454
        %v2487 = vmax.f32 %v2423, %v2455
        %s2488 = scalar_lea.vmem [#allocation2], 96
        %v2489 = vld [vmem:[%s2488] sm:$0xff]
        %v2490 = vld [vmem:[%s2488 + $0x8] sm:$0xff]
        %v2491 = vld [vmem:[%s2488 + $0x18] sm:$0xff]
        %v2492 = vld [vmem:[%s2488 + $0x20] sm:$0xff]
        %v2493 = vld [vmem:[%s2488 + $0x30] sm:$0xff]
        %v2494 = vld [vmem:[%s2488 + $0x38] sm:$0xff]
        %v2495 = vld [vmem:[%s2488 + $0x48] sm:$0xff]
        %v2496 = vld [vmem:[%s2488 + $0x50] sm:$0xff]
        %v2497 = vld [vmem:[%s2488 + $0x60] sm:$0xff]
        %v2498 = vld [vmem:[%s2488 + $0x68] sm:$0xff]
        %v2499 = vld [vmem:[%s2488 + $0x78] sm:$0xff]
        %v2500 = vld [vmem:[%s2488 + $0x80] sm:$0xff]
        %v2501 = vld [vmem:[%s2488 + $0x90] sm:$0xff]
        %v2502 = vld [vmem:[%s2488 + $0x98] sm:$0xff]
        %v2503 = vld [vmem:[%s2488 + $0xa8] sm:$0xff]
        %v2504 = vld [vmem:[%s2488 + $0xb0] sm:$0xff]
        %v2505 = vld [vmem:[%s2488 + $0xc0] sm:$0xff]
        %v2506 = vld [vmem:[%s2488 + $0xc8] sm:$0xff]
        %v2507 = vld [vmem:[%s2488 + $0xd8] sm:$0xff]
        %v2508 = vld [vmem:[%s2488 + $0xe0] sm:$0xff]
        %v2509 = vld [vmem:[%s2488 + $0xf0] sm:$0xff]
        %v2510 = vld [vmem:[%s2488 + $0xf8] sm:$0xff]
        %v2511 = vld [vmem:[%s2488 + $0x108] sm:$0xff]
        %v2512 = vld [vmem:[%s2488 + $0x110] sm:$0xff]
        %v2513 = vld [vmem:[%s2488 + $0x120] sm:$0xff]
        %v2514 = vld [vmem:[%s2488 + $0x128] sm:$0xff]
        %v2515 = vld [vmem:[%s2488 + $0x138] sm:$0xff]
        %v2516 = vld [vmem:[%s2488 + $0x140] sm:$0xff]
        %v2517 = vld [vmem:[%s2488 + $0x150] sm:$0xff]
        %v2518 = vld [vmem:[%s2488 + $0x158] sm:$0xff]
        %v2519 = vld [vmem:[%s2488 + $0x168] sm:$0xff]
        %v2520 = vld [vmem:[%s2488 + $0x170] sm:$0xff]
        %v2521 = vmax.f32 %v2456, %v2489
        %v2522 = vmax.f32 %v2457, %v2490
        %v2523 = vmax.f32 %v2458, %v2491
        %v2524 = vmax.f32 %v2459, %v2492
        %v2525 = vmax.f32 %v2460, %v2493
        %v2526 = vmax.f32 %v2461, %v2494
        %v2527 = vmax.f32 %v2462, %v2495
        %v2528 = vmax.f32 %v2463, %v2496
        %v2529 = vmax.f32 %v2464, %v2497
        %v2530 = vmax.f32 %v2465, %v2498
        %v2531 = vmax.f32 %v2466, %v2499
        %v2532 = vmax.f32 %v2467, %v2500
        %v2533 = vmax.f32 %v2468, %v2501
        %v2534 = vmax.f32 %v2469, %v2502
        %v2535 = vmax.f32 %v2470, %v2503
        %v2536 = vmax.f32 %v2471, %v2504
        %v2537 = vmax.f32 %v2472, %v2505
        %v2538 = vmax.f32 %v2473, %v2506
        %v2539 = vmax.f32 %v2474, %v2507
        %v2540 = vmax.f32 %v2475, %v2508
        %v2541 = vmax.f32 %v2476, %v2509
        %v2542 = vmax.f32 %v2477, %v2510
        %v2543 = vmax.f32 %v2478, %v2511
        %v2544 = vmax.f32 %v2479, %v2512
        %v2545 = vmax.f32 %v2480, %v2513
        %v2546 = vmax.f32 %v2481, %v2514
        %v2547 = vmax.f32 %v2482, %v2515
        %v2548 = vmax.f32 %v2483, %v2516
        %v2549 = vmax.f32 %v2484, %v2517
        %v2550 = vmax.f32 %v2485, %v2518
        %v2551 = vmax.f32 %v2486, %v2519
        %v2552 = vmax.f32 %v2487, %v2520
        %v2553 = vld [vmem:[%s2488 + $0x1] sm:$0xff]
        %v2554 = vld [vmem:[%s2488 + $0x9] sm:$0xff]
        %v2555 = vld [vmem:[%s2488 + $0x19] sm:$0xff]
        %v2556 = vld [vmem:[%s2488 + $0x21] sm:$0xff]
        %v2557 = vld [vmem:[%s2488 + $0x31] sm:$0xff]
        %v2558 = vld [vmem:[%s2488 + $0x39] sm:$0xff]
        %v2559 = vld [vmem:[%s2488 + $0x49] sm:$0xff]
        %v2560 = vld [vmem:[%s2488 + $0x51] sm:$0xff]
        %v2561 = vld [vmem:[%s2488 + $0x61] sm:$0xff]
        %v2562 = vld [vmem:[%s2488 + $0x69] sm:$0xff]
        %v2563 = vld [vmem:[%s2488 + $0x79] sm:$0xff]
        %v2564 = vld [vmem:[%s2488 + $0x81] sm:$0xff]
        %v2565 = vld [vmem:[%s2488 + $0x91] sm:$0xff]
        %v2566 = vld [vmem:[%s2488 + $0x99] sm:$0xff]
        %v2567 = vld [vmem:[%s2488 + $0xa9] sm:$0xff]
        %v2568 = vld [vmem:[%s2488 + $0xb1] sm:$0xff]
        %v2569 = vld [vmem:[%s2488 + $0xc1] sm:$0xff]
        %v2570 = vld [vmem:[%s2488 + $0xc9] sm:$0xff]
        %v2571 = vld [vmem:[%s2488 + $0xd9] sm:$0xff]
        %v2572 = vld [vmem:[%s2488 + $0xe1] sm:$0xff]
        %v2573 = vld [vmem:[%s2488 + $0xf1] sm:$0xff]
        %v2574 = vld [vmem:[%s2488 + $0xf9] sm:$0xff]
        %v2575 = vld [vmem:[%s2488 + $0x109] sm:$0xff]
        %v2576 = vld [vmem:[%s2488 + $0x111] sm:$0xff]
        %v2577 = vld [vmem:[%s2488 + $0x121] sm:$0xff]
        %v2578 = vld [vmem:[%s2488 + $0x129] sm:$0xff]
        %v2579 = vld [vmem:[%s2488 + $0x139] sm:$0xff]
        %v2580 = vld [vmem:[%s2488 + $0x141] sm:$0xff]
        %v2581 = vld [vmem:[%s2488 + $0x151] sm:$0xff]
        %v2582 = vld [vmem:[%s2488 + $0x159] sm:$0xff]
        %v2583 = vld [vmem:[%s2488 + $0x169] sm:$0xff]
        %v2584 = vld [vmem:[%s2488 + $0x171] sm:$0xff]
        %v2585 = vmax.f32 %v2521, %v2553
        %v2586 = vmax.f32 %v2522, %v2554
        %v2587 = vmax.f32 %v2523, %v2555
        %v2588 = vmax.f32 %v2524, %v2556
        %v2589 = vmax.f32 %v2525, %v2557
        %v2590 = vmax.f32 %v2526, %v2558
        %v2591 = vmax.f32 %v2527, %v2559
        %v2592 = vmax.f32 %v2528, %v2560
        %v2593 = vmax.f32 %v2529, %v2561
        %v2594 = vmax.f32 %v2530, %v2562
        %v2595 = vmax.f32 %v2531, %v2563
        %v2596 = vmax.f32 %v2532, %v2564
        %v2597 = vmax.f32 %v2533, %v2565
        %v2598 = vmax.f32 %v2534, %v2566
        %v2599 = vmax.f32 %v2535, %v2567
        %v2600 = vmax.f32 %v2536, %v2568
        %v2601 = vmax.f32 %v2537, %v2569
        %v2602 = vmax.f32 %v2538, %v2570
        %v2603 = vmax.f32 %v2539, %v2571
        %v2604 = vmax.f32 %v2540, %v2572
        %v2605 = vmax.f32 %v2541, %v2573
        %v2606 = vmax.f32 %v2542, %v2574
        %v2607 = vmax.f32 %v2543, %v2575
        %v2608 = vmax.f32 %v2544, %v2576
        %v2609 = vmax.f32 %v2545, %v2577
        %v2610 = vmax.f32 %v2546, %v2578
        %v2611 = vmax.f32 %v2547, %v2579
        %v2612 = vmax.f32 %v2548, %v2580
        %v2613 = vmax.f32 %v2549, %v2581
        %v2614 = vmax.f32 %v2550, %v2582
        %v2615 = vmax.f32 %v2551, %v2583
        %v2616 = vmax.f32 %v2552, %v2584
        %v2617 = vld [vmem:[%s2488 + $0x2] sm:$0xff]
        %v2618 = vld [vmem:[%s2488 + $0xa] sm:$0xff]
        %v2619 = vld [vmem:[%s2488 + $0x1a] sm:$0xff]
        %v2620 = vld [vmem:[%s2488 + $0x22] sm:$0xff]
        %v2621 = vld [vmem:[%s2488 + $0x32] sm:$0xff]
        %v2622 = vld [vmem:[%s2488 + $0x3a] sm:$0xff]
        %v2623 = vld [vmem:[%s2488 + $0x4a] sm:$0xff]
        %v2624 = vld [vmem:[%s2488 + $0x52] sm:$0xff]
        %v2625 = vld [vmem:[%s2488 + $0x62] sm:$0xff]
        %v2626 = vld [vmem:[%s2488 + $0x6a] sm:$0xff]
        %v2627 = vld [vmem:[%s2488 + $0x7a] sm:$0xff]
        %v2628 = vld [vmem:[%s2488 + $0x82] sm:$0xff]
        %v2629 = vld [vmem:[%s2488 + $0x92] sm:$0xff]
        %v2630 = vld [vmem:[%s2488 + $0x9a] sm:$0xff]
        %v2631 = vld [vmem:[%s2488 + $0xaa] sm:$0xff]
        %v2632 = vld [vmem:[%s2488 + $0xb2] sm:$0xff]
        %v2633 = vld [vmem:[%s2488 + $0xc2] sm:$0xff]
        %v2634 = vld [vmem:[%s2488 + $0xca] sm:$0xff]
        %v2635 = vld [vmem:[%s2488 + $0xda] sm:$0xff]
        %v2636 = vld [vmem:[%s2488 + $0xe2] sm:$0xff]
        %v2637 = vld [vmem:[%s2488 + $0xf2] sm:$0xff]
        %v2638 = vld [vmem:[%s2488 + $0xfa] sm:$0xff]
        %v2639 = vld [vmem:[%s2488 + $0x10a] sm:$0xff]
        %v2640 = vld [vmem:[%s2488 + $0x112] sm:$0xff]
        %v2641 = vld [vmem:[%s2488 + $0x122] sm:$0xff]
        %v2642 = vld [vmem:[%s2488 + $0x12a] sm:$0xff]
        %v2643 = vld [vmem:[%s2488 + $0x13a] sm:$0xff]
        %v2644 = vld [vmem:[%s2488 + $0x142] sm:$0xff]
        %v2645 = vld [vmem:[%s2488 + $0x152] sm:$0xff]
        %v2646 = vld [vmem:[%s2488 + $0x15a] sm:$0xff]
        %v2647 = vld [vmem:[%s2488 + $0x16a] sm:$0xff]
        %v2648 = vld [vmem:[%s2488 + $0x172] sm:$0xff]
        %v2649 = vmax.f32 %v2585, %v2617
        %v2650 = vmax.f32 %v2586, %v2618
        %v2651 = vmax.f32 %v2587, %v2619
        %v2652 = vmax.f32 %v2588, %v2620
        %v2653 = vmax.f32 %v2589, %v2621
        %v2654 = vmax.f32 %v2590, %v2622
        %v2655 = vmax.f32 %v2591, %v2623
        %v2656 = vmax.f32 %v2592, %v2624
        %v2657 = vmax.f32 %v2593, %v2625
        %v2658 = vmax.f32 %v2594, %v2626
        %v2659 = vmax.f32 %v2595, %v2627
        %v2660 = vmax.f32 %v2596, %v2628
        %v2661 = vmax.f32 %v2597, %v2629
        %v2662 = vmax.f32 %v2598, %v2630
        %v2663 = vmax.f32 %v2599, %v2631
        %v2664 = vmax.f32 %v2600, %v2632
        %v2665 = vmax.f32 %v2601, %v2633
        %v2666 = vmax.f32 %v2602, %v2634
        %v2667 = vmax.f32 %v2603, %v2635
        %v2668 = vmax.f32 %v2604, %v2636
        %v2669 = vmax.f32 %v2605, %v2637
        %v2670 = vmax.f32 %v2606, %v2638
        %v2671 = vmax.f32 %v2607, %v2639
        %v2672 = vmax.f32 %v2608, %v2640
        %v2673 = vmax.f32 %v2609, %v2641
        %v2674 = vmax.f32 %v2610, %v2642
        %v2675 = vmax.f32 %v2611, %v2643
        %v2676 = vmax.f32 %v2612, %v2644
        %v2677 = vmax.f32 %v2613, %v2645
        %v2678 = vmax.f32 %v2614, %v2646
        %v2679 = vmax.f32 %v2615, %v2647
        %v2680 = vmax.f32 %v2616, %v2648
        %v2681 = vld [vmem:[%s2488 + $0x3] sm:$0xff]
        %v2682 = vld [vmem:[%s2488 + $0xb] sm:$0xff]
        %v2683 = vld [vmem:[%s2488 + $0x1b] sm:$0xff]
        %v2684 = vld [vmem:[%s2488 + $0x23] sm:$0xff]
        %v2685 = vld [vmem:[%s2488 + $0x33] sm:$0xff]
        %v2686 = vld [vmem:[%s2488 + $0x3b] sm:$0xff]
        %v2687 = vld [vmem:[%s2488 + $0x4b] sm:$0xff]
        %v2688 = vld [vmem:[%s2488 + $0x53] sm:$0xff]
        %v2689 = vld [vmem:[%s2488 + $0x63] sm:$0xff]
        %v2690 = vld [vmem:[%s2488 + $0x6b] sm:$0xff]
        %v2691 = vld [vmem:[%s2488 + $0x7b] sm:$0xff]
        %v2692 = vld [vmem:[%s2488 + $0x83] sm:$0xff]
        %v2693 = vld [vmem:[%s2488 + $0x93] sm:$0xff]
        %v2694 = vld [vmem:[%s2488 + $0x9b] sm:$0xff]
        %v2695 = vld [vmem:[%s2488 + $0xab] sm:$0xff]
        %v2696 = vld [vmem:[%s2488 + $0xb3] sm:$0xff]
        %v2697 = vld [vmem:[%s2488 + $0xc3] sm:$0xff]
        %v2698 = vld [vmem:[%s2488 + $0xcb] sm:$0xff]
        %v2699 = vld [vmem:[%s2488 + $0xdb] sm:$0xff]
        %v2700 = vld [vmem:[%s2488 + $0xe3] sm:$0xff]
        %v2701 = vld [vmem:[%s2488 + $0xf3] sm:$0xff]
        %v2702 = vld [vmem:[%s2488 + $0xfb] sm:$0xff]
        %v2703 = vld [vmem:[%s2488 + $0x10b] sm:$0xff]
        %v2704 = vld [vmem:[%s2488 + $0x113] sm:$0xff]
        %v2705 = vld [vmem:[%s2488 + $0x123] sm:$0xff]
        %v2706 = vld [vmem:[%s2488 + $0x12b] sm:$0xff]
        %v2707 = vld [vmem:[%s2488 + $0x13b] sm:$0xff]
        %v2708 = vld [vmem:[%s2488 + $0x143] sm:$0xff]
        %v2709 = vld [vmem:[%s2488 + $0x153] sm:$0xff]
        %v2710 = vld [vmem:[%s2488 + $0x15b] sm:$0xff]
        %v2711 = vld [vmem:[%s2488 + $0x16b] sm:$0xff]
        %v2712 = vld [vmem:[%s2488 + $0x173] sm:$0xff]
        %v2713 = vmax.f32 %v2649, %v2681
        %v2714 = vmax.f32 %v2650, %v2682
        %v2715 = vmax.f32 %v2651, %v2683
        %v2716 = vmax.f32 %v2652, %v2684
        %v2717 = vmax.f32 %v2653, %v2685
        %v2718 = vmax.f32 %v2654, %v2686
        %v2719 = vmax.f32 %v2655, %v2687
        %v2720 = vmax.f32 %v2656, %v2688
        %v2721 = vmax.f32 %v2657, %v2689
        %v2722 = vmax.f32 %v2658, %v2690
        %v2723 = vmax.f32 %v2659, %v2691
        %v2724 = vmax.f32 %v2660, %v2692
        %v2725 = vmax.f32 %v2661, %v2693
        %v2726 = vmax.f32 %v2662, %v2694
        %v2727 = vmax.f32 %v2663, %v2695
        %v2728 = vmax.f32 %v2664, %v2696
        %v2729 = vmax.f32 %v2665, %v2697
        %v2730 = vmax.f32 %v2666, %v2698
        %v2731 = vmax.f32 %v2667, %v2699
        %v2732 = vmax.f32 %v2668, %v2700
        %v2733 = vmax.f32 %v2669, %v2701
        %v2734 = vmax.f32 %v2670, %v2702
        %v2735 = vmax.f32 %v2671, %v2703
        %v2736 = vmax.f32 %v2672, %v2704
        %v2737 = vmax.f32 %v2673, %v2705
        %v2738 = vmax.f32 %v2674, %v2706
        %v2739 = vmax.f32 %v2675, %v2707
        %v2740 = vmax.f32 %v2676, %v2708
        %v2741 = vmax.f32 %v2677, %v2709
        %v2742 = vmax.f32 %v2678, %v2710
        %v2743 = vmax.f32 %v2679, %v2711
        %v2744 = vmax.f32 %v2680, %v2712
        %v2745 = vld [vmem:[%s2488 + $0x4] sm:$0xff]
        %v2746 = vld [vmem:[%s2488 + $0xc] sm:$0xff]
        %v2747 = vld [vmem:[%s2488 + $0x1c] sm:$0xff]
        %v2748 = vld [vmem:[%s2488 + $0x24] sm:$0xff]
        %v2749 = vld [vmem:[%s2488 + $0x34] sm:$0xff]
        %v2750 = vld [vmem:[%s2488 + $0x3c] sm:$0xff]
        %v2751 = vld [vmem:[%s2488 + $0x4c] sm:$0xff]
        %v2752 = vld [vmem:[%s2488 + $0x54] sm:$0xff]
        %v2753 = vld [vmem:[%s2488 + $0x64] sm:$0xff]
        %v2754 = vld [vmem:[%s2488 + $0x6c] sm:$0xff]
        %v2755 = vld [vmem:[%s2488 + $0x7c] sm:$0xff]
        %v2756 = vld [vmem:[%s2488 + $0x84] sm:$0xff]
        %v2757 = vld [vmem:[%s2488 + $0x94] sm:$0xff]
        %v2758 = vld [vmem:[%s2488 + $0x9c] sm:$0xff]
        %v2759 = vld [vmem:[%s2488 + $0xac] sm:$0xff]
        %v2760 = vld [vmem:[%s2488 + $0xb4] sm:$0xff]
        %v2761 = vld [vmem:[%s2488 + $0xc4] sm:$0xff]
        %v2762 = vld [vmem:[%s2488 + $0xcc] sm:$0xff]
        %v2763 = vld [vmem:[%s2488 + $0xdc] sm:$0xff]
        %v2764 = vld [vmem:[%s2488 + $0xe4] sm:$0xff]
        %v2765 = vld [vmem:[%s2488 + $0xf4] sm:$0xff]
        %v2766 = vld [vmem:[%s2488 + $0xfc] sm:$0xff]
        %v2767 = vld [vmem:[%s2488 + $0x10c] sm:$0xff]
        %v2768 = vld [vmem:[%s2488 + $0x114] sm:$0xff]
        %v2769 = vld [vmem:[%s2488 + $0x124] sm:$0xff]
        %v2770 = vld [vmem:[%s2488 + $0x12c] sm:$0xff]
        %v2771 = vld [vmem:[%s2488 + $0x13c] sm:$0xff]
        %v2772 = vld [vmem:[%s2488 + $0x144] sm:$0xff]
        %v2773 = vld [vmem:[%s2488 + $0x154] sm:$0xff]
        %v2774 = vld [vmem:[%s2488 + $0x15c] sm:$0xff]
        %v2775 = vld [vmem:[%s2488 + $0x16c] sm:$0xff]
        %v2776 = vld [vmem:[%s2488 + $0x174] sm:$0xff]
        %v2777 = vmax.f32 %v2713, %v2745
        %v2778 = vmax.f32 %v2714, %v2746
        %v2779 = vmax.f32 %v2715, %v2747
        %v2780 = vmax.f32 %v2716, %v2748
        %v2781 = vmax.f32 %v2717, %v2749
        %v2782 = vmax.f32 %v2718, %v2750
        %v2783 = vmax.f32 %v2719, %v2751
        %v2784 = vmax.f32 %v2720, %v2752
        %v2785 = vmax.f32 %v2721, %v2753
        %v2786 = vmax.f32 %v2722, %v2754
        %v2787 = vmax.f32 %v2723, %v2755
        %v2788 = vmax.f32 %v2724, %v2756
        %v2789 = vmax.f32 %v2725, %v2757
        %v2790 = vmax.f32 %v2726, %v2758
        %v2791 = vmax.f32 %v2727, %v2759
        %v2792 = vmax.f32 %v2728, %v2760
        %v2793 = vmax.f32 %v2729, %v2761
        %v2794 = vmax.f32 %v2730, %v2762
        %v2795 = vmax.f32 %v2731, %v2763
        %v2796 = vmax.f32 %v2732, %v2764
        %v2797 = vmax.f32 %v2733, %v2765
        %v2798 = vmax.f32 %v2734, %v2766
        %v2799 = vmax.f32 %v2735, %v2767
        %v2800 = vmax.f32 %v2736, %v2768
        %v2801 = vmax.f32 %v2737, %v2769
        %v2802 = vmax.f32 %v2738, %v2770
        %v2803 = vmax.f32 %v2739, %v2771
        %v2804 = vmax.f32 %v2740, %v2772
        %v2805 = vmax.f32 %v2741, %v2773
        %v2806 = vmax.f32 %v2742, %v2774
        %v2807 = vmax.f32 %v2743, %v2775
        %v2808 = vmax.f32 %v2744, %v2776
        %v2810 = vsel %vm1143, %v2777, 0
        %v2813 = vsel %vm1143, %v2778, 0
        %v2816 = vsel %vm1143, %v2779, 0
        %v2819 = vsel %vm1143, %v2780, 0
        %v2822 = vsel %vm1143, %v2781, 0
        %v2825 = vsel %vm1143, %v2782, 0
        %v2828 = vsel %vm1143, %v2783, 0
        %v2831 = vsel %vm1143, %v2784, 0
        %v2834 = vsel %vm1143, %v2785, 0
        %v2837 = vsel %vm1143, %v2786, 0
        %v2840 = vsel %vm1143, %v2787, 0
        %v2843 = vsel %vm1143, %v2788, 0
        %v2846 = vsel %vm1143, %v2789, 0
        %v2849 = vsel %vm1143, %v2790, 0
        %v2852 = vsel %vm1143, %v2791, 0
        %v2855 = vsel %vm1143, %v2792, 0
        %v2858 = vsel %vm1143, %v2793, 0
        %v2861 = vsel %vm1143, %v2794, 0
        %v2864 = vsel %vm1143, %v2795, 0
        %v2867 = vsel %vm1143, %v2796, 0
        %v2870 = vsel %vm1143, %v2797, 0
        %v2873 = vsel %vm1143, %v2798, 0
        %v2876 = vsel %vm1143, %v2799, 0
        %v2879 = vsel %vm1143, %v2800, 0
        %v2882 = vsel %vm1143, %v2801, 0
        %v2885 = vsel %vm1143, %v2802, 0
        %v2888 = vsel %vm1143, %v2803, 0
        %v2891 = vsel %vm1143, %v2804, 0
        %v2894 = vsel %vm1143, %v2805, 0
        %v2897 = vsel %vm1143, %v2806, 0
        %v2900 = vsel %vm1143, %v2807, 0
        %v2903 = vsel %vm1143, %v2808, 0
        %2905 = vmatpush.msra.mxu0 0.0
        %2906 = vmatpush.msra.mxu0 0.0
        %2907 = vmatpush.msra.mxu0 0.0
        %2908 = vmatpush.msra.mxu0 0.0
        %2909 = vmatpush.msra.mxu0 0.0
        %2910 = vmatpush.msra.mxu0 0.0
        %2911 = vmatpush.msra.mxu0 0.0
        %2912 = vmatpush.msra.mxu0 0.0
        %2913 = vmatpush.msra.mxu0 0.0
        %2914 = vmatpush.msra.mxu0 0.0
        %2915 = vmatpush.msra.mxu0 0.0
        %2916 = vmatpush.msra.mxu0 0.0
        %2917 = vmatpush.msra.mxu0 0.0
        %2918 = vmatpush.msra.mxu0 0.0
        %2919 = vmatpush.msra.mxu0 %v1138
        %2920 = vmatpush.msra.mxu0 %v1137
        %2921 = vmatmul.f32.gmra.mxu0 %v2810
        %v2922 = vpop.f32.mrf.mxu0
        %v2923 = vadd.f32 0.0, %v2922
        %2924 = vmatmul.f32.gmra.mxu0 %v2813
        %v2925 = vpop.f32.mrf.mxu0
        %v2926 = vadd.f32 0.0, %v2925
        %2927 = vmatmul.f32.gmra.mxu0 %v2816
        %v2928 = vpop.f32.mrf.mxu0
        %v2929 = vadd.f32 0.0, %v2928
        %2930 = vmatmul.f32.gmra.mxu0 %v2819
        %v2931 = vpop.f32.mrf.mxu0
        %v2932 = vadd.f32 0.0, %v2931
        %2933 = vmatmul.f32.gmra.mxu0 %v2822
        %v2934 = vpop.f32.mrf.mxu0
        %v2935 = vadd.f32 0.0, %v2934
        %2936 = vmatmul.f32.gmra.mxu0 %v2825
        %v2937 = vpop.f32.mrf.mxu0
        %v2938 = vadd.f32 0.0, %v2937
        %2939 = vmatmul.f32.gmra.mxu0 %v2828
        %v2940 = vpop.f32.mrf.mxu0
        %v2941 = vadd.f32 0.0, %v2940
        %2942 = vmatmul.f32.gmra.mxu0 %v2831
        %v2943 = vpop.f32.mrf.mxu0
        %v2944 = vadd.f32 0.0, %v2943
        %2945 = vmatmul.f32.gmra.mxu0 %v2834
        %v2946 = vpop.f32.mrf.mxu0
        %v2947 = vadd.f32 0.0, %v2946
        %2948 = vmatmul.f32.gmra.mxu0 %v2837
        %v2949 = vpop.f32.mrf.mxu0
        %v2950 = vadd.f32 0.0, %v2949
        %2951 = vmatmul.f32.gmra.mxu0 %v2840
        %v2952 = vpop.f32.mrf.mxu0
        %v2953 = vadd.f32 0.0, %v2952
        %2954 = vmatmul.f32.gmra.mxu0 %v2843
        %v2955 = vpop.f32.mrf.mxu0
        %v2956 = vadd.f32 0.0, %v2955
        %2957 = vmatmul.f32.gmra.mxu0 %v2846
        %v2958 = vpop.f32.mrf.mxu0
        %v2959 = vadd.f32 0.0, %v2958
        %2960 = vmatmul.f32.gmra.mxu0 %v2849
        %v2961 = vpop.f32.mrf.mxu0
        %v2962 = vadd.f32 0.0, %v2961
        %2963 = vmatmul.f32.gmra.mxu0 %v2852
        %v2964 = vpop.f32.mrf.mxu0
        %v2965 = vadd.f32 0.0, %v2964
        %2966 = vmatmul.f32.gmra.mxu0 %v2855
        %v2967 = vpop.f32.mrf.mxu0
        %v2968 = vadd.f32 0.0, %v2967
        %2969 = vmatmul.f32.gmra.mxu0 %v2858
        %v2970 = vpop.f32.mrf.mxu0
        %v2971 = vadd.f32 0.0, %v2970
        %2972 = vmatmul.f32.gmra.mxu0 %v2861
        %v2973 = vpop.f32.mrf.mxu0
        %v2974 = vadd.f32 0.0, %v2973
        %2975 = vmatmul.f32.gmra.mxu0 %v2864
        %v2976 = vpop.f32.mrf.mxu0
        %v2977 = vadd.f32 0.0, %v2976
        %2978 = vmatmul.f32.gmra.mxu0 %v2867
        %v2979 = vpop.f32.mrf.mxu0
        %v2980 = vadd.f32 0.0, %v2979
        %2981 = vmatmul.f32.gmra.mxu0 %v2870
        %v2982 = vpop.f32.mrf.mxu0
        %v2983 = vadd.f32 0.0, %v2982
        %2984 = vmatmul.f32.gmra.mxu0 %v2873
        %v2985 = vpop.f32.mrf.mxu0
        %v2986 = vadd.f32 0.0, %v2985
        %2987 = vmatmul.f32.gmra.mxu0 %v2876
        %v2988 = vpop.f32.mrf.mxu0
        %v2989 = vadd.f32 0.0, %v2988
        %2990 = vmatmul.f32.gmra.mxu0 %v2879
        %v2991 = vpop.f32.mrf.mxu0
        %v2992 = vadd.f32 0.0, %v2991
        %2993 = vmatmul.f32.gmra.mxu0 %v2882
        %v2994 = vpop.f32.mrf.mxu0
        %v2995 = vadd.f32 0.0, %v2994
        %2996 = vmatmul.f32.gmra.mxu0 %v2885
        %v2997 = vpop.f32.mrf.mxu0
        %v2998 = vadd.f32 0.0, %v2997
        %2999 = vmatmul.f32.gmra.mxu0 %v2888
        %v3000 = vpop.f32.mrf.mxu0
        %v3001 = vadd.f32 0.0, %v3000
        %3002 = vmatmul.f32.gmra.mxu0 %v2891
        %v3003 = vpop.f32.mrf.mxu0
        %v3004 = vadd.f32 0.0, %v3003
        %3005 = vmatmul.f32.gmra.mxu0 %v2894
        %v3006 = vpop.f32.mrf.mxu0
        %v3007 = vadd.f32 0.0, %v3006
        %3008 = vmatmul.f32.gmra.mxu0 %v2897
        %v3009 = vpop.f32.mrf.mxu0
        %v3010 = vadd.f32 0.0, %v3009
        %3011 = vmatmul.f32.gmra.mxu0 %v2900
        %v3012 = vpop.f32.mrf.mxu0
        %v3013 = vadd.f32 0.0, %v3012
        %3014 = vmatmul.f32.gmra.mxu0 %v2903
        %v3015 = vpop.f32.mrf.mxu0
        %v3016 = vadd.f32 0.0, %v3015
        %3017 = vdwg.mxu0
        %v3019 = vsel %vm1143, %v1103, 0
        %v3022 = vsel %vm1143, %v1104, 0
        %v3025 = vsel %vm1143, %v1105, 0
        %v3028 = vsel %vm1143, %v1106, 0
        %v3031 = vsel %vm1143, %v1107, 0
        %v3034 = vsel %vm1143, %v1108, 0
        %v3037 = vsel %vm1143, %v1109, 0
        %v3040 = vsel %vm1143, %v1110, 0
        %v3043 = vsel %vm1143, %v1111, 0
        %v3046 = vsel %vm1143, %v1112, 0
        %v3049 = vsel %vm1143, %v1113, 0
        %v3052 = vsel %vm1143, %v1114, 0
        %v3055 = vsel %vm1143, %v1115, 0
        %v3058 = vsel %vm1143, %v1116, 0
        %v3061 = vsel %vm1143, %v1117, 0
        %v3064 = vsel %vm1143, %v1118, 0
        %v3067 = vsel %vm1143, %v1119, 0
        %v3070 = vsel %vm1143, %v1120, 0
        %v3073 = vsel %vm1143, %v1121, 0
        %v3076 = vsel %vm1143, %v1122, 0
        %v3079 = vsel %vm1143, %v1123, 0
        %v3082 = vsel %vm1143, %v1124, 0
        %v3085 = vsel %vm1143, %v1125, 0
        %v3088 = vsel %vm1143, %v1126, 0
        %v3091 = vsel %vm1143, %v1127, 0
        %v3094 = vsel %vm1143, %v1128, 0
        %v3097 = vsel %vm1143, %v1129, 0
        %v3100 = vsel %vm1143, %v1130, 0
        %v3103 = vsel %vm1143, %v1131, 0
        %v3106 = vsel %vm1143, %v1132, 0
        %v3109 = vsel %vm1143, %v1133, 0
        %v3112 = vsel %vm1143, %v1134, 0
        %3114 = vmatpush.msra.mxu0 0.0
        %3115 = vmatpush.msra.mxu0 0.0
        %3116 = vmatpush.msra.mxu0 0.0
        %3117 = vmatpush.msra.mxu0 0.0
        %3118 = vmatpush.msra.mxu0 0.0
        %3119 = vmatpush.msra.mxu0 0.0
        %3120 = vmatpush.msra.mxu0 0.0
        %3121 = vmatpush.msra.mxu0 0.0
        %3122 = vmatpush.msra.mxu0 0.0
        %3123 = vmatpush.msra.mxu0 0.0
        %3124 = vmatpush.msra.mxu0 0.0
        %3125 = vmatpush.msra.mxu0 0.0
        %3126 = vmatpush.msra.mxu0 0.0
        %3127 = vmatpush.msra.mxu0 0.0
        %3128 = vmatpush.msra.mxu0 %v1136
        %3129 = vmatpush.msra.mxu0 %v1135
        %3130 = vmatmul.f32.gmra.mxu0 %v3019
        %v3131 = vpop.f32.mrf.mxu0
        %v3132 = vadd.f32 %v2923, %v3131
        %3133 = vmatmul.f32.gmra.mxu0 %v3022
        %v3134 = vpop.f32.mrf.mxu0
        %v3135 = vadd.f32 %v2926, %v3134
        %3136 = vmatmul.f32.gmra.mxu0 %v3025
        %v3137 = vpop.f32.mrf.mxu0
        %v3138 = vadd.f32 %v2929, %v3137
        %3139 = vmatmul.f32.gmra.mxu0 %v3028
        %v3140 = vpop.f32.mrf.mxu0
        %v3141 = vadd.f32 %v2932, %v3140
        %3142 = vmatmul.f32.gmra.mxu0 %v3031
        %v3143 = vpop.f32.mrf.mxu0
        %v3144 = vadd.f32 %v2935, %v3143
        %3145 = vmatmul.f32.gmra.mxu0 %v3034
        %v3146 = vpop.f32.mrf.mxu0
        %v3147 = vadd.f32 %v2938, %v3146
        %3148 = vmatmul.f32.gmra.mxu0 %v3037
        %v3149 = vpop.f32.mrf.mxu0
        %v3150 = vadd.f32 %v2941, %v3149
        %3151 = vmatmul.f32.gmra.mxu0 %v3040
        %v3152 = vpop.f32.mrf.mxu0
        %v3153 = vadd.f32 %v2944, %v3152
        %3154 = vmatmul.f32.gmra.mxu0 %v3043
        %v3155 = vpop.f32.mrf.mxu0
        %v3156 = vadd.f32 %v2947, %v3155
        %3157 = vmatmul.f32.gmra.mxu0 %v3046
        %v3158 = vpop.f32.mrf.mxu0
        %v3159 = vadd.f32 %v2950, %v3158
        %3160 = vmatmul.f32.gmra.mxu0 %v3049
        %v3161 = vpop.f32.mrf.mxu0
        %v3162 = vadd.f32 %v2953, %v3161
        %3163 = vmatmul.f32.gmra.mxu0 %v3052
        %v3164 = vpop.f32.mrf.mxu0
        %v3165 = vadd.f32 %v2956, %v3164
        %3166 = vmatmul.f32.gmra.mxu0 %v3055
        %v3167 = vpop.f32.mrf.mxu0
        %v3168 = vadd.f32 %v2959, %v3167
        %3169 = vmatmul.f32.gmra.mxu0 %v3058
        %v3170 = vpop.f32.mrf.mxu0
        %v3171 = vadd.f32 %v2962, %v3170
        %3172 = vmatmul.f32.gmra.mxu0 %v3061
        %v3173 = vpop.f32.mrf.mxu0
        %v3174 = vadd.f32 %v2965, %v3173
        %3175 = vmatmul.f32.gmra.mxu0 %v3064
        %v3176 = vpop.f32.mrf.mxu0
        %v3177 = vadd.f32 %v2968, %v3176
        %3178 = vmatmul.f32.gmra.mxu0 %v3067
        %v3179 = vpop.f32.mrf.mxu0
        %v3180 = vadd.f32 %v2971, %v3179
        %3181 = vmatmul.f32.gmra.mxu0 %v3070
        %v3182 = vpop.f32.mrf.mxu0
        %v3183 = vadd.f32 %v2974, %v3182
        %3184 = vmatmul.f32.gmra.mxu0 %v3073
        %v3185 = vpop.f32.mrf.mxu0
        %v3186 = vadd.f32 %v2977, %v3185
        %3187 = vmatmul.f32.gmra.mxu0 %v3076
        %v3188 = vpop.f32.mrf.mxu0
        %v3189 = vadd.f32 %v2980, %v3188
        %3190 = vmatmul.f32.gmra.mxu0 %v3079
        %v3191 = vpop.f32.mrf.mxu0
        %v3192 = vadd.f32 %v2983, %v3191
        %3193 = vmatmul.f32.gmra.mxu0 %v3082
        %v3194 = vpop.f32.mrf.mxu0
        %v3195 = vadd.f32 %v2986, %v3194
        %3196 = vmatmul.f32.gmra.mxu0 %v3085
        %v3197 = vpop.f32.mrf.mxu0
        %v3198 = vadd.f32 %v2989, %v3197
        %3199 = vmatmul.f32.gmra.mxu0 %v3088
        %v3200 = vpop.f32.mrf.mxu0
        %v3201 = vadd.f32 %v2992, %v3200
        %3202 = vmatmul.f32.gmra.mxu0 %v3091
        %v3203 = vpop.f32.mrf.mxu0
        %v3204 = vadd.f32 %v2995, %v3203
        %3205 = vmatmul.f32.gmra.mxu0 %v3094
        %v3206 = vpop.f32.mrf.mxu0
        %v3207 = vadd.f32 %v2998, %v3206
        %3208 = vmatmul.f32.gmra.mxu0 %v3097
        %v3209 = vpop.f32.mrf.mxu0
        %v3210 = vadd.f32 %v3001, %v3209
        %3211 = vmatmul.f32.gmra.mxu0 %v3100
        %v3212 = vpop.f32.mrf.mxu0
        %v3213 = vadd.f32 %v3004, %v3212
        %3214 = vmatmul.f32.gmra.mxu0 %v3103
        %v3215 = vpop.f32.mrf.mxu0
        %v3216 = vadd.f32 %v3007, %v3215
        %3217 = vmatmul.f32.gmra.mxu0 %v3106
        %v3218 = vpop.f32.mrf.mxu0
        %v3219 = vadd.f32 %v3010, %v3218
        %3220 = vmatmul.f32.gmra.mxu0 %v3109
        %v3221 = vpop.f32.mrf.mxu0
        %v3222 = vadd.f32 %v3013, %v3221
        %3223 = vmatmul.f32.gmra.mxu0 %v3112
        %v3224 = vpop.f32.mrf.mxu0
        %v3225 = vadd.f32 %v3016, %v3224
        %3226 = vdwg.mxu0
        %3227 = vst.msk [vmem:[%s1205 + $0x2] sm:$0xff] %vm1143, %v2777
        %3228 = vst.msk [vmem:[%s1205 + $0xa] sm:$0xff] %vm1143, %v2778
        %3229 = vst.msk [vmem:[%s1205 + $0x1a] sm:$0xff] %vm1143, %v2779
        %3230 = vst.msk [vmem:[%s1205 + $0x22] sm:$0xff] %vm1143, %v2780
        %3231 = vst.msk [vmem:[%s1205 + $0x32] sm:$0xff] %vm1143, %v2781
        %3232 = vst.msk [vmem:[%s1205 + $0x3a] sm:$0xff] %vm1143, %v2782
        %3233 = vst.msk [vmem:[%s1205 + $0x4a] sm:$0xff] %vm1143, %v2783
        %3234 = vst.msk [vmem:[%s1205 + $0x52] sm:$0xff] %vm1143, %v2784
        %3235 = vst.msk [vmem:[%s1205 + $0x62] sm:$0xff] %vm1143, %v2785
        %3236 = vst.msk [vmem:[%s1205 + $0x6a] sm:$0xff] %vm1143, %v2786
        %3237 = vst.msk [vmem:[%s1205 + $0x7a] sm:$0xff] %vm1143, %v2787
        %3238 = vst.msk [vmem:[%s1205 + $0x82] sm:$0xff] %vm1143, %v2788
        %3239 = vst.msk [vmem:[%s1205 + $0x92] sm:$0xff] %vm1143, %v2789
        %3240 = vst.msk [vmem:[%s1205 + $0x9a] sm:$0xff] %vm1143, %v2790
        %3241 = vst.msk [vmem:[%s1205 + $0xaa] sm:$0xff] %vm1143, %v2791
        %3242 = vst.msk [vmem:[%s1205 + $0xb2] sm:$0xff] %vm1143, %v2792
        %3243 = vst.msk [vmem:[%s1205 + $0xc2] sm:$0xff] %vm1143, %v2793
        %3244 = vst.msk [vmem:[%s1205 + $0xca] sm:$0xff] %vm1143, %v2794
        %3245 = vst.msk [vmem:[%s1205 + $0xda] sm:$0xff] %vm1143, %v2795
        %3246 = vst.msk [vmem:[%s1205 + $0xe2] sm:$0xff] %vm1143, %v2796
        %3247 = vst.msk [vmem:[%s1205 + $0xf2] sm:$0xff] %vm1143, %v2797
        %3248 = vst.msk [vmem:[%s1205 + $0xfa] sm:$0xff] %vm1143, %v2798
        %3249 = vst.msk [vmem:[%s1205 + $0x10a] sm:$0xff] %vm1143, %v2799
        %3250 = vst.msk [vmem:[%s1205 + $0x112] sm:$0xff] %vm1143, %v2800
        %3251 = vst.msk [vmem:[%s1205 + $0x122] sm:$0xff] %vm1143, %v2801
        %3252 = vst.msk [vmem:[%s1205 + $0x12a] sm:$0xff] %vm1143, %v2802
        %3253 = vst.msk [vmem:[%s1205 + $0x13a] sm:$0xff] %vm1143, %v2803
        %3254 = vst.msk [vmem:[%s1205 + $0x142] sm:$0xff] %vm1143, %v2804
        %3255 = vst.msk [vmem:[%s1205 + $0x152] sm:$0xff] %vm1143, %v2805
        %3256 = vst.msk [vmem:[%s1205 + $0x15a] sm:$0xff] %vm1143, %v2806
        %3257 = vst.msk [vmem:[%s1205 + $0x16a] sm:$0xff] %vm1143, %v2807
        %3258 = vst.msk [vmem:[%s1205 + $0x172] sm:$0xff] %vm1143, %v2808
        %v3259 = vld [vmem:[#allocation2] sm:$0xff]
        %v3260 = vld [vmem:[#allocation2 + $0x8] sm:$0xff]
        %v3261 = vld [vmem:[#allocation2 + $0x18] sm:$0xff]
        %v3262 = vld [vmem:[#allocation2 + $0x20] sm:$0xff]
        %v3263 = vld [vmem:[#allocation2 + $0x30] sm:$0xff]
        %v3264 = vld [vmem:[#allocation2 + $0x38] sm:$0xff]
        %v3265 = vld [vmem:[#allocation2 + $0x48] sm:$0xff]
        %v3266 = vld [vmem:[#allocation2 + $0x50] sm:$0xff]
        %v3267 = vld [vmem:[#allocation2 + $0x60] sm:$0xff]
        %v3268 = vld [vmem:[#allocation2 + $0x68] sm:$0xff]
        %v3269 = vld [vmem:[#allocation2 + $0x78] sm:$0xff]
        %v3270 = vld [vmem:[#allocation2 + $0x80] sm:$0xff]
        %v3271 = vld [vmem:[#allocation2 + $0x90] sm:$0xff]
        %v3272 = vld [vmem:[#allocation2 + $0x98] sm:$0xff]
        %v3273 = vld [vmem:[#allocation2 + $0xa8] sm:$0xff]
        %v3274 = vld [vmem:[#allocation2 + $0xb0] sm:$0xff]
        %v3275 = vld [vmem:[#allocation2 + $0xc0] sm:$0xff]
        %v3276 = vld [vmem:[#allocation2 + $0xc8] sm:$0xff]
        %v3277 = vld [vmem:[#allocation2 + $0xd8] sm:$0xff]
        %v3278 = vld [vmem:[#allocation2 + $0xe0] sm:$0xff]
        %v3279 = vld [vmem:[#allocation2 + $0xf0] sm:$0xff]
        %v3280 = vld [vmem:[#allocation2 + $0xf8] sm:$0xff]
        %v3281 = vld [vmem:[#allocation2 + $0x108] sm:$0xff]
        %v3282 = vld [vmem:[#allocation2 + $0x110] sm:$0xff]
        %v3283 = vld [vmem:[#allocation2 + $0x120] sm:$0xff]
        %v3284 = vld [vmem:[#allocation2 + $0x128] sm:$0xff]
        %v3285 = vld [vmem:[#allocation2 + $0x138] sm:$0xff]
        %v3286 = vld [vmem:[#allocation2 + $0x140] sm:$0xff]
        %v3287 = vld [vmem:[#allocation2 + $0x150] sm:$0xff]
        %v3288 = vld [vmem:[#allocation2 + $0x158] sm:$0xff]
        %v3289 = vld [vmem:[#allocation2 + $0x168] sm:$0xff]
        %v3290 = vld [vmem:[#allocation2 + $0x170] sm:$0xff]
        %v3291 = vld [vmem:[#allocation2 + $0x1] sm:$0xff]
        %v3292 = vld [vmem:[#allocation2 + $0x9] sm:$0xff]
        %v3293 = vld [vmem:[#allocation2 + $0x19] sm:$0xff]
        %v3294 = vld [vmem:[#allocation2 + $0x21] sm:$0xff]
        %v3295 = vld [vmem:[#allocation2 + $0x31] sm:$0xff]
        %v3296 = vld [vmem:[#allocation2 + $0x39] sm:$0xff]
        %v3297 = vld [vmem:[#allocation2 + $0x49] sm:$0xff]
        %v3298 = vld [vmem:[#allocation2 + $0x51] sm:$0xff]
        %v3299 = vld [vmem:[#allocation2 + $0x61] sm:$0xff]
        %v3300 = vld [vmem:[#allocation2 + $0x69] sm:$0xff]
        %v3301 = vld [vmem:[#allocation2 + $0x79] sm:$0xff]
        %v3302 = vld [vmem:[#allocation2 + $0x81] sm:$0xff]
        %v3303 = vld [vmem:[#allocation2 + $0x91] sm:$0xff]
        %v3304 = vld [vmem:[#allocation2 + $0x99] sm:$0xff]
        %v3305 = vld [vmem:[#allocation2 + $0xa9] sm:$0xff]
        %v3306 = vld [vmem:[#allocation2 + $0xb1] sm:$0xff]
        %v3307 = vld [vmem:[#allocation2 + $0xc1] sm:$0xff]
        %v3308 = vld [vmem:[#allocation2 + $0xc9] sm:$0xff]
        %v3309 = vld [vmem:[#allocation2 + $0xd9] sm:$0xff]
        %v3310 = vld [vmem:[#allocation2 + $0xe1] sm:$0xff]
        %v3311 = vld [vmem:[#allocation2 + $0xf1] sm:$0xff]
        %v3312 = vld [vmem:[#allocation2 + $0xf9] sm:$0xff]
        %v3313 = vld [vmem:[#allocation2 + $0x109] sm:$0xff]
        %v3314 = vld [vmem:[#allocation2 + $0x111] sm:$0xff]
        %v3315 = vld [vmem:[#allocation2 + $0x121] sm:$0xff]
        %v3316 = vld [vmem:[#allocation2 + $0x129] sm:$0xff]
        %v3317 = vld [vmem:[#allocation2 + $0x139] sm:$0xff]
        %v3318 = vld [vmem:[#allocation2 + $0x141] sm:$0xff]
        %v3319 = vld [vmem:[#allocation2 + $0x151] sm:$0xff]
        %v3320 = vld [vmem:[#allocation2 + $0x159] sm:$0xff]
        %v3321 = vld [vmem:[#allocation2 + $0x169] sm:$0xff]
        %v3322 = vld [vmem:[#allocation2 + $0x171] sm:$0xff]
        %v3323 = vmax.f32 %v3259, %v3291
        %v3324 = vmax.f32 %v3260, %v3292
        %v3325 = vmax.f32 %v3261, %v3293
        %v3326 = vmax.f32 %v3262, %v3294
        %v3327 = vmax.f32 %v3263, %v3295
        %v3328 = vmax.f32 %v3264, %v3296
        %v3329 = vmax.f32 %v3265, %v3297
        %v3330 = vmax.f32 %v3266, %v3298
        %v3331 = vmax.f32 %v3267, %v3299
        %v3332 = vmax.f32 %v3268, %v3300
        %v3333 = vmax.f32 %v3269, %v3301
        %v3334 = vmax.f32 %v3270, %v3302
        %v3335 = vmax.f32 %v3271, %v3303
        %v3336 = vmax.f32 %v3272, %v3304
        %v3337 = vmax.f32 %v3273, %v3305
        %v3338 = vmax.f32 %v3274, %v3306
        %v3339 = vmax.f32 %v3275, %v3307
        %v3340 = vmax.f32 %v3276, %v3308
        %v3341 = vmax.f32 %v3277, %v3309
        %v3342 = vmax.f32 %v3278, %v3310
        %v3343 = vmax.f32 %v3279, %v3311
        %v3344 = vmax.f32 %v3280, %v3312
        %v3345 = vmax.f32 %v3281, %v3313
        %v3346 = vmax.f32 %v3282, %v3314
        %v3347 = vmax.f32 %v3283, %v3315
        %v3348 = vmax.f32 %v3284, %v3316
        %v3349 = vmax.f32 %v3285, %v3317
        %v3350 = vmax.f32 %v3286, %v3318
        %v3351 = vmax.f32 %v3287, %v3319
        %v3352 = vmax.f32 %v3288, %v3320
        %v3353 = vmax.f32 %v3289, %v3321
        %v3354 = vmax.f32 %v3290, %v3322
        %v3355 = vld [vmem:[#allocation2 + $0x2] sm:$0xff]
        %v3356 = vld [vmem:[#allocation2 + $0xa] sm:$0xff]
        %v3357 = vld [vmem:[#allocation2 + $0x1a] sm:$0xff]
        %v3358 = vld [vmem:[#allocation2 + $0x22] sm:$0xff]
        %v3359 = vld [vmem:[#allocation2 + $0x32] sm:$0xff]
        %v3360 = vld [vmem:[#allocation2 + $0x3a] sm:$0xff]
        %v3361 = vld [vmem:[#allocation2 + $0x4a] sm:$0xff]
        %v3362 = vld [vmem:[#allocation2 + $0x52] sm:$0xff]
        %v3363 = vld [vmem:[#allocation2 + $0x62] sm:$0xff]
        %v3364 = vld [vmem:[#allocation2 + $0x6a] sm:$0xff]
        %v3365 = vld [vmem:[#allocation2 + $0x7a] sm:$0xff]
        %v3366 = vld [vmem:[#allocation2 + $0x82] sm:$0xff]
        %v3367 = vld [vmem:[#allocation2 + $0x92] sm:$0xff]
        %v3368 = vld [vmem:[#allocation2 + $0x9a] sm:$0xff]
        %v3369 = vld [vmem:[#allocation2 + $0xaa] sm:$0xff]
        %v3370 = vld [vmem:[#allocation2 + $0xb2] sm:$0xff]
        %v3371 = vld [vmem:[#allocation2 + $0xc2] sm:$0xff]
        %v3372 = vld [vmem:[#allocation2 + $0xca] sm:$0xff]
        %v3373 = vld [vmem:[#allocation2 + $0xda] sm:$0xff]
        %v3374 = vld [vmem:[#allocation2 + $0xe2] sm:$0xff]
        %v3375 = vld [vmem:[#allocation2 + $0xf2] sm:$0xff]
        %v3376 = vld [vmem:[#allocation2 + $0xfa] sm:$0xff]
        %v3377 = vld [vmem:[#allocation2 + $0x10a] sm:$0xff]
        %v3378 = vld [vmem:[#allocation2 + $0x112] sm:$0xff]
        %v3379 = vld [vmem:[#allocation2 + $0x122] sm:$0xff]
        %v3380 = vld [vmem:[#allocation2 + $0x12a] sm:$0xff]
        %v3381 = vld [vmem:[#allocation2 + $0x13a] sm:$0xff]
        %v3382 = vld [vmem:[#allocation2 + $0x142] sm:$0xff]
        %v3383 = vld [vmem:[#allocation2 + $0x152] sm:$0xff]
        %v3384 = vld [vmem:[#allocation2 + $0x15a] sm:$0xff]
        %v3385 = vld [vmem:[#allocation2 + $0x16a] sm:$0xff]
        %v3386 = vld [vmem:[#allocation2 + $0x172] sm:$0xff]
        %v3387 = vmax.f32 %v3323, %v3355
        %v3388 = vmax.f32 %v3324, %v3356
        %v3389 = vmax.f32 %v3325, %v3357
        %v3390 = vmax.f32 %v3326, %v3358
        %v3391 = vmax.f32 %v3327, %v3359
        %v3392 = vmax.f32 %v3328, %v3360
        %v3393 = vmax.f32 %v3329, %v3361
        %v3394 = vmax.f32 %v3330, %v3362
        %v3395 = vmax.f32 %v3331, %v3363
        %v3396 = vmax.f32 %v3332, %v3364
        %v3397 = vmax.f32 %v3333, %v3365
        %v3398 = vmax.f32 %v3334, %v3366
        %v3399 = vmax.f32 %v3335, %v3367
        %v3400 = vmax.f32 %v3336, %v3368
        %v3401 = vmax.f32 %v3337, %v3369
        %v3402 = vmax.f32 %v3338, %v3370
        %v3403 = vmax.f32 %v3339, %v3371
        %v3404 = vmax.f32 %v3340, %v3372
        %v3405 = vmax.f32 %v3341, %v3373
        %v3406 = vmax.f32 %v3342, %v3374
        %v3407 = vmax.f32 %v3343, %v3375
        %v3408 = vmax.f32 %v3344, %v3376
        %v3409 = vmax.f32 %v3345, %v3377
        %v3410 = vmax.f32 %v3346, %v3378
        %v3411 = vmax.f32 %v3347, %v3379
        %v3412 = vmax.f32 %v3348, %v3380
        %v3413 = vmax.f32 %v3349, %v3381
        %v3414 = vmax.f32 %v3350, %v3382
        %v3415 = vmax.f32 %v3351, %v3383
        %v3416 = vmax.f32 %v3352, %v3384
        %v3417 = vmax.f32 %v3353, %v3385
        %v3418 = vmax.f32 %v3354, %v3386
        %v3419 = vld [vmem:[#allocation2 + $0x3] sm:$0xff]
        %v3420 = vld [vmem:[#allocation2 + $0xb] sm:$0xff]
        %v3421 = vld [vmem:[#allocation2 + $0x1b] sm:$0xff]
        %v3422 = vld [vmem:[#allocation2 + $0x23] sm:$0xff]
        %v3423 = vld [vmem:[#allocation2 + $0x33] sm:$0xff]
        %v3424 = vld [vmem:[#allocation2 + $0x3b] sm:$0xff]
        %v3425 = vld [vmem:[#allocation2 + $0x4b] sm:$0xff]
        %v3426 = vld [vmem:[#allocation2 + $0x53] sm:$0xff]
        %v3427 = vld [vmem:[#allocation2 + $0x63] sm:$0xff]
        %v3428 = vld [vmem:[#allocation2 + $0x6b] sm:$0xff]
        %v3429 = vld [vmem:[#allocation2 + $0x7b] sm:$0xff]
        %v3430 = vld [vmem:[#allocation2 + $0x83] sm:$0xff]
        %v3431 = vld [vmem:[#allocation2 + $0x93] sm:$0xff]
        %v3432 = vld [vmem:[#allocation2 + $0x9b] sm:$0xff]
        %v3433 = vld [vmem:[#allocation2 + $0xab] sm:$0xff]
        %v3434 = vld [vmem:[#allocation2 + $0xb3] sm:$0xff]
        %v3435 = vld [vmem:[#allocation2 + $0xc3] sm:$0xff]
        %v3436 = vld [vmem:[#allocation2 + $0xcb] sm:$0xff]
        %v3437 = vld [vmem:[#allocation2 + $0xdb] sm:$0xff]
        %v3438 = vld [vmem:[#allocation2 + $0xe3] sm:$0xff]
        %v3439 = vld [vmem:[#allocation2 + $0xf3] sm:$0xff]
        %v3440 = vld [vmem:[#allocation2 + $0xfb] sm:$0xff]
        %v3441 = vld [vmem:[#allocation2 + $0x10b] sm:$0xff]
        %v3442 = vld [vmem:[#allocation2 + $0x113] sm:$0xff]
        %v3443 = vld [vmem:[#allocation2 + $0x123] sm:$0xff]
        %v3444 = vld [vmem:[#allocation2 + $0x12b] sm:$0xff]
        %v3445 = vld [vmem:[#allocation2 + $0x13b] sm:$0xff]
        %v3446 = vld [vmem:[#allocation2 + $0x143] sm:$0xff]
        %v3447 = vld [vmem:[#allocation2 + $0x153] sm:$0xff]
        %v3448 = vld [vmem:[#allocation2 + $0x15b] sm:$0xff]
        %v3449 = vld [vmem:[#allocation2 + $0x16b] sm:$0xff]
        %v3450 = vld [vmem:[#allocation2 + $0x173] sm:$0xff]
        %v3451 = vmax.f32 %v3387, %v3419
        %v3452 = vmax.f32 %v3388, %v3420
        %v3453 = vmax.f32 %v3389, %v3421
        %v3454 = vmax.f32 %v3390, %v3422
        %v3455 = vmax.f32 %v3391, %v3423
        %v3456 = vmax.f32 %v3392, %v3424
        %v3457 = vmax.f32 %v3393, %v3425
        %v3458 = vmax.f32 %v3394, %v3426
        %v3459 = vmax.f32 %v3395, %v3427
        %v3460 = vmax.f32 %v3396, %v3428
        %v3461 = vmax.f32 %v3397, %v3429
        %v3462 = vmax.f32 %v3398, %v3430
        %v3463 = vmax.f32 %v3399, %v3431
        %v3464 = vmax.f32 %v3400, %v3432
        %v3465 = vmax.f32 %v3401, %v3433
        %v3466 = vmax.f32 %v3402, %v3434
        %v3467 = vmax.f32 %v3403, %v3435
        %v3468 = vmax.f32 %v3404, %v3436
        %v3469 = vmax.f32 %v3405, %v3437
        %v3470 = vmax.f32 %v3406, %v3438
        %v3471 = vmax.f32 %v3407, %v3439
        %v3472 = vmax.f32 %v3408, %v3440
        %v3473 = vmax.f32 %v3409, %v3441
        %v3474 = vmax.f32 %v3410, %v3442
        %v3475 = vmax.f32 %v3411, %v3443
        %v3476 = vmax.f32 %v3412, %v3444
        %v3477 = vmax.f32 %v3413, %v3445
        %v3478 = vmax.f32 %v3414, %v3446
        %v3479 = vmax.f32 %v3415, %v3447
        %v3480 = vmax.f32 %v3416, %v3448
        %v3481 = vmax.f32 %v3417, %v3449
        %v3482 = vmax.f32 %v3418, %v3450
        %v3483 = vld [vmem:[#allocation2 + $0x4] sm:$0xff]
        %v3484 = vld [vmem:[#allocation2 + $0xc] sm:$0xff]
        %v3485 = vld [vmem:[#allocation2 + $0x1c] sm:$0xff]
        %v3486 = vld [vmem:[#allocation2 + $0x24] sm:$0xff]
        %v3487 = vld [vmem:[#allocation2 + $0x34] sm:$0xff]
        %v3488 = vld [vmem:[#allocation2 + $0x3c] sm:$0xff]
        %v3489 = vld [vmem:[#allocation2 + $0x4c] sm:$0xff]
        %v3490 = vld [vmem:[#allocation2 + $0x54] sm:$0xff]
        %v3491 = vld [vmem:[#allocation2 + $0x64] sm:$0xff]
        %v3492 = vld [vmem:[#allocation2 + $0x6c] sm:$0xff]
        %v3493 = vld [vmem:[#allocation2 + $0x7c] sm:$0xff]
        %v3494 = vld [vmem:[#allocation2 + $0x84] sm:$0xff]
        %v3495 = vld [vmem:[#allocation2 + $0x94] sm:$0xff]
        %v3496 = vld [vmem:[#allocation2 + $0x9c] sm:$0xff]
        %v3497 = vld [vmem:[#allocation2 + $0xac] sm:$0xff]
        %v3498 = vld [vmem:[#allocation2 + $0xb4] sm:$0xff]
        %v3499 = vld [vmem:[#allocation2 + $0xc4] sm:$0xff]
        %v3500 = vld [vmem:[#allocation2 + $0xcc] sm:$0xff]
        %v3501 = vld [vmem:[#allocation2 + $0xdc] sm:$0xff]
        %v3502 = vld [vmem:[#allocation2 + $0xe4] sm:$0xff]
        %v3503 = vld [vmem:[#allocation2 + $0xf4] sm:$0xff]
        %v3504 = vld [vmem:[#allocation2 + $0xfc] sm:$0xff]
        %v3505 = vld [vmem:[#allocation2 + $0x10c] sm:$0xff]
        %v3506 = vld [vmem:[#allocation2 + $0x114] sm:$0xff]
        %v3507 = vld [vmem:[#allocation2 + $0x124] sm:$0xff]
        %v3508 = vld [vmem:[#allocation2 + $0x12c] sm:$0xff]
        %v3509 = vld [vmem:[#allocation2 + $0x13c] sm:$0xff]
        %v3510 = vld [vmem:[#allocation2 + $0x144] sm:$0xff]
        %v3511 = vld [vmem:[#allocation2 + $0x154] sm:$0xff]
        %v3512 = vld [vmem:[#allocation2 + $0x15c] sm:$0xff]
        %v3513 = vld [vmem:[#allocation2 + $0x16c] sm:$0xff]
        %v3514 = vld [vmem:[#allocation2 + $0x174] sm:$0xff]
        %v3515 = vmax.f32 %v3451, %v3483
        %v3516 = vmax.f32 %v3452, %v3484
        %v3517 = vmax.f32 %v3453, %v3485
        %v3518 = vmax.f32 %v3454, %v3486
        %v3519 = vmax.f32 %v3455, %v3487
        %v3520 = vmax.f32 %v3456, %v3488
        %v3521 = vmax.f32 %v3457, %v3489
        %v3522 = vmax.f32 %v3458, %v3490
        %v3523 = vmax.f32 %v3459, %v3491
        %v3524 = vmax.f32 %v3460, %v3492
        %v3525 = vmax.f32 %v3461, %v3493
        %v3526 = vmax.f32 %v3462, %v3494
        %v3527 = vmax.f32 %v3463, %v3495
        %v3528 = vmax.f32 %v3464, %v3496
        %v3529 = vmax.f32 %v3465, %v3497
        %v3530 = vmax.f32 %v3466, %v3498
        %v3531 = vmax.f32 %v3467, %v3499
        %v3532 = vmax.f32 %v3468, %v3500
        %v3533 = vmax.f32 %v3469, %v3501
        %v3534 = vmax.f32 %v3470, %v3502
        %v3535 = vmax.f32 %v3471, %v3503
        %v3536 = vmax.f32 %v3472, %v3504
        %v3537 = vmax.f32 %v3473, %v3505
        %v3538 = vmax.f32 %v3474, %v3506
        %v3539 = vmax.f32 %v3475, %v3507
        %v3540 = vmax.f32 %v3476, %v3508
        %v3541 = vmax.f32 %v3477, %v3509
        %v3542 = vmax.f32 %v3478, %v3510
        %v3543 = vmax.f32 %v3479, %v3511
        %v3544 = vmax.f32 %v3480, %v3512
        %v3545 = vmax.f32 %v3481, %v3513
        %v3546 = vmax.f32 %v3482, %v3514
        %v3547 = vld [vmem:[%s1526] sm:$0xff]
        %v3548 = vld [vmem:[%s1526 + $0x8] sm:$0xff]
        %v3549 = vld [vmem:[%s1526 + $0x18] sm:$0xff]
        %v3550 = vld [vmem:[%s1526 + $0x20] sm:$0xff]
        %v3551 = vld [vmem:[%s1526 + $0x30] sm:$0xff]
        %v3552 = vld [vmem:[%s1526 + $0x38] sm:$0xff]
        %v3553 = vld [vmem:[%s1526 + $0x48] sm:$0xff]
        %v3554 = vld [vmem:[%s1526 + $0x50] sm:$0xff]
        %v3555 = vld [vmem:[%s1526 + $0x60] sm:$0xff]
        %v3556 = vld [vmem:[%s1526 + $0x68] sm:$0xff]
        %v3557 = vld [vmem:[%s1526 + $0x78] sm:$0xff]
        %v3558 = vld [vmem:[%s1526 + $0x80] sm:$0xff]
        %v3559 = vld [vmem:[%s1526 + $0x90] sm:$0xff]
        %v3560 = vld [vmem:[%s1526 + $0x98] sm:$0xff]
        %v3561 = vld [vmem:[%s1526 + $0xa8] sm:$0xff]
        %v3562 = vld [vmem:[%s1526 + $0xb0] sm:$0xff]
        %v3563 = vld [vmem:[%s1526 + $0xc0] sm:$0xff]
        %v3564 = vld [vmem:[%s1526 + $0xc8] sm:$0xff]
        %v3565 = vld [vmem:[%s1526 + $0xd8] sm:$0xff]
        %v3566 = vld [vmem:[%s1526 + $0xe0] sm:$0xff]
        %v3567 = vld [vmem:[%s1526 + $0xf0] sm:$0xff]
        %v3568 = vld [vmem:[%s1526 + $0xf8] sm:$0xff]
        %v3569 = vld [vmem:[%s1526 + $0x108] sm:$0xff]
        %v3570 = vld [vmem:[%s1526 + $0x110] sm:$0xff]
        %v3571 = vld [vmem:[%s1526 + $0x120] sm:$0xff]
        %v3572 = vld [vmem:[%s1526 + $0x128] sm:$0xff]
        %v3573 = vld [vmem:[%s1526 + $0x138] sm:$0xff]
        %v3574 = vld [vmem:[%s1526 + $0x140] sm:$0xff]
        %v3575 = vld [vmem:[%s1526 + $0x150] sm:$0xff]
        %v3576 = vld [vmem:[%s1526 + $0x158] sm:$0xff]
        %v3577 = vld [vmem:[%s1526 + $0x168] sm:$0xff]
        %v3578 = vld [vmem:[%s1526 + $0x170] sm:$0xff]
        %v3579 = vmax.f32 %v3515, %v3547
        %v3580 = vmax.f32 %v3516, %v3548
        %v3581 = vmax.f32 %v3517, %v3549
        %v3582 = vmax.f32 %v3518, %v3550
        %v3583 = vmax.f32 %v3519, %v3551
        %v3584 = vmax.f32 %v3520, %v3552
        %v3585 = vmax.f32 %v3521, %v3553
        %v3586 = vmax.f32 %v3522, %v3554
        %v3587 = vmax.f32 %v3523, %v3555
        %v3588 = vmax.f32 %v3524, %v3556
        %v3589 = vmax.f32 %v3525, %v3557
        %v3590 = vmax.f32 %v3526, %v3558
        %v3591 = vmax.f32 %v3527, %v3559
        %v3592 = vmax.f32 %v3528, %v3560
        %v3593 = vmax.f32 %v3529, %v3561
        %v3594 = vmax.f32 %v3530, %v3562
        %v3595 = vmax.f32 %v3531, %v3563
        %v3596 = vmax.f32 %v3532, %v3564
        %v3597 = vmax.f32 %v3533, %v3565
        %v3598 = vmax.f32 %v3534, %v3566
        %v3599 = vmax.f32 %v3535, %v3567
        %v3600 = vmax.f32 %v3536, %v3568
        %v3601 = vmax.f32 %v3537, %v3569
        %v3602 = vmax.f32 %v3538, %v3570
        %v3603 = vmax.f32 %v3539, %v3571
        %v3604 = vmax.f32 %v3540, %v3572
        %v3605 = vmax.f32 %v3541, %v3573
        %v3606 = vmax.f32 %v3542, %v3574
        %v3607 = vmax.f32 %v3543, %v3575
        %v3608 = vmax.f32 %v3544, %v3576
        %v3609 = vmax.f32 %v3545, %v3577
        %v3610 = vmax.f32 %v3546, %v3578
        %v3611 = vld [vmem:[%s1526 + $0x1] sm:$0xff]
        %v3612 = vld [vmem:[%s1526 + $0x9] sm:$0xff]
        %v3613 = vld [vmem:[%s1526 + $0x19] sm:$0xff]
        %v3614 = vld [vmem:[%s1526 + $0x21] sm:$0xff]
        %v3615 = vld [vmem:[%s1526 + $0x31] sm:$0xff]
        %v3616 = vld [vmem:[%s1526 + $0x39] sm:$0xff]
        %v3617 = vld [vmem:[%s1526 + $0x49] sm:$0xff]
        %v3618 = vld [vmem:[%s1526 + $0x51] sm:$0xff]
        %v3619 = vld [vmem:[%s1526 + $0x61] sm:$0xff]
        %v3620 = vld [vmem:[%s1526 + $0x69] sm:$0xff]
        %v3621 = vld [vmem:[%s1526 + $0x79] sm:$0xff]
        %v3622 = vld [vmem:[%s1526 + $0x81] sm:$0xff]
        %v3623 = vld [vmem:[%s1526 + $0x91] sm:$0xff]
        %v3624 = vld [vmem:[%s1526 + $0x99] sm:$0xff]
        %v3625 = vld [vmem:[%s1526 + $0xa9] sm:$0xff]
        %v3626 = vld [vmem:[%s1526 + $0xb1] sm:$0xff]
        %v3627 = vld [vmem:[%s1526 + $0xc1] sm:$0xff]
        %v3628 = vld [vmem:[%s1526 + $0xc9] sm:$0xff]
        %v3629 = vld [vmem:[%s1526 + $0xd9] sm:$0xff]
        %v3630 = vld [vmem:[%s1526 + $0xe1] sm:$0xff]
        %v3631 = vld [vmem:[%s1526 + $0xf1] sm:$0xff]
        %v3632 = vld [vmem:[%s1526 + $0xf9] sm:$0xff]
        %v3633 = vld [vmem:[%s1526 + $0x109] sm:$0xff]
        %v3634 = vld [vmem:[%s1526 + $0x111] sm:$0xff]
        %v3635 = vld [vmem:[%s1526 + $0x121] sm:$0xff]
        %v3636 = vld [vmem:[%s1526 + $0x129] sm:$0xff]
        %v3637 = vld [vmem:[%s1526 + $0x139] sm:$0xff]
        %v3638 = vld [vmem:[%s1526 + $0x141] sm:$0xff]
        %v3639 = vld [vmem:[%s1526 + $0x151] sm:$0xff]
        %v3640 = vld [vmem:[%s1526 + $0x159] sm:$0xff]
        %v3641 = vld [vmem:[%s1526 + $0x169] sm:$0xff]
        %v3642 = vld [vmem:[%s1526 + $0x171] sm:$0xff]
        %v3643 = vmax.f32 %v3579, %v3611
        %v3644 = vmax.f32 %v3580, %v3612
        %v3645 = vmax.f32 %v3581, %v3613
        %v3646 = vmax.f32 %v3582, %v3614
        %v3647 = vmax.f32 %v3583, %v3615
        %v3648 = vmax.f32 %v3584, %v3616
        %v3649 = vmax.f32 %v3585, %v3617
        %v3650 = vmax.f32 %v3586, %v3618
        %v3651 = vmax.f32 %v3587, %v3619
        %v3652 = vmax.f32 %v3588, %v3620
        %v3653 = vmax.f32 %v3589, %v3621
        %v3654 = vmax.f32 %v3590, %v3622
        %v3655 = vmax.f32 %v3591, %v3623
        %v3656 = vmax.f32 %v3592, %v3624
        %v3657 = vmax.f32 %v3593, %v3625
        %v3658 = vmax.f32 %v3594, %v3626
        %v3659 = vmax.f32 %v3595, %v3627
        %v3660 = vmax.f32 %v3596, %v3628
        %v3661 = vmax.f32 %v3597, %v3629
        %v3662 = vmax.f32 %v3598, %v3630
        %v3663 = vmax.f32 %v3599, %v3631
        %v3664 = vmax.f32 %v3600, %v3632
        %v3665 = vmax.f32 %v3601, %v3633
        %v3666 = vmax.f32 %v3602, %v3634
        %v3667 = vmax.f32 %v3603, %v3635
        %v3668 = vmax.f32 %v3604, %v3636
        %v3669 = vmax.f32 %v3605, %v3637
        %v3670 = vmax.f32 %v3606, %v3638
        %v3671 = vmax.f32 %v3607, %v3639
        %v3672 = vmax.f32 %v3608, %v3640
        %v3673 = vmax.f32 %v3609, %v3641
        %v3674 = vmax.f32 %v3610, %v3642
        %v3675 = vld [vmem:[%s1526 + $0x2] sm:$0xff]
        %v3676 = vld [vmem:[%s1526 + $0xa] sm:$0xff]
        %v3677 = vld [vmem:[%s1526 + $0x1a] sm:$0xff]
        %v3678 = vld [vmem:[%s1526 + $0x22] sm:$0xff]
        %v3679 = vld [vmem:[%s1526 + $0x32] sm:$0xff]
        %v3680 = vld [vmem:[%s1526 + $0x3a] sm:$0xff]
        %v3681 = vld [vmem:[%s1526 + $0x4a] sm:$0xff]
        %v3682 = vld [vmem:[%s1526 + $0x52] sm:$0xff]
        %v3683 = vld [vmem:[%s1526 + $0x62] sm:$0xff]
        %v3684 = vld [vmem:[%s1526 + $0x6a] sm:$0xff]
        %v3685 = vld [vmem:[%s1526 + $0x7a] sm:$0xff]
        %v3686 = vld [vmem:[%s1526 + $0x82] sm:$0xff]
        %v3687 = vld [vmem:[%s1526 + $0x92] sm:$0xff]
        %v3688 = vld [vmem:[%s1526 + $0x9a] sm:$0xff]
        %v3689 = vld [vmem:[%s1526 + $0xaa] sm:$0xff]
        %v3690 = vld [vmem:[%s1526 + $0xb2] sm:$0xff]
        %v3691 = vld [vmem:[%s1526 + $0xc2] sm:$0xff]
        %v3692 = vld [vmem:[%s1526 + $0xca] sm:$0xff]
        %v3693 = vld [vmem:[%s1526 + $0xda] sm:$0xff]
        %v3694 = vld [vmem:[%s1526 + $0xe2] sm:$0xff]
        %v3695 = vld [vmem:[%s1526 + $0xf2] sm:$0xff]
        %v3696 = vld [vmem:[%s1526 + $0xfa] sm:$0xff]
        %v3697 = vld [vmem:[%s1526 + $0x10a] sm:$0xff]
        %v3698 = vld [vmem:[%s1526 + $0x112] sm:$0xff]
        %v3699 = vld [vmem:[%s1526 + $0x122] sm:$0xff]
        %v3700 = vld [vmem:[%s1526 + $0x12a] sm:$0xff]
        %v3701 = vld [vmem:[%s1526 + $0x13a] sm:$0xff]
        %v3702 = vld [vmem:[%s1526 + $0x142] sm:$0xff]
        %v3703 = vld [vmem:[%s1526 + $0x152] sm:$0xff]
        %v3704 = vld [vmem:[%s1526 + $0x15a] sm:$0xff]
        %v3705 = vld [vmem:[%s1526 + $0x16a] sm:$0xff]
        %v3706 = vld [vmem:[%s1526 + $0x172] sm:$0xff]
        %v3707 = vmax.f32 %v3643, %v3675
        %v3708 = vmax.f32 %v3644, %v3676
        %v3709 = vmax.f32 %v3645, %v3677
        %v3710 = vmax.f32 %v3646, %v3678
        %v3711 = vmax.f32 %v3647, %v3679
        %v3712 = vmax.f32 %v3648, %v3680
        %v3713 = vmax.f32 %v3649, %v3681
        %v3714 = vmax.f32 %v3650, %v3682
        %v3715 = vmax.f32 %v3651, %v3683
        %v3716 = vmax.f32 %v3652, %v3684
        %v3717 = vmax.f32 %v3653, %v3685
        %v3718 = vmax.f32 %v3654, %v3686
        %v3719 = vmax.f32 %v3655, %v3687
        %v3720 = vmax.f32 %v3656, %v3688
        %v3721 = vmax.f32 %v3657, %v3689
        %v3722 = vmax.f32 %v3658, %v3690
        %v3723 = vmax.f32 %v3659, %v3691
        %v3724 = vmax.f32 %v3660, %v3692
        %v3725 = vmax.f32 %v3661, %v3693
        %v3726 = vmax.f32 %v3662, %v3694
        %v3727 = vmax.f32 %v3663, %v3695
        %v3728 = vmax.f32 %v3664, %v3696
        %v3729 = vmax.f32 %v3665, %v3697
        %v3730 = vmax.f32 %v3666, %v3698
        %v3731 = vmax.f32 %v3667, %v3699
        %v3732 = vmax.f32 %v3668, %v3700
        %v3733 = vmax.f32 %v3669, %v3701
        %v3734 = vmax.f32 %v3670, %v3702
        %v3735 = vmax.f32 %v3671, %v3703
        %v3736 = vmax.f32 %v3672, %v3704
        %v3737 = vmax.f32 %v3673, %v3705
        %v3738 = vmax.f32 %v3674, %v3706
        %v3739 = vld [vmem:[%s1526 + $0x3] sm:$0xff]
        %v3740 = vld [vmem:[%s1526 + $0xb] sm:$0xff]
        %v3741 = vld [vmem:[%s1526 + $0x1b] sm:$0xff]
        %v3742 = vld [vmem:[%s1526 + $0x23] sm:$0xff]
        %v3743 = vld [vmem:[%s1526 + $0x33] sm:$0xff]
        %v3744 = vld [vmem:[%s1526 + $0x3b] sm:$0xff]
        %v3745 = vld [vmem:[%s1526 + $0x4b] sm:$0xff]
        %v3746 = vld [vmem:[%s1526 + $0x53] sm:$0xff]
        %v3747 = vld [vmem:[%s1526 + $0x63] sm:$0xff]
        %v3748 = vld [vmem:[%s1526 + $0x6b] sm:$0xff]
        %v3749 = vld [vmem:[%s1526 + $0x7b] sm:$0xff]
        %v3750 = vld [vmem:[%s1526 + $0x83] sm:$0xff]
        %v3751 = vld [vmem:[%s1526 + $0x93] sm:$0xff]
        %v3752 = vld [vmem:[%s1526 + $0x9b] sm:$0xff]
        %v3753 = vld [vmem:[%s1526 + $0xab] sm:$0xff]
        %v3754 = vld [vmem:[%s1526 + $0xb3] sm:$0xff]
        %v3755 = vld [vmem:[%s1526 + $0xc3] sm:$0xff]
        %v3756 = vld [vmem:[%s1526 + $0xcb] sm:$0xff]
        %v3757 = vld [vmem:[%s1526 + $0xdb] sm:$0xff]
        %v3758 = vld [vmem:[%s1526 + $0xe3] sm:$0xff]
        %v3759 = vld [vmem:[%s1526 + $0xf3] sm:$0xff]
        %v3760 = vld [vmem:[%s1526 + $0xfb] sm:$0xff]
        %v3761 = vld [vmem:[%s1526 + $0x10b] sm:$0xff]
        %v3762 = vld [vmem:[%s1526 + $0x113] sm:$0xff]
        %v3763 = vld [vmem:[%s1526 + $0x123] sm:$0xff]
        %v3764 = vld [vmem:[%s1526 + $0x12b] sm:$0xff]
        %v3765 = vld [vmem:[%s1526 + $0x13b] sm:$0xff]
        %v3766 = vld [vmem:[%s1526 + $0x143] sm:$0xff]
        %v3767 = vld [vmem:[%s1526 + $0x153] sm:$0xff]
        %v3768 = vld [vmem:[%s1526 + $0x15b] sm:$0xff]
        %v3769 = vld [vmem:[%s1526 + $0x16b] sm:$0xff]
        %v3770 = vld [vmem:[%s1526 + $0x173] sm:$0xff]
        %v3771 = vmax.f32 %v3707, %v3739
        %v3772 = vmax.f32 %v3708, %v3740
        %v3773 = vmax.f32 %v3709, %v3741
        %v3774 = vmax.f32 %v3710, %v3742
        %v3775 = vmax.f32 %v3711, %v3743
        %v3776 = vmax.f32 %v3712, %v3744
        %v3777 = vmax.f32 %v3713, %v3745
        %v3778 = vmax.f32 %v3714, %v3746
        %v3779 = vmax.f32 %v3715, %v3747
        %v3780 = vmax.f32 %v3716, %v3748
        %v3781 = vmax.f32 %v3717, %v3749
        %v3782 = vmax.f32 %v3718, %v3750
        %v3783 = vmax.f32 %v3719, %v3751
        %v3784 = vmax.f32 %v3720, %v3752
        %v3785 = vmax.f32 %v3721, %v3753
        %v3786 = vmax.f32 %v3722, %v3754
        %v3787 = vmax.f32 %v3723, %v3755
        %v3788 = vmax.f32 %v3724, %v3756
        %v3789 = vmax.f32 %v3725, %v3757
        %v3790 = vmax.f32 %v3726, %v3758
        %v3791 = vmax.f32 %v3727, %v3759
        %v3792 = vmax.f32 %v3728, %v3760
        %v3793 = vmax.f32 %v3729, %v3761
        %v3794 = vmax.f32 %v3730, %v3762
        %v3795 = vmax.f32 %v3731, %v3763
        %v3796 = vmax.f32 %v3732, %v3764
        %v3797 = vmax.f32 %v3733, %v3765
        %v3798 = vmax.f32 %v3734, %v3766
        %v3799 = vmax.f32 %v3735, %v3767
        %v3800 = vmax.f32 %v3736, %v3768
        %v3801 = vmax.f32 %v3737, %v3769
        %v3802 = vmax.f32 %v3738, %v3770
        %v3803 = vld [vmem:[%s1526 + $0x4] sm:$0xff]
        %v3804 = vld [vmem:[%s1526 + $0xc] sm:$0xff]
        %v3805 = vld [vmem:[%s1526 + $0x1c] sm:$0xff]
        %v3806 = vld [vmem:[%s1526 + $0x24] sm:$0xff]
        %v3807 = vld [vmem:[%s1526 + $0x34] sm:$0xff]
        %v3808 = vld [vmem:[%s1526 + $0x3c] sm:$0xff]
        %v3809 = vld [vmem:[%s1526 + $0x4c] sm:$0xff]
        %v3810 = vld [vmem:[%s1526 + $0x54] sm:$0xff]
        %v3811 = vld [vmem:[%s1526 + $0x64] sm:$0xff]
        %v3812 = vld [vmem:[%s1526 + $0x6c] sm:$0xff]
        %v3813 = vld [vmem:[%s1526 + $0x7c] sm:$0xff]
        %v3814 = vld [vmem:[%s1526 + $0x84] sm:$0xff]
        %v3815 = vld [vmem:[%s1526 + $0x94] sm:$0xff]
        %v3816 = vld [vmem:[%s1526 + $0x9c] sm:$0xff]
        %v3817 = vld [vmem:[%s1526 + $0xac] sm:$0xff]
        %v3818 = vld [vmem:[%s1526 + $0xb4] sm:$0xff]
        %v3819 = vld [vmem:[%s1526 + $0xc4] sm:$0xff]
        %v3820 = vld [vmem:[%s1526 + $0xcc] sm:$0xff]
        %v3821 = vld [vmem:[%s1526 + $0xdc] sm:$0xff]
        %v3822 = vld [vmem:[%s1526 + $0xe4] sm:$0xff]
        %v3823 = vld [vmem:[%s1526 + $0xf4] sm:$0xff]
        %v3824 = vld [vmem:[%s1526 + $0xfc] sm:$0xff]
        %v3825 = vld [vmem:[%s1526 + $0x10c] sm:$0xff]
        %v3826 = vld [vmem:[%s1526 + $0x114] sm:$0xff]
        %v3827 = vld [vmem:[%s1526 + $0x124] sm:$0xff]
        %v3828 = vld [vmem:[%s1526 + $0x12c] sm:$0xff]
        %v3829 = vld [vmem:[%s1526 + $0x13c] sm:$0xff]
        %v3830 = vld [vmem:[%s1526 + $0x144] sm:$0xff]
        %v3831 = vld [vmem:[%s1526 + $0x154] sm:$0xff]
        %v3832 = vld [vmem:[%s1526 + $0x15c] sm:$0xff]
        %v3833 = vld [vmem:[%s1526 + $0x16c] sm:$0xff]
        %v3834 = vld [vmem:[%s1526 + $0x174] sm:$0xff]
        %v3835 = vmax.f32 %v3771, %v3803
        %v3836 = vmax.f32 %v3772, %v3804
        %v3837 = vmax.f32 %v3773, %v3805
        %v3838 = vmax.f32 %v3774, %v3806
        %v3839 = vmax.f32 %v3775, %v3807
        %v3840 = vmax.f32 %v3776, %v3808
        %v3841 = vmax.f32 %v3777, %v3809
        %v3842 = vmax.f32 %v3778, %v3810
        %v3843 = vmax.f32 %v3779, %v3811
        %v3844 = vmax.f32 %v3780, %v3812
        %v3845 = vmax.f32 %v3781, %v3813
        %v3846 = vmax.f32 %v3782, %v3814
        %v3847 = vmax.f32 %v3783, %v3815
        %v3848 = vmax.f32 %v3784, %v3816
        %v3849 = vmax.f32 %v3785, %v3817
        %v3850 = vmax.f32 %v3786, %v3818
        %v3851 = vmax.f32 %v3787, %v3819
        %v3852 = vmax.f32 %v3788, %v3820
        %v3853 = vmax.f32 %v3789, %v3821
        %v3854 = vmax.f32 %v3790, %v3822
        %v3855 = vmax.f32 %v3791, %v3823
        %v3856 = vmax.f32 %v3792, %v3824
        %v3857 = vmax.f32 %v3793, %v3825
        %v3858 = vmax.f32 %v3794, %v3826
        %v3859 = vmax.f32 %v3795, %v3827
        %v3860 = vmax.f32 %v3796, %v3828
        %v3861 = vmax.f32 %v3797, %v3829
        %v3862 = vmax.f32 %v3798, %v3830
        %v3863 = vmax.f32 %v3799, %v3831
        %v3864 = vmax.f32 %v3800, %v3832
        %v3865 = vmax.f32 %v3801, %v3833
        %v3866 = vmax.f32 %v3802, %v3834
        %v3867 = vld [vmem:[%s1205] sm:$0xff]
        %v3868 = vld [vmem:[%s1205 + $0x8] sm:$0xff]
        %v3869 = vld [vmem:[%s1205 + $0x18] sm:$0xff]
        %v3870 = vld [vmem:[%s1205 + $0x20] sm:$0xff]
        %v3871 = vld [vmem:[%s1205 + $0x30] sm:$0xff]
        %v3872 = vld [vmem:[%s1205 + $0x38] sm:$0xff]
        %v3873 = vld [vmem:[%s1205 + $0x48] sm:$0xff]
        %v3874 = vld [vmem:[%s1205 + $0x50] sm:$0xff]
        %v3875 = vld [vmem:[%s1205 + $0x60] sm:$0xff]
        %v3876 = vld [vmem:[%s1205 + $0x68] sm:$0xff]
        %v3877 = vld [vmem:[%s1205 + $0x78] sm:$0xff]
        %v3878 = vld [vmem:[%s1205 + $0x80] sm:$0xff]
        %v3879 = vld [vmem:[%s1205 + $0x90] sm:$0xff]
        %v3880 = vld [vmem:[%s1205 + $0x98] sm:$0xff]
        %v3881 = vld [vmem:[%s1205 + $0xa8] sm:$0xff]
        %v3882 = vld [vmem:[%s1205 + $0xb0] sm:$0xff]
        %v3883 = vld [vmem:[%s1205 + $0xc0] sm:$0xff]
        %v3884 = vld [vmem:[%s1205 + $0xc8] sm:$0xff]
        %v3885 = vld [vmem:[%s1205 + $0xd8] sm:$0xff]
        %v3886 = vld [vmem:[%s1205 + $0xe0] sm:$0xff]
        %v3887 = vld [vmem:[%s1205 + $0xf0] sm:$0xff]
        %v3888 = vld [vmem:[%s1205 + $0xf8] sm:$0xff]
        %v3889 = vld [vmem:[%s1205 + $0x108] sm:$0xff]
        %v3890 = vld [vmem:[%s1205 + $0x110] sm:$0xff]
        %v3891 = vld [vmem:[%s1205 + $0x120] sm:$0xff]
        %v3892 = vld [vmem:[%s1205 + $0x128] sm:$0xff]
        %v3893 = vld [vmem:[%s1205 + $0x138] sm:$0xff]
        %v3894 = vld [vmem:[%s1205 + $0x140] sm:$0xff]
        %v3895 = vld [vmem:[%s1205 + $0x150] sm:$0xff]
        %v3896 = vld [vmem:[%s1205 + $0x158] sm:$0xff]
        %v3897 = vld [vmem:[%s1205 + $0x168] sm:$0xff]
        %v3898 = vld [vmem:[%s1205 + $0x170] sm:$0xff]
        %v3899 = vmax.f32 %v3835, %v3867
        %v3900 = vmax.f32 %v3836, %v3868
        %v3901 = vmax.f32 %v3837, %v3869
        %v3902 = vmax.f32 %v3838, %v3870
        %v3903 = vmax.f32 %v3839, %v3871
        %v3904 = vmax.f32 %v3840, %v3872
        %v3905 = vmax.f32 %v3841, %v3873
        %v3906 = vmax.f32 %v3842, %v3874
        %v3907 = vmax.f32 %v3843, %v3875
        %v3908 = vmax.f32 %v3844, %v3876
        %v3909 = vmax.f32 %v3845, %v3877
        %v3910 = vmax.f32 %v3846, %v3878
        %v3911 = vmax.f32 %v3847, %v3879
        %v3912 = vmax.f32 %v3848, %v3880
        %v3913 = vmax.f32 %v3849, %v3881
        %v3914 = vmax.f32 %v3850, %v3882
        %v3915 = vmax.f32 %v3851, %v3883
        %v3916 = vmax.f32 %v3852, %v3884
        %v3917 = vmax.f32 %v3853, %v3885
        %v3918 = vmax.f32 %v3854, %v3886
        %v3919 = vmax.f32 %v3855, %v3887
        %v3920 = vmax.f32 %v3856, %v3888
        %v3921 = vmax.f32 %v3857, %v3889
        %v3922 = vmax.f32 %v3858, %v3890
        %v3923 = vmax.f32 %v3859, %v3891
        %v3924 = vmax.f32 %v3860, %v3892
        %v3925 = vmax.f32 %v3861, %v3893
        %v3926 = vmax.f32 %v3862, %v3894
        %v3927 = vmax.f32 %v3863, %v3895
        %v3928 = vmax.f32 %v3864, %v3896
        %v3929 = vmax.f32 %v3865, %v3897
        %v3930 = vmax.f32 %v3866, %v3898
        %v3931 = vld [vmem:[%s1205 + $0x1] sm:$0xff]
        %v3932 = vld [vmem:[%s1205 + $0x9] sm:$0xff]
        %v3933 = vld [vmem:[%s1205 + $0x19] sm:$0xff]
        %v3934 = vld [vmem:[%s1205 + $0x21] sm:$0xff]
        %v3935 = vld [vmem:[%s1205 + $0x31] sm:$0xff]
        %v3936 = vld [vmem:[%s1205 + $0x39] sm:$0xff]
        %v3937 = vld [vmem:[%s1205 + $0x49] sm:$0xff]
        %v3938 = vld [vmem:[%s1205 + $0x51] sm:$0xff]
        %v3939 = vld [vmem:[%s1205 + $0x61] sm:$0xff]
        %v3940 = vld [vmem:[%s1205 + $0x69] sm:$0xff]
        %v3941 = vld [vmem:[%s1205 + $0x79] sm:$0xff]
        %v3942 = vld [vmem:[%s1205 + $0x81] sm:$0xff]
        %v3943 = vld [vmem:[%s1205 + $0x91] sm:$0xff]
        %v3944 = vld [vmem:[%s1205 + $0x99] sm:$0xff]
        %v3945 = vld [vmem:[%s1205 + $0xa9] sm:$0xff]
        %v3946 = vld [vmem:[%s1205 + $0xb1] sm:$0xff]
        %v3947 = vld [vmem:[%s1205 + $0xc1] sm:$0xff]
        %v3948 = vld [vmem:[%s1205 + $0xc9] sm:$0xff]
        %v3949 = vld [vmem:[%s1205 + $0xd9] sm:$0xff]
        %v3950 = vld [vmem:[%s1205 + $0xe1] sm:$0xff]
        %v3951 = vld [vmem:[%s1205 + $0xf1] sm:$0xff]
        %v3952 = vld [vmem:[%s1205 + $0xf9] sm:$0xff]
        %v3953 = vld [vmem:[%s1205 + $0x109] sm:$0xff]
        %v3954 = vld [vmem:[%s1205 + $0x111] sm:$0xff]
        %v3955 = vld [vmem:[%s1205 + $0x121] sm:$0xff]
        %v3956 = vld [vmem:[%s1205 + $0x129] sm:$0xff]
        %v3957 = vld [vmem:[%s1205 + $0x139] sm:$0xff]
        %v3958 = vld [vmem:[%s1205 + $0x141] sm:$0xff]
        %v3959 = vld [vmem:[%s1205 + $0x151] sm:$0xff]
        %v3960 = vld [vmem:[%s1205 + $0x159] sm:$0xff]
        %v3961 = vld [vmem:[%s1205 + $0x169] sm:$0xff]
        %v3962 = vld [vmem:[%s1205 + $0x171] sm:$0xff]
        %v3963 = vmax.f32 %v3899, %v3931
        %v3964 = vmax.f32 %v3900, %v3932
        %v3965 = vmax.f32 %v3901, %v3933
        %v3966 = vmax.f32 %v3902, %v3934
        %v3967 = vmax.f32 %v3903, %v3935
        %v3968 = vmax.f32 %v3904, %v3936
        %v3969 = vmax.f32 %v3905, %v3937
        %v3970 = vmax.f32 %v3906, %v3938
        %v3971 = vmax.f32 %v3907, %v3939
        %v3972 = vmax.f32 %v3908, %v3940
        %v3973 = vmax.f32 %v3909, %v3941
        %v3974 = vmax.f32 %v3910, %v3942
        %v3975 = vmax.f32 %v3911, %v3943
        %v3976 = vmax.f32 %v3912, %v3944
        %v3977 = vmax.f32 %v3913, %v3945
        %v3978 = vmax.f32 %v3914, %v3946
        %v3979 = vmax.f32 %v3915, %v3947
        %v3980 = vmax.f32 %v3916, %v3948
        %v3981 = vmax.f32 %v3917, %v3949
        %v3982 = vmax.f32 %v3918, %v3950
        %v3983 = vmax.f32 %v3919, %v3951
        %v3984 = vmax.f32 %v3920, %v3952
        %v3985 = vmax.f32 %v3921, %v3953
        %v3986 = vmax.f32 %v3922, %v3954
        %v3987 = vmax.f32 %v3923, %v3955
        %v3988 = vmax.f32 %v3924, %v3956
        %v3989 = vmax.f32 %v3925, %v3957
        %v3990 = vmax.f32 %v3926, %v3958
        %v3991 = vmax.f32 %v3927, %v3959
        %v3992 = vmax.f32 %v3928, %v3960
        %v3993 = vmax.f32 %v3929, %v3961
        %v3994 = vmax.f32 %v3930, %v3962
        %v3995 = vld [vmem:[%s1205 + $0x2] sm:$0xff]
        %v3996 = vld [vmem:[%s1205 + $0xa] sm:$0xff]
        %v3997 = vld [vmem:[%s1205 + $0x1a] sm:$0xff]
        %v3998 = vld [vmem:[%s1205 + $0x22] sm:$0xff]
        %v3999 = vld [vmem:[%s1205 + $0x32] sm:$0xff]
        %v4000 = vld [vmem:[%s1205 + $0x3a] sm:$0xff]
        %v4001 = vld [vmem:[%s1205 + $0x4a] sm:$0xff]
        %v4002 = vld [vmem:[%s1205 + $0x52] sm:$0xff]
        %v4003 = vld [vmem:[%s1205 + $0x62] sm:$0xff]
        %v4004 = vld [vmem:[%s1205 + $0x6a] sm:$0xff]
        %v4005 = vld [vmem:[%s1205 + $0x7a] sm:$0xff]
        %v4006 = vld [vmem:[%s1205 + $0x82] sm:$0xff]
        %v4007 = vld [vmem:[%s1205 + $0x92] sm:$0xff]
        %v4008 = vld [vmem:[%s1205 + $0x9a] sm:$0xff]
        %v4009 = vld [vmem:[%s1205 + $0xaa] sm:$0xff]
        %v4010 = vld [vmem:[%s1205 + $0xb2] sm:$0xff]
        %v4011 = vld [vmem:[%s1205 + $0xc2] sm:$0xff]
        %v4012 = vld [vmem:[%s1205 + $0xca] sm:$0xff]
        %v4013 = vld [vmem:[%s1205 + $0xda] sm:$0xff]
        %v4014 = vld [vmem:[%s1205 + $0xe2] sm:$0xff]
        %v4015 = vld [vmem:[%s1205 + $0xf2] sm:$0xff]
        %v4016 = vld [vmem:[%s1205 + $0xfa] sm:$0xff]
        %v4017 = vld [vmem:[%s1205 + $0x10a] sm:$0xff]
        %v4018 = vld [vmem:[%s1205 + $0x112] sm:$0xff]
        %v4019 = vld [vmem:[%s1205 + $0x122] sm:$0xff]
        %v4020 = vld [vmem:[%s1205 + $0x12a] sm:$0xff]
        %v4021 = vld [vmem:[%s1205 + $0x13a] sm:$0xff]
        %v4022 = vld [vmem:[%s1205 + $0x142] sm:$0xff]
        %v4023 = vld [vmem:[%s1205 + $0x152] sm:$0xff]
        %v4024 = vld [vmem:[%s1205 + $0x15a] sm:$0xff]
        %v4025 = vld [vmem:[%s1205 + $0x16a] sm:$0xff]
        %v4026 = vld [vmem:[%s1205 + $0x172] sm:$0xff]
        %v4027 = vmax.f32 %v3963, %v3995
        %v4028 = vmax.f32 %v3964, %v3996
        %v4029 = vmax.f32 %v3965, %v3997
        %v4030 = vmax.f32 %v3966, %v3998
        %v4031 = vmax.f32 %v3967, %v3999
        %v4032 = vmax.f32 %v3968, %v4000
        %v4033 = vmax.f32 %v3969, %v4001
        %v4034 = vmax.f32 %v3970, %v4002
        %v4035 = vmax.f32 %v3971, %v4003
        %v4036 = vmax.f32 %v3972, %v4004
        %v4037 = vmax.f32 %v3973, %v4005
        %v4038 = vmax.f32 %v3974, %v4006
        %v4039 = vmax.f32 %v3975, %v4007
        %v4040 = vmax.f32 %v3976, %v4008
        %v4041 = vmax.f32 %v3977, %v4009
        %v4042 = vmax.f32 %v3978, %v4010
        %v4043 = vmax.f32 %v3979, %v4011
        %v4044 = vmax.f32 %v3980, %v4012
        %v4045 = vmax.f32 %v3981, %v4013
        %v4046 = vmax.f32 %v3982, %v4014
        %v4047 = vmax.f32 %v3983, %v4015
        %v4048 = vmax.f32 %v3984, %v4016
        %v4049 = vmax.f32 %v3985, %v4017
        %v4050 = vmax.f32 %v3986, %v4018
        %v4051 = vmax.f32 %v3987, %v4019
        %v4052 = vmax.f32 %v3988, %v4020
        %v4053 = vmax.f32 %v3989, %v4021
        %v4054 = vmax.f32 %v3990, %v4022
        %v4055 = vmax.f32 %v3991, %v4023
        %v4056 = vmax.f32 %v3992, %v4024
        %v4057 = vmax.f32 %v3993, %v4025
        %v4058 = vmax.f32 %v3994, %v4026
        %v4059 = vld [vmem:[%s1205 + $0x3] sm:$0xff]
        %v4060 = vld [vmem:[%s1205 + $0xb] sm:$0xff]
        %v4061 = vld [vmem:[%s1205 + $0x1b] sm:$0xff]
        %v4062 = vld [vmem:[%s1205 + $0x23] sm:$0xff]
        %v4063 = vld [vmem:[%s1205 + $0x33] sm:$0xff]
        %v4064 = vld [vmem:[%s1205 + $0x3b] sm:$0xff]
        %v4065 = vld [vmem:[%s1205 + $0x4b] sm:$0xff]
        %v4066 = vld [vmem:[%s1205 + $0x53] sm:$0xff]
        %v4067 = vld [vmem:[%s1205 + $0x63] sm:$0xff]
        %v4068 = vld [vmem:[%s1205 + $0x6b] sm:$0xff]
        %v4069 = vld [vmem:[%s1205 + $0x7b] sm:$0xff]
        %v4070 = vld [vmem:[%s1205 + $0x83] sm:$0xff]
        %v4071 = vld [vmem:[%s1205 + $0x93] sm:$0xff]
        %v4072 = vld [vmem:[%s1205 + $0x9b] sm:$0xff]
        %v4073 = vld [vmem:[%s1205 + $0xab] sm:$0xff]
        %v4074 = vld [vmem:[%s1205 + $0xb3] sm:$0xff]
        %v4075 = vld [vmem:[%s1205 + $0xc3] sm:$0xff]
        %v4076 = vld [vmem:[%s1205 + $0xcb] sm:$0xff]
        %v4077 = vld [vmem:[%s1205 + $0xdb] sm:$0xff]
        %v4078 = vld [vmem:[%s1205 + $0xe3] sm:$0xff]
        %v4079 = vld [vmem:[%s1205 + $0xf3] sm:$0xff]
        %v4080 = vld [vmem:[%s1205 + $0xfb] sm:$0xff]
        %v4081 = vld [vmem:[%s1205 + $0x10b] sm:$0xff]
        %v4082 = vld [vmem:[%s1205 + $0x113] sm:$0xff]
        %v4083 = vld [vmem:[%s1205 + $0x123] sm:$0xff]
        %v4084 = vld [vmem:[%s1205 + $0x12b] sm:$0xff]
        %v4085 = vld [vmem:[%s1205 + $0x13b] sm:$0xff]
        %v4086 = vld [vmem:[%s1205 + $0x143] sm:$0xff]
        %v4087 = vld [vmem:[%s1205 + $0x153] sm:$0xff]
        %v4088 = vld [vmem:[%s1205 + $0x15b] sm:$0xff]
        %v4089 = vld [vmem:[%s1205 + $0x16b] sm:$0xff]
        %v4090 = vld [vmem:[%s1205 + $0x173] sm:$0xff]
        %v4091 = vmax.f32 %v4027, %v4059
        %v4092 = vmax.f32 %v4028, %v4060
        %v4093 = vmax.f32 %v4029, %v4061
        %v4094 = vmax.f32 %v4030, %v4062
        %v4095 = vmax.f32 %v4031, %v4063
        %v4096 = vmax.f32 %v4032, %v4064
        %v4097 = vmax.f32 %v4033, %v4065
        %v4098 = vmax.f32 %v4034, %v4066
        %v4099 = vmax.f32 %v4035, %v4067
        %v4100 = vmax.f32 %v4036, %v4068
        %v4101 = vmax.f32 %v4037, %v4069
        %v4102 = vmax.f32 %v4038, %v4070
        %v4103 = vmax.f32 %v4039, %v4071
        %v4104 = vmax.f32 %v4040, %v4072
        %v4105 = vmax.f32 %v4041, %v4073
        %v4106 = vmax.f32 %v4042, %v4074
        %v4107 = vmax.f32 %v4043, %v4075
        %v4108 = vmax.f32 %v4044, %v4076
        %v4109 = vmax.f32 %v4045, %v4077
        %v4110 = vmax.f32 %v4046, %v4078
        %v4111 = vmax.f32 %v4047, %v4079
        %v4112 = vmax.f32 %v4048, %v4080
        %v4113 = vmax.f32 %v4049, %v4081
        %v4114 = vmax.f32 %v4050, %v4082
        %v4115 = vmax.f32 %v4051, %v4083
        %v4116 = vmax.f32 %v4052, %v4084
        %v4117 = vmax.f32 %v4053, %v4085
        %v4118 = vmax.f32 %v4054, %v4086
        %v4119 = vmax.f32 %v4055, %v4087
        %v4120 = vmax.f32 %v4056, %v4088
        %v4121 = vmax.f32 %v4057, %v4089
        %v4122 = vmax.f32 %v4058, %v4090
        %v4123 = vld [vmem:[%s1205 + $0x4] sm:$0xff]
        %v4124 = vld [vmem:[%s1205 + $0xc] sm:$0xff]
        %v4125 = vld [vmem:[%s1205 + $0x1c] sm:$0xff]
        %v4126 = vld [vmem:[%s1205 + $0x24] sm:$0xff]
        %v4127 = vld [vmem:[%s1205 + $0x34] sm:$0xff]
        %v4128 = vld [vmem:[%s1205 + $0x3c] sm:$0xff]
        %v4129 = vld [vmem:[%s1205 + $0x4c] sm:$0xff]
        %v4130 = vld [vmem:[%s1205 + $0x54] sm:$0xff]
        %v4131 = vld [vmem:[%s1205 + $0x64] sm:$0xff]
        %v4132 = vld [vmem:[%s1205 + $0x6c] sm:$0xff]
        %v4133 = vld [vmem:[%s1205 + $0x7c] sm:$0xff]
        %v4134 = vld [vmem:[%s1205 + $0x84] sm:$0xff]
        %v4135 = vld [vmem:[%s1205 + $0x94] sm:$0xff]
        %v4136 = vld [vmem:[%s1205 + $0x9c] sm:$0xff]
        %v4137 = vld [vmem:[%s1205 + $0xac] sm:$0xff]
        %v4138 = vld [vmem:[%s1205 + $0xb4] sm:$0xff]
        %v4139 = vld [vmem:[%s1205 + $0xc4] sm:$0xff]
        %v4140 = vld [vmem:[%s1205 + $0xcc] sm:$0xff]
        %v4141 = vld [vmem:[%s1205 + $0xdc] sm:$0xff]
        %v4142 = vld [vmem:[%s1205 + $0xe4] sm:$0xff]
        %v4143 = vld [vmem:[%s1205 + $0xf4] sm:$0xff]
        %v4144 = vld [vmem:[%s1205 + $0xfc] sm:$0xff]
        %v4145 = vld [vmem:[%s1205 + $0x10c] sm:$0xff]
        %v4146 = vld [vmem:[%s1205 + $0x114] sm:$0xff]
        %v4147 = vld [vmem:[%s1205 + $0x124] sm:$0xff]
        %v4148 = vld [vmem:[%s1205 + $0x12c] sm:$0xff]
        %v4149 = vld [vmem:[%s1205 + $0x13c] sm:$0xff]
        %v4150 = vld [vmem:[%s1205 + $0x144] sm:$0xff]
        %v4151 = vld [vmem:[%s1205 + $0x154] sm:$0xff]
        %v4152 = vld [vmem:[%s1205 + $0x15c] sm:$0xff]
        %v4153 = vld [vmem:[%s1205 + $0x16c] sm:$0xff]
        %v4154 = vld [vmem:[%s1205 + $0x174] sm:$0xff]
        %v4155 = vmax.f32 %v4091, %v4123
        %v4156 = vmax.f32 %v4092, %v4124
        %v4157 = vmax.f32 %v4093, %v4125
        %v4158 = vmax.f32 %v4094, %v4126
        %v4159 = vmax.f32 %v4095, %v4127
        %v4160 = vmax.f32 %v4096, %v4128
        %v4161 = vmax.f32 %v4097, %v4129
        %v4162 = vmax.f32 %v4098, %v4130
        %v4163 = vmax.f32 %v4099, %v4131
        %v4164 = vmax.f32 %v4100, %v4132
        %v4165 = vmax.f32 %v4101, %v4133
        %v4166 = vmax.f32 %v4102, %v4134
        %v4167 = vmax.f32 %v4103, %v4135
        %v4168 = vmax.f32 %v4104, %v4136
        %v4169 = vmax.f32 %v4105, %v4137
        %v4170 = vmax.f32 %v4106, %v4138
        %v4171 = vmax.f32 %v4107, %v4139
        %v4172 = vmax.f32 %v4108, %v4140
        %v4173 = vmax.f32 %v4109, %v4141
        %v4174 = vmax.f32 %v4110, %v4142
        %v4175 = vmax.f32 %v4111, %v4143
        %v4176 = vmax.f32 %v4112, %v4144
        %v4177 = vmax.f32 %v4113, %v4145
        %v4178 = vmax.f32 %v4114, %v4146
        %v4179 = vmax.f32 %v4115, %v4147
        %v4180 = vmax.f32 %v4116, %v4148
        %v4181 = vmax.f32 %v4117, %v4149
        %v4182 = vmax.f32 %v4118, %v4150
        %v4183 = vmax.f32 %v4119, %v4151
        %v4184 = vmax.f32 %v4120, %v4152
        %v4185 = vmax.f32 %v4121, %v4153
        %v4186 = vmax.f32 %v4122, %v4154
        %v4187 = vld [vmem:[%s2167] sm:$0xff]
        %v4188 = vld [vmem:[%s2167 + $0x8] sm:$0xff]
        %v4189 = vld [vmem:[%s2167 + $0x18] sm:$0xff]
        %v4190 = vld [vmem:[%s2167 + $0x20] sm:$0xff]
        %v4191 = vld [vmem:[%s2167 + $0x30] sm:$0xff]
        %v4192 = vld [vmem:[%s2167 + $0x38] sm:$0xff]
        %v4193 = vld [vmem:[%s2167 + $0x48] sm:$0xff]
        %v4194 = vld [vmem:[%s2167 + $0x50] sm:$0xff]
        %v4195 = vld [vmem:[%s2167 + $0x60] sm:$0xff]
        %v4196 = vld [vmem:[%s2167 + $0x68] sm:$0xff]
        %v4197 = vld [vmem:[%s2167 + $0x78] sm:$0xff]
        %v4198 = vld [vmem:[%s2167 + $0x80] sm:$0xff]
        %v4199 = vld [vmem:[%s2167 + $0x90] sm:$0xff]
        %v4200 = vld [vmem:[%s2167 + $0x98] sm:$0xff]
        %v4201 = vld [vmem:[%s2167 + $0xa8] sm:$0xff]
        %v4202 = vld [vmem:[%s2167 + $0xb0] sm:$0xff]
        %v4203 = vld [vmem:[%s2167 + $0xc0] sm:$0xff]
        %v4204 = vld [vmem:[%s2167 + $0xc8] sm:$0xff]
        %v4205 = vld [vmem:[%s2167 + $0xd8] sm:$0xff]
        %v4206 = vld [vmem:[%s2167 + $0xe0] sm:$0xff]
        %v4207 = vld [vmem:[%s2167 + $0xf0] sm:$0xff]
        %v4208 = vld [vmem:[%s2167 + $0xf8] sm:$0xff]
        %v4209 = vld [vmem:[%s2167 + $0x108] sm:$0xff]
        %v4210 = vld [vmem:[%s2167 + $0x110] sm:$0xff]
        %v4211 = vld [vmem:[%s2167 + $0x120] sm:$0xff]
        %v4212 = vld [vmem:[%s2167 + $0x128] sm:$0xff]
        %v4213 = vld [vmem:[%s2167 + $0x138] sm:$0xff]
        %v4214 = vld [vmem:[%s2167 + $0x140] sm:$0xff]
        %v4215 = vld [vmem:[%s2167 + $0x150] sm:$0xff]
        %v4216 = vld [vmem:[%s2167 + $0x158] sm:$0xff]
        %v4217 = vld [vmem:[%s2167 + $0x168] sm:$0xff]
        %v4218 = vld [vmem:[%s2167 + $0x170] sm:$0xff]
        %v4219 = vmax.f32 %v4155, %v4187
        %v4220 = vmax.f32 %v4156, %v4188
        %v4221 = vmax.f32 %v4157, %v4189
        %v4222 = vmax.f32 %v4158, %v4190
        %v4223 = vmax.f32 %v4159, %v4191
        %v4224 = vmax.f32 %v4160, %v4192
        %v4225 = vmax.f32 %v4161, %v4193
        %v4226 = vmax.f32 %v4162, %v4194
        %v4227 = vmax.f32 %v4163, %v4195
        %v4228 = vmax.f32 %v4164, %v4196
        %v4229 = vmax.f32 %v4165, %v4197
        %v4230 = vmax.f32 %v4166, %v4198
        %v4231 = vmax.f32 %v4167, %v4199
        %v4232 = vmax.f32 %v4168, %v4200
        %v4233 = vmax.f32 %v4169, %v4201
        %v4234 = vmax.f32 %v4170, %v4202
        %v4235 = vmax.f32 %v4171, %v4203
        %v4236 = vmax.f32 %v4172, %v4204
        %v4237 = vmax.f32 %v4173, %v4205
        %v4238 = vmax.f32 %v4174, %v4206
        %v4239 = vmax.f32 %v4175, %v4207
        %v4240 = vmax.f32 %v4176, %v4208
        %v4241 = vmax.f32 %v4177, %v4209
        %v4242 = vmax.f32 %v4178, %v4210
        %v4243 = vmax.f32 %v4179, %v4211
        %v4244 = vmax.f32 %v4180, %v4212
        %v4245 = vmax.f32 %v4181, %v4213
        %v4246 = vmax.f32 %v4182, %v4214
        %v4247 = vmax.f32 %v4183, %v4215
        %v4248 = vmax.f32 %v4184, %v4216
        %v4249 = vmax.f32 %v4185, %v4217
        %v4250 = vmax.f32 %v4186, %v4218
        %v4251 = vld [vmem:[%s2167 + $0x1] sm:$0xff]
        %v4252 = vld [vmem:[%s2167 + $0x9] sm:$0xff]
        %v4253 = vld [vmem:[%s2167 + $0x19] sm:$0xff]
        %v4254 = vld [vmem:[%s2167 + $0x21] sm:$0xff]
        %v4255 = vld [vmem:[%s2167 + $0x31] sm:$0xff]
        %v4256 = vld [vmem:[%s2167 + $0x39] sm:$0xff]
        %v4257 = vld [vmem:[%s2167 + $0x49] sm:$0xff]
        %v4258 = vld [vmem:[%s2167 + $0x51] sm:$0xff]
        %v4259 = vld [vmem:[%s2167 + $0x61] sm:$0xff]
        %v4260 = vld [vmem:[%s2167 + $0x69] sm:$0xff]
        %v4261 = vld [vmem:[%s2167 + $0x79] sm:$0xff]
        %v4262 = vld [vmem:[%s2167 + $0x81] sm:$0xff]
        %v4263 = vld [vmem:[%s2167 + $0x91] sm:$0xff]
        %v4264 = vld [vmem:[%s2167 + $0x99] sm:$0xff]
        %v4265 = vld [vmem:[%s2167 + $0xa9] sm:$0xff]
        %v4266 = vld [vmem:[%s2167 + $0xb1] sm:$0xff]
        %v4267 = vld [vmem:[%s2167 + $0xc1] sm:$0xff]
        %v4268 = vld [vmem:[%s2167 + $0xc9] sm:$0xff]
        %v4269 = vld [vmem:[%s2167 + $0xd9] sm:$0xff]
        %v4270 = vld [vmem:[%s2167 + $0xe1] sm:$0xff]
        %v4271 = vld [vmem:[%s2167 + $0xf1] sm:$0xff]
        %v4272 = vld [vmem:[%s2167 + $0xf9] sm:$0xff]
        %v4273 = vld [vmem:[%s2167 + $0x109] sm:$0xff]
        %v4274 = vld [vmem:[%s2167 + $0x111] sm:$0xff]
        %v4275 = vld [vmem:[%s2167 + $0x121] sm:$0xff]
        %v4276 = vld [vmem:[%s2167 + $0x129] sm:$0xff]
        %v4277 = vld [vmem:[%s2167 + $0x139] sm:$0xff]
        %v4278 = vld [vmem:[%s2167 + $0x141] sm:$0xff]
        %v4279 = vld [vmem:[%s2167 + $0x151] sm:$0xff]
        %v4280 = vld [vmem:[%s2167 + $0x159] sm:$0xff]
        %v4281 = vld [vmem:[%s2167 + $0x169] sm:$0xff]
        %v4282 = vld [vmem:[%s2167 + $0x171] sm:$0xff]
        %v4283 = vmax.f32 %v4219, %v4251
        %v4284 = vmax.f32 %v4220, %v4252
        %v4285 = vmax.f32 %v4221, %v4253
        %v4286 = vmax.f32 %v4222, %v4254
        %v4287 = vmax.f32 %v4223, %v4255
        %v4288 = vmax.f32 %v4224, %v4256
        %v4289 = vmax.f32 %v4225, %v4257
        %v4290 = vmax.f32 %v4226, %v4258
        %v4291 = vmax.f32 %v4227, %v4259
        %v4292 = vmax.f32 %v4228, %v4260
        %v4293 = vmax.f32 %v4229, %v4261
        %v4294 = vmax.f32 %v4230, %v4262
        %v4295 = vmax.f32 %v4231, %v4263
        %v4296 = vmax.f32 %v4232, %v4264
        %v4297 = vmax.f32 %v4233, %v4265
        %v4298 = vmax.f32 %v4234, %v4266
        %v4299 = vmax.f32 %v4235, %v4267
        %v4300 = vmax.f32 %v4236, %v4268
        %v4301 = vmax.f32 %v4237, %v4269
        %v4302 = vmax.f32 %v4238, %v4270
        %v4303 = vmax.f32 %v4239, %v4271
        %v4304 = vmax.f32 %v4240, %v4272
        %v4305 = vmax.f32 %v4241, %v4273
        %v4306 = vmax.f32 %v4242, %v4274
        %v4307 = vmax.f32 %v4243, %v4275
        %v4308 = vmax.f32 %v4244, %v4276
        %v4309 = vmax.f32 %v4245, %v4277
        %v4310 = vmax.f32 %v4246, %v4278
        %v4311 = vmax.f32 %v4247, %v4279
        %v4312 = vmax.f32 %v4248, %v4280
        %v4313 = vmax.f32 %v4249, %v4281
        %v4314 = vmax.f32 %v4250, %v4282
        %v4315 = vld [vmem:[%s2167 + $0x2] sm:$0xff]
        %v4316 = vld [vmem:[%s2167 + $0xa] sm:$0xff]
        %v4317 = vld [vmem:[%s2167 + $0x1a] sm:$0xff]
        %v4318 = vld [vmem:[%s2167 + $0x22] sm:$0xff]
        %v4319 = vld [vmem:[%s2167 + $0x32] sm:$0xff]
        %v4320 = vld [vmem:[%s2167 + $0x3a] sm:$0xff]
        %v4321 = vld [vmem:[%s2167 + $0x4a] sm:$0xff]
        %v4322 = vld [vmem:[%s2167 + $0x52] sm:$0xff]
        %v4323 = vld [vmem:[%s2167 + $0x62] sm:$0xff]
        %v4324 = vld [vmem:[%s2167 + $0x6a] sm:$0xff]
        %v4325 = vld [vmem:[%s2167 + $0x7a] sm:$0xff]
        %v4326 = vld [vmem:[%s2167 + $0x82] sm:$0xff]
        %v4327 = vld [vmem:[%s2167 + $0x92] sm:$0xff]
        %v4328 = vld [vmem:[%s2167 + $0x9a] sm:$0xff]
        %v4329 = vld [vmem:[%s2167 + $0xaa] sm:$0xff]
        %v4330 = vld [vmem:[%s2167 + $0xb2] sm:$0xff]
        %v4331 = vld [vmem:[%s2167 + $0xc2] sm:$0xff]
        %v4332 = vld [vmem:[%s2167 + $0xca] sm:$0xff]
        %v4333 = vld [vmem:[%s2167 + $0xda] sm:$0xff]
        %v4334 = vld [vmem:[%s2167 + $0xe2] sm:$0xff]
        %v4335 = vld [vmem:[%s2167 + $0xf2] sm:$0xff]
        %v4336 = vld [vmem:[%s2167 + $0xfa] sm:$0xff]
        %v4337 = vld [vmem:[%s2167 + $0x10a] sm:$0xff]
        %v4338 = vld [vmem:[%s2167 + $0x112] sm:$0xff]
        %v4339 = vld [vmem:[%s2167 + $0x122] sm:$0xff]
        %v4340 = vld [vmem:[%s2167 + $0x12a] sm:$0xff]
        %v4341 = vld [vmem:[%s2167 + $0x13a] sm:$0xff]
        %v4342 = vld [vmem:[%s2167 + $0x142] sm:$0xff]
        %v4343 = vld [vmem:[%s2167 + $0x152] sm:$0xff]
        %v4344 = vld [vmem:[%s2167 + $0x15a] sm:$0xff]
        %v4345 = vld [vmem:[%s2167 + $0x16a] sm:$0xff]
        %v4346 = vld [vmem:[%s2167 + $0x172] sm:$0xff]
        %v4347 = vmax.f32 %v4283, %v4315
        %v4348 = vmax.f32 %v4284, %v4316
        %v4349 = vmax.f32 %v4285, %v4317
        %v4350 = vmax.f32 %v4286, %v4318
        %v4351 = vmax.f32 %v4287, %v4319
        %v4352 = vmax.f32 %v4288, %v4320
        %v4353 = vmax.f32 %v4289, %v4321
        %v4354 = vmax.f32 %v4290, %v4322
        %v4355 = vmax.f32 %v4291, %v4323
        %v4356 = vmax.f32 %v4292, %v4324
        %v4357 = vmax.f32 %v4293, %v4325
        %v4358 = vmax.f32 %v4294, %v4326
        %v4359 = vmax.f32 %v4295, %v4327
        %v4360 = vmax.f32 %v4296, %v4328
        %v4361 = vmax.f32 %v4297, %v4329
        %v4362 = vmax.f32 %v4298, %v4330
        %v4363 = vmax.f32 %v4299, %v4331
        %v4364 = vmax.f32 %v4300, %v4332
        %v4365 = vmax.f32 %v4301, %v4333
        %v4366 = vmax.f32 %v4302, %v4334
        %v4367 = vmax.f32 %v4303, %v4335
        %v4368 = vmax.f32 %v4304, %v4336
        %v4369 = vmax.f32 %v4305, %v4337
        %v4370 = vmax.f32 %v4306, %v4338
        %v4371 = vmax.f32 %v4307, %v4339
        %v4372 = vmax.f32 %v4308, %v4340
        %v4373 = vmax.f32 %v4309, %v4341
        %v4374 = vmax.f32 %v4310, %v4342
        %v4375 = vmax.f32 %v4311, %v4343
        %v4376 = vmax.f32 %v4312, %v4344
        %v4377 = vmax.f32 %v4313, %v4345
        %v4378 = vmax.f32 %v4314, %v4346
        %v4379 = vld [vmem:[%s2167 + $0x3] sm:$0xff]
        %v4380 = vld [vmem:[%s2167 + $0xb] sm:$0xff]
        %v4381 = vld [vmem:[%s2167 + $0x1b] sm:$0xff]
        %v4382 = vld [vmem:[%s2167 + $0x23] sm:$0xff]
        %v4383 = vld [vmem:[%s2167 + $0x33] sm:$0xff]
        %v4384 = vld [vmem:[%s2167 + $0x3b] sm:$0xff]
        %v4385 = vld [vmem:[%s2167 + $0x4b] sm:$0xff]
        %v4386 = vld [vmem:[%s2167 + $0x53] sm:$0xff]
        %v4387 = vld [vmem:[%s2167 + $0x63] sm:$0xff]
        %v4388 = vld [vmem:[%s2167 + $0x6b] sm:$0xff]
        %v4389 = vld [vmem:[%s2167 + $0x7b] sm:$0xff]
        %v4390 = vld [vmem:[%s2167 + $0x83] sm:$0xff]
        %v4391 = vld [vmem:[%s2167 + $0x93] sm:$0xff]
        %v4392 = vld [vmem:[%s2167 + $0x9b] sm:$0xff]
        %v4393 = vld [vmem:[%s2167 + $0xab] sm:$0xff]
        %v4394 = vld [vmem:[%s2167 + $0xb3] sm:$0xff]
        %v4395 = vld [vmem:[%s2167 + $0xc3] sm:$0xff]
        %v4396 = vld [vmem:[%s2167 + $0xcb] sm:$0xff]
        %v4397 = vld [vmem:[%s2167 + $0xdb] sm:$0xff]
        %v4398 = vld [vmem:[%s2167 + $0xe3] sm:$0xff]
        %v4399 = vld [vmem:[%s2167 + $0xf3] sm:$0xff]
        %v4400 = vld [vmem:[%s2167 + $0xfb] sm:$0xff]
        %v4401 = vld [vmem:[%s2167 + $0x10b] sm:$0xff]
        %v4402 = vld [vmem:[%s2167 + $0x113] sm:$0xff]
        %v4403 = vld [vmem:[%s2167 + $0x123] sm:$0xff]
        %v4404 = vld [vmem:[%s2167 + $0x12b] sm:$0xff]
        %v4405 = vld [vmem:[%s2167 + $0x13b] sm:$0xff]
        %v4406 = vld [vmem:[%s2167 + $0x143] sm:$0xff]
        %v4407 = vld [vmem:[%s2167 + $0x153] sm:$0xff]
        %v4408 = vld [vmem:[%s2167 + $0x15b] sm:$0xff]
        %v4409 = vld [vmem:[%s2167 + $0x16b] sm:$0xff]
        %v4410 = vld [vmem:[%s2167 + $0x173] sm:$0xff]
        %v4411 = vmax.f32 %v4347, %v4379
        %v4412 = vmax.f32 %v4348, %v4380
        %v4413 = vmax.f32 %v4349, %v4381
        %v4414 = vmax.f32 %v4350, %v4382
        %v4415 = vmax.f32 %v4351, %v4383
        %v4416 = vmax.f32 %v4352, %v4384
        %v4417 = vmax.f32 %v4353, %v4385
        %v4418 = vmax.f32 %v4354, %v4386
        %v4419 = vmax.f32 %v4355, %v4387
        %v4420 = vmax.f32 %v4356, %v4388
        %v4421 = vmax.f32 %v4357, %v4389
        %v4422 = vmax.f32 %v4358, %v4390
        %v4423 = vmax.f32 %v4359, %v4391
        %v4424 = vmax.f32 %v4360, %v4392
        %v4425 = vmax.f32 %v4361, %v4393
        %v4426 = vmax.f32 %v4362, %v4394
        %v4427 = vmax.f32 %v4363, %v4395
        %v4428 = vmax.f32 %v4364, %v4396
        %v4429 = vmax.f32 %v4365, %v4397
        %v4430 = vmax.f32 %v4366, %v4398
        %v4431 = vmax.f32 %v4367, %v4399
        %v4432 = vmax.f32 %v4368, %v4400
        %v4433 = vmax.f32 %v4369, %v4401
        %v4434 = vmax.f32 %v4370, %v4402
        %v4435 = vmax.f32 %v4371, %v4403
        %v4436 = vmax.f32 %v4372, %v4404
        %v4437 = vmax.f32 %v4373, %v4405
        %v4438 = vmax.f32 %v4374, %v4406
        %v4439 = vmax.f32 %v4375, %v4407
        %v4440 = vmax.f32 %v4376, %v4408
        %v4441 = vmax.f32 %v4377, %v4409
        %v4442 = vmax.f32 %v4378, %v4410
        %v4443 = vld [vmem:[%s2167 + $0x4] sm:$0xff]
        %v4444 = vld [vmem:[%s2167 + $0xc] sm:$0xff]
        %v4445 = vld [vmem:[%s2167 + $0x1c] sm:$0xff]
        %v4446 = vld [vmem:[%s2167 + $0x24] sm:$0xff]
        %v4447 = vld [vmem:[%s2167 + $0x34] sm:$0xff]
        %v4448 = vld [vmem:[%s2167 + $0x3c] sm:$0xff]
        %v4449 = vld [vmem:[%s2167 + $0x4c] sm:$0xff]
        %v4450 = vld [vmem:[%s2167 + $0x54] sm:$0xff]
        %v4451 = vld [vmem:[%s2167 + $0x64] sm:$0xff]
        %v4452 = vld [vmem:[%s2167 + $0x6c] sm:$0xff]
        %v4453 = vld [vmem:[%s2167 + $0x7c] sm:$0xff]
        %v4454 = vld [vmem:[%s2167 + $0x84] sm:$0xff]
        %v4455 = vld [vmem:[%s2167 + $0x94] sm:$0xff]
        %v4456 = vld [vmem:[%s2167 + $0x9c] sm:$0xff]
        %v4457 = vld [vmem:[%s2167 + $0xac] sm:$0xff]
        %v4458 = vld [vmem:[%s2167 + $0xb4] sm:$0xff]
        %v4459 = vld [vmem:[%s2167 + $0xc4] sm:$0xff]
        %v4460 = vld [vmem:[%s2167 + $0xcc] sm:$0xff]
        %v4461 = vld [vmem:[%s2167 + $0xdc] sm:$0xff]
        %v4462 = vld [vmem:[%s2167 + $0xe4] sm:$0xff]
        %v4463 = vld [vmem:[%s2167 + $0xf4] sm:$0xff]
        %v4464 = vld [vmem:[%s2167 + $0xfc] sm:$0xff]
        %v4465 = vld [vmem:[%s2167 + $0x10c] sm:$0xff]
        %v4466 = vld [vmem:[%s2167 + $0x114] sm:$0xff]
        %v4467 = vld [vmem:[%s2167 + $0x124] sm:$0xff]
        %v4468 = vld [vmem:[%s2167 + $0x12c] sm:$0xff]
        %v4469 = vld [vmem:[%s2167 + $0x13c] sm:$0xff]
        %v4470 = vld [vmem:[%s2167 + $0x144] sm:$0xff]
        %v4471 = vld [vmem:[%s2167 + $0x154] sm:$0xff]
        %v4472 = vld [vmem:[%s2167 + $0x15c] sm:$0xff]
        %v4473 = vld [vmem:[%s2167 + $0x16c] sm:$0xff]
        %v4474 = vld [vmem:[%s2167 + $0x174] sm:$0xff]
        %v4475 = vmax.f32 %v4411, %v4443
        %v4476 = vmax.f32 %v4412, %v4444
        %v4477 = vmax.f32 %v4413, %v4445
        %v4478 = vmax.f32 %v4414, %v4446
        %v4479 = vmax.f32 %v4415, %v4447
        %v4480 = vmax.f32 %v4416, %v4448
        %v4481 = vmax.f32 %v4417, %v4449
        %v4482 = vmax.f32 %v4418, %v4450
        %v4483 = vmax.f32 %v4419, %v4451
        %v4484 = vmax.f32 %v4420, %v4452
        %v4485 = vmax.f32 %v4421, %v4453
        %v4486 = vmax.f32 %v4422, %v4454
        %v4487 = vmax.f32 %v4423, %v4455
        %v4488 = vmax.f32 %v4424, %v4456
        %v4489 = vmax.f32 %v4425, %v4457
        %v4490 = vmax.f32 %v4426, %v4458
        %v4491 = vmax.f32 %v4427, %v4459
        %v4492 = vmax.f32 %v4428, %v4460
        %v4493 = vmax.f32 %v4429, %v4461
        %v4494 = vmax.f32 %v4430, %v4462
        %v4495 = vmax.f32 %v4431, %v4463
        %v4496 = vmax.f32 %v4432, %v4464
        %v4497 = vmax.f32 %v4433, %v4465
        %v4498 = vmax.f32 %v4434, %v4466
        %v4499 = vmax.f32 %v4435, %v4467
        %v4500 = vmax.f32 %v4436, %v4468
        %v4501 = vmax.f32 %v4437, %v4469
        %v4502 = vmax.f32 %v4438, %v4470
        %v4503 = vmax.f32 %v4439, %v4471
        %v4504 = vmax.f32 %v4440, %v4472
        %v4505 = vmax.f32 %v4441, %v4473
        %v4506 = vmax.f32 %v4442, %v4474
        %v4507 = vld [vmem:[%s2488] sm:$0xff]
        %v4508 = vld [vmem:[%s2488 + $0x8] sm:$0xff]
        %v4509 = vld [vmem:[%s2488 + $0x18] sm:$0xff]
        %v4510 = vld [vmem:[%s2488 + $0x20] sm:$0xff]
        %v4511 = vld [vmem:[%s2488 + $0x30] sm:$0xff]
        %v4512 = vld [vmem:[%s2488 + $0x38] sm:$0xff]
        %v4513 = vld [vmem:[%s2488 + $0x48] sm:$0xff]
        %v4514 = vld [vmem:[%s2488 + $0x50] sm:$0xff]
        %v4515 = vld [vmem:[%s2488 + $0x60] sm:$0xff]
        %v4516 = vld [vmem:[%s2488 + $0x68] sm:$0xff]
        %v4517 = vld [vmem:[%s2488 + $0x78] sm:$0xff]
        %v4518 = vld [vmem:[%s2488 + $0x80] sm:$0xff]
        %v4519 = vld [vmem:[%s2488 + $0x90] sm:$0xff]
        %v4520 = vld [vmem:[%s2488 + $0x98] sm:$0xff]
        %v4521 = vld [vmem:[%s2488 + $0xa8] sm:$0xff]
        %v4522 = vld [vmem:[%s2488 + $0xb0] sm:$0xff]
        %v4523 = vld [vmem:[%s2488 + $0xc0] sm:$0xff]
        %v4524 = vld [vmem:[%s2488 + $0xc8] sm:$0xff]
        %v4525 = vld [vmem:[%s2488 + $0xd8] sm:$0xff]
        %v4526 = vld [vmem:[%s2488 + $0xe0] sm:$0xff]
        %v4527 = vld [vmem:[%s2488 + $0xf0] sm:$0xff]
        %v4528 = vld [vmem:[%s2488 + $0xf8] sm:$0xff]
        %v4529 = vld [vmem:[%s2488 + $0x108] sm:$0xff]
        %v4530 = vld [vmem:[%s2488 + $0x110] sm:$0xff]
        %v4531 = vld [vmem:[%s2488 + $0x120] sm:$0xff]
        %v4532 = vld [vmem:[%s2488 + $0x128] sm:$0xff]
        %v4533 = vld [vmem:[%s2488 + $0x138] sm:$0xff]
        %v4534 = vld [vmem:[%s2488 + $0x140] sm:$0xff]
        %v4535 = vld [vmem:[%s2488 + $0x150] sm:$0xff]
        %v4536 = vld [vmem:[%s2488 + $0x158] sm:$0xff]
        %v4537 = vld [vmem:[%s2488 + $0x168] sm:$0xff]
        %v4538 = vld [vmem:[%s2488 + $0x170] sm:$0xff]
        %v4539 = vmax.f32 %v4475, %v4507
        %v4540 = vmax.f32 %v4476, %v4508
        %v4541 = vmax.f32 %v4477, %v4509
        %v4542 = vmax.f32 %v4478, %v4510
        %v4543 = vmax.f32 %v4479, %v4511
        %v4544 = vmax.f32 %v4480, %v4512
        %v4545 = vmax.f32 %v4481, %v4513
        %v4546 = vmax.f32 %v4482, %v4514
        %v4547 = vmax.f32 %v4483, %v4515
        %v4548 = vmax.f32 %v4484, %v4516
        %v4549 = vmax.f32 %v4485, %v4517
        %v4550 = vmax.f32 %v4486, %v4518
        %v4551 = vmax.f32 %v4487, %v4519
        %v4552 = vmax.f32 %v4488, %v4520
        %v4553 = vmax.f32 %v4489, %v4521
        %v4554 = vmax.f32 %v4490, %v4522
        %v4555 = vmax.f32 %v4491, %v4523
        %v4556 = vmax.f32 %v4492, %v4524
        %v4557 = vmax.f32 %v4493, %v4525
        %v4558 = vmax.f32 %v4494, %v4526
        %v4559 = vmax.f32 %v4495, %v4527
        %v4560 = vmax.f32 %v4496, %v4528
        %v4561 = vmax.f32 %v4497, %v4529
        %v4562 = vmax.f32 %v4498, %v4530
        %v4563 = vmax.f32 %v4499, %v4531
        %v4564 = vmax.f32 %v4500, %v4532
        %v4565 = vmax.f32 %v4501, %v4533
        %v4566 = vmax.f32 %v4502, %v4534
        %v4567 = vmax.f32 %v4503, %v4535
        %v4568 = vmax.f32 %v4504, %v4536
        %v4569 = vmax.f32 %v4505, %v4537
        %v4570 = vmax.f32 %v4506, %v4538
        %v4571 = vld [vmem:[%s2488 + $0x1] sm:$0xff]
        %v4572 = vld [vmem:[%s2488 + $0x9] sm:$0xff]
        %v4573 = vld [vmem:[%s2488 + $0x19] sm:$0xff]
        %v4574 = vld [vmem:[%s2488 + $0x21] sm:$0xff]
        %v4575 = vld [vmem:[%s2488 + $0x31] sm:$0xff]
        %v4576 = vld [vmem:[%s2488 + $0x39] sm:$0xff]
        %v4577 = vld [vmem:[%s2488 + $0x49] sm:$0xff]
        %v4578 = vld [vmem:[%s2488 + $0x51] sm:$0xff]
        %v4579 = vld [vmem:[%s2488 + $0x61] sm:$0xff]
        %v4580 = vld [vmem:[%s2488 + $0x69] sm:$0xff]
        %v4581 = vld [vmem:[%s2488 + $0x79] sm:$0xff]
        %v4582 = vld [vmem:[%s2488 + $0x81] sm:$0xff]
        %v4583 = vld [vmem:[%s2488 + $0x91] sm:$0xff]
        %v4584 = vld [vmem:[%s2488 + $0x99] sm:$0xff]
        %v4585 = vld [vmem:[%s2488 + $0xa9] sm:$0xff]
        %v4586 = vld [vmem:[%s2488 + $0xb1] sm:$0xff]
        %v4587 = vld [vmem:[%s2488 + $0xc1] sm:$0xff]
        %v4588 = vld [vmem:[%s2488 + $0xc9] sm:$0xff]
        %v4589 = vld [vmem:[%s2488 + $0xd9] sm:$0xff]
        %v4590 = vld [vmem:[%s2488 + $0xe1] sm:$0xff]
        %v4591 = vld [vmem:[%s2488 + $0xf1] sm:$0xff]
        %v4592 = vld [vmem:[%s2488 + $0xf9] sm:$0xff]
        %v4593 = vld [vmem:[%s2488 + $0x109] sm:$0xff]
        %v4594 = vld [vmem:[%s2488 + $0x111] sm:$0xff]
        %v4595 = vld [vmem:[%s2488 + $0x121] sm:$0xff]
        %v4596 = vld [vmem:[%s2488 + $0x129] sm:$0xff]
        %v4597 = vld [vmem:[%s2488 + $0x139] sm:$0xff]
        %v4598 = vld [vmem:[%s2488 + $0x141] sm:$0xff]
        %v4599 = vld [vmem:[%s2488 + $0x151] sm:$0xff]
        %v4600 = vld [vmem:[%s2488 + $0x159] sm:$0xff]
        %v4601 = vld [vmem:[%s2488 + $0x169] sm:$0xff]
        %v4602 = vld [vmem:[%s2488 + $0x171] sm:$0xff]
        %v4603 = vmax.f32 %v4539, %v4571
        %v4604 = vmax.f32 %v4540, %v4572
        %v4605 = vmax.f32 %v4541, %v4573
        %v4606 = vmax.f32 %v4542, %v4574
        %v4607 = vmax.f32 %v4543, %v4575
        %v4608 = vmax.f32 %v4544, %v4576
        %v4609 = vmax.f32 %v4545, %v4577
        %v4610 = vmax.f32 %v4546, %v4578
        %v4611 = vmax.f32 %v4547, %v4579
        %v4612 = vmax.f32 %v4548, %v4580
        %v4613 = vmax.f32 %v4549, %v4581
        %v4614 = vmax.f32 %v4550, %v4582
        %v4615 = vmax.f32 %v4551, %v4583
        %v4616 = vmax.f32 %v4552, %v4584
        %v4617 = vmax.f32 %v4553, %v4585
        %v4618 = vmax.f32 %v4554, %v4586
        %v4619 = vmax.f32 %v4555, %v4587
        %v4620 = vmax.f32 %v4556, %v4588
        %v4621 = vmax.f32 %v4557, %v4589
        %v4622 = vmax.f32 %v4558, %v4590
        %v4623 = vmax.f32 %v4559, %v4591
        %v4624 = vmax.f32 %v4560, %v4592
        %v4625 = vmax.f32 %v4561, %v4593
        %v4626 = vmax.f32 %v4562, %v4594
        %v4627 = vmax.f32 %v4563, %v4595
        %v4628 = vmax.f32 %v4564, %v4596
        %v4629 = vmax.f32 %v4565, %v4597
        %v4630 = vmax.f32 %v4566, %v4598
        %v4631 = vmax.f32 %v4567, %v4599
        %v4632 = vmax.f32 %v4568, %v4600
        %v4633 = vmax.f32 %v4569, %v4601
        %v4634 = vmax.f32 %v4570, %v4602
        %v4635 = vld [vmem:[%s2488 + $0x2] sm:$0xff]
        %v4636 = vld [vmem:[%s2488 + $0xa] sm:$0xff]
        %v4637 = vld [vmem:[%s2488 + $0x1a] sm:$0xff]
        %v4638 = vld [vmem:[%s2488 + $0x22] sm:$0xff]
        %v4639 = vld [vmem:[%s2488 + $0x32] sm:$0xff]
        %v4640 = vld [vmem:[%s2488 + $0x3a] sm:$0xff]
        %v4641 = vld [vmem:[%s2488 + $0x4a] sm:$0xff]
        %v4642 = vld [vmem:[%s2488 + $0x52] sm:$0xff]
        %v4643 = vld [vmem:[%s2488 + $0x62] sm:$0xff]
        %v4644 = vld [vmem:[%s2488 + $0x6a] sm:$0xff]
        %v4645 = vld [vmem:[%s2488 + $0x7a] sm:$0xff]
        %v4646 = vld [vmem:[%s2488 + $0x82] sm:$0xff]
        %v4647 = vld [vmem:[%s2488 + $0x92] sm:$0xff]
        %v4648 = vld [vmem:[%s2488 + $0x9a] sm:$0xff]
        %v4649 = vld [vmem:[%s2488 + $0xaa] sm:$0xff]
        %v4650 = vld [vmem:[%s2488 + $0xb2] sm:$0xff]
        %v4651 = vld [vmem:[%s2488 + $0xc2] sm:$0xff]
        %v4652 = vld [vmem:[%s2488 + $0xca] sm:$0xff]
        %v4653 = vld [vmem:[%s2488 + $0xda] sm:$0xff]
        %v4654 = vld [vmem:[%s2488 + $0xe2] sm:$0xff]
        %v4655 = vld [vmem:[%s2488 + $0xf2] sm:$0xff]
        %v4656 = vld [vmem:[%s2488 + $0xfa] sm:$0xff]
        %v4657 = vld [vmem:[%s2488 + $0x10a] sm:$0xff]
        %v4658 = vld [vmem:[%s2488 + $0x112] sm:$0xff]
        %v4659 = vld [vmem:[%s2488 + $0x122] sm:$0xff]
        %v4660 = vld [vmem:[%s2488 + $0x12a] sm:$0xff]
        %v4661 = vld [vmem:[%s2488 + $0x13a] sm:$0xff]
        %v4662 = vld [vmem:[%s2488 + $0x142] sm:$0xff]
        %v4663 = vld [vmem:[%s2488 + $0x152] sm:$0xff]
        %v4664 = vld [vmem:[%s2488 + $0x15a] sm:$0xff]
        %v4665 = vld [vmem:[%s2488 + $0x16a] sm:$0xff]
        %v4666 = vld [vmem:[%s2488 + $0x172] sm:$0xff]
        %v4667 = vmax.f32 %v4603, %v4635
        %v4668 = vmax.f32 %v4604, %v4636
        %v4669 = vmax.f32 %v4605, %v4637
        %v4670 = vmax.f32 %v4606, %v4638
        %v4671 = vmax.f32 %v4607, %v4639
        %v4672 = vmax.f32 %v4608, %v4640
        %v4673 = vmax.f32 %v4609, %v4641
        %v4674 = vmax.f32 %v4610, %v4642
        %v4675 = vmax.f32 %v4611, %v4643
        %v4676 = vmax.f32 %v4612, %v4644
        %v4677 = vmax.f32 %v4613, %v4645
        %v4678 = vmax.f32 %v4614, %v4646
        %v4679 = vmax.f32 %v4615, %v4647
        %v4680 = vmax.f32 %v4616, %v4648
        %v4681 = vmax.f32 %v4617, %v4649
        %v4682 = vmax.f32 %v4618, %v4650
        %v4683 = vmax.f32 %v4619, %v4651
        %v4684 = vmax.f32 %v4620, %v4652
        %v4685 = vmax.f32 %v4621, %v4653
        %v4686 = vmax.f32 %v4622, %v4654
        %v4687 = vmax.f32 %v4623, %v4655
        %v4688 = vmax.f32 %v4624, %v4656
        %v4689 = vmax.f32 %v4625, %v4657
        %v4690 = vmax.f32 %v4626, %v4658
        %v4691 = vmax.f32 %v4627, %v4659
        %v4692 = vmax.f32 %v4628, %v4660
        %v4693 = vmax.f32 %v4629, %v4661
        %v4694 = vmax.f32 %v4630, %v4662
        %v4695 = vmax.f32 %v4631, %v4663
        %v4696 = vmax.f32 %v4632, %v4664
        %v4697 = vmax.f32 %v4633, %v4665
        %v4698 = vmax.f32 %v4634, %v4666
        %v4699 = vld [vmem:[%s2488 + $0x3] sm:$0xff]
        %v4700 = vld [vmem:[%s2488 + $0xb] sm:$0xff]
        %v4701 = vld [vmem:[%s2488 + $0x1b] sm:$0xff]
        %v4702 = vld [vmem:[%s2488 + $0x23] sm:$0xff]
        %v4703 = vld [vmem:[%s2488 + $0x33] sm:$0xff]
        %v4704 = vld [vmem:[%s2488 + $0x3b] sm:$0xff]
        %v4705 = vld [vmem:[%s2488 + $0x4b] sm:$0xff]
        %v4706 = vld [vmem:[%s2488 + $0x53] sm:$0xff]
        %v4707 = vld [vmem:[%s2488 + $0x63] sm:$0xff]
        %v4708 = vld [vmem:[%s2488 + $0x6b] sm:$0xff]
        %v4709 = vld [vmem:[%s2488 + $0x7b] sm:$0xff]
        %v4710 = vld [vmem:[%s2488 + $0x83] sm:$0xff]
        %v4711 = vld [vmem:[%s2488 + $0x93] sm:$0xff]
        %v4712 = vld [vmem:[%s2488 + $0x9b] sm:$0xff]
        %v4713 = vld [vmem:[%s2488 + $0xab] sm:$0xff]
        %v4714 = vld [vmem:[%s2488 + $0xb3] sm:$0xff]
        %v4715 = vld [vmem:[%s2488 + $0xc3] sm:$0xff]
        %v4716 = vld [vmem:[%s2488 + $0xcb] sm:$0xff]
        %v4717 = vld [vmem:[%s2488 + $0xdb] sm:$0xff]
        %v4718 = vld [vmem:[%s2488 + $0xe3] sm:$0xff]
        %v4719 = vld [vmem:[%s2488 + $0xf3] sm:$0xff]
        %v4720 = vld [vmem:[%s2488 + $0xfb] sm:$0xff]
        %v4721 = vld [vmem:[%s2488 + $0x10b] sm:$0xff]
        %v4722 = vld [vmem:[%s2488 + $0x113] sm:$0xff]
        %v4723 = vld [vmem:[%s2488 + $0x123] sm:$0xff]
        %v4724 = vld [vmem:[%s2488 + $0x12b] sm:$0xff]
        %v4725 = vld [vmem:[%s2488 + $0x13b] sm:$0xff]
        %v4726 = vld [vmem:[%s2488 + $0x143] sm:$0xff]
        %v4727 = vld [vmem:[%s2488 + $0x153] sm:$0xff]
        %v4728 = vld [vmem:[%s2488 + $0x15b] sm:$0xff]
        %v4729 = vld [vmem:[%s2488 + $0x16b] sm:$0xff]
        %v4730 = vld [vmem:[%s2488 + $0x173] sm:$0xff]
        %v4731 = vmax.f32 %v4667, %v4699
        %v4732 = vmax.f32 %v4668, %v4700
        %v4733 = vmax.f32 %v4669, %v4701
        %v4734 = vmax.f32 %v4670, %v4702
        %v4735 = vmax.f32 %v4671, %v4703
        %v4736 = vmax.f32 %v4672, %v4704
        %v4737 = vmax.f32 %v4673, %v4705
        %v4738 = vmax.f32 %v4674, %v4706
        %v4739 = vmax.f32 %v4675, %v4707
        %v4740 = vmax.f32 %v4676, %v4708
        %v4741 = vmax.f32 %v4677, %v4709
        %v4742 = vmax.f32 %v4678, %v4710
        %v4743 = vmax.f32 %v4679, %v4711
        %v4744 = vmax.f32 %v4680, %v4712
        %v4745 = vmax.f32 %v4681, %v4713
        %v4746 = vmax.f32 %v4682, %v4714
        %v4747 = vmax.f32 %v4683, %v4715
        %v4748 = vmax.f32 %v4684, %v4716
        %v4749 = vmax.f32 %v4685, %v4717
        %v4750 = vmax.f32 %v4686, %v4718
        %v4751 = vmax.f32 %v4687, %v4719
        %v4752 = vmax.f32 %v4688, %v4720
        %v4753 = vmax.f32 %v4689, %v4721
        %v4754 = vmax.f32 %v4690, %v4722
        %v4755 = vmax.f32 %v4691, %v4723
        %v4756 = vmax.f32 %v4692, %v4724
        %v4757 = vmax.f32 %v4693, %v4725
        %v4758 = vmax.f32 %v4694, %v4726
        %v4759 = vmax.f32 %v4695, %v4727
        %v4760 = vmax.f32 %v4696, %v4728
        %v4761 = vmax.f32 %v4697, %v4729
        %v4762 = vmax.f32 %v4698, %v4730
        %v4763 = vld [vmem:[%s2488 + $0x4] sm:$0xff]
        %v4764 = vld [vmem:[%s2488 + $0xc] sm:$0xff]
        %v4765 = vld [vmem:[%s2488 + $0x1c] sm:$0xff]
        %v4766 = vld [vmem:[%s2488 + $0x24] sm:$0xff]
        %v4767 = vld [vmem:[%s2488 + $0x34] sm:$0xff]
        %v4768 = vld [vmem:[%s2488 + $0x3c] sm:$0xff]
        %v4769 = vld [vmem:[%s2488 + $0x4c] sm:$0xff]
        %v4770 = vld [vmem:[%s2488 + $0x54] sm:$0xff]
        %v4771 = vld [vmem:[%s2488 + $0x64] sm:$0xff]
        %v4772 = vld [vmem:[%s2488 + $0x6c] sm:$0xff]
        %v4773 = vld [vmem:[%s2488 + $0x7c] sm:$0xff]
        %v4774 = vld [vmem:[%s2488 + $0x84] sm:$0xff]
        %v4775 = vld [vmem:[%s2488 + $0x94] sm:$0xff]
        %v4776 = vld [vmem:[%s2488 + $0x9c] sm:$0xff]
        %v4777 = vld [vmem:[%s2488 + $0xac] sm:$0xff]
        %v4778 = vld [vmem:[%s2488 + $0xb4] sm:$0xff]
        %v4779 = vld [vmem:[%s2488 + $0xc4] sm:$0xff]
        %v4780 = vld [vmem:[%s2488 + $0xcc] sm:$0xff]
        %v4781 = vld [vmem:[%s2488 + $0xdc] sm:$0xff]
        %v4782 = vld [vmem:[%s2488 + $0xe4] sm:$0xff]
        %v4783 = vld [vmem:[%s2488 + $0xf4] sm:$0xff]
        %v4784 = vld [vmem:[%s2488 + $0xfc] sm:$0xff]
        %v4785 = vld [vmem:[%s2488 + $0x10c] sm:$0xff]
        %v4786 = vld [vmem:[%s2488 + $0x114] sm:$0xff]
        %v4787 = vld [vmem:[%s2488 + $0x124] sm:$0xff]
        %v4788 = vld [vmem:[%s2488 + $0x12c] sm:$0xff]
        %v4789 = vld [vmem:[%s2488 + $0x13c] sm:$0xff]
        %v4790 = vld [vmem:[%s2488 + $0x144] sm:$0xff]
        %v4791 = vld [vmem:[%s2488 + $0x154] sm:$0xff]
        %v4792 = vld [vmem:[%s2488 + $0x15c] sm:$0xff]
        %v4793 = vld [vmem:[%s2488 + $0x16c] sm:$0xff]
        %v4794 = vld [vmem:[%s2488 + $0x174] sm:$0xff]
        %v4795 = vmax.f32 %v4731, %v4763
        %v4796 = vmax.f32 %v4732, %v4764
        %v4797 = vmax.f32 %v4733, %v4765
        %v4798 = vmax.f32 %v4734, %v4766
        %v4799 = vmax.f32 %v4735, %v4767
        %v4800 = vmax.f32 %v4736, %v4768
        %v4801 = vmax.f32 %v4737, %v4769
        %v4802 = vmax.f32 %v4738, %v4770
        %v4803 = vmax.f32 %v4739, %v4771
        %v4804 = vmax.f32 %v4740, %v4772
        %v4805 = vmax.f32 %v4741, %v4773
        %v4806 = vmax.f32 %v4742, %v4774
        %v4807 = vmax.f32 %v4743, %v4775
        %v4808 = vmax.f32 %v4744, %v4776
        %v4809 = vmax.f32 %v4745, %v4777
        %v4810 = vmax.f32 %v4746, %v4778
        %v4811 = vmax.f32 %v4747, %v4779
        %v4812 = vmax.f32 %v4748, %v4780
        %v4813 = vmax.f32 %v4749, %v4781
        %v4814 = vmax.f32 %v4750, %v4782
        %v4815 = vmax.f32 %v4751, %v4783
        %v4816 = vmax.f32 %v4752, %v4784
        %v4817 = vmax.f32 %v4753, %v4785
        %v4818 = vmax.f32 %v4754, %v4786
        %v4819 = vmax.f32 %v4755, %v4787
        %v4820 = vmax.f32 %v4756, %v4788
        %v4821 = vmax.f32 %v4757, %v4789
        %v4822 = vmax.f32 %v4758, %v4790
        %v4823 = vmax.f32 %v4759, %v4791
        %v4824 = vmax.f32 %v4760, %v4792
        %v4825 = vmax.f32 %v4761, %v4793
        %v4826 = vmax.f32 %v4762, %v4794
        %v4828 = vsel %vm1143, %v4795, 0
        %v4831 = vsel %vm1143, %v4796, 0
        %v4834 = vsel %vm1143, %v4797, 0
        %v4837 = vsel %vm1143, %v4798, 0
        %v4840 = vsel %vm1143, %v4799, 0
        %v4843 = vsel %vm1143, %v4800, 0
        %v4846 = vsel %vm1143, %v4801, 0
        %v4849 = vsel %vm1143, %v4802, 0
        %v4852 = vsel %vm1143, %v4803, 0
        %v4855 = vsel %vm1143, %v4804, 0
        %v4858 = vsel %vm1143, %v4805, 0
        %v4861 = vsel %vm1143, %v4806, 0
        %v4864 = vsel %vm1143, %v4807, 0
        %v4867 = vsel %vm1143, %v4808, 0
        %v4870 = vsel %vm1143, %v4809, 0
        %v4873 = vsel %vm1143, %v4810, 0
        %v4876 = vsel %vm1143, %v4811, 0
        %v4879 = vsel %vm1143, %v4812, 0
        %v4882 = vsel %vm1143, %v4813, 0
        %v4885 = vsel %vm1143, %v4814, 0
        %v4888 = vsel %vm1143, %v4815, 0
        %v4891 = vsel %vm1143, %v4816, 0
        %v4894 = vsel %vm1143, %v4817, 0
        %v4897 = vsel %vm1143, %v4818, 0
        %v4900 = vsel %vm1143, %v4819, 0
        %v4903 = vsel %vm1143, %v4820, 0
        %v4906 = vsel %vm1143, %v4821, 0
        %v4909 = vsel %vm1143, %v4822, 0
        %v4912 = vsel %vm1143, %v4823, 0
        %v4915 = vsel %vm1143, %v4824, 0
        %v4918 = vsel %vm1143, %v4825, 0
        %v4921 = vsel %vm1143, %v4826, 0
        %4923 = vmatpush.msra.mxu0 0.0
        %4924 = vmatpush.msra.mxu0 0.0
        %4925 = vmatpush.msra.mxu0 0.0
        %4926 = vmatpush.msra.mxu0 0.0
        %4927 = vmatpush.msra.mxu0 0.0
        %4928 = vmatpush.msra.mxu0 0.0
        %4929 = vmatpush.msra.mxu0 0.0
        %4930 = vmatpush.msra.mxu0 0.0
        %4931 = vmatpush.msra.mxu0 0.0
        %4932 = vmatpush.msra.mxu0 0.0
        %4933 = vmatpush.msra.mxu0 0.0
        %4934 = vmatpush.msra.mxu0 0.0
        %4935 = vmatpush.msra.mxu0 0.0
        %4936 = vmatpush.msra.mxu0 0.0
        %4937 = vmatpush.msra.mxu0 %v1140
        %4938 = vmatpush.msra.mxu0 %v1139
        %4939 = vmatmul.f32.gmra.mxu0 %v4828
        %v4940 = vpop.f32.mrf.mxu0
        %v4941 = vadd.f32 0.0, %v4940
        %4942 = vmatmul.f32.gmra.mxu0 %v4831
        %v4943 = vpop.f32.mrf.mxu0
        %v4944 = vadd.f32 0.0, %v4943
        %4945 = vmatmul.f32.gmra.mxu0 %v4834
        %v4946 = vpop.f32.mrf.mxu0
        %v4947 = vadd.f32 0.0, %v4946
        %4948 = vmatmul.f32.gmra.mxu0 %v4837
        %v4949 = vpop.f32.mrf.mxu0
        %v4950 = vadd.f32 0.0, %v4949
        %4951 = vmatmul.f32.gmra.mxu0 %v4840
        %v4952 = vpop.f32.mrf.mxu0
        %v4953 = vadd.f32 0.0, %v4952
        %4954 = vmatmul.f32.gmra.mxu0 %v4843
        %v4955 = vpop.f32.mrf.mxu0
        %v4956 = vadd.f32 0.0, %v4955
        %4957 = vmatmul.f32.gmra.mxu0 %v4846
        %v4958 = vpop.f32.mrf.mxu0
        %v4959 = vadd.f32 0.0, %v4958
        %4960 = vmatmul.f32.gmra.mxu0 %v4849
        %v4961 = vpop.f32.mrf.mxu0
        %v4962 = vadd.f32 0.0, %v4961
        %4963 = vmatmul.f32.gmra.mxu0 %v4852
        %v4964 = vpop.f32.mrf.mxu0
        %v4965 = vadd.f32 0.0, %v4964
        %4966 = vmatmul.f32.gmra.mxu0 %v4855
        %v4967 = vpop.f32.mrf.mxu0
        %v4968 = vadd.f32 0.0, %v4967
        %4969 = vmatmul.f32.gmra.mxu0 %v4858
        %v4970 = vpop.f32.mrf.mxu0
        %v4971 = vadd.f32 0.0, %v4970
        %4972 = vmatmul.f32.gmra.mxu0 %v4861
        %v4973 = vpop.f32.mrf.mxu0
        %v4974 = vadd.f32 0.0, %v4973
        %4975 = vmatmul.f32.gmra.mxu0 %v4864
        %v4976 = vpop.f32.mrf.mxu0
        %v4977 = vadd.f32 0.0, %v4976
        %4978 = vmatmul.f32.gmra.mxu0 %v4867
        %v4979 = vpop.f32.mrf.mxu0
        %v4980 = vadd.f32 0.0, %v4979
        %4981 = vmatmul.f32.gmra.mxu0 %v4870
        %v4982 = vpop.f32.mrf.mxu0
        %v4983 = vadd.f32 0.0, %v4982
        %4984 = vmatmul.f32.gmra.mxu0 %v4873
        %v4985 = vpop.f32.mrf.mxu0
        %v4986 = vadd.f32 0.0, %v4985
        %4987 = vmatmul.f32.gmra.mxu0 %v4876
        %v4988 = vpop.f32.mrf.mxu0
        %v4989 = vadd.f32 0.0, %v4988
        %4990 = vmatmul.f32.gmra.mxu0 %v4879
        %v4991 = vpop.f32.mrf.mxu0
        %v4992 = vadd.f32 0.0, %v4991
        %4993 = vmatmul.f32.gmra.mxu0 %v4882
        %v4994 = vpop.f32.mrf.mxu0
        %v4995 = vadd.f32 0.0, %v4994
        %4996 = vmatmul.f32.gmra.mxu0 %v4885
        %v4997 = vpop.f32.mrf.mxu0
        %v4998 = vadd.f32 0.0, %v4997
        %4999 = vmatmul.f32.gmra.mxu0 %v4888
        %v5000 = vpop.f32.mrf.mxu0
        %v5001 = vadd.f32 0.0, %v5000
        %5002 = vmatmul.f32.gmra.mxu0 %v4891
        %v5003 = vpop.f32.mrf.mxu0
        %v5004 = vadd.f32 0.0, %v5003
        %5005 = vmatmul.f32.gmra.mxu0 %v4894
        %v5006 = vpop.f32.mrf.mxu0
        %v5007 = vadd.f32 0.0, %v5006
        %5008 = vmatmul.f32.gmra.mxu0 %v4897
        %v5009 = vpop.f32.mrf.mxu0
        %v5010 = vadd.f32 0.0, %v5009
        %5011 = vmatmul.f32.gmra.mxu0 %v4900
        %v5012 = vpop.f32.mrf.mxu0
        %v5013 = vadd.f32 0.0, %v5012
        %5014 = vmatmul.f32.gmra.mxu0 %v4903
        %v5015 = vpop.f32.mrf.mxu0
        %v5016 = vadd.f32 0.0, %v5015
        %5017 = vmatmul.f32.gmra.mxu0 %v4906
        %v5018 = vpop.f32.mrf.mxu0
        %v5019 = vadd.f32 0.0, %v5018
        %5020 = vmatmul.f32.gmra.mxu0 %v4909
        %v5021 = vpop.f32.mrf.mxu0
        %v5022 = vadd.f32 0.0, %v5021
        %5023 = vmatmul.f32.gmra.mxu0 %v4912
        %v5024 = vpop.f32.mrf.mxu0
        %v5025 = vadd.f32 0.0, %v5024
        %5026 = vmatmul.f32.gmra.mxu0 %v4915
        %v5027 = vpop.f32.mrf.mxu0
        %v5028 = vadd.f32 0.0, %v5027
        %5029 = vmatmul.f32.gmra.mxu0 %v4918
        %v5030 = vpop.f32.mrf.mxu0
        %v5031 = vadd.f32 0.0, %v5030
        %5032 = vmatmul.f32.gmra.mxu0 %v4921
        %v5033 = vpop.f32.mrf.mxu0
        %v5034 = vadd.f32 0.0, %v5033
        %5035 = vdwg.mxu0
        %v5036 = vadd.f32 %v3132, %v4941
        %v5037 = vadd.f32 %v3135, %v4944
        %v5038 = vadd.f32 %v3138, %v4947
        %v5039 = vadd.f32 %v3141, %v4950
        %v5040 = vadd.f32 %v3144, %v4953
        %v5041 = vadd.f32 %v3147, %v4956
        %v5042 = vadd.f32 %v3150, %v4959
        %v5043 = vadd.f32 %v3153, %v4962
        %v5044 = vadd.f32 %v3156, %v4965
        %v5045 = vadd.f32 %v3159, %v4968
        %v5046 = vadd.f32 %v3162, %v4971
        %v5047 = vadd.f32 %v3165, %v4974
        %v5048 = vadd.f32 %v3168, %v4977
        %v5049 = vadd.f32 %v3171, %v4980
        %v5050 = vadd.f32 %v3174, %v4983
        %v5051 = vadd.f32 %v3177, %v4986
        %v5052 = vadd.f32 %v3180, %v4989
        %v5053 = vadd.f32 %v3183, %v4992
        %v5054 = vadd.f32 %v3186, %v4995
        %v5055 = vadd.f32 %v3189, %v4998
        %v5056 = vadd.f32 %v3192, %v5001
        %v5057 = vadd.f32 %v3195, %v5004
        %v5058 = vadd.f32 %v3198, %v5007
        %v5059 = vadd.f32 %v3201, %v5010
        %v5060 = vadd.f32 %v3204, %v5013
        %v5061 = vadd.f32 %v3207, %v5016
        %v5062 = vadd.f32 %v3210, %v5019
        %v5063 = vadd.f32 %v3213, %v5022
        %v5064 = vadd.f32 %v3216, %v5025
        %v5065 = vadd.f32 %v3219, %v5028
        %v5066 = vadd.f32 %v3222, %v5031
        %v5067 = vadd.f32 %v3225, %v5034
        %5068 = vst.msk [vmem:[%s1205 + $0x2] sm:$0xff] %vm1143, %v4795
        %5069 = vst.msk [vmem:[%s1205 + $0xa] sm:$0xff] %vm1143, %v4796
        %5070 = vst.msk [vmem:[%s1205 + $0x1a] sm:$0xff] %vm1143, %v4797
        %5071 = vst.msk [vmem:[%s1205 + $0x22] sm:$0xff] %vm1143, %v4798
        %5072 = vst.msk [vmem:[%s1205 + $0x32] sm:$0xff] %vm1143, %v4799
        %5073 = vst.msk [vmem:[%s1205 + $0x3a] sm:$0xff] %vm1143, %v4800
        %5074 = vst.msk [vmem:[%s1205 + $0x4a] sm:$0xff] %vm1143, %v4801
        %5075 = vst.msk [vmem:[%s1205 + $0x52] sm:$0xff] %vm1143, %v4802
        %5076 = vst.msk [vmem:[%s1205 + $0x62] sm:$0xff] %vm1143, %v4803
        %5077 = vst.msk [vmem:[%s1205 + $0x6a] sm:$0xff] %vm1143, %v4804
        %5078 = vst.msk [vmem:[%s1205 + $0x7a] sm:$0xff] %vm1143, %v4805
        %5079 = vst.msk [vmem:[%s1205 + $0x82] sm:$0xff] %vm1143, %v4806
        %5080 = vst.msk [vmem:[%s1205 + $0x92] sm:$0xff] %vm1143, %v4807
        %5081 = vst.msk [vmem:[%s1205 + $0x9a] sm:$0xff] %vm1143, %v4808
        %5082 = vst.msk [vmem:[%s1205 + $0xaa] sm:$0xff] %vm1143, %v4809
        %5083 = vst.msk [vmem:[%s1205 + $0xb2] sm:$0xff] %vm1143, %v4810
        %5084 = vst.msk [vmem:[%s1205 + $0xc2] sm:$0xff] %vm1143, %v4811
        %5085 = vst.msk [vmem:[%s1205 + $0xca] sm:$0xff] %vm1143, %v4812
        %5086 = vst.msk [vmem:[%s1205 + $0xda] sm:$0xff] %vm1143, %v4813
        %5087 = vst.msk [vmem:[%s1205 + $0xe2] sm:$0xff] %vm1143, %v4814
        %5088 = vst.msk [vmem:[%s1205 + $0xf2] sm:$0xff] %vm1143, %v4815
        %5089 = vst.msk [vmem:[%s1205 + $0xfa] sm:$0xff] %vm1143, %v4816
        %5090 = vst.msk [vmem:[%s1205 + $0x10a] sm:$0xff] %vm1143, %v4817
        %5091 = vst.msk [vmem:[%s1205 + $0x112] sm:$0xff] %vm1143, %v4818
        %5092 = vst.msk [vmem:[%s1205 + $0x122] sm:$0xff] %vm1143, %v4819
        %5093 = vst.msk [vmem:[%s1205 + $0x12a] sm:$0xff] %vm1143, %v4820
        %5094 = vst.msk [vmem:[%s1205 + $0x13a] sm:$0xff] %vm1143, %v4821
        %5095 = vst.msk [vmem:[%s1205 + $0x142] sm:$0xff] %vm1143, %v4822
        %5096 = vst.msk [vmem:[%s1205 + $0x152] sm:$0xff] %vm1143, %v4823
        %5097 = vst.msk [vmem:[%s1205 + $0x15a] sm:$0xff] %vm1143, %v4824
        %5098 = vst.msk [vmem:[%s1205 + $0x16a] sm:$0xff] %vm1143, %v4825
        %5099 = vst.msk [vmem:[%s1205 + $0x172] sm:$0xff] %vm1143, %v4826
        %v5100 = vld [vmem:[#allocation2] sm:$0xff]
        %v5101 = vld [vmem:[#allocation2 + $0x8] sm:$0xff]
        %v5102 = vld [vmem:[#allocation2 + $0x18] sm:$0xff]
        %v5103 = vld [vmem:[#allocation2 + $0x20] sm:$0xff]
        %v5104 = vld [vmem:[#allocation2 + $0x30] sm:$0xff]
        %v5105 = vld [vmem:[#allocation2 + $0x38] sm:$0xff]
        %v5106 = vld [vmem:[#allocation2 + $0x48] sm:$0xff]
        %v5107 = vld [vmem:[#allocation2 + $0x50] sm:$0xff]
        %v5108 = vld [vmem:[#allocation2 + $0x60] sm:$0xff]
        %v5109 = vld [vmem:[#allocation2 + $0x68] sm:$0xff]
        %v5110 = vld [vmem:[#allocation2 + $0x78] sm:$0xff]
        %v5111 = vld [vmem:[#allocation2 + $0x80] sm:$0xff]
        %v5112 = vld [vmem:[#allocation2 + $0x90] sm:$0xff]
        %v5113 = vld [vmem:[#allocation2 + $0x98] sm:$0xff]
        %v5114 = vld [vmem:[#allocation2 + $0xa8] sm:$0xff]
        %v5115 = vld [vmem:[#allocation2 + $0xb0] sm:$0xff]
        %v5116 = vld [vmem:[#allocation2 + $0xc0] sm:$0xff]
        %v5117 = vld [vmem:[#allocation2 + $0xc8] sm:$0xff]
        %v5118 = vld [vmem:[#allocation2 + $0xd8] sm:$0xff]
        %v5119 = vld [vmem:[#allocation2 + $0xe0] sm:$0xff]
        %v5120 = vld [vmem:[#allocation2 + $0xf0] sm:$0xff]
        %v5121 = vld [vmem:[#allocation2 + $0xf8] sm:$0xff]
        %v5122 = vld [vmem:[#allocation2 + $0x108] sm:$0xff]
        %v5123 = vld [vmem:[#allocation2 + $0x110] sm:$0xff]
        %v5124 = vld [vmem:[#allocation2 + $0x120] sm:$0xff]
        %v5125 = vld [vmem:[#allocation2 + $0x128] sm:$0xff]
        %v5126 = vld [vmem:[#allocation2 + $0x138] sm:$0xff]
        %v5127 = vld [vmem:[#allocation2 + $0x140] sm:$0xff]
        %v5128 = vld [vmem:[#allocation2 + $0x150] sm:$0xff]
        %v5129 = vld [vmem:[#allocation2 + $0x158] sm:$0xff]
        %v5130 = vld [vmem:[#allocation2 + $0x168] sm:$0xff]
        %v5131 = vld [vmem:[#allocation2 + $0x170] sm:$0xff]
        %v5132 = vld [vmem:[#allocation2 + $0x1] sm:$0xff]
        %v5133 = vld [vmem:[#allocation2 + $0x9] sm:$0xff]
        %v5134 = vld [vmem:[#allocation2 + $0x19] sm:$0xff]
        %v5135 = vld [vmem:[#allocation2 + $0x21] sm:$0xff]
        %v5136 = vld [vmem:[#allocation2 + $0x31] sm:$0xff]
        %v5137 = vld [vmem:[#allocation2 + $0x39] sm:$0xff]
        %v5138 = vld [vmem:[#allocation2 + $0x49] sm:$0xff]
        %v5139 = vld [vmem:[#allocation2 + $0x51] sm:$0xff]
        %v5140 = vld [vmem:[#allocation2 + $0x61] sm:$0xff]
        %v5141 = vld [vmem:[#allocation2 + $0x69] sm:$0xff]
        %v5142 = vld [vmem:[#allocation2 + $0x79] sm:$0xff]
        %v5143 = vld [vmem:[#allocation2 + $0x81] sm:$0xff]
        %v5144 = vld [vmem:[#allocation2 + $0x91] sm:$0xff]
        %v5145 = vld [vmem:[#allocation2 + $0x99] sm:$0xff]
        %v5146 = vld [vmem:[#allocation2 + $0xa9] sm:$0xff]
        %v5147 = vld [vmem:[#allocation2 + $0xb1] sm:$0xff]
        %v5148 = vld [vmem:[#allocation2 + $0xc1] sm:$0xff]
        %v5149 = vld [vmem:[#allocation2 + $0xc9] sm:$0xff]
        %v5150 = vld [vmem:[#allocation2 + $0xd9] sm:$0xff]
        %v5151 = vld [vmem:[#allocation2 + $0xe1] sm:$0xff]
        %v5152 = vld [vmem:[#allocation2 + $0xf1] sm:$0xff]
        %v5153 = vld [vmem:[#allocation2 + $0xf9] sm:$0xff]
        %v5154 = vld [vmem:[#allocation2 + $0x109] sm:$0xff]
        %v5155 = vld [vmem:[#allocation2 + $0x111] sm:$0xff]
        %v5156 = vld [vmem:[#allocation2 + $0x121] sm:$0xff]
        %v5157 = vld [vmem:[#allocation2 + $0x129] sm:$0xff]
        %v5158 = vld [vmem:[#allocation2 + $0x139] sm:$0xff]
        %v5159 = vld [vmem:[#allocation2 + $0x141] sm:$0xff]
        %v5160 = vld [vmem:[#allocation2 + $0x151] sm:$0xff]
        %v5161 = vld [vmem:[#allocation2 + $0x159] sm:$0xff]
        %v5162 = vld [vmem:[#allocation2 + $0x169] sm:$0xff]
        %v5163 = vld [vmem:[#allocation2 + $0x171] sm:$0xff]
        %v5164 = vmax.f32 %v5100, %v5132
        %v5165 = vmax.f32 %v5101, %v5133
        %v5166 = vmax.f32 %v5102, %v5134
        %v5167 = vmax.f32 %v5103, %v5135
        %v5168 = vmax.f32 %v5104, %v5136
        %v5169 = vmax.f32 %v5105, %v5137
        %v5170 = vmax.f32 %v5106, %v5138
        %v5171 = vmax.f32 %v5107, %v5139
        %v5172 = vmax.f32 %v5108, %v5140
        %v5173 = vmax.f32 %v5109, %v5141
        %v5174 = vmax.f32 %v5110, %v5142
        %v5175 = vmax.f32 %v5111, %v5143
        %v5176 = vmax.f32 %v5112, %v5144
        %v5177 = vmax.f32 %v5113, %v5145
        %v5178 = vmax.f32 %v5114, %v5146
        %v5179 = vmax.f32 %v5115, %v5147
        %v5180 = vmax.f32 %v5116, %v5148
        %v5181 = vmax.f32 %v5117, %v5149
        %v5182 = vmax.f32 %v5118, %v5150
        %v5183 = vmax.f32 %v5119, %v5151
        %v5184 = vmax.f32 %v5120, %v5152
        %v5185 = vmax.f32 %v5121, %v5153
        %v5186 = vmax.f32 %v5122, %v5154
        %v5187 = vmax.f32 %v5123, %v5155
        %v5188 = vmax.f32 %v5124, %v5156
        %v5189 = vmax.f32 %v5125, %v5157
        %v5190 = vmax.f32 %v5126, %v5158
        %v5191 = vmax.f32 %v5127, %v5159
        %v5192 = vmax.f32 %v5128, %v5160
        %v5193 = vmax.f32 %v5129, %v5161
        %v5194 = vmax.f32 %v5130, %v5162
        %v5195 = vmax.f32 %v5131, %v5163
        %v5196 = vld [vmem:[#allocation2 + $0x2] sm:$0xff]
        %v5197 = vld [vmem:[#allocation2 + $0xa] sm:$0xff]
        %v5198 = vld [vmem:[#allocation2 + $0x1a] sm:$0xff]
        %v5199 = vld [vmem:[#allocation2 + $0x22] sm:$0xff]
        %v5200 = vld [vmem:[#allocation2 + $0x32] sm:$0xff]
        %v5201 = vld [vmem:[#allocation2 + $0x3a] sm:$0xff]
        %v5202 = vld [vmem:[#allocation2 + $0x4a] sm:$0xff]
        %v5203 = vld [vmem:[#allocation2 + $0x52] sm:$0xff]
        %v5204 = vld [vmem:[#allocation2 + $0x62] sm:$0xff]
        %v5205 = vld [vmem:[#allocation2 + $0x6a] sm:$0xff]
        %v5206 = vld [vmem:[#allocation2 + $0x7a] sm:$0xff]
        %v5207 = vld [vmem:[#allocation2 + $0x82] sm:$0xff]
        %v5208 = vld [vmem:[#allocation2 + $0x92] sm:$0xff]
        %v5209 = vld [vmem:[#allocation2 + $0x9a] sm:$0xff]
        %v5210 = vld [vmem:[#allocation2 + $0xaa] sm:$0xff]
        %v5211 = vld [vmem:[#allocation2 + $0xb2] sm:$0xff]
        %v5212 = vld [vmem:[#allocation2 + $0xc2] sm:$0xff]
        %v5213 = vld [vmem:[#allocation2 + $0xca] sm:$0xff]
        %v5214 = vld [vmem:[#allocation2 + $0xda] sm:$0xff]
        %v5215 = vld [vmem:[#allocation2 + $0xe2] sm:$0xff]
        %v5216 = vld [vmem:[#allocation2 + $0xf2] sm:$0xff]
        %v5217 = vld [vmem:[#allocation2 + $0xfa] sm:$0xff]
        %v5218 = vld [vmem:[#allocation2 + $0x10a] sm:$0xff]
        %v5219 = vld [vmem:[#allocation2 + $0x112] sm:$0xff]
        %v5220 = vld [vmem:[#allocation2 + $0x122] sm:$0xff]
        %v5221 = vld [vmem:[#allocation2 + $0x12a] sm:$0xff]
        %v5222 = vld [vmem:[#allocation2 + $0x13a] sm:$0xff]
        %v5223 = vld [vmem:[#allocation2 + $0x142] sm:$0xff]
        %v5224 = vld [vmem:[#allocation2 + $0x152] sm:$0xff]
        %v5225 = vld [vmem:[#allocation2 + $0x15a] sm:$0xff]
        %v5226 = vld [vmem:[#allocation2 + $0x16a] sm:$0xff]
        %v5227 = vld [vmem:[#allocation2 + $0x172] sm:$0xff]
        %v5228 = vmax.f32 %v5164, %v5196
        %v5229 = vmax.f32 %v5165, %v5197
        %v5230 = vmax.f32 %v5166, %v5198
        %v5231 = vmax.f32 %v5167, %v5199
        %v5232 = vmax.f32 %v5168, %v5200
        %v5233 = vmax.f32 %v5169, %v5201
        %v5234 = vmax.f32 %v5170, %v5202
        %v5235 = vmax.f32 %v5171, %v5203
        %v5236 = vmax.f32 %v5172, %v5204
        %v5237 = vmax.f32 %v5173, %v5205
        %v5238 = vmax.f32 %v5174, %v5206
        %v5239 = vmax.f32 %v5175, %v5207
        %v5240 = vmax.f32 %v5176, %v5208
        %v5241 = vmax.f32 %v5177, %v5209
        %v5242 = vmax.f32 %v5178, %v5210
        %v5243 = vmax.f32 %v5179, %v5211
        %v5244 = vmax.f32 %v5180, %v5212
        %v5245 = vmax.f32 %v5181, %v5213
        %v5246 = vmax.f32 %v5182, %v5214
        %v5247 = vmax.f32 %v5183, %v5215
        %v5248 = vmax.f32 %v5184, %v5216
        %v5249 = vmax.f32 %v5185, %v5217
        %v5250 = vmax.f32 %v5186, %v5218
        %v5251 = vmax.f32 %v5187, %v5219
        %v5252 = vmax.f32 %v5188, %v5220
        %v5253 = vmax.f32 %v5189, %v5221
        %v5254 = vmax.f32 %v5190, %v5222
        %v5255 = vmax.f32 %v5191, %v5223
        %v5256 = vmax.f32 %v5192, %v5224
        %v5257 = vmax.f32 %v5193, %v5225
        %v5258 = vmax.f32 %v5194, %v5226
        %v5259 = vmax.f32 %v5195, %v5227
        %v5260 = vld [vmem:[#allocation2 + $0x3] sm:$0xff]
        %v5261 = vld [vmem:[#allocation2 + $0xb] sm:$0xff]
        %v5262 = vld [vmem:[#allocation2 + $0x1b] sm:$0xff]
        %v5263 = vld [vmem:[#allocation2 + $0x23] sm:$0xff]
        %v5264 = vld [vmem:[#allocation2 + $0x33] sm:$0xff]
        %v5265 = vld [vmem:[#allocation2 + $0x3b] sm:$0xff]
        %v5266 = vld [vmem:[#allocation2 + $0x4b] sm:$0xff]
        %v5267 = vld [vmem:[#allocation2 + $0x53] sm:$0xff]
        %v5268 = vld [vmem:[#allocation2 + $0x63] sm:$0xff]
        %v5269 = vld [vmem:[#allocation2 + $0x6b] sm:$0xff]
        %v5270 = vld [vmem:[#allocation2 + $0x7b] sm:$0xff]
        %v5271 = vld [vmem:[#allocation2 + $0x83] sm:$0xff]
        %v5272 = vld [vmem:[#allocation2 + $0x93] sm:$0xff]
        %v5273 = vld [vmem:[#allocation2 + $0x9b] sm:$0xff]
        %v5274 = vld [vmem:[#allocation2 + $0xab] sm:$0xff]
        %v5275 = vld [vmem:[#allocation2 + $0xb3] sm:$0xff]
        %v5276 = vld [vmem:[#allocation2 + $0xc3] sm:$0xff]
        %v5277 = vld [vmem:[#allocation2 + $0xcb] sm:$0xff]
        %v5278 = vld [vmem:[#allocation2 + $0xdb] sm:$0xff]
        %v5279 = vld [vmem:[#allocation2 + $0xe3] sm:$0xff]
        %v5280 = vld [vmem:[#allocation2 + $0xf3] sm:$0xff]
        %v5281 = vld [vmem:[#allocation2 + $0xfb] sm:$0xff]
        %v5282 = vld [vmem:[#allocation2 + $0x10b] sm:$0xff]
        %v5283 = vld [vmem:[#allocation2 + $0x113] sm:$0xff]
        %v5284 = vld [vmem:[#allocation2 + $0x123] sm:$0xff]
        %v5285 = vld [vmem:[#allocation2 + $0x12b] sm:$0xff]
        %v5286 = vld [vmem:[#allocation2 + $0x13b] sm:$0xff]
        %v5287 = vld [vmem:[#allocation2 + $0x143] sm:$0xff]
        %v5288 = vld [vmem:[#allocation2 + $0x153] sm:$0xff]
        %v5289 = vld [vmem:[#allocation2 + $0x15b] sm:$0xff]
        %v5290 = vld [vmem:[#allocation2 + $0x16b] sm:$0xff]
        %v5291 = vld [vmem:[#allocation2 + $0x173] sm:$0xff]
        %v5292 = vmax.f32 %v5228, %v5260
        %v5293 = vmax.f32 %v5229, %v5261
        %v5294 = vmax.f32 %v5230, %v5262
        %v5295 = vmax.f32 %v5231, %v5263
        %v5296 = vmax.f32 %v5232, %v5264
        %v5297 = vmax.f32 %v5233, %v5265
        %v5298 = vmax.f32 %v5234, %v5266
        %v5299 = vmax.f32 %v5235, %v5267
        %v5300 = vmax.f32 %v5236, %v5268
        %v5301 = vmax.f32 %v5237, %v5269
        %v5302 = vmax.f32 %v5238, %v5270
        %v5303 = vmax.f32 %v5239, %v5271
        %v5304 = vmax.f32 %v5240, %v5272
        %v5305 = vmax.f32 %v5241, %v5273
        %v5306 = vmax.f32 %v5242, %v5274
        %v5307 = vmax.f32 %v5243, %v5275
        %v5308 = vmax.f32 %v5244, %v5276
        %v5309 = vmax.f32 %v5245, %v5277
        %v5310 = vmax.f32 %v5246, %v5278
        %v5311 = vmax.f32 %v5247, %v5279
        %v5312 = vmax.f32 %v5248, %v5280
        %v5313 = vmax.f32 %v5249, %v5281
        %v5314 = vmax.f32 %v5250, %v5282
        %v5315 = vmax.f32 %v5251, %v5283
        %v5316 = vmax.f32 %v5252, %v5284
        %v5317 = vmax.f32 %v5253, %v5285
        %v5318 = vmax.f32 %v5254, %v5286
        %v5319 = vmax.f32 %v5255, %v5287
        %v5320 = vmax.f32 %v5256, %v5288
        %v5321 = vmax.f32 %v5257, %v5289
        %v5322 = vmax.f32 %v5258, %v5290
        %v5323 = vmax.f32 %v5259, %v5291
        %v5324 = vld [vmem:[#allocation2 + $0x4] sm:$0xff]
        %v5325 = vld [vmem:[#allocation2 + $0xc] sm:$0xff]
        %v5326 = vld [vmem:[#allocation2 + $0x1c] sm:$0xff]
        %v5327 = vld [vmem:[#allocation2 + $0x24] sm:$0xff]
        %v5328 = vld [vmem:[#allocation2 + $0x34] sm:$0xff]
        %v5329 = vld [vmem:[#allocation2 + $0x3c] sm:$0xff]
        %v5330 = vld [vmem:[#allocation2 + $0x4c] sm:$0xff]
        %v5331 = vld [vmem:[#allocation2 + $0x54] sm:$0xff]
        %v5332 = vld [vmem:[#allocation2 + $0x64] sm:$0xff]
        %v5333 = vld [vmem:[#allocation2 + $0x6c] sm:$0xff]
        %v5334 = vld [vmem:[#allocation2 + $0x7c] sm:$0xff]
        %v5335 = vld [vmem:[#allocation2 + $0x84] sm:$0xff]
        %v5336 = vld [vmem:[#allocation2 + $0x94] sm:$0xff]
        %v5337 = vld [vmem:[#allocation2 + $0x9c] sm:$0xff]
        %v5338 = vld [vmem:[#allocation2 + $0xac] sm:$0xff]
        %v5339 = vld [vmem:[#allocation2 + $0xb4] sm:$0xff]
        %v5340 = vld [vmem:[#allocation2 + $0xc4] sm:$0xff]
        %v5341 = vld [vmem:[#allocation2 + $0xcc] sm:$0xff]
        %v5342 = vld [vmem:[#allocation2 + $0xdc] sm:$0xff]
        %v5343 = vld [vmem:[#allocation2 + $0xe4] sm:$0xff]
        %v5344 = vld [vmem:[#allocation2 + $0xf4] sm:$0xff]
        %v5345 = vld [vmem:[#allocation2 + $0xfc] sm:$0xff]
        %v5346 = vld [vmem:[#allocation2 + $0x10c] sm:$0xff]
        %v5347 = vld [vmem:[#allocation2 + $0x114] sm:$0xff]
        %v5348 = vld [vmem:[#allocation2 + $0x124] sm:$0xff]
        %v5349 = vld [vmem:[#allocation2 + $0x12c] sm:$0xff]
        %v5350 = vld [vmem:[#allocation2 + $0x13c] sm:$0xff]
        %v5351 = vld [vmem:[#allocation2 + $0x144] sm:$0xff]
        %v5352 = vld [vmem:[#allocation2 + $0x154] sm:$0xff]
        %v5353 = vld [vmem:[#allocation2 + $0x15c] sm:$0xff]
        %v5354 = vld [vmem:[#allocation2 + $0x16c] sm:$0xff]
        %v5355 = vld [vmem:[#allocation2 + $0x174] sm:$0xff]
        %v5356 = vmax.f32 %v5292, %v5324
        %v5357 = vmax.f32 %v5293, %v5325
        %v5358 = vmax.f32 %v5294, %v5326
        %v5359 = vmax.f32 %v5295, %v5327
        %v5360 = vmax.f32 %v5296, %v5328
        %v5361 = vmax.f32 %v5297, %v5329
        %v5362 = vmax.f32 %v5298, %v5330
        %v5363 = vmax.f32 %v5299, %v5331
        %v5364 = vmax.f32 %v5300, %v5332
        %v5365 = vmax.f32 %v5301, %v5333
        %v5366 = vmax.f32 %v5302, %v5334
        %v5367 = vmax.f32 %v5303, %v5335
        %v5368 = vmax.f32 %v5304, %v5336
        %v5369 = vmax.f32 %v5305, %v5337
        %v5370 = vmax.f32 %v5306, %v5338
        %v5371 = vmax.f32 %v5307, %v5339
        %v5372 = vmax.f32 %v5308, %v5340
        %v5373 = vmax.f32 %v5309, %v5341
        %v5374 = vmax.f32 %v5310, %v5342
        %v5375 = vmax.f32 %v5311, %v5343
        %v5376 = vmax.f32 %v5312, %v5344
        %v5377 = vmax.f32 %v5313, %v5345
        %v5378 = vmax.f32 %v5314, %v5346
        %v5379 = vmax.f32 %v5315, %v5347
        %v5380 = vmax.f32 %v5316, %v5348
        %v5381 = vmax.f32 %v5317, %v5349
        %v5382 = vmax.f32 %v5318, %v5350
        %v5383 = vmax.f32 %v5319, %v5351
        %v5384 = vmax.f32 %v5320, %v5352
        %v5385 = vmax.f32 %v5321, %v5353
        %v5386 = vmax.f32 %v5322, %v5354
        %v5387 = vmax.f32 %v5323, %v5355
        %v5388 = vld [vmem:[%s1526] sm:$0xff]
        %v5389 = vld [vmem:[%s1526 + $0x8] sm:$0xff]
        %v5390 = vld [vmem:[%s1526 + $0x18] sm:$0xff]
        %v5391 = vld [vmem:[%s1526 + $0x20] sm:$0xff]
        %v5392 = vld [vmem:[%s1526 + $0x30] sm:$0xff]
        %v5393 = vld [vmem:[%s1526 + $0x38] sm:$0xff]
        %v5394 = vld [vmem:[%s1526 + $0x48] sm:$0xff]
        %v5395 = vld [vmem:[%s1526 + $0x50] sm:$0xff]
        %v5396 = vld [vmem:[%s1526 + $0x60] sm:$0xff]
        %v5397 = vld [vmem:[%s1526 + $0x68] sm:$0xff]
        %v5398 = vld [vmem:[%s1526 + $0x78] sm:$0xff]
        %v5399 = vld [vmem:[%s1526 + $0x80] sm:$0xff]
        %v5400 = vld [vmem:[%s1526 + $0x90] sm:$0xff]
        %v5401 = vld [vmem:[%s1526 + $0x98] sm:$0xff]
        %v5402 = vld [vmem:[%s1526 + $0xa8] sm:$0xff]
        %v5403 = vld [vmem:[%s1526 + $0xb0] sm:$0xff]
        %v5404 = vld [vmem:[%s1526 + $0xc0] sm:$0xff]
        %v5405 = vld [vmem:[%s1526 + $0xc8] sm:$0xff]
        %v5406 = vld [vmem:[%s1526 + $0xd8] sm:$0xff]
        %v5407 = vld [vmem:[%s1526 + $0xe0] sm:$0xff]
        %v5408 = vld [vmem:[%s1526 + $0xf0] sm:$0xff]
        %v5409 = vld [vmem:[%s1526 + $0xf8] sm:$0xff]
        %v5410 = vld [vmem:[%s1526 + $0x108] sm:$0xff]
        %v5411 = vld [vmem:[%s1526 + $0x110] sm:$0xff]
        %v5412 = vld [vmem:[%s1526 + $0x120] sm:$0xff]
        %v5413 = vld [vmem:[%s1526 + $0x128] sm:$0xff]
        %v5414 = vld [vmem:[%s1526 + $0x138] sm:$0xff]
        %v5415 = vld [vmem:[%s1526 + $0x140] sm:$0xff]
        %v5416 = vld [vmem:[%s1526 + $0x150] sm:$0xff]
        %v5417 = vld [vmem:[%s1526 + $0x158] sm:$0xff]
        %v5418 = vld [vmem:[%s1526 + $0x168] sm:$0xff]
        %v5419 = vld [vmem:[%s1526 + $0x170] sm:$0xff]
        %v5420 = vmax.f32 %v5356, %v5388
        %v5421 = vmax.f32 %v5357, %v5389
        %v5422 = vmax.f32 %v5358, %v5390
        %v5423 = vmax.f32 %v5359, %v5391
        %v5424 = vmax.f32 %v5360, %v5392
        %v5425 = vmax.f32 %v5361, %v5393
        %v5426 = vmax.f32 %v5362, %v5394
        %v5427 = vmax.f32 %v5363, %v5395
        %v5428 = vmax.f32 %v5364, %v5396
        %v5429 = vmax.f32 %v5365, %v5397
        %v5430 = vmax.f32 %v5366, %v5398
        %v5431 = vmax.f32 %v5367, %v5399
        %v5432 = vmax.f32 %v5368, %v5400
        %v5433 = vmax.f32 %v5369, %v5401
        %v5434 = vmax.f32 %v5370, %v5402
        %v5435 = vmax.f32 %v5371, %v5403
        %v5436 = vmax.f32 %v5372, %v5404
        %v5437 = vmax.f32 %v5373, %v5405
        %v5438 = vmax.f32 %v5374, %v5406
        %v5439 = vmax.f32 %v5375, %v5407
        %v5440 = vmax.f32 %v5376, %v5408
        %v5441 = vmax.f32 %v5377, %v5409
        %v5442 = vmax.f32 %v5378, %v5410
        %v5443 = vmax.f32 %v5379, %v5411
        %v5444 = vmax.f32 %v5380, %v5412
        %v5445 = vmax.f32 %v5381, %v5413
        %v5446 = vmax.f32 %v5382, %v5414
        %v5447 = vmax.f32 %v5383, %v5415
        %v5448 = vmax.f32 %v5384, %v5416
        %v5449 = vmax.f32 %v5385, %v5417
        %v5450 = vmax.f32 %v5386, %v5418
        %v5451 = vmax.f32 %v5387, %v5419
        %v5452 = vld [vmem:[%s1526 + $0x1] sm:$0xff]
        %v5453 = vld [vmem:[%s1526 + $0x9] sm:$0xff]
        %v5454 = vld [vmem:[%s1526 + $0x19] sm:$0xff]
        %v5455 = vld [vmem:[%s1526 + $0x21] sm:$0xff]
        %v5456 = vld [vmem:[%s1526 + $0x31] sm:$0xff]
        %v5457 = vld [vmem:[%s1526 + $0x39] sm:$0xff]
        %v5458 = vld [vmem:[%s1526 + $0x49] sm:$0xff]
        %v5459 = vld [vmem:[%s1526 + $0x51] sm:$0xff]
        %v5460 = vld [vmem:[%s1526 + $0x61] sm:$0xff]
        %v5461 = vld [vmem:[%s1526 + $0x69] sm:$0xff]
        %v5462 = vld [vmem:[%s1526 + $0x79] sm:$0xff]
        %v5463 = vld [vmem:[%s1526 + $0x81] sm:$0xff]
        %v5464 = vld [vmem:[%s1526 + $0x91] sm:$0xff]
        %v5465 = vld [vmem:[%s1526 + $0x99] sm:$0xff]
        %v5466 = vld [vmem:[%s1526 + $0xa9] sm:$0xff]
        %v5467 = vld [vmem:[%s1526 + $0xb1] sm:$0xff]
        %v5468 = vld [vmem:[%s1526 + $0xc1] sm:$0xff]
        %v5469 = vld [vmem:[%s1526 + $0xc9] sm:$0xff]
        %v5470 = vld [vmem:[%s1526 + $0xd9] sm:$0xff]
        %v5471 = vld [vmem:[%s1526 + $0xe1] sm:$0xff]
        %v5472 = vld [vmem:[%s1526 + $0xf1] sm:$0xff]
        %v5473 = vld [vmem:[%s1526 + $0xf9] sm:$0xff]
        %v5474 = vld [vmem:[%s1526 + $0x109] sm:$0xff]
        %v5475 = vld [vmem:[%s1526 + $0x111] sm:$0xff]
        %v5476 = vld [vmem:[%s1526 + $0x121] sm:$0xff]
        %v5477 = vld [vmem:[%s1526 + $0x129] sm:$0xff]
        %v5478 = vld [vmem:[%s1526 + $0x139] sm:$0xff]
        %v5479 = vld [vmem:[%s1526 + $0x141] sm:$0xff]
        %v5480 = vld [vmem:[%s1526 + $0x151] sm:$0xff]
        %v5481 = vld [vmem:[%s1526 + $0x159] sm:$0xff]
        %v5482 = vld [vmem:[%s1526 + $0x169] sm:$0xff]
        %v5483 = vld [vmem:[%s1526 + $0x171] sm:$0xff]
        %v5484 = vmax.f32 %v5420, %v5452
        %v5485 = vmax.f32 %v5421, %v5453
        %v5486 = vmax.f32 %v5422, %v5454
        %v5487 = vmax.f32 %v5423, %v5455
        %v5488 = vmax.f32 %v5424, %v5456
        %v5489 = vmax.f32 %v5425, %v5457
        %v5490 = vmax.f32 %v5426, %v5458
        %v5491 = vmax.f32 %v5427, %v5459
        %v5492 = vmax.f32 %v5428, %v5460
        %v5493 = vmax.f32 %v5429, %v5461
        %v5494 = vmax.f32 %v5430, %v5462
        %v5495 = vmax.f32 %v5431, %v5463
        %v5496 = vmax.f32 %v5432, %v5464
        %v5497 = vmax.f32 %v5433, %v5465
        %v5498 = vmax.f32 %v5434, %v5466
        %v5499 = vmax.f32 %v5435, %v5467
        %v5500 = vmax.f32 %v5436, %v5468
        %v5501 = vmax.f32 %v5437, %v5469
        %v5502 = vmax.f32 %v5438, %v5470
        %v5503 = vmax.f32 %v5439, %v5471
        %v5504 = vmax.f32 %v5440, %v5472
        %v5505 = vmax.f32 %v5441, %v5473
        %v5506 = vmax.f32 %v5442, %v5474
        %v5507 = vmax.f32 %v5443, %v5475
        %v5508 = vmax.f32 %v5444, %v5476
        %v5509 = vmax.f32 %v5445, %v5477
        %v5510 = vmax.f32 %v5446, %v5478
        %v5511 = vmax.f32 %v5447, %v5479
        %v5512 = vmax.f32 %v5448, %v5480
        %v5513 = vmax.f32 %v5449, %v5481
        %v5514 = vmax.f32 %v5450, %v5482
        %v5515 = vmax.f32 %v5451, %v5483
        %v5516 = vld [vmem:[%s1526 + $0x2] sm:$0xff]
        %v5517 = vld [vmem:[%s1526 + $0xa] sm:$0xff]
        %v5518 = vld [vmem:[%s1526 + $0x1a] sm:$0xff]
        %v5519 = vld [vmem:[%s1526 + $0x22] sm:$0xff]
        %v5520 = vld [vmem:[%s1526 + $0x32] sm:$0xff]
        %v5521 = vld [vmem:[%s1526 + $0x3a] sm:$0xff]
        %v5522 = vld [vmem:[%s1526 + $0x4a] sm:$0xff]
        %v5523 = vld [vmem:[%s1526 + $0x52] sm:$0xff]
        %v5524 = vld [vmem:[%s1526 + $0x62] sm:$0xff]
        %v5525 = vld [vmem:[%s1526 + $0x6a] sm:$0xff]
        %v5526 = vld [vmem:[%s1526 + $0x7a] sm:$0xff]
        %v5527 = vld [vmem:[%s1526 + $0x82] sm:$0xff]
        %v5528 = vld [vmem:[%s1526 + $0x92] sm:$0xff]
        %v5529 = vld [vmem:[%s1526 + $0x9a] sm:$0xff]
        %v5530 = vld [vmem:[%s1526 + $0xaa] sm:$0xff]
        %v5531 = vld [vmem:[%s1526 + $0xb2] sm:$0xff]
        %v5532 = vld [vmem:[%s1526 + $0xc2] sm:$0xff]
        %v5533 = vld [vmem:[%s1526 + $0xca] sm:$0xff]
        %v5534 = vld [vmem:[%s1526 + $0xda] sm:$0xff]
        %v5535 = vld [vmem:[%s1526 + $0xe2] sm:$0xff]
        %v5536 = vld [vmem:[%s1526 + $0xf2] sm:$0xff]
        %v5537 = vld [vmem:[%s1526 + $0xfa] sm:$0xff]
        %v5538 = vld [vmem:[%s1526 + $0x10a] sm:$0xff]
        %v5539 = vld [vmem:[%s1526 + $0x112] sm:$0xff]
        %v5540 = vld [vmem:[%s1526 + $0x122] sm:$0xff]
        %v5541 = vld [vmem:[%s1526 + $0x12a] sm:$0xff]
        %v5542 = vld [vmem:[%s1526 + $0x13a] sm:$0xff]
        %v5543 = vld [vmem:[%s1526 + $0x142] sm:$0xff]
        %v5544 = vld [vmem:[%s1526 + $0x152] sm:$0xff]
        %v5545 = vld [vmem:[%s1526 + $0x15a] sm:$0xff]
        %v5546 = vld [vmem:[%s1526 + $0x16a] sm:$0xff]
        %v5547 = vld [vmem:[%s1526 + $0x172] sm:$0xff]
        %v5548 = vmax.f32 %v5484, %v5516
        %v5549 = vmax.f32 %v5485, %v5517
        %v5550 = vmax.f32 %v5486, %v5518
        %v5551 = vmax.f32 %v5487, %v5519
        %v5552 = vmax.f32 %v5488, %v5520
        %v5553 = vmax.f32 %v5489, %v5521
        %v5554 = vmax.f32 %v5490, %v5522
        %v5555 = vmax.f32 %v5491, %v5523
        %v5556 = vmax.f32 %v5492, %v5524
        %v5557 = vmax.f32 %v5493, %v5525
        %v5558 = vmax.f32 %v5494, %v5526
        %v5559 = vmax.f32 %v5495, %v5527
        %v5560 = vmax.f32 %v5496, %v5528
        %v5561 = vmax.f32 %v5497, %v5529
        %v5562 = vmax.f32 %v5498, %v5530
        %v5563 = vmax.f32 %v5499, %v5531
        %v5564 = vmax.f32 %v5500, %v5532
        %v5565 = vmax.f32 %v5501, %v5533
        %v5566 = vmax.f32 %v5502, %v5534
        %v5567 = vmax.f32 %v5503, %v5535
        %v5568 = vmax.f32 %v5504, %v5536
        %v5569 = vmax.f32 %v5505, %v5537
        %v5570 = vmax.f32 %v5506, %v5538
        %v5571 = vmax.f32 %v5507, %v5539
        %v5572 = vmax.f32 %v5508, %v5540
        %v5573 = vmax.f32 %v5509, %v5541
        %v5574 = vmax.f32 %v5510, %v5542
        %v5575 = vmax.f32 %v5511, %v5543
        %v5576 = vmax.f32 %v5512, %v5544
        %v5577 = vmax.f32 %v5513, %v5545
        %v5578 = vmax.f32 %v5514, %v5546
        %v5579 = vmax.f32 %v5515, %v5547
        %v5580 = vld [vmem:[%s1526 + $0x3] sm:$0xff]
        %v5581 = vld [vmem:[%s1526 + $0xb] sm:$0xff]
        %v5582 = vld [vmem:[%s1526 + $0x1b] sm:$0xff]
        %v5583 = vld [vmem:[%s1526 + $0x23] sm:$0xff]
        %v5584 = vld [vmem:[%s1526 + $0x33] sm:$0xff]
        %v5585 = vld [vmem:[%s1526 + $0x3b] sm:$0xff]
        %v5586 = vld [vmem:[%s1526 + $0x4b] sm:$0xff]
        %v5587 = vld [vmem:[%s1526 + $0x53] sm:$0xff]
        %v5588 = vld [vmem:[%s1526 + $0x63] sm:$0xff]
        %v5589 = vld [vmem:[%s1526 + $0x6b] sm:$0xff]
        %v5590 = vld [vmem:[%s1526 + $0x7b] sm:$0xff]
        %v5591 = vld [vmem:[%s1526 + $0x83] sm:$0xff]
        %v5592 = vld [vmem:[%s1526 + $0x93] sm:$0xff]
        %v5593 = vld [vmem:[%s1526 + $0x9b] sm:$0xff]
        %v5594 = vld [vmem:[%s1526 + $0xab] sm:$0xff]
        %v5595 = vld [vmem:[%s1526 + $0xb3] sm:$0xff]
        %v5596 = vld [vmem:[%s1526 + $0xc3] sm:$0xff]
        %v5597 = vld [vmem:[%s1526 + $0xcb] sm:$0xff]
        %v5598 = vld [vmem:[%s1526 + $0xdb] sm:$0xff]
        %v5599 = vld [vmem:[%s1526 + $0xe3] sm:$0xff]
        %v5600 = vld [vmem:[%s1526 + $0xf3] sm:$0xff]
        %v5601 = vld [vmem:[%s1526 + $0xfb] sm:$0xff]
        %v5602 = vld [vmem:[%s1526 + $0x10b] sm:$0xff]
        %v5603 = vld [vmem:[%s1526 + $0x113] sm:$0xff]
        %v5604 = vld [vmem:[%s1526 + $0x123] sm:$0xff]
        %v5605 = vld [vmem:[%s1526 + $0x12b] sm:$0xff]
        %v5606 = vld [vmem:[%s1526 + $0x13b] sm:$0xff]
        %v5607 = vld [vmem:[%s1526 + $0x143] sm:$0xff]
        %v5608 = vld [vmem:[%s1526 + $0x153] sm:$0xff]
        %v5609 = vld [vmem:[%s1526 + $0x15b] sm:$0xff]
        %v5610 = vld [vmem:[%s1526 + $0x16b] sm:$0xff]
        %v5611 = vld [vmem:[%s1526 + $0x173] sm:$0xff]
        %v5612 = vmax.f32 %v5548, %v5580
        %v5613 = vmax.f32 %v5549, %v5581
        %v5614 = vmax.f32 %v5550, %v5582
        %v5615 = vmax.f32 %v5551, %v5583
        %v5616 = vmax.f32 %v5552, %v5584
        %v5617 = vmax.f32 %v5553, %v5585
        %v5618 = vmax.f32 %v5554, %v5586
        %v5619 = vmax.f32 %v5555, %v5587
        %v5620 = vmax.f32 %v5556, %v5588
        %v5621 = vmax.f32 %v5557, %v5589
        %v5622 = vmax.f32 %v5558, %v5590
        %v5623 = vmax.f32 %v5559, %v5591
        %v5624 = vmax.f32 %v5560, %v5592
        %v5625 = vmax.f32 %v5561, %v5593
        %v5626 = vmax.f32 %v5562, %v5594
        %v5627 = vmax.f32 %v5563, %v5595
        %v5628 = vmax.f32 %v5564, %v5596
        %v5629 = vmax.f32 %v5565, %v5597
        %v5630 = vmax.f32 %v5566, %v5598
        %v5631 = vmax.f32 %v5567, %v5599
        %v5632 = vmax.f32 %v5568, %v5600
        %v5633 = vmax.f32 %v5569, %v5601
        %v5634 = vmax.f32 %v5570, %v5602
        %v5635 = vmax.f32 %v5571, %v5603
        %v5636 = vmax.f32 %v5572, %v5604
        %v5637 = vmax.f32 %v5573, %v5605
        %v5638 = vmax.f32 %v5574, %v5606
        %v5639 = vmax.f32 %v5575, %v5607
        %v5640 = vmax.f32 %v5576, %v5608
        %v5641 = vmax.f32 %v5577, %v5609
        %v5642 = vmax.f32 %v5578, %v5610
        %v5643 = vmax.f32 %v5579, %v5611
        %v5644 = vld [vmem:[%s1526 + $0x4] sm:$0xff]
        %v5645 = vld [vmem:[%s1526 + $0xc] sm:$0xff]
        %v5646 = vld [vmem:[%s1526 + $0x1c] sm:$0xff]
        %v5647 = vld [vmem:[%s1526 + $0x24] sm:$0xff]
        %v5648 = vld [vmem:[%s1526 + $0x34] sm:$0xff]
        %v5649 = vld [vmem:[%s1526 + $0x3c] sm:$0xff]
        %v5650 = vld [vmem:[%s1526 + $0x4c] sm:$0xff]
        %v5651 = vld [vmem:[%s1526 + $0x54] sm:$0xff]
        %v5652 = vld [vmem:[%s1526 + $0x64] sm:$0xff]
        %v5653 = vld [vmem:[%s1526 + $0x6c] sm:$0xff]
        %v5654 = vld [vmem:[%s1526 + $0x7c] sm:$0xff]
        %v5655 = vld [vmem:[%s1526 + $0x84] sm:$0xff]
        %v5656 = vld [vmem:[%s1526 + $0x94] sm:$0xff]
        %v5657 = vld [vmem:[%s1526 + $0x9c] sm:$0xff]
        %v5658 = vld [vmem:[%s1526 + $0xac] sm:$0xff]
        %v5659 = vld [vmem:[%s1526 + $0xb4] sm:$0xff]
        %v5660 = vld [vmem:[%s1526 + $0xc4] sm:$0xff]
        %v5661 = vld [vmem:[%s1526 + $0xcc] sm:$0xff]
        %v5662 = vld [vmem:[%s1526 + $0xdc] sm:$0xff]
        %v5663 = vld [vmem:[%s1526 + $0xe4] sm:$0xff]
        %v5664 = vld [vmem:[%s1526 + $0xf4] sm:$0xff]
        %v5665 = vld [vmem:[%s1526 + $0xfc] sm:$0xff]
        %v5666 = vld [vmem:[%s1526 + $0x10c] sm:$0xff]
        %v5667 = vld [vmem:[%s1526 + $0x114] sm:$0xff]
        %v5668 = vld [vmem:[%s1526 + $0x124] sm:$0xff]
        %v5669 = vld [vmem:[%s1526 + $0x12c] sm:$0xff]
        %v5670 = vld [vmem:[%s1526 + $0x13c] sm:$0xff]
        %v5671 = vld [vmem:[%s1526 + $0x144] sm:$0xff]
        %v5672 = vld [vmem:[%s1526 + $0x154] sm:$0xff]
        %v5673 = vld [vmem:[%s1526 + $0x15c] sm:$0xff]
        %v5674 = vld [vmem:[%s1526 + $0x16c] sm:$0xff]
        %v5675 = vld [vmem:[%s1526 + $0x174] sm:$0xff]
        %v5676 = vmax.f32 %v5612, %v5644
        %v5677 = vmax.f32 %v5613, %v5645
        %v5678 = vmax.f32 %v5614, %v5646
        %v5679 = vmax.f32 %v5615, %v5647
        %v5680 = vmax.f32 %v5616, %v5648
        %v5681 = vmax.f32 %v5617, %v5649
        %v5682 = vmax.f32 %v5618, %v5650
        %v5683 = vmax.f32 %v5619, %v5651
        %v5684 = vmax.f32 %v5620, %v5652
        %v5685 = vmax.f32 %v5621, %v5653
        %v5686 = vmax.f32 %v5622, %v5654
        %v5687 = vmax.f32 %v5623, %v5655
        %v5688 = vmax.f32 %v5624, %v5656
        %v5689 = vmax.f32 %v5625, %v5657
        %v5690 = vmax.f32 %v5626, %v5658
        %v5691 = vmax.f32 %v5627, %v5659
        %v5692 = vmax.f32 %v5628, %v5660
        %v5693 = vmax.f32 %v5629, %v5661
        %v5694 = vmax.f32 %v5630, %v5662
        %v5695 = vmax.f32 %v5631, %v5663
        %v5696 = vmax.f32 %v5632, %v5664
        %v5697 = vmax.f32 %v5633, %v5665
        %v5698 = vmax.f32 %v5634, %v5666
        %v5699 = vmax.f32 %v5635, %v5667
        %v5700 = vmax.f32 %v5636, %v5668
        %v5701 = vmax.f32 %v5637, %v5669
        %v5702 = vmax.f32 %v5638, %v5670
        %v5703 = vmax.f32 %v5639, %v5671
        %v5704 = vmax.f32 %v5640, %v5672
        %v5705 = vmax.f32 %v5641, %v5673
        %v5706 = vmax.f32 %v5642, %v5674
        %v5707 = vmax.f32 %v5643, %v5675
        %v5708 = vld [vmem:[%s1205] sm:$0xff]
        %v5709 = vld [vmem:[%s1205 + $0x8] sm:$0xff]
        %v5710 = vld [vmem:[%s1205 + $0x18] sm:$0xff]
        %v5711 = vld [vmem:[%s1205 + $0x20] sm:$0xff]
        %v5712 = vld [vmem:[%s1205 + $0x30] sm:$0xff]
        %v5713 = vld [vmem:[%s1205 + $0x38] sm:$0xff]
        %v5714 = vld [vmem:[%s1205 + $0x48] sm:$0xff]
        %v5715 = vld [vmem:[%s1205 + $0x50] sm:$0xff]
        %v5716 = vld [vmem:[%s1205 + $0x60] sm:$0xff]
        %v5717 = vld [vmem:[%s1205 + $0x68] sm:$0xff]
        %v5718 = vld [vmem:[%s1205 + $0x78] sm:$0xff]
        %v5719 = vld [vmem:[%s1205 + $0x80] sm:$0xff]
        %v5720 = vld [vmem:[%s1205 + $0x90] sm:$0xff]
        %v5721 = vld [vmem:[%s1205 + $0x98] sm:$0xff]
        %v5722 = vld [vmem:[%s1205 + $0xa8] sm:$0xff]
        %v5723 = vld [vmem:[%s1205 + $0xb0] sm:$0xff]
        %v5724 = vld [vmem:[%s1205 + $0xc0] sm:$0xff]
        %v5725 = vld [vmem:[%s1205 + $0xc8] sm:$0xff]
        %v5726 = vld [vmem:[%s1205 + $0xd8] sm:$0xff]
        %v5727 = vld [vmem:[%s1205 + $0xe0] sm:$0xff]
        %v5728 = vld [vmem:[%s1205 + $0xf0] sm:$0xff]
        %v5729 = vld [vmem:[%s1205 + $0xf8] sm:$0xff]
        %v5730 = vld [vmem:[%s1205 + $0x108] sm:$0xff]
        %v5731 = vld [vmem:[%s1205 + $0x110] sm:$0xff]
        %v5732 = vld [vmem:[%s1205 + $0x120] sm:$0xff]
        %v5733 = vld [vmem:[%s1205 + $0x128] sm:$0xff]
        %v5734 = vld [vmem:[%s1205 + $0x138] sm:$0xff]
        %v5735 = vld [vmem:[%s1205 + $0x140] sm:$0xff]
        %v5736 = vld [vmem:[%s1205 + $0x150] sm:$0xff]
        %v5737 = vld [vmem:[%s1205 + $0x158] sm:$0xff]
        %v5738 = vld [vmem:[%s1205 + $0x168] sm:$0xff]
        %v5739 = vld [vmem:[%s1205 + $0x170] sm:$0xff]
        %v5740 = vmax.f32 %v5676, %v5708
        %v5741 = vmax.f32 %v5677, %v5709
        %v5742 = vmax.f32 %v5678, %v5710
        %v5743 = vmax.f32 %v5679, %v5711
        %v5744 = vmax.f32 %v5680, %v5712
        %v5745 = vmax.f32 %v5681, %v5713
        %v5746 = vmax.f32 %v5682, %v5714
        %v5747 = vmax.f32 %v5683, %v5715
        %v5748 = vmax.f32 %v5684, %v5716
        %v5749 = vmax.f32 %v5685, %v5717
        %v5750 = vmax.f32 %v5686, %v5718
        %v5751 = vmax.f32 %v5687, %v5719
        %v5752 = vmax.f32 %v5688, %v5720
        %v5753 = vmax.f32 %v5689, %v5721
        %v5754 = vmax.f32 %v5690, %v5722
        %v5755 = vmax.f32 %v5691, %v5723
        %v5756 = vmax.f32 %v5692, %v5724
        %v5757 = vmax.f32 %v5693, %v5725
        %v5758 = vmax.f32 %v5694, %v5726
        %v5759 = vmax.f32 %v5695, %v5727
        %v5760 = vmax.f32 %v5696, %v5728
        %v5761 = vmax.f32 %v5697, %v5729
        %v5762 = vmax.f32 %v5698, %v5730
        %v5763 = vmax.f32 %v5699, %v5731
        %v5764 = vmax.f32 %v5700, %v5732
        %v5765 = vmax.f32 %v5701, %v5733
        %v5766 = vmax.f32 %v5702, %v5734
        %v5767 = vmax.f32 %v5703, %v5735
        %v5768 = vmax.f32 %v5704, %v5736
        %v5769 = vmax.f32 %v5705, %v5737
        %v5770 = vmax.f32 %v5706, %v5738
        %v5771 = vmax.f32 %v5707, %v5739
        %v5772 = vld [vmem:[%s1205 + $0x1] sm:$0xff]
        %v5773 = vld [vmem:[%s1205 + $0x9] sm:$0xff]
        %v5774 = vld [vmem:[%s1205 + $0x19] sm:$0xff]
        %v5775 = vld [vmem:[%s1205 + $0x21] sm:$0xff]
        %v5776 = vld [vmem:[%s1205 + $0x31] sm:$0xff]
        %v5777 = vld [vmem:[%s1205 + $0x39] sm:$0xff]
        %v5778 = vld [vmem:[%s1205 + $0x49] sm:$0xff]
        %v5779 = vld [vmem:[%s1205 + $0x51] sm:$0xff]
        %v5780 = vld [vmem:[%s1205 + $0x61] sm:$0xff]
        %v5781 = vld [vmem:[%s1205 + $0x69] sm:$0xff]
        %v5782 = vld [vmem:[%s1205 + $0x79] sm:$0xff]
        %v5783 = vld [vmem:[%s1205 + $0x81] sm:$0xff]
        %v5784 = vld [vmem:[%s1205 + $0x91] sm:$0xff]
        %v5785 = vld [vmem:[%s1205 + $0x99] sm:$0xff]
        %v5786 = vld [vmem:[%s1205 + $0xa9] sm:$0xff]
        %v5787 = vld [vmem:[%s1205 + $0xb1] sm:$0xff]
        %v5788 = vld [vmem:[%s1205 + $0xc1] sm:$0xff]
        %v5789 = vld [vmem:[%s1205 + $0xc9] sm:$0xff]
        %v5790 = vld [vmem:[%s1205 + $0xd9] sm:$0xff]
        %v5791 = vld [vmem:[%s1205 + $0xe1] sm:$0xff]
        %v5792 = vld [vmem:[%s1205 + $0xf1] sm:$0xff]
        %v5793 = vld [vmem:[%s1205 + $0xf9] sm:$0xff]
        %v5794 = vld [vmem:[%s1205 + $0x109] sm:$0xff]
        %v5795 = vld [vmem:[%s1205 + $0x111] sm:$0xff]
        %v5796 = vld [vmem:[%s1205 + $0x121] sm:$0xff]
        %v5797 = vld [vmem:[%s1205 + $0x129] sm:$0xff]
        %v5798 = vld [vmem:[%s1205 + $0x139] sm:$0xff]
        %v5799 = vld [vmem:[%s1205 + $0x141] sm:$0xff]
        %v5800 = vld [vmem:[%s1205 + $0x151] sm:$0xff]
        %v5801 = vld [vmem:[%s1205 + $0x159] sm:$0xff]
        %v5802 = vld [vmem:[%s1205 + $0x169] sm:$0xff]
        %v5803 = vld [vmem:[%s1205 + $0x171] sm:$0xff]
        %v5804 = vmax.f32 %v5740, %v5772
        %v5805 = vmax.f32 %v5741, %v5773
        %v5806 = vmax.f32 %v5742, %v5774
        %v5807 = vmax.f32 %v5743, %v5775
        %v5808 = vmax.f32 %v5744, %v5776
        %v5809 = vmax.f32 %v5745, %v5777
        %v5810 = vmax.f32 %v5746, %v5778
        %v5811 = vmax.f32 %v5747, %v5779
        %v5812 = vmax.f32 %v5748, %v5780
        %v5813 = vmax.f32 %v5749, %v5781
        %v5814 = vmax.f32 %v5750, %v5782
        %v5815 = vmax.f32 %v5751, %v5783
        %v5816 = vmax.f32 %v5752, %v5784
        %v5817 = vmax.f32 %v5753, %v5785
        %v5818 = vmax.f32 %v5754, %v5786
        %v5819 = vmax.f32 %v5755, %v5787
        %v5820 = vmax.f32 %v5756, %v5788
        %v5821 = vmax.f32 %v5757, %v5789
        %v5822 = vmax.f32 %v5758, %v5790
        %v5823 = vmax.f32 %v5759, %v5791
        %v5824 = vmax.f32 %v5760, %v5792
        %v5825 = vmax.f32 %v5761, %v5793
        %v5826 = vmax.f32 %v5762, %v5794
        %v5827 = vmax.f32 %v5763, %v5795
        %v5828 = vmax.f32 %v5764, %v5796
        %v5829 = vmax.f32 %v5765, %v5797
        %v5830 = vmax.f32 %v5766, %v5798
        %v5831 = vmax.f32 %v5767, %v5799
        %v5832 = vmax.f32 %v5768, %v5800
        %v5833 = vmax.f32 %v5769, %v5801
        %v5834 = vmax.f32 %v5770, %v5802
        %v5835 = vmax.f32 %v5771, %v5803
        %v5836 = vld [vmem:[%s1205 + $0x2] sm:$0xff]
        %v5837 = vld [vmem:[%s1205 + $0xa] sm:$0xff]
        %v5838 = vld [vmem:[%s1205 + $0x1a] sm:$0xff]
        %v5839 = vld [vmem:[%s1205 + $0x22] sm:$0xff]
        %v5840 = vld [vmem:[%s1205 + $0x32] sm:$0xff]
        %v5841 = vld [vmem:[%s1205 + $0x3a] sm:$0xff]
        %v5842 = vld [vmem:[%s1205 + $0x4a] sm:$0xff]
        %v5843 = vld [vmem:[%s1205 + $0x52] sm:$0xff]
        %v5844 = vld [vmem:[%s1205 + $0x62] sm:$0xff]
        %v5845 = vld [vmem:[%s1205 + $0x6a] sm:$0xff]
        %v5846 = vld [vmem:[%s1205 + $0x7a] sm:$0xff]
        %v5847 = vld [vmem:[%s1205 + $0x82] sm:$0xff]
        %v5848 = vld [vmem:[%s1205 + $0x92] sm:$0xff]
        %v5849 = vld [vmem:[%s1205 + $0x9a] sm:$0xff]
        %v5850 = vld [vmem:[%s1205 + $0xaa] sm:$0xff]
        %v5851 = vld [vmem:[%s1205 + $0xb2] sm:$0xff]
        %v5852 = vld [vmem:[%s1205 + $0xc2] sm:$0xff]
        %v5853 = vld [vmem:[%s1205 + $0xca] sm:$0xff]
        %v5854 = vld [vmem:[%s1205 + $0xda] sm:$0xff]
        %v5855 = vld [vmem:[%s1205 + $0xe2] sm:$0xff]
        %v5856 = vld [vmem:[%s1205 + $0xf2] sm:$0xff]
        %v5857 = vld [vmem:[%s1205 + $0xfa] sm:$0xff]
        %v5858 = vld [vmem:[%s1205 + $0x10a] sm:$0xff]
        %v5859 = vld [vmem:[%s1205 + $0x112] sm:$0xff]
        %v5860 = vld [vmem:[%s1205 + $0x122] sm:$0xff]
        %v5861 = vld [vmem:[%s1205 + $0x12a] sm:$0xff]
        %v5862 = vld [vmem:[%s1205 + $0x13a] sm:$0xff]
        %v5863 = vld [vmem:[%s1205 + $0x142] sm:$0xff]
        %v5864 = vld [vmem:[%s1205 + $0x152] sm:$0xff]
        %v5865 = vld [vmem:[%s1205 + $0x15a] sm:$0xff]
        %v5866 = vld [vmem:[%s1205 + $0x16a] sm:$0xff]
        %v5867 = vld [vmem:[%s1205 + $0x172] sm:$0xff]
        %v5868 = vmax.f32 %v5804, %v5836
        %v5869 = vmax.f32 %v5805, %v5837
        %v5870 = vmax.f32 %v5806, %v5838
        %v5871 = vmax.f32 %v5807, %v5839
        %v5872 = vmax.f32 %v5808, %v5840
        %v5873 = vmax.f32 %v5809, %v5841
        %v5874 = vmax.f32 %v5810, %v5842
        %v5875 = vmax.f32 %v5811, %v5843
        %v5876 = vmax.f32 %v5812, %v5844
        %v5877 = vmax.f32 %v5813, %v5845
        %v5878 = vmax.f32 %v5814, %v5846
        %v5879 = vmax.f32 %v5815, %v5847
        %v5880 = vmax.f32 %v5816, %v5848
        %v5881 = vmax.f32 %v5817, %v5849
        %v5882 = vmax.f32 %v5818, %v5850
        %v5883 = vmax.f32 %v5819, %v5851
        %v5884 = vmax.f32 %v5820, %v5852
        %v5885 = vmax.f32 %v5821, %v5853
        %v5886 = vmax.f32 %v5822, %v5854
        %v5887 = vmax.f32 %v5823, %v5855
        %v5888 = vmax.f32 %v5824, %v5856
        %v5889 = vmax.f32 %v5825, %v5857
        %v5890 = vmax.f32 %v5826, %v5858
        %v5891 = vmax.f32 %v5827, %v5859
        %v5892 = vmax.f32 %v5828, %v5860
        %v5893 = vmax.f32 %v5829, %v5861
        %v5894 = vmax.f32 %v5830, %v5862
        %v5895 = vmax.f32 %v5831, %v5863
        %v5896 = vmax.f32 %v5832, %v5864
        %v5897 = vmax.f32 %v5833, %v5865
        %v5898 = vmax.f32 %v5834, %v5866
        %v5899 = vmax.f32 %v5835, %v5867
        %v5900 = vld [vmem:[%s1205 + $0x3] sm:$0xff]
        %v5901 = vld [vmem:[%s1205 + $0xb] sm:$0xff]
        %v5902 = vld [vmem:[%s1205 + $0x1b] sm:$0xff]
        %v5903 = vld [vmem:[%s1205 + $0x23] sm:$0xff]
        %v5904 = vld [vmem:[%s1205 + $0x33] sm:$0xff]
        %v5905 = vld [vmem:[%s1205 + $0x3b] sm:$0xff]
        %v5906 = vld [vmem:[%s1205 + $0x4b] sm:$0xff]
        %v5907 = vld [vmem:[%s1205 + $0x53] sm:$0xff]
        %v5908 = vld [vmem:[%s1205 + $0x63] sm:$0xff]
        %v5909 = vld [vmem:[%s1205 + $0x6b] sm:$0xff]
        %v5910 = vld [vmem:[%s1205 + $0x7b] sm:$0xff]
        %v5911 = vld [vmem:[%s1205 + $0x83] sm:$0xff]
        %v5912 = vld [vmem:[%s1205 + $0x93] sm:$0xff]
        %v5913 = vld [vmem:[%s1205 + $0x9b] sm:$0xff]
        %v5914 = vld [vmem:[%s1205 + $0xab] sm:$0xff]
        %v5915 = vld [vmem:[%s1205 + $0xb3] sm:$0xff]
        %v5916 = vld [vmem:[%s1205 + $0xc3] sm:$0xff]
        %v5917 = vld [vmem:[%s1205 + $0xcb] sm:$0xff]
        %v5918 = vld [vmem:[%s1205 + $0xdb] sm:$0xff]
        %v5919 = vld [vmem:[%s1205 + $0xe3] sm:$0xff]
        %v5920 = vld [vmem:[%s1205 + $0xf3] sm:$0xff]
        %v5921 = vld [vmem:[%s1205 + $0xfb] sm:$0xff]
        %v5922 = vld [vmem:[%s1205 + $0x10b] sm:$0xff]
        %v5923 = vld [vmem:[%s1205 + $0x113] sm:$0xff]
        %v5924 = vld [vmem:[%s1205 + $0x123] sm:$0xff]
        %v5925 = vld [vmem:[%s1205 + $0x12b] sm:$0xff]
        %v5926 = vld [vmem:[%s1205 + $0x13b] sm:$0xff]
        %v5927 = vld [vmem:[%s1205 + $0x143] sm:$0xff]
        %v5928 = vld [vmem:[%s1205 + $0x153] sm:$0xff]
        %v5929 = vld [vmem:[%s1205 + $0x15b] sm:$0xff]
        %v5930 = vld [vmem:[%s1205 + $0x16b] sm:$0xff]
        %v5931 = vld [vmem:[%s1205 + $0x173] sm:$0xff]
        %v5932 = vmax.f32 %v5868, %v5900
        %v5933 = vmax.f32 %v5869, %v5901
        %v5934 = vmax.f32 %v5870, %v5902
        %v5935 = vmax.f32 %v5871, %v5903
        %v5936 = vmax.f32 %v5872, %v5904
        %v5937 = vmax.f32 %v5873, %v5905
        %v5938 = vmax.f32 %v5874, %v5906
        %v5939 = vmax.f32 %v5875, %v5907
        %v5940 = vmax.f32 %v5876, %v5908
        %v5941 = vmax.f32 %v5877, %v5909
        %v5942 = vmax.f32 %v5878, %v5910
        %v5943 = vmax.f32 %v5879, %v5911
        %v5944 = vmax.f32 %v5880, %v5912
        %v5945 = vmax.f32 %v5881, %v5913
        %v5946 = vmax.f32 %v5882, %v5914
        %v5947 = vmax.f32 %v5883, %v5915
        %v5948 = vmax.f32 %v5884, %v5916
        %v5949 = vmax.f32 %v5885, %v5917
        %v5950 = vmax.f32 %v5886, %v5918
        %v5951 = vmax.f32 %v5887, %v5919
        %v5952 = vmax.f32 %v5888, %v5920
        %v5953 = vmax.f32 %v5889, %v5921
        %v5954 = vmax.f32 %v5890, %v5922
        %v5955 = vmax.f32 %v5891, %v5923
        %v5956 = vmax.f32 %v5892, %v5924
        %v5957 = vmax.f32 %v5893, %v5925
        %v5958 = vmax.f32 %v5894, %v5926
        %v5959 = vmax.f32 %v5895, %v5927
        %v5960 = vmax.f32 %v5896, %v5928
        %v5961 = vmax.f32 %v5897, %v5929
        %v5962 = vmax.f32 %v5898, %v5930
        %v5963 = vmax.f32 %v5899, %v5931
        %v5964 = vld [vmem:[%s1205 + $0x4] sm:$0xff]
        %v5965 = vld [vmem:[%s1205 + $0xc] sm:$0xff]
        %v5966 = vld [vmem:[%s1205 + $0x1c] sm:$0xff]
        %v5967 = vld [vmem:[%s1205 + $0x24] sm:$0xff]
        %v5968 = vld [vmem:[%s1205 + $0x34] sm:$0xff]
        %v5969 = vld [vmem:[%s1205 + $0x3c] sm:$0xff]
        %v5970 = vld [vmem:[%s1205 + $0x4c] sm:$0xff]
        %v5971 = vld [vmem:[%s1205 + $0x54] sm:$0xff]
        %v5972 = vld [vmem:[%s1205 + $0x64] sm:$0xff]
        %v5973 = vld [vmem:[%s1205 + $0x6c] sm:$0xff]
        %v5974 = vld [vmem:[%s1205 + $0x7c] sm:$0xff]
        %v5975 = vld [vmem:[%s1205 + $0x84] sm:$0xff]
        %v5976 = vld [vmem:[%s1205 + $0x94] sm:$0xff]
        %v5977 = vld [vmem:[%s1205 + $0x9c] sm:$0xff]
        %v5978 = vld [vmem:[%s1205 + $0xac] sm:$0xff]
        %v5979 = vld [vmem:[%s1205 + $0xb4] sm:$0xff]
        %v5980 = vld [vmem:[%s1205 + $0xc4] sm:$0xff]
        %v5981 = vld [vmem:[%s1205 + $0xcc] sm:$0xff]
        %v5982 = vld [vmem:[%s1205 + $0xdc] sm:$0xff]
        %v5983 = vld [vmem:[%s1205 + $0xe4] sm:$0xff]
        %v5984 = vld [vmem:[%s1205 + $0xf4] sm:$0xff]
        %v5985 = vld [vmem:[%s1205 + $0xfc] sm:$0xff]
        %v5986 = vld [vmem:[%s1205 + $0x10c] sm:$0xff]
        %v5987 = vld [vmem:[%s1205 + $0x114] sm:$0xff]
        %v5988 = vld [vmem:[%s1205 + $0x124] sm:$0xff]
        %v5989 = vld [vmem:[%s1205 + $0x12c] sm:$0xff]
        %v5990 = vld [vmem:[%s1205 + $0x13c] sm:$0xff]
        %v5991 = vld [vmem:[%s1205 + $0x144] sm:$0xff]
        %v5992 = vld [vmem:[%s1205 + $0x154] sm:$0xff]
        %v5993 = vld [vmem:[%s1205 + $0x15c] sm:$0xff]
        %v5994 = vld [vmem:[%s1205 + $0x16c] sm:$0xff]
        %v5995 = vld [vmem:[%s1205 + $0x174] sm:$0xff]
        %v5996 = vmax.f32 %v5932, %v5964
        %v5997 = vmax.f32 %v5933, %v5965
        %v5998 = vmax.f32 %v5934, %v5966
        %v5999 = vmax.f32 %v5935, %v5967
        %v6000 = vmax.f32 %v5936, %v5968
        %v6001 = vmax.f32 %v5937, %v5969
        %v6002 = vmax.f32 %v5938, %v5970
        %v6003 = vmax.f32 %v5939, %v5971
        %v6004 = vmax.f32 %v5940, %v5972
        %v6005 = vmax.f32 %v5941, %v5973
        %v6006 = vmax.f32 %v5942, %v5974
        %v6007 = vmax.f32 %v5943, %v5975
        %v6008 = vmax.f32 %v5944, %v5976
        %v6009 = vmax.f32 %v5945, %v5977
        %v6010 = vmax.f32 %v5946, %v5978
        %v6011 = vmax.f32 %v5947, %v5979
        %v6012 = vmax.f32 %v5948, %v5980
        %v6013 = vmax.f32 %v5949, %v5981
        %v6014 = vmax.f32 %v5950, %v5982
        %v6015 = vmax.f32 %v5951, %v5983
        %v6016 = vmax.f32 %v5952, %v5984
        %v6017 = vmax.f32 %v5953, %v5985
        %v6018 = vmax.f32 %v5954, %v5986
        %v6019 = vmax.f32 %v5955, %v5987
        %v6020 = vmax.f32 %v5956, %v5988
        %v6021 = vmax.f32 %v5957, %v5989
        %v6022 = vmax.f32 %v5958, %v5990
        %v6023 = vmax.f32 %v5959, %v5991
        %v6024 = vmax.f32 %v5960, %v5992
        %v6025 = vmax.f32 %v5961, %v5993
        %v6026 = vmax.f32 %v5962, %v5994
        %v6027 = vmax.f32 %v5963, %v5995
        %v6028 = vld [vmem:[%s2167] sm:$0xff]
        %v6029 = vld [vmem:[%s2167 + $0x8] sm:$0xff]
        %v6030 = vld [vmem:[%s2167 + $0x18] sm:$0xff]
        %v6031 = vld [vmem:[%s2167 + $0x20] sm:$0xff]
        %v6032 = vld [vmem:[%s2167 + $0x30] sm:$0xff]
        %v6033 = vld [vmem:[%s2167 + $0x38] sm:$0xff]
        %v6034 = vld [vmem:[%s2167 + $0x48] sm:$0xff]
        %v6035 = vld [vmem:[%s2167 + $0x50] sm:$0xff]
        %v6036 = vld [vmem:[%s2167 + $0x60] sm:$0xff]
        %v6037 = vld [vmem:[%s2167 + $0x68] sm:$0xff]
        %v6038 = vld [vmem:[%s2167 + $0x78] sm:$0xff]
        %v6039 = vld [vmem:[%s2167 + $0x80] sm:$0xff]
        %v6040 = vld [vmem:[%s2167 + $0x90] sm:$0xff]
        %v6041 = vld [vmem:[%s2167 + $0x98] sm:$0xff]
        %v6042 = vld [vmem:[%s2167 + $0xa8] sm:$0xff]
        %v6043 = vld [vmem:[%s2167 + $0xb0] sm:$0xff]
        %v6044 = vld [vmem:[%s2167 + $0xc0] sm:$0xff]
        %v6045 = vld [vmem:[%s2167 + $0xc8] sm:$0xff]
        %v6046 = vld [vmem:[%s2167 + $0xd8] sm:$0xff]
        %v6047 = vld [vmem:[%s2167 + $0xe0] sm:$0xff]
        %v6048 = vld [vmem:[%s2167 + $0xf0] sm:$0xff]
        %v6049 = vld [vmem:[%s2167 + $0xf8] sm:$0xff]
        %v6050 = vld [vmem:[%s2167 + $0x108] sm:$0xff]
        %v6051 = vld [vmem:[%s2167 + $0x110] sm:$0xff]
        %v6052 = vld [vmem:[%s2167 + $0x120] sm:$0xff]
        %v6053 = vld [vmem:[%s2167 + $0x128] sm:$0xff]
        %v6054 = vld [vmem:[%s2167 + $0x138] sm:$0xff]
        %v6055 = vld [vmem:[%s2167 + $0x140] sm:$0xff]
        %v6056 = vld [vmem:[%s2167 + $0x150] sm:$0xff]
        %v6057 = vld [vmem:[%s2167 + $0x158] sm:$0xff]
        %v6058 = vld [vmem:[%s2167 + $0x168] sm:$0xff]
        %v6059 = vld [vmem:[%s2167 + $0x170] sm:$0xff]
        %v6060 = vmax.f32 %v5996, %v6028
        %v6061 = vmax.f32 %v5997, %v6029
        %v6062 = vmax.f32 %v5998, %v6030
        %v6063 = vmax.f32 %v5999, %v6031
        %v6064 = vmax.f32 %v6000, %v6032
        %v6065 = vmax.f32 %v6001, %v6033
        %v6066 = vmax.f32 %v6002, %v6034
        %v6067 = vmax.f32 %v6003, %v6035
        %v6068 = vmax.f32 %v6004, %v6036
        %v6069 = vmax.f32 %v6005, %v6037
        %v6070 = vmax.f32 %v6006, %v6038
        %v6071 = vmax.f32 %v6007, %v6039
        %v6072 = vmax.f32 %v6008, %v6040
        %v6073 = vmax.f32 %v6009, %v6041
        %v6074 = vmax.f32 %v6010, %v6042
        %v6075 = vmax.f32 %v6011, %v6043
        %v6076 = vmax.f32 %v6012, %v6044
        %v6077 = vmax.f32 %v6013, %v6045
        %v6078 = vmax.f32 %v6014, %v6046
        %v6079 = vmax.f32 %v6015, %v6047
        %v6080 = vmax.f32 %v6016, %v6048
        %v6081 = vmax.f32 %v6017, %v6049
        %v6082 = vmax.f32 %v6018, %v6050
        %v6083 = vmax.f32 %v6019, %v6051
        %v6084 = vmax.f32 %v6020, %v6052
        %v6085 = vmax.f32 %v6021, %v6053
        %v6086 = vmax.f32 %v6022, %v6054
        %v6087 = vmax.f32 %v6023, %v6055
        %v6088 = vmax.f32 %v6024, %v6056
        %v6089 = vmax.f32 %v6025, %v6057
        %v6090 = vmax.f32 %v6026, %v6058
        %v6091 = vmax.f32 %v6027, %v6059
        %v6092 = vld [vmem:[%s2167 + $0x1] sm:$0xff]
        %v6093 = vld [vmem:[%s2167 + $0x9] sm:$0xff]
        %v6094 = vld [vmem:[%s2167 + $0x19] sm:$0xff]
        %v6095 = vld [vmem:[%s2167 + $0x21] sm:$0xff]
        %v6096 = vld [vmem:[%s2167 + $0x31] sm:$0xff]
        %v6097 = vld [vmem:[%s2167 + $0x39] sm:$0xff]
        %v6098 = vld [vmem:[%s2167 + $0x49] sm:$0xff]
        %v6099 = vld [vmem:[%s2167 + $0x51] sm:$0xff]
        %v6100 = vld [vmem:[%s2167 + $0x61] sm:$0xff]
        %v6101 = vld [vmem:[%s2167 + $0x69] sm:$0xff]
        %v6102 = vld [vmem:[%s2167 + $0x79] sm:$0xff]
        %v6103 = vld [vmem:[%s2167 + $0x81] sm:$0xff]
        %v6104 = vld [vmem:[%s2167 + $0x91] sm:$0xff]
        %v6105 = vld [vmem:[%s2167 + $0x99] sm:$0xff]
        %v6106 = vld [vmem:[%s2167 + $0xa9] sm:$0xff]
        %v6107 = vld [vmem:[%s2167 + $0xb1] sm:$0xff]
        %v6108 = vld [vmem:[%s2167 + $0xc1] sm:$0xff]
        %v6109 = vld [vmem:[%s2167 + $0xc9] sm:$0xff]
        %v6110 = vld [vmem:[%s2167 + $0xd9] sm:$0xff]
        %v6111 = vld [vmem:[%s2167 + $0xe1] sm:$0xff]
        %v6112 = vld [vmem:[%s2167 + $0xf1] sm:$0xff]
        %v6113 = vld [vmem:[%s2167 + $0xf9] sm:$0xff]
        %v6114 = vld [vmem:[%s2167 + $0x109] sm:$0xff]
        %v6115 = vld [vmem:[%s2167 + $0x111] sm:$0xff]
        %v6116 = vld [vmem:[%s2167 + $0x121] sm:$0xff]
        %v6117 = vld [vmem:[%s2167 + $0x129] sm:$0xff]
        %v6118 = vld [vmem:[%s2167 + $0x139] sm:$0xff]
        %v6119 = vld [vmem:[%s2167 + $0x141] sm:$0xff]
        %v6120 = vld [vmem:[%s2167 + $0x151] sm:$0xff]
        %v6121 = vld [vmem:[%s2167 + $0x159] sm:$0xff]
        %v6122 = vld [vmem:[%s2167 + $0x169] sm:$0xff]
        %v6123 = vld [vmem:[%s2167 + $0x171] sm:$0xff]
        %v6124 = vmax.f32 %v6060, %v6092
        %v6125 = vmax.f32 %v6061, %v6093
        %v6126 = vmax.f32 %v6062, %v6094
        %v6127 = vmax.f32 %v6063, %v6095
        %v6128 = vmax.f32 %v6064, %v6096
        %v6129 = vmax.f32 %v6065, %v6097
        %v6130 = vmax.f32 %v6066, %v6098
        %v6131 = vmax.f32 %v6067, %v6099
        %v6132 = vmax.f32 %v6068, %v6100
        %v6133 = vmax.f32 %v6069, %v6101
        %v6134 = vmax.f32 %v6070, %v6102
        %v6135 = vmax.f32 %v6071, %v6103
        %v6136 = vmax.f32 %v6072, %v6104
        %v6137 = vmax.f32 %v6073, %v6105
        %v6138 = vmax.f32 %v6074, %v6106
        %v6139 = vmax.f32 %v6075, %v6107
        %v6140 = vmax.f32 %v6076, %v6108
        %v6141 = vmax.f32 %v6077, %v6109
        %v6142 = vmax.f32 %v6078, %v6110
        %v6143 = vmax.f32 %v6079, %v6111
        %v6144 = vmax.f32 %v6080, %v6112
        %v6145 = vmax.f32 %v6081, %v6113
        %v6146 = vmax.f32 %v6082, %v6114
        %v6147 = vmax.f32 %v6083, %v6115
        %v6148 = vmax.f32 %v6084, %v6116
        %v6149 = vmax.f32 %v6085, %v6117
        %v6150 = vmax.f32 %v6086, %v6118
        %v6151 = vmax.f32 %v6087, %v6119
        %v6152 = vmax.f32 %v6088, %v6120
        %v6153 = vmax.f32 %v6089, %v6121
        %v6154 = vmax.f32 %v6090, %v6122
        %v6155 = vmax.f32 %v6091, %v6123
        %v6156 = vld [vmem:[%s2167 + $0x2] sm:$0xff]
        %v6157 = vld [vmem:[%s2167 + $0xa] sm:$0xff]
        %v6158 = vld [vmem:[%s2167 + $0x1a] sm:$0xff]
        %v6159 = vld [vmem:[%s2167 + $0x22] sm:$0xff]
        %v6160 = vld [vmem:[%s2167 + $0x32] sm:$0xff]
        %v6161 = vld [vmem:[%s2167 + $0x3a] sm:$0xff]
        %v6162 = vld [vmem:[%s2167 + $0x4a] sm:$0xff]
        %v6163 = vld [vmem:[%s2167 + $0x52] sm:$0xff]
        %v6164 = vld [vmem:[%s2167 + $0x62] sm:$0xff]
        %v6165 = vld [vmem:[%s2167 + $0x6a] sm:$0xff]
        %v6166 = vld [vmem:[%s2167 + $0x7a] sm:$0xff]
        %v6167 = vld [vmem:[%s2167 + $0x82] sm:$0xff]
        %v6168 = vld [vmem:[%s2167 + $0x92] sm:$0xff]
        %v6169 = vld [vmem:[%s2167 + $0x9a] sm:$0xff]
        %v6170 = vld [vmem:[%s2167 + $0xaa] sm:$0xff]
        %v6171 = vld [vmem:[%s2167 + $0xb2] sm:$0xff]
        %v6172 = vld [vmem:[%s2167 + $0xc2] sm:$0xff]
        %v6173 = vld [vmem:[%s2167 + $0xca] sm:$0xff]
        %v6174 = vld [vmem:[%s2167 + $0xda] sm:$0xff]
        %v6175 = vld [vmem:[%s2167 + $0xe2] sm:$0xff]
        %v6176 = vld [vmem:[%s2167 + $0xf2] sm:$0xff]
        %v6177 = vld [vmem:[%s2167 + $0xfa] sm:$0xff]
        %v6178 = vld [vmem:[%s2167 + $0x10a] sm:$0xff]
        %v6179 = vld [vmem:[%s2167 + $0x112] sm:$0xff]
        %v6180 = vld [vmem:[%s2167 + $0x122] sm:$0xff]
        %v6181 = vld [vmem:[%s2167 + $0x12a] sm:$0xff]
        %v6182 = vld [vmem:[%s2167 + $0x13a] sm:$0xff]
        %v6183 = vld [vmem:[%s2167 + $0x142] sm:$0xff]
        %v6184 = vld [vmem:[%s2167 + $0x152] sm:$0xff]
        %v6185 = vld [vmem:[%s2167 + $0x15a] sm:$0xff]
        %v6186 = vld [vmem:[%s2167 + $0x16a] sm:$0xff]
        %v6187 = vld [vmem:[%s2167 + $0x172] sm:$0xff]
        %v6188 = vmax.f32 %v6124, %v6156
        %v6189 = vmax.f32 %v6125, %v6157
        %v6190 = vmax.f32 %v6126, %v6158
        %v6191 = vmax.f32 %v6127, %v6159
        %v6192 = vmax.f32 %v6128, %v6160
        %v6193 = vmax.f32 %v6129, %v6161
        %v6194 = vmax.f32 %v6130, %v6162
        %v6195 = vmax.f32 %v6131, %v6163
        %v6196 = vmax.f32 %v6132, %v6164
        %v6197 = vmax.f32 %v6133, %v6165
        %v6198 = vmax.f32 %v6134, %v6166
        %v6199 = vmax.f32 %v6135, %v6167
        %v6200 = vmax.f32 %v6136, %v6168
        %v6201 = vmax.f32 %v6137, %v6169
        %v6202 = vmax.f32 %v6138, %v6170
        %v6203 = vmax.f32 %v6139, %v6171
        %v6204 = vmax.f32 %v6140, %v6172
        %v6205 = vmax.f32 %v6141, %v6173
        %v6206 = vmax.f32 %v6142, %v6174
        %v6207 = vmax.f32 %v6143, %v6175
        %v6208 = vmax.f32 %v6144, %v6176
        %v6209 = vmax.f32 %v6145, %v6177
        %v6210 = vmax.f32 %v6146, %v6178
        %v6211 = vmax.f32 %v6147, %v6179
        %v6212 = vmax.f32 %v6148, %v6180
        %v6213 = vmax.f32 %v6149, %v6181
        %v6214 = vmax.f32 %v6150, %v6182
        %v6215 = vmax.f32 %v6151, %v6183
        %v6216 = vmax.f32 %v6152, %v6184
        %v6217 = vmax.f32 %v6153, %v6185
        %v6218 = vmax.f32 %v6154, %v6186
        %v6219 = vmax.f32 %v6155, %v6187
        %v6220 = vld [vmem:[%s2167 + $0x3] sm:$0xff]
        %v6221 = vld [vmem:[%s2167 + $0xb] sm:$0xff]
        %v6222 = vld [vmem:[%s2167 + $0x1b] sm:$0xff]
        %v6223 = vld [vmem:[%s2167 + $0x23] sm:$0xff]
        %v6224 = vld [vmem:[%s2167 + $0x33] sm:$0xff]
        %v6225 = vld [vmem:[%s2167 + $0x3b] sm:$0xff]
        %v6226 = vld [vmem:[%s2167 + $0x4b] sm:$0xff]
        %v6227 = vld [vmem:[%s2167 + $0x53] sm:$0xff]
        %v6228 = vld [vmem:[%s2167 + $0x63] sm:$0xff]
        %v6229 = vld [vmem:[%s2167 + $0x6b] sm:$0xff]
        %v6230 = vld [vmem:[%s2167 + $0x7b] sm:$0xff]
        %v6231 = vld [vmem:[%s2167 + $0x83] sm:$0xff]
        %v6232 = vld [vmem:[%s2167 + $0x93] sm:$0xff]
        %v6233 = vld [vmem:[%s2167 + $0x9b] sm:$0xff]
        %v6234 = vld [vmem:[%s2167 + $0xab] sm:$0xff]
        %v6235 = vld [vmem:[%s2167 + $0xb3] sm:$0xff]
        %v6236 = vld [vmem:[%s2167 + $0xc3] sm:$0xff]
        %v6237 = vld [vmem:[%s2167 + $0xcb] sm:$0xff]
        %v6238 = vld [vmem:[%s2167 + $0xdb] sm:$0xff]
        %v6239 = vld [vmem:[%s2167 + $0xe3] sm:$0xff]
        %v6240 = vld [vmem:[%s2167 + $0xf3] sm:$0xff]
        %v6241 = vld [vmem:[%s2167 + $0xfb] sm:$0xff]
        %v6242 = vld [vmem:[%s2167 + $0x10b] sm:$0xff]
        %v6243 = vld [vmem:[%s2167 + $0x113] sm:$0xff]
        %v6244 = vld [vmem:[%s2167 + $0x123] sm:$0xff]
        %v6245 = vld [vmem:[%s2167 + $0x12b] sm:$0xff]
        %v6246 = vld [vmem:[%s2167 + $0x13b] sm:$0xff]
        %v6247 = vld [vmem:[%s2167 + $0x143] sm:$0xff]
        %v6248 = vld [vmem:[%s2167 + $0x153] sm:$0xff]
        %v6249 = vld [vmem:[%s2167 + $0x15b] sm:$0xff]
        %v6250 = vld [vmem:[%s2167 + $0x16b] sm:$0xff]
        %v6251 = vld [vmem:[%s2167 + $0x173] sm:$0xff]
        %v6252 = vmax.f32 %v6188, %v6220
        %v6253 = vmax.f32 %v6189, %v6221
        %v6254 = vmax.f32 %v6190, %v6222
        %v6255 = vmax.f32 %v6191, %v6223
        %v6256 = vmax.f32 %v6192, %v6224
        %v6257 = vmax.f32 %v6193, %v6225
        %v6258 = vmax.f32 %v6194, %v6226
        %v6259 = vmax.f32 %v6195, %v6227
        %v6260 = vmax.f32 %v6196, %v6228
        %v6261 = vmax.f32 %v6197, %v6229
        %v6262 = vmax.f32 %v6198, %v6230
        %v6263 = vmax.f32 %v6199, %v6231
        %v6264 = vmax.f32 %v6200, %v6232
        %v6265 = vmax.f32 %v6201, %v6233
        %v6266 = vmax.f32 %v6202, %v6234
        %v6267 = vmax.f32 %v6203, %v6235
        %v6268 = vmax.f32 %v6204, %v6236
        %v6269 = vmax.f32 %v6205, %v6237
        %v6270 = vmax.f32 %v6206, %v6238
        %v6271 = vmax.f32 %v6207, %v6239
        %v6272 = vmax.f32 %v6208, %v6240
        %v6273 = vmax.f32 %v6209, %v6241
        %v6274 = vmax.f32 %v6210, %v6242
        %v6275 = vmax.f32 %v6211, %v6243
        %v6276 = vmax.f32 %v6212, %v6244
        %v6277 = vmax.f32 %v6213, %v6245
        %v6278 = vmax.f32 %v6214, %v6246
        %v6279 = vmax.f32 %v6215, %v6247
        %v6280 = vmax.f32 %v6216, %v6248
        %v6281 = vmax.f32 %v6217, %v6249
        %v6282 = vmax.f32 %v6218, %v6250
        %v6283 = vmax.f32 %v6219, %v6251
        %v6284 = vld [vmem:[%s2167 + $0x4] sm:$0xff]
        %v6285 = vld [vmem:[%s2167 + $0xc] sm:$0xff]
        %v6286 = vld [vmem:[%s2167 + $0x1c] sm:$0xff]
        %v6287 = vld [vmem:[%s2167 + $0x24] sm:$0xff]
        %v6288 = vld [vmem:[%s2167 + $0x34] sm:$0xff]
        %v6289 = vld [vmem:[%s2167 + $0x3c] sm:$0xff]
        %v6290 = vld [vmem:[%s2167 + $0x4c] sm:$0xff]
        %v6291 = vld [vmem:[%s2167 + $0x54] sm:$0xff]
        %v6292 = vld [vmem:[%s2167 + $0x64] sm:$0xff]
        %v6293 = vld [vmem:[%s2167 + $0x6c] sm:$0xff]
        %v6294 = vld [vmem:[%s2167 + $0x7c] sm:$0xff]
        %v6295 = vld [vmem:[%s2167 + $0x84] sm:$0xff]
        %v6296 = vld [vmem:[%s2167 + $0x94] sm:$0xff]
        %v6297 = vld [vmem:[%s2167 + $0x9c] sm:$0xff]
        %v6298 = vld [vmem:[%s2167 + $0xac] sm:$0xff]
        %v6299 = vld [vmem:[%s2167 + $0xb4] sm:$0xff]
        %v6300 = vld [vmem:[%s2167 + $0xc4] sm:$0xff]
        %v6301 = vld [vmem:[%s2167 + $0xcc] sm:$0xff]
        %v6302 = vld [vmem:[%s2167 + $0xdc] sm:$0xff]
        %v6303 = vld [vmem:[%s2167 + $0xe4] sm:$0xff]
        %v6304 = vld [vmem:[%s2167 + $0xf4] sm:$0xff]
        %v6305 = vld [vmem:[%s2167 + $0xfc] sm:$0xff]
        %v6306 = vld [vmem:[%s2167 + $0x10c] sm:$0xff]
        %v6307 = vld [vmem:[%s2167 + $0x114] sm:$0xff]
        %v6308 = vld [vmem:[%s2167 + $0x124] sm:$0xff]
        %v6309 = vld [vmem:[%s2167 + $0x12c] sm:$0xff]
        %v6310 = vld [vmem:[%s2167 + $0x13c] sm:$0xff]
        %v6311 = vld [vmem:[%s2167 + $0x144] sm:$0xff]
        %v6312 = vld [vmem:[%s2167 + $0x154] sm:$0xff]
        %v6313 = vld [vmem:[%s2167 + $0x15c] sm:$0xff]
        %v6314 = vld [vmem:[%s2167 + $0x16c] sm:$0xff]
        %v6315 = vld [vmem:[%s2167 + $0x174] sm:$0xff]
        %v6316 = vmax.f32 %v6252, %v6284
        %v6317 = vmax.f32 %v6253, %v6285
        %v6318 = vmax.f32 %v6254, %v6286
        %v6319 = vmax.f32 %v6255, %v6287
        %v6320 = vmax.f32 %v6256, %v6288
        %v6321 = vmax.f32 %v6257, %v6289
        %v6322 = vmax.f32 %v6258, %v6290
        %v6323 = vmax.f32 %v6259, %v6291
        %v6324 = vmax.f32 %v6260, %v6292
        %v6325 = vmax.f32 %v6261, %v6293
        %v6326 = vmax.f32 %v6262, %v6294
        %v6327 = vmax.f32 %v6263, %v6295
        %v6328 = vmax.f32 %v6264, %v6296
        %v6329 = vmax.f32 %v6265, %v6297
        %v6330 = vmax.f32 %v6266, %v6298
        %v6331 = vmax.f32 %v6267, %v6299
        %v6332 = vmax.f32 %v6268, %v6300
        %v6333 = vmax.f32 %v6269, %v6301
        %v6334 = vmax.f32 %v6270, %v6302
        %v6335 = vmax.f32 %v6271, %v6303
        %v6336 = vmax.f32 %v6272, %v6304
        %v6337 = vmax.f32 %v6273, %v6305
        %v6338 = vmax.f32 %v6274, %v6306
        %v6339 = vmax.f32 %v6275, %v6307
        %v6340 = vmax.f32 %v6276, %v6308
        %v6341 = vmax.f32 %v6277, %v6309
        %v6342 = vmax.f32 %v6278, %v6310
        %v6343 = vmax.f32 %v6279, %v6311
        %v6344 = vmax.f32 %v6280, %v6312
        %v6345 = vmax.f32 %v6281, %v6313
        %v6346 = vmax.f32 %v6282, %v6314
        %v6347 = vmax.f32 %v6283, %v6315
        %v6348 = vld [vmem:[%s2488] sm:$0xff]
        %v6349 = vld [vmem:[%s2488 + $0x8] sm:$0xff]
        %v6350 = vld [vmem:[%s2488 + $0x18] sm:$0xff]
        %v6351 = vld [vmem:[%s2488 + $0x20] sm:$0xff]
        %v6352 = vld [vmem:[%s2488 + $0x30] sm:$0xff]
        %v6353 = vld [vmem:[%s2488 + $0x38] sm:$0xff]
        %v6354 = vld [vmem:[%s2488 + $0x48] sm:$0xff]
        %v6355 = vld [vmem:[%s2488 + $0x50] sm:$0xff]
        %v6356 = vld [vmem:[%s2488 + $0x60] sm:$0xff]
        %v6357 = vld [vmem:[%s2488 + $0x68] sm:$0xff]
        %v6358 = vld [vmem:[%s2488 + $0x78] sm:$0xff]
        %v6359 = vld [vmem:[%s2488 + $0x80] sm:$0xff]
        %v6360 = vld [vmem:[%s2488 + $0x90] sm:$0xff]
        %v6361 = vld [vmem:[%s2488 + $0x98] sm:$0xff]
        %v6362 = vld [vmem:[%s2488 + $0xa8] sm:$0xff]
        %v6363 = vld [vmem:[%s2488 + $0xb0] sm:$0xff]
        %v6364 = vld [vmem:[%s2488 + $0xc0] sm:$0xff]
        %v6365 = vld [vmem:[%s2488 + $0xc8] sm:$0xff]
        %v6366 = vld [vmem:[%s2488 + $0xd8] sm:$0xff]
        %v6367 = vld [vmem:[%s2488 + $0xe0] sm:$0xff]
        %v6368 = vld [vmem:[%s2488 + $0xf0] sm:$0xff]
        %v6369 = vld [vmem:[%s2488 + $0xf8] sm:$0xff]
        %v6370 = vld [vmem:[%s2488 + $0x108] sm:$0xff]
        %v6371 = vld [vmem:[%s2488 + $0x110] sm:$0xff]
        %v6372 = vld [vmem:[%s2488 + $0x120] sm:$0xff]
        %v6373 = vld [vmem:[%s2488 + $0x128] sm:$0xff]
        %v6374 = vld [vmem:[%s2488 + $0x138] sm:$0xff]
        %v6375 = vld [vmem:[%s2488 + $0x140] sm:$0xff]
        %v6376 = vld [vmem:[%s2488 + $0x150] sm:$0xff]
        %v6377 = vld [vmem:[%s2488 + $0x158] sm:$0xff]
        %v6378 = vld [vmem:[%s2488 + $0x168] sm:$0xff]
        %v6379 = vld [vmem:[%s2488 + $0x170] sm:$0xff]
        %v6380 = vmax.f32 %v6316, %v6348
        %v6381 = vmax.f32 %v6317, %v6349
        %v6382 = vmax.f32 %v6318, %v6350
        %v6383 = vmax.f32 %v6319, %v6351
        %v6384 = vmax.f32 %v6320, %v6352
        %v6385 = vmax.f32 %v6321, %v6353
        %v6386 = vmax.f32 %v6322, %v6354
        %v6387 = vmax.f32 %v6323, %v6355
        %v6388 = vmax.f32 %v6324, %v6356
        %v6389 = vmax.f32 %v6325, %v6357
        %v6390 = vmax.f32 %v6326, %v6358
        %v6391 = vmax.f32 %v6327, %v6359
        %v6392 = vmax.f32 %v6328, %v6360
        %v6393 = vmax.f32 %v6329, %v6361
        %v6394 = vmax.f32 %v6330, %v6362
        %v6395 = vmax.f32 %v6331, %v6363
        %v6396 = vmax.f32 %v6332, %v6364
        %v6397 = vmax.f32 %v6333, %v6365
        %v6398 = vmax.f32 %v6334, %v6366
        %v6399 = vmax.f32 %v6335, %v6367
        %v6400 = vmax.f32 %v6336, %v6368
        %v6401 = vmax.f32 %v6337, %v6369
        %v6402 = vmax.f32 %v6338, %v6370
        %v6403 = vmax.f32 %v6339, %v6371
        %v6404 = vmax.f32 %v6340, %v6372
        %v6405 = vmax.f32 %v6341, %v6373
        %v6406 = vmax.f32 %v6342, %v6374
        %v6407 = vmax.f32 %v6343, %v6375
        %v6408 = vmax.f32 %v6344, %v6376
        %v6409 = vmax.f32 %v6345, %v6377
        %v6410 = vmax.f32 %v6346, %v6378
        %v6411 = vmax.f32 %v6347, %v6379
        %v6412 = vld [vmem:[%s2488 + $0x1] sm:$0xff]
        %v6413 = vld [vmem:[%s2488 + $0x9] sm:$0xff]
        %v6414 = vld [vmem:[%s2488 + $0x19] sm:$0xff]
        %v6415 = vld [vmem:[%s2488 + $0x21] sm:$0xff]
        %v6416 = vld [vmem:[%s2488 + $0x31] sm:$0xff]
        %v6417 = vld [vmem:[%s2488 + $0x39] sm:$0xff]
        %v6418 = vld [vmem:[%s2488 + $0x49] sm:$0xff]
        %v6419 = vld [vmem:[%s2488 + $0x51] sm:$0xff]
        %v6420 = vld [vmem:[%s2488 + $0x61] sm:$0xff]
        %v6421 = vld [vmem:[%s2488 + $0x69] sm:$0xff]
        %v6422 = vld [vmem:[%s2488 + $0x79] sm:$0xff]
        %v6423 = vld [vmem:[%s2488 + $0x81] sm:$0xff]
        %v6424 = vld [vmem:[%s2488 + $0x91] sm:$0xff]
        %v6425 = vld [vmem:[%s2488 + $0x99] sm:$0xff]
        %v6426 = vld [vmem:[%s2488 + $0xa9] sm:$0xff]
        %v6427 = vld [vmem:[%s2488 + $0xb1] sm:$0xff]
        %v6428 = vld [vmem:[%s2488 + $0xc1] sm:$0xff]
        %v6429 = vld [vmem:[%s2488 + $0xc9] sm:$0xff]
        %v6430 = vld [vmem:[%s2488 + $0xd9] sm:$0xff]
        %v6431 = vld [vmem:[%s2488 + $0xe1] sm:$0xff]
        %v6432 = vld [vmem:[%s2488 + $0xf1] sm:$0xff]
        %v6433 = vld [vmem:[%s2488 + $0xf9] sm:$0xff]
        %v6434 = vld [vmem:[%s2488 + $0x109] sm:$0xff]
        %v6435 = vld [vmem:[%s2488 + $0x111] sm:$0xff]
        %v6436 = vld [vmem:[%s2488 + $0x121] sm:$0xff]
        %v6437 = vld [vmem:[%s2488 + $0x129] sm:$0xff]
        %v6438 = vld [vmem:[%s2488 + $0x139] sm:$0xff]
        %v6439 = vld [vmem:[%s2488 + $0x141] sm:$0xff]
        %v6440 = vld [vmem:[%s2488 + $0x151] sm:$0xff]
        %v6441 = vld [vmem:[%s2488 + $0x159] sm:$0xff]
        %v6442 = vld [vmem:[%s2488 + $0x169] sm:$0xff]
        %v6443 = vld [vmem:[%s2488 + $0x171] sm:$0xff]
        %v6444 = vmax.f32 %v6380, %v6412
        %v6445 = vmax.f32 %v6381, %v6413
        %v6446 = vmax.f32 %v6382, %v6414
        %v6447 = vmax.f32 %v6383, %v6415
        %v6448 = vmax.f32 %v6384, %v6416
        %v6449 = vmax.f32 %v6385, %v6417
        %v6450 = vmax.f32 %v6386, %v6418
        %v6451 = vmax.f32 %v6387, %v6419
        %v6452 = vmax.f32 %v6388, %v6420
        %v6453 = vmax.f32 %v6389, %v6421
        %v6454 = vmax.f32 %v6390, %v6422
        %v6455 = vmax.f32 %v6391, %v6423
        %v6456 = vmax.f32 %v6392, %v6424
        %v6457 = vmax.f32 %v6393, %v6425
        %v6458 = vmax.f32 %v6394, %v6426
        %v6459 = vmax.f32 %v6395, %v6427
        %v6460 = vmax.f32 %v6396, %v6428
        %v6461 = vmax.f32 %v6397, %v6429
        %v6462 = vmax.f32 %v6398, %v6430
        %v6463 = vmax.f32 %v6399, %v6431
        %v6464 = vmax.f32 %v6400, %v6432
        %v6465 = vmax.f32 %v6401, %v6433
        %v6466 = vmax.f32 %v6402, %v6434
        %v6467 = vmax.f32 %v6403, %v6435
        %v6468 = vmax.f32 %v6404, %v6436
        %v6469 = vmax.f32 %v6405, %v6437
        %v6470 = vmax.f32 %v6406, %v6438
        %v6471 = vmax.f32 %v6407, %v6439
        %v6472 = vmax.f32 %v6408, %v6440
        %v6473 = vmax.f32 %v6409, %v6441
        %v6474 = vmax.f32 %v6410, %v6442
        %v6475 = vmax.f32 %v6411, %v6443
        %v6476 = vld [vmem:[%s2488 + $0x2] sm:$0xff]
        %v6477 = vld [vmem:[%s2488 + $0xa] sm:$0xff]
        %v6478 = vld [vmem:[%s2488 + $0x1a] sm:$0xff]
        %v6479 = vld [vmem:[%s2488 + $0x22] sm:$0xff]
        %v6480 = vld [vmem:[%s2488 + $0x32] sm:$0xff]
        %v6481 = vld [vmem:[%s2488 + $0x3a] sm:$0xff]
        %v6482 = vld [vmem:[%s2488 + $0x4a] sm:$0xff]
        %v6483 = vld [vmem:[%s2488 + $0x52] sm:$0xff]
        %v6484 = vld [vmem:[%s2488 + $0x62] sm:$0xff]
        %v6485 = vld [vmem:[%s2488 + $0x6a] sm:$0xff]
        %v6486 = vld [vmem:[%s2488 + $0x7a] sm:$0xff]
        %v6487 = vld [vmem:[%s2488 + $0x82] sm:$0xff]
        %v6488 = vld [vmem:[%s2488 + $0x92] sm:$0xff]
        %v6489 = vld [vmem:[%s2488 + $0x9a] sm:$0xff]
        %v6490 = vld [vmem:[%s2488 + $0xaa] sm:$0xff]
        %v6491 = vld [vmem:[%s2488 + $0xb2] sm:$0xff]
        %v6492 = vld [vmem:[%s2488 + $0xc2] sm:$0xff]
        %v6493 = vld [vmem:[%s2488 + $0xca] sm:$0xff]
        %v6494 = vld [vmem:[%s2488 + $0xda] sm:$0xff]
        %v6495 = vld [vmem:[%s2488 + $0xe2] sm:$0xff]
        %v6496 = vld [vmem:[%s2488 + $0xf2] sm:$0xff]
        %v6497 = vld [vmem:[%s2488 + $0xfa] sm:$0xff]
        %v6498 = vld [vmem:[%s2488 + $0x10a] sm:$0xff]
        %v6499 = vld [vmem:[%s2488 + $0x112] sm:$0xff]
        %v6500 = vld [vmem:[%s2488 + $0x122] sm:$0xff]
        %v6501 = vld [vmem:[%s2488 + $0x12a] sm:$0xff]
        %v6502 = vld [vmem:[%s2488 + $0x13a] sm:$0xff]
        %v6503 = vld [vmem:[%s2488 + $0x142] sm:$0xff]
        %v6504 = vld [vmem:[%s2488 + $0x152] sm:$0xff]
        %v6505 = vld [vmem:[%s2488 + $0x15a] sm:$0xff]
        %v6506 = vld [vmem:[%s2488 + $0x16a] sm:$0xff]
        %v6507 = vld [vmem:[%s2488 + $0x172] sm:$0xff]
        %v6508 = vmax.f32 %v6444, %v6476
        %v6509 = vmax.f32 %v6445, %v6477
        %v6510 = vmax.f32 %v6446, %v6478
        %v6511 = vmax.f32 %v6447, %v6479
        %v6512 = vmax.f32 %v6448, %v6480
        %v6513 = vmax.f32 %v6449, %v6481
        %v6514 = vmax.f32 %v6450, %v6482
        %v6515 = vmax.f32 %v6451, %v6483
        %v6516 = vmax.f32 %v6452, %v6484
        %v6517 = vmax.f32 %v6453, %v6485
        %v6518 = vmax.f32 %v6454, %v6486
        %v6519 = vmax.f32 %v6455, %v6487
        %v6520 = vmax.f32 %v6456, %v6488
        %v6521 = vmax.f32 %v6457, %v6489
        %v6522 = vmax.f32 %v6458, %v6490
        %v6523 = vmax.f32 %v6459, %v6491
        %v6524 = vmax.f32 %v6460, %v6492
        %v6525 = vmax.f32 %v6461, %v6493
        %v6526 = vmax.f32 %v6462, %v6494
        %v6527 = vmax.f32 %v6463, %v6495
        %v6528 = vmax.f32 %v6464, %v6496
        %v6529 = vmax.f32 %v6465, %v6497
        %v6530 = vmax.f32 %v6466, %v6498
        %v6531 = vmax.f32 %v6467, %v6499
        %v6532 = vmax.f32 %v6468, %v6500
        %v6533 = vmax.f32 %v6469, %v6501
        %v6534 = vmax.f32 %v6470, %v6502
        %v6535 = vmax.f32 %v6471, %v6503
        %v6536 = vmax.f32 %v6472, %v6504
        %v6537 = vmax.f32 %v6473, %v6505
        %v6538 = vmax.f32 %v6474, %v6506
        %v6539 = vmax.f32 %v6475, %v6507
        %v6540 = vld [vmem:[%s2488 + $0x3] sm:$0xff]
        %v6541 = vld [vmem:[%s2488 + $0xb] sm:$0xff]
        %v6542 = vld [vmem:[%s2488 + $0x1b] sm:$0xff]
        %v6543 = vld [vmem:[%s2488 + $0x23] sm:$0xff]
        %v6544 = vld [vmem:[%s2488 + $0x33] sm:$0xff]
        %v6545 = vld [vmem:[%s2488 + $0x3b] sm:$0xff]
        %v6546 = vld [vmem:[%s2488 + $0x4b] sm:$0xff]
        %v6547 = vld [vmem:[%s2488 + $0x53] sm:$0xff]
        %v6548 = vld [vmem:[%s2488 + $0x63] sm:$0xff]
        %v6549 = vld [vmem:[%s2488 + $0x6b] sm:$0xff]
        %v6550 = vld [vmem:[%s2488 + $0x7b] sm:$0xff]
        %v6551 = vld [vmem:[%s2488 + $0x83] sm:$0xff]
        %v6552 = vld [vmem:[%s2488 + $0x93] sm:$0xff]
        %v6553 = vld [vmem:[%s2488 + $0x9b] sm:$0xff]
        %v6554 = vld [vmem:[%s2488 + $0xab] sm:$0xff]
        %v6555 = vld [vmem:[%s2488 + $0xb3] sm:$0xff]
        %v6556 = vld [vmem:[%s2488 + $0xc3] sm:$0xff]
        %v6557 = vld [vmem:[%s2488 + $0xcb] sm:$0xff]
        %v6558 = vld [vmem:[%s2488 + $0xdb] sm:$0xff]
        %v6559 = vld [vmem:[%s2488 + $0xe3] sm:$0xff]
        %v6560 = vld [vmem:[%s2488 + $0xf3] sm:$0xff]
        %v6561 = vld [vmem:[%s2488 + $0xfb] sm:$0xff]
        %v6562 = vld [vmem:[%s2488 + $0x10b] sm:$0xff]
        %v6563 = vld [vmem:[%s2488 + $0x113] sm:$0xff]
        %v6564 = vld [vmem:[%s2488 + $0x123] sm:$0xff]
        %v6565 = vld [vmem:[%s2488 + $0x12b] sm:$0xff]
        %v6566 = vld [vmem:[%s2488 + $0x13b] sm:$0xff]
        %v6567 = vld [vmem:[%s2488 + $0x143] sm:$0xff]
        %v6568 = vld [vmem:[%s2488 + $0x153] sm:$0xff]
        %v6569 = vld [vmem:[%s2488 + $0x15b] sm:$0xff]
        %v6570 = vld [vmem:[%s2488 + $0x16b] sm:$0xff]
        %v6571 = vld [vmem:[%s2488 + $0x173] sm:$0xff]
        %v6572 = vmax.f32 %v6508, %v6540
        %v6573 = vmax.f32 %v6509, %v6541
        %v6574 = vmax.f32 %v6510, %v6542
        %v6575 = vmax.f32 %v6511, %v6543
        %v6576 = vmax.f32 %v6512, %v6544
        %v6577 = vmax.f32 %v6513, %v6545
        %v6578 = vmax.f32 %v6514, %v6546
        %v6579 = vmax.f32 %v6515, %v6547
        %v6580 = vmax.f32 %v6516, %v6548
        %v6581 = vmax.f32 %v6517, %v6549
        %v6582 = vmax.f32 %v6518, %v6550
        %v6583 = vmax.f32 %v6519, %v6551
        %v6584 = vmax.f32 %v6520, %v6552
        %v6585 = vmax.f32 %v6521, %v6553
        %v6586 = vmax.f32 %v6522, %v6554
        %v6587 = vmax.f32 %v6523, %v6555
        %v6588 = vmax.f32 %v6524, %v6556
        %v6589 = vmax.f32 %v6525, %v6557
        %v6590 = vmax.f32 %v6526, %v6558
        %v6591 = vmax.f32 %v6527, %v6559
        %v6592 = vmax.f32 %v6528, %v6560
        %v6593 = vmax.f32 %v6529, %v6561
        %v6594 = vmax.f32 %v6530, %v6562
        %v6595 = vmax.f32 %v6531, %v6563
        %v6596 = vmax.f32 %v6532, %v6564
        %v6597 = vmax.f32 %v6533, %v6565
        %v6598 = vmax.f32 %v6534, %v6566
        %v6599 = vmax.f32 %v6535, %v6567
        %v6600 = vmax.f32 %v6536, %v6568
        %v6601 = vmax.f32 %v6537, %v6569
        %v6602 = vmax.f32 %v6538, %v6570
        %v6603 = vmax.f32 %v6539, %v6571
        %v6604 = vld [vmem:[%s2488 + $0x4] sm:$0xff]
        %v6605 = vld [vmem:[%s2488 + $0xc] sm:$0xff]
        %v6606 = vld [vmem:[%s2488 + $0x1c] sm:$0xff]
        %v6607 = vld [vmem:[%s2488 + $0x24] sm:$0xff]
        %v6608 = vld [vmem:[%s2488 + $0x34] sm:$0xff]
        %v6609 = vld [vmem:[%s2488 + $0x3c] sm:$0xff]
        %v6610 = vld [vmem:[%s2488 + $0x4c] sm:$0xff]
        %v6611 = vld [vmem:[%s2488 + $0x54] sm:$0xff]
        %v6612 = vld [vmem:[%s2488 + $0x64] sm:$0xff]
        %v6613 = vld [vmem:[%s2488 + $0x6c] sm:$0xff]
        %v6614 = vld [vmem:[%s2488 + $0x7c] sm:$0xff]
        %v6615 = vld [vmem:[%s2488 + $0x84] sm:$0xff]
        %v6616 = vld [vmem:[%s2488 + $0x94] sm:$0xff]
        %v6617 = vld [vmem:[%s2488 + $0x9c] sm:$0xff]
        %v6618 = vld [vmem:[%s2488 + $0xac] sm:$0xff]
        %v6619 = vld [vmem:[%s2488 + $0xb4] sm:$0xff]
        %v6620 = vld [vmem:[%s2488 + $0xc4] sm:$0xff]
        %v6621 = vld [vmem:[%s2488 + $0xcc] sm:$0xff]
        %v6622 = vld [vmem:[%s2488 + $0xdc] sm:$0xff]
        %v6623 = vld [vmem:[%s2488 + $0xe4] sm:$0xff]
        %v6624 = vld [vmem:[%s2488 + $0xf4] sm:$0xff]
        %v6625 = vld [vmem:[%s2488 + $0xfc] sm:$0xff]
        %v6626 = vld [vmem:[%s2488 + $0x10c] sm:$0xff]
        %v6627 = vld [vmem:[%s2488 + $0x114] sm:$0xff]
        %v6628 = vld [vmem:[%s2488 + $0x124] sm:$0xff]
        %v6629 = vld [vmem:[%s2488 + $0x12c] sm:$0xff]
        %v6630 = vld [vmem:[%s2488 + $0x13c] sm:$0xff]
        %v6631 = vld [vmem:[%s2488 + $0x144] sm:$0xff]
        %v6632 = vld [vmem:[%s2488 + $0x154] sm:$0xff]
        %v6633 = vld [vmem:[%s2488 + $0x15c] sm:$0xff]
        %v6634 = vld [vmem:[%s2488 + $0x16c] sm:$0xff]
        %v6635 = vld [vmem:[%s2488 + $0x174] sm:$0xff]
        %v6636 = vmax.f32 %v6572, %v6604
        %v6637 = vmax.f32 %v6573, %v6605
        %v6638 = vmax.f32 %v6574, %v6606
        %v6639 = vmax.f32 %v6575, %v6607
        %v6640 = vmax.f32 %v6576, %v6608
        %v6641 = vmax.f32 %v6577, %v6609
        %v6642 = vmax.f32 %v6578, %v6610
        %v6643 = vmax.f32 %v6579, %v6611
        %v6644 = vmax.f32 %v6580, %v6612
        %v6645 = vmax.f32 %v6581, %v6613
        %v6646 = vmax.f32 %v6582, %v6614
        %v6647 = vmax.f32 %v6583, %v6615
        %v6648 = vmax.f32 %v6584, %v6616
        %v6649 = vmax.f32 %v6585, %v6617
        %v6650 = vmax.f32 %v6586, %v6618
        %v6651 = vmax.f32 %v6587, %v6619
        %v6652 = vmax.f32 %v6588, %v6620
        %v6653 = vmax.f32 %v6589, %v6621
        %v6654 = vmax.f32 %v6590, %v6622
        %v6655 = vmax.f32 %v6591, %v6623
        %v6656 = vmax.f32 %v6592, %v6624
        %v6657 = vmax.f32 %v6593, %v6625
        %v6658 = vmax.f32 %v6594, %v6626
        %v6659 = vmax.f32 %v6595, %v6627
        %v6660 = vmax.f32 %v6596, %v6628
        %v6661 = vmax.f32 %v6597, %v6629
        %v6662 = vmax.f32 %v6598, %v6630
        %v6663 = vmax.f32 %v6599, %v6631
        %v6664 = vmax.f32 %v6600, %v6632
        %v6665 = vmax.f32 %v6601, %v6633
        %v6666 = vmax.f32 %v6602, %v6634
        %v6667 = vmax.f32 %v6603, %v6635
        %v6669 = vsel %vm1143, %v6636, 0
        %v6672 = vsel %vm1143, %v6637, 0
        %v6675 = vsel %vm1143, %v6638, 0
        %v6678 = vsel %vm1143, %v6639, 0
        %v6681 = vsel %vm1143, %v6640, 0
        %v6684 = vsel %vm1143, %v6641, 0
        %v6687 = vsel %vm1143, %v6642, 0
        %v6690 = vsel %vm1143, %v6643, 0
        %v6693 = vsel %vm1143, %v6644, 0
        %v6696 = vsel %vm1143, %v6645, 0
        %v6699 = vsel %vm1143, %v6646, 0
        %v6702 = vsel %vm1143, %v6647, 0
        %v6705 = vsel %vm1143, %v6648, 0
        %v6708 = vsel %vm1143, %v6649, 0
        %v6711 = vsel %vm1143, %v6650, 0
        %v6714 = vsel %vm1143, %v6651, 0
        %v6717 = vsel %vm1143, %v6652, 0
        %v6720 = vsel %vm1143, %v6653, 0
        %v6723 = vsel %vm1143, %v6654, 0
        %v6726 = vsel %vm1143, %v6655, 0
        %v6729 = vsel %vm1143, %v6656, 0
        %v6732 = vsel %vm1143, %v6657, 0
        %v6735 = vsel %vm1143, %v6658, 0
        %v6738 = vsel %vm1143, %v6659, 0
        %v6741 = vsel %vm1143, %v6660, 0
        %v6744 = vsel %vm1143, %v6661, 0
        %v6747 = vsel %vm1143, %v6662, 0
        %v6750 = vsel %vm1143, %v6663, 0
        %v6753 = vsel %vm1143, %v6664, 0
        %v6756 = vsel %vm1143, %v6665, 0
        %v6759 = vsel %vm1143, %v6666, 0
        %v6762 = vsel %vm1143, %v6667, 0
        %6764 = vmatpush.msra.mxu0 0.0
        %6765 = vmatpush.msra.mxu0 0.0
        %6766 = vmatpush.msra.mxu0 0.0
        %6767 = vmatpush.msra.mxu0 0.0
        %6768 = vmatpush.msra.mxu0 0.0
        %6769 = vmatpush.msra.mxu0 0.0
        %6770 = vmatpush.msra.mxu0 0.0
        %6771 = vmatpush.msra.mxu0 0.0
        %6772 = vmatpush.msra.mxu0 0.0
        %6773 = vmatpush.msra.mxu0 0.0
        %6774 = vmatpush.msra.mxu0 0.0
        %6775 = vmatpush.msra.mxu0 0.0
        %6776 = vmatpush.msra.mxu0 0.0
        %6777 = vmatpush.msra.mxu0 0.0
        %6778 = vmatpush.msra.mxu0 %v1142
        %6779 = vmatpush.msra.mxu0 %v1141
        %6780 = vmatmul.f32.gmra.mxu0 %v6669
        %v6781 = vpop.f32.mrf.mxu0
        %v6782 = vadd.f32 0.0, %v6781
        %6783 = vmatmul.f32.gmra.mxu0 %v6672
        %v6784 = vpop.f32.mrf.mxu0
        %v6785 = vadd.f32 0.0, %v6784
        %6786 = vmatmul.f32.gmra.mxu0 %v6675
        %v6787 = vpop.f32.mrf.mxu0
        %v6788 = vadd.f32 0.0, %v6787
        %6789 = vmatmul.f32.gmra.mxu0 %v6678
        %v6790 = vpop.f32.mrf.mxu0
        %v6791 = vadd.f32 0.0, %v6790
        %6792 = vmatmul.f32.gmra.mxu0 %v6681
        %v6793 = vpop.f32.mrf.mxu0
        %v6794 = vadd.f32 0.0, %v6793
        %6795 = vmatmul.f32.gmra.mxu0 %v6684
        %v6796 = vpop.f32.mrf.mxu0
        %v6797 = vadd.f32 0.0, %v6796
        %6798 = vmatmul.f32.gmra.mxu0 %v6687
        %v6799 = vpop.f32.mrf.mxu0
        %v6800 = vadd.f32 0.0, %v6799
        %6801 = vmatmul.f32.gmra.mxu0 %v6690
        %v6802 = vpop.f32.mrf.mxu0
        %v6803 = vadd.f32 0.0, %v6802
        %6804 = vmatmul.f32.gmra.mxu0 %v6693
        %v6805 = vpop.f32.mrf.mxu0
        %v6806 = vadd.f32 0.0, %v6805
        %6807 = vmatmul.f32.gmra.mxu0 %v6696
        %v6808 = vpop.f32.mrf.mxu0
        %v6809 = vadd.f32 0.0, %v6808
        %6810 = vmatmul.f32.gmra.mxu0 %v6699
        %v6811 = vpop.f32.mrf.mxu0
        %v6812 = vadd.f32 0.0, %v6811
        %6813 = vmatmul.f32.gmra.mxu0 %v6702
        %v6814 = vpop.f32.mrf.mxu0
        %v6815 = vadd.f32 0.0, %v6814
        %6816 = vmatmul.f32.gmra.mxu0 %v6705
        %v6817 = vpop.f32.mrf.mxu0
        %v6818 = vadd.f32 0.0, %v6817
        %6819 = vmatmul.f32.gmra.mxu0 %v6708
        %v6820 = vpop.f32.mrf.mxu0
        %v6821 = vadd.f32 0.0, %v6820
        %6822 = vmatmul.f32.gmra.mxu0 %v6711
        %v6823 = vpop.f32.mrf.mxu0
        %v6824 = vadd.f32 0.0, %v6823
        %6825 = vmatmul.f32.gmra.mxu0 %v6714
        %v6826 = vpop.f32.mrf.mxu0
        %v6827 = vadd.f32 0.0, %v6826
        %6828 = vmatmul.f32.gmra.mxu0 %v6717
        %v6829 = vpop.f32.mrf.mxu0
        %v6830 = vadd.f32 0.0, %v6829
        %6831 = vmatmul.f32.gmra.mxu0 %v6720
        %v6832 = vpop.f32.mrf.mxu0
        %v6833 = vadd.f32 0.0, %v6832
        %6834 = vmatmul.f32.gmra.mxu0 %v6723
        %v6835 = vpop.f32.mrf.mxu0
        %v6836 = vadd.f32 0.0, %v6835
        %6837 = vmatmul.f32.gmra.mxu0 %v6726
        %v6838 = vpop.f32.mrf.mxu0
        %v6839 = vadd.f32 0.0, %v6838
        %6840 = vmatmul.f32.gmra.mxu0 %v6729
        %v6841 = vpop.f32.mrf.mxu0
        %v6842 = vadd.f32 0.0, %v6841
        %6843 = vmatmul.f32.gmra.mxu0 %v6732
        %v6844 = vpop.f32.mrf.mxu0
        %v6845 = vadd.f32 0.0, %v6844
        %6846 = vmatmul.f32.gmra.mxu0 %v6735
        %v6847 = vpop.f32.mrf.mxu0
        %v6848 = vadd.f32 0.0, %v6847
        %6849 = vmatmul.f32.gmra.mxu0 %v6738
        %v6850 = vpop.f32.mrf.mxu0
        %v6851 = vadd.f32 0.0, %v6850
        %6852 = vmatmul.f32.gmra.mxu0 %v6741
        %v6853 = vpop.f32.mrf.mxu0
        %v6854 = vadd.f32 0.0, %v6853
        %6855 = vmatmul.f32.gmra.mxu0 %v6744
        %v6856 = vpop.f32.mrf.mxu0
        %v6857 = vadd.f32 0.0, %v6856
        %6858 = vmatmul.f32.gmra.mxu0 %v6747
        %v6859 = vpop.f32.mrf.mxu0
        %v6860 = vadd.f32 0.0, %v6859
        %6861 = vmatmul.f32.gmra.mxu0 %v6750
        %v6862 = vpop.f32.mrf.mxu0
        %v6863 = vadd.f32 0.0, %v6862
        %6864 = vmatmul.f32.gmra.mxu0 %v6753
        %v6865 = vpop.f32.mrf.mxu0
        %v6866 = vadd.f32 0.0, %v6865
        %6867 = vmatmul.f32.gmra.mxu0 %v6756
        %v6868 = vpop.f32.mrf.mxu0
        %v6869 = vadd.f32 0.0, %v6868
        %6870 = vmatmul.f32.gmra.mxu0 %v6759
        %v6871 = vpop.f32.mrf.mxu0
        %v6872 = vadd.f32 0.0, %v6871
        %6873 = vmatmul.f32.gmra.mxu0 %v6762
        %v6874 = vpop.f32.mrf.mxu0
        %v6875 = vadd.f32 0.0, %v6874
        %6876 = vdwg.mxu0
        %v6877 = vadd.f32 %v5036, %v6782
        %v6878 = vadd.f32 %v5037, %v6785
        %v6879 = vadd.f32 %v5038, %v6788
        %v6880 = vadd.f32 %v5039, %v6791
        %v6881 = vadd.f32 %v5040, %v6794
        %v6882 = vadd.f32 %v5041, %v6797
        %v6883 = vadd.f32 %v5042, %v6800
        %v6884 = vadd.f32 %v5043, %v6803
        %v6885 = vadd.f32 %v5044, %v6806
        %v6886 = vadd.f32 %v5045, %v6809
        %v6887 = vadd.f32 %v5046, %v6812
        %v6888 = vadd.f32 %v5047, %v6815
        %v6889 = vadd.f32 %v5048, %v6818
        %v6890 = vadd.f32 %v5049, %v6821
        %v6891 = vadd.f32 %v5050, %v6824
        %v6892 = vadd.f32 %v5051, %v6827
        %v6893 = vadd.f32 %v5052, %v6830
        %v6894 = vadd.f32 %v5053, %v6833
        %v6895 = vadd.f32 %v5054, %v6836
        %v6896 = vadd.f32 %v5055, %v6839
        %v6897 = vadd.f32 %v5056, %v6842
        %v6898 = vadd.f32 %v5057, %v6845
        %v6899 = vadd.f32 %v5058, %v6848
        %v6900 = vadd.f32 %v5059, %v6851
        %v6901 = vadd.f32 %v5060, %v6854
        %v6902 = vadd.f32 %v5061, %v6857
        %v6903 = vadd.f32 %v5062, %v6860
        %v6904 = vadd.f32 %v5063, %v6863
        %v6905 = vadd.f32 %v5064, %v6866
        %v6906 = vadd.f32 %v5065, %v6869
        %v6907 = vadd.f32 %v5066, %v6872
        %v6908 = vadd.f32 %v5067, %v6875
        %v6909 = vld [vmem:[%s4] sm:$0x1]
        %v6911 = vperm.slane %v6909, 0
        %v6913 = vadd.f32 %v6877, %v6911
        %v6914 = vadd.f32 %v6878, %v6911
        %v6915 = vadd.f32 %v6879, %v6911
        %v6916 = vadd.f32 %v6880, %v6911
        %v6917 = vadd.f32 %v6881, %v6911
        %v6918 = vadd.f32 %v6882, %v6911
        %v6919 = vadd.f32 %v6883, %v6911
        %v6920 = vadd.f32 %v6884, %v6911
        %v6921 = vadd.f32 %v6885, %v6911
        %v6922 = vadd.f32 %v6886, %v6911
        %v6923 = vadd.f32 %v6887, %v6911
        %v6924 = vadd.f32 %v6888, %v6911
        %v6925 = vadd.f32 %v6889, %v6911
        %v6926 = vadd.f32 %v6890, %v6911
        %v6927 = vadd.f32 %v6891, %v6911
        %v6928 = vadd.f32 %v6892, %v6911
        %v6929 = vadd.f32 %v6893, %v6911
        %v6930 = vadd.f32 %v6894, %v6911
        %v6931 = vadd.f32 %v6895, %v6911
        %v6932 = vadd.f32 %v6896, %v6911
        %v6933 = vadd.f32 %v6897, %v6911
        %v6934 = vadd.f32 %v6898, %v6911
        %v6935 = vadd.f32 %v6899, %v6911
        %v6936 = vadd.f32 %v6900, %v6911
        %v6937 = vadd.f32 %v6901, %v6911
        %v6938 = vadd.f32 %v6902, %v6911
        %v6939 = vadd.f32 %v6903, %v6911
        %v6940 = vadd.f32 %v6904, %v6911
        %v6941 = vadd.f32 %v6905, %v6911
        %v6942 = vadd.f32 %v6906, %v6911
        %v6943 = vadd.f32 %v6907, %v6911
        %v6944 = vadd.f32 %v6908, %v6911
        %v6945 = vxor.u32 %v6913, 2147483648
        %v6946 = vxor.u32 %v6914, 2147483648
        %v6947 = vxor.u32 %v6915, 2147483648
        %v6948 = vxor.u32 %v6916, 2147483648
        %v6949 = vxor.u32 %v6917, 2147483648
        %v6950 = vxor.u32 %v6918, 2147483648
        %v6951 = vxor.u32 %v6919, 2147483648
        %v6952 = vxor.u32 %v6920, 2147483648
        %v6953 = vxor.u32 %v6921, 2147483648
        %v6954 = vxor.u32 %v6922, 2147483648
        %v6955 = vxor.u32 %v6923, 2147483648
        %v6956 = vxor.u32 %v6924, 2147483648
        %v6957 = vxor.u32 %v6925, 2147483648
        %v6958 = vxor.u32 %v6926, 2147483648
        %v6959 = vxor.u32 %v6927, 2147483648
        %v6960 = vxor.u32 %v6928, 2147483648
        %v6961 = vxor.u32 %v6929, 2147483648
        %v6962 = vxor.u32 %v6930, 2147483648
        %v6963 = vxor.u32 %v6931, 2147483648
        %v6964 = vxor.u32 %v6932, 2147483648
        %v6965 = vxor.u32 %v6933, 2147483648
        %v6966 = vxor.u32 %v6934, 2147483648
        %v6967 = vxor.u32 %v6935, 2147483648
        %v6968 = vxor.u32 %v6936, 2147483648
        %v6969 = vxor.u32 %v6937, 2147483648
        %v6970 = vxor.u32 %v6938, 2147483648
        %v6971 = vxor.u32 %v6939, 2147483648
        %v6972 = vxor.u32 %v6940, 2147483648
        %v6973 = vxor.u32 %v6941, 2147483648
        %v6974 = vxor.u32 %v6942, 2147483648
        %v6975 = vxor.u32 %v6943, 2147483648
        %v6976 = vxor.u32 %v6944, 2147483648
        %v6977 = vmul.f32 %v6945, 1.442695
        %v6978 = vpow.pop %v6977
        %v6979 = vmul.f32 %v6946, 1.442695
        %v6980 = vpow.pop %v6979
        %v6981 = vmul.f32 %v6947, 1.442695
        %v6982 = vpow.pop %v6981
        %v6983 = vmul.f32 %v6948, 1.442695
        %v6984 = vpow.pop %v6983
        %v6985 = vmul.f32 %v6949, 1.442695
        %v6986 = vpow.pop %v6985
        %v6987 = vmul.f32 %v6950, 1.442695
        %v6988 = vpow.pop %v6987
        %v6989 = vmul.f32 %v6951, 1.442695
        %v6990 = vpow.pop %v6989
        %v6991 = vmul.f32 %v6952, 1.442695
        %v6992 = vpow.pop %v6991
        %v6993 = vmul.f32 %v6953, 1.442695
        %v6994 = vpow.pop %v6993
        %v6995 = vmul.f32 %v6954, 1.442695
        %v6996 = vpow.pop %v6995
        %v6997 = vmul.f32 %v6955, 1.442695
        %v6998 = vpow.pop %v6997
        %v6999 = vmul.f32 %v6956, 1.442695
        %v7000 = vpow.pop %v6999
        %v7001 = vmul.f32 %v6957, 1.442695
        %v7002 = vpow.pop %v7001
        %v7003 = vmul.f32 %v6958, 1.442695
        %v7004 = vpow.pop %v7003
        %v7005 = vmul.f32 %v6959, 1.442695
        %v7006 = vpow.pop %v7005
        %v7007 = vmul.f32 %v6960, 1.442695
        %v7008 = vpow.pop %v7007
        %v7009 = vmul.f32 %v6961, 1.442695
        %v7010 = vpow.pop %v7009
        %v7011 = vmul.f32 %v6962, 1.442695
        %v7012 = vpow.pop %v7011
        %v7013 = vmul.f32 %v6963, 1.442695
        %v7014 = vpow.pop %v7013
        %v7015 = vmul.f32 %v6964, 1.442695
        %v7016 = vpow.pop %v7015
        %v7017 = vmul.f32 %v6965, 1.442695
        %v7018 = vpow.pop %v7017
        %v7019 = vmul.f32 %v6966, 1.442695
        %v7020 = vpow.pop %v7019
        %v7021 = vmul.f32 %v6967, 1.442695
        %v7022 = vpow.pop %v7021
        %v7023 = vmul.f32 %v6968, 1.442695
        %v7024 = vpow.pop %v7023
        %v7025 = vmul.f32 %v6969, 1.442695
        %v7026 = vpow.pop %v7025
        %v7027 = vmul.f32 %v6970, 1.442695
        %v7028 = vpow.pop %v7027
        %v7029 = vmul.f32 %v6971, 1.442695
        %v7030 = vpow.pop %v7029
        %v7031 = vmul.f32 %v6972, 1.442695
        %v7032 = vpow.pop %v7031
        %v7033 = vmul.f32 %v6973, 1.442695
        %v7034 = vpow.pop %v7033
        %v7035 = vmul.f32 %v6974, 1.442695
        %v7036 = vpow.pop %v7035
        %v7037 = vmul.f32 %v6975, 1.442695
        %v7038 = vpow.pop %v7037
        %v7039 = vmul.f32 %v6976, 1.442695
        %v7040 = vpow.pop %v7039
        %v7041 = vadd.f32 %v6978, 1.0
        %v7042 = vadd.f32 %v6980, 1.0
        %v7043 = vadd.f32 %v6982, 1.0
        %v7044 = vadd.f32 %v6984, 1.0
        %v7045 = vadd.f32 %v6986, 1.0
        %v7046 = vadd.f32 %v6988, 1.0
        %v7047 = vadd.f32 %v6990, 1.0
        %v7048 = vadd.f32 %v6992, 1.0
        %v7049 = vadd.f32 %v6994, 1.0
        %v7050 = vadd.f32 %v6996, 1.0
        %v7051 = vadd.f32 %v6998, 1.0
        %v7052 = vadd.f32 %v7000, 1.0
        %v7053 = vadd.f32 %v7002, 1.0
        %v7054 = vadd.f32 %v7004, 1.0
        %v7055 = vadd.f32 %v7006, 1.0
        %v7056 = vadd.f32 %v7008, 1.0
        %v7057 = vadd.f32 %v7010, 1.0
        %v7058 = vadd.f32 %v7012, 1.0
        %v7059 = vadd.f32 %v7014, 1.0
        %v7060 = vadd.f32 %v7016, 1.0
        %v7061 = vadd.f32 %v7018, 1.0
        %v7062 = vadd.f32 %v7020, 1.0
        %v7063 = vadd.f32 %v7022, 1.0
        %v7064 = vadd.f32 %v7024, 1.0
        %v7065 = vadd.f32 %v7026, 1.0
        %v7066 = vadd.f32 %v7028, 1.0
        %v7067 = vadd.f32 %v7030, 1.0
        %v7068 = vadd.f32 %v7032, 1.0
        %v7069 = vadd.f32 %v7034, 1.0
        %v7070 = vadd.f32 %v7036, 1.0
        %v7071 = vadd.f32 %v7038, 1.0
        %v7072 = vadd.f32 %v7040, 1.0
        %v7073 = vrcp.pop %v7041
        %v7074 = vmul.f32 %v7041, %v7073
        %v7075 = vsub.f32 1.0, %v7074
        %v7076 = vmul.f32 %v7073, %v7075
        %v7077 = vadd.f32 %v7073, %v7076
        %vm7078 = vweird.f32 %v7041
        %vm7079 = vweird.f32 %v7073
        %vm7080 = vmor %vm7078, %vm7079
        %v7081 = vsel %vm7080, %v7073, %v7077
        %v7082 = vand.u32 2147483647, %v7041
        %vm7083 = vcmp.eq.f32.partialorder %v7082, 8.507059e+37
        %v7084 = vand.u32 %v7041, 2147483648
        %v7085 = vor.u32 1.1754944e-38, %v7084
        %v7086 = vsel %vm7083, %v7085, %v7081
        %v7087 = vmul.f32 1.0, %v7086
        %v7088 = vrcp.pop %v7042
        %v7089 = vmul.f32 %v7042, %v7088
        %v7090 = vsub.f32 1.0, %v7089
        %v7091 = vmul.f32 %v7088, %v7090
        %v7092 = vadd.f32 %v7088, %v7091
        %vm7093 = vweird.f32 %v7042
        %vm7094 = vweird.f32 %v7088
        %vm7095 = vmor %vm7093, %vm7094
        %v7096 = vsel %vm7095, %v7088, %v7092
        %v7097 = vand.u32 2147483647, %v7042
        %vm7098 = vcmp.eq.f32.partialorder %v7097, 8.507059e+37
        %v7099 = vand.u32 %v7042, 2147483648
        %v7100 = vor.u32 1.1754944e-38, %v7099
        %v7101 = vsel %vm7098, %v7100, %v7096
        %v7102 = vmul.f32 1.0, %v7101
        %v7103 = vrcp.pop %v7043
        %v7104 = vmul.f32 %v7043, %v7103
        %v7105 = vsub.f32 1.0, %v7104
        %v7106 = vmul.f32 %v7103, %v7105
        %v7107 = vadd.f32 %v7103, %v7106
        %vm7108 = vweird.f32 %v7043
        %vm7109 = vweird.f32 %v7103
        %vm7110 = vmor %vm7108, %vm7109
        %v7111 = vsel %vm7110, %v7103, %v7107
        %v7112 = vand.u32 2147483647, %v7043
        %vm7113 = vcmp.eq.f32.partialorder %v7112, 8.507059e+37
        %v7114 = vand.u32 %v7043, 2147483648
        %v7115 = vor.u32 1.1754944e-38, %v7114
        %v7116 = vsel %vm7113, %v7115, %v7111
        %v7117 = vmul.f32 1.0, %v7116
        %v7118 = vrcp.pop %v7044
        %v7119 = vmul.f32 %v7044, %v7118
        %v7120 = vsub.f32 1.0, %v7119
        %v7121 = vmul.f32 %v7118, %v7120
        %v7122 = vadd.f32 %v7118, %v7121
        %vm7123 = vweird.f32 %v7044
        %vm7124 = vweird.f32 %v7118
        %vm7125 = vmor %vm7123, %vm7124
        %v7126 = vsel %vm7125, %v7118, %v7122
        %v7127 = vand.u32 2147483647, %v7044
        %vm7128 = vcmp.eq.f32.partialorder %v7127, 8.507059e+37
        %v7129 = vand.u32 %v7044, 2147483648
        %v7130 = vor.u32 1.1754944e-38, %v7129
        %v7131 = vsel %vm7128, %v7130, %v7126
        %v7132 = vmul.f32 1.0, %v7131
        %v7133 = vrcp.pop %v7045
        %v7134 = vmul.f32 %v7045, %v7133
        %v7135 = vsub.f32 1.0, %v7134
        %v7136 = vmul.f32 %v7133, %v7135
        %v7137 = vadd.f32 %v7133, %v7136
        %vm7138 = vweird.f32 %v7045
        %vm7139 = vweird.f32 %v7133
        %vm7140 = vmor %vm7138, %vm7139
        %v7141 = vsel %vm7140, %v7133, %v7137
        %v7142 = vand.u32 2147483647, %v7045
        %vm7143 = vcmp.eq.f32.partialorder %v7142, 8.507059e+37
        %v7144 = vand.u32 %v7045, 2147483648
        %v7145 = vor.u32 1.1754944e-38, %v7144
        %v7146 = vsel %vm7143, %v7145, %v7141
        %v7147 = vmul.f32 1.0, %v7146
        %v7148 = vrcp.pop %v7046
        %v7149 = vmul.f32 %v7046, %v7148
        %v7150 = vsub.f32 1.0, %v7149
        %v7151 = vmul.f32 %v7148, %v7150
        %v7152 = vadd.f32 %v7148, %v7151
        %vm7153 = vweird.f32 %v7046
        %vm7154 = vweird.f32 %v7148
        %vm7155 = vmor %vm7153, %vm7154
        %v7156 = vsel %vm7155, %v7148, %v7152
        %v7157 = vand.u32 2147483647, %v7046
        %vm7158 = vcmp.eq.f32.partialorder %v7157, 8.507059e+37
        %v7159 = vand.u32 %v7046, 2147483648
        %v7160 = vor.u32 1.1754944e-38, %v7159
        %v7161 = vsel %vm7158, %v7160, %v7156
        %v7162 = vmul.f32 1.0, %v7161
        %v7163 = vrcp.pop %v7047
        %v7164 = vmul.f32 %v7047, %v7163
        %v7165 = vsub.f32 1.0, %v7164
        %v7166 = vmul.f32 %v7163, %v7165
        %v7167 = vadd.f32 %v7163, %v7166
        %vm7168 = vweird.f32 %v7047
        %vm7169 = vweird.f32 %v7163
        %vm7170 = vmor %vm7168, %vm7169
        %v7171 = vsel %vm7170, %v7163, %v7167
        %v7172 = vand.u32 2147483647, %v7047
        %vm7173 = vcmp.eq.f32.partialorder %v7172, 8.507059e+37
        %v7174 = vand.u32 %v7047, 2147483648
        %v7175 = vor.u32 1.1754944e-38, %v7174
        %v7176 = vsel %vm7173, %v7175, %v7171
        %v7177 = vmul.f32 1.0, %v7176
        %v7178 = vrcp.pop %v7048
        %v7179 = vmul.f32 %v7048, %v7178
        %v7180 = vsub.f32 1.0, %v7179
        %v7181 = vmul.f32 %v7178, %v7180
        %v7182 = vadd.f32 %v7178, %v7181
        %vm7183 = vweird.f32 %v7048
        %vm7184 = vweird.f32 %v7178
        %vm7185 = vmor %vm7183, %vm7184
        %v7186 = vsel %vm7185, %v7178, %v7182
        %v7187 = vand.u32 2147483647, %v7048
        %vm7188 = vcmp.eq.f32.partialorder %v7187, 8.507059e+37
        %v7189 = vand.u32 %v7048, 2147483648
        %v7190 = vor.u32 1.1754944e-38, %v7189
        %v7191 = vsel %vm7188, %v7190, %v7186
        %v7192 = vmul.f32 1.0, %v7191
        %v7193 = vrcp.pop %v7049
        %v7194 = vmul.f32 %v7049, %v7193
        %v7195 = vsub.f32 1.0, %v7194
        %v7196 = vmul.f32 %v7193, %v7195
        %v7197 = vadd.f32 %v7193, %v7196
        %vm7198 = vweird.f32 %v7049
        %vm7199 = vweird.f32 %v7193
        %vm7200 = vmor %vm7198, %vm7199
        %v7201 = vsel %vm7200, %v7193, %v7197
        %v7202 = vand.u32 2147483647, %v7049
        %vm7203 = vcmp.eq.f32.partialorder %v7202, 8.507059e+37
        %v7204 = vand.u32 %v7049, 2147483648
        %v7205 = vor.u32 1.1754944e-38, %v7204
        %v7206 = vsel %vm7203, %v7205, %v7201
        %v7207 = vmul.f32 1.0, %v7206
        %v7208 = vrcp.pop %v7050
        %v7209 = vmul.f32 %v7050, %v7208
        %v7210 = vsub.f32 1.0, %v7209
        %v7211 = vmul.f32 %v7208, %v7210
        %v7212 = vadd.f32 %v7208, %v7211
        %vm7213 = vweird.f32 %v7050
        %vm7214 = vweird.f32 %v7208
        %vm7215 = vmor %vm7213, %vm7214
        %v7216 = vsel %vm7215, %v7208, %v7212
        %v7217 = vand.u32 2147483647, %v7050
        %vm7218 = vcmp.eq.f32.partialorder %v7217, 8.507059e+37
        %v7219 = vand.u32 %v7050, 2147483648
        %v7220 = vor.u32 1.1754944e-38, %v7219
        %v7221 = vsel %vm7218, %v7220, %v7216
        %v7222 = vmul.f32 1.0, %v7221
        %v7223 = vrcp.pop %v7051
        %v7224 = vmul.f32 %v7051, %v7223
        %v7225 = vsub.f32 1.0, %v7224
        %v7226 = vmul.f32 %v7223, %v7225
        %v7227 = vadd.f32 %v7223, %v7226
        %vm7228 = vweird.f32 %v7051
        %vm7229 = vweird.f32 %v7223
        %vm7230 = vmor %vm7228, %vm7229
        %v7231 = vsel %vm7230, %v7223, %v7227
        %v7232 = vand.u32 2147483647, %v7051
        %vm7233 = vcmp.eq.f32.partialorder %v7232, 8.507059e+37
        %v7234 = vand.u32 %v7051, 2147483648
        %v7235 = vor.u32 1.1754944e-38, %v7234
        %v7236 = vsel %vm7233, %v7235, %v7231
        %v7237 = vmul.f32 1.0, %v7236
        %v7238 = vrcp.pop %v7052
        %v7239 = vmul.f32 %v7052, %v7238
        %v7240 = vsub.f32 1.0, %v7239
        %v7241 = vmul.f32 %v7238, %v7240
        %v7242 = vadd.f32 %v7238, %v7241
        %vm7243 = vweird.f32 %v7052
        %vm7244 = vweird.f32 %v7238
        %vm7245 = vmor %vm7243, %vm7244
        %v7246 = vsel %vm7245, %v7238, %v7242
        %v7247 = vand.u32 2147483647, %v7052
        %vm7248 = vcmp.eq.f32.partialorder %v7247, 8.507059e+37
        %v7249 = vand.u32 %v7052, 2147483648
        %v7250 = vor.u32 1.1754944e-38, %v7249
        %v7251 = vsel %vm7248, %v7250, %v7246
        %v7252 = vmul.f32 1.0, %v7251
        %v7253 = vrcp.pop %v7053
        %v7254 = vmul.f32 %v7053, %v7253
        %v7255 = vsub.f32 1.0, %v7254
        %v7256 = vmul.f32 %v7253, %v7255
        %v7257 = vadd.f32 %v7253, %v7256
        %vm7258 = vweird.f32 %v7053
        %vm7259 = vweird.f32 %v7253
        %vm7260 = vmor %vm7258, %vm7259
        %v7261 = vsel %vm7260, %v7253, %v7257
        %v7262 = vand.u32 2147483647, %v7053
        %vm7263 = vcmp.eq.f32.partialorder %v7262, 8.507059e+37
        %v7264 = vand.u32 %v7053, 2147483648
        %v7265 = vor.u32 1.1754944e-38, %v7264
        %v7266 = vsel %vm7263, %v7265, %v7261
        %v7267 = vmul.f32 1.0, %v7266
        %v7268 = vrcp.pop %v7054
        %v7269 = vmul.f32 %v7054, %v7268
        %v7270 = vsub.f32 1.0, %v7269
        %v7271 = vmul.f32 %v7268, %v7270
        %v7272 = vadd.f32 %v7268, %v7271
        %vm7273 = vweird.f32 %v7054
        %vm7274 = vweird.f32 %v7268
        %vm7275 = vmor %vm7273, %vm7274
        %v7276 = vsel %vm7275, %v7268, %v7272
        %v7277 = vand.u32 2147483647, %v7054
        %vm7278 = vcmp.eq.f32.partialorder %v7277, 8.507059e+37
        %v7279 = vand.u32 %v7054, 2147483648
        %v7280 = vor.u32 1.1754944e-38, %v7279
        %v7281 = vsel %vm7278, %v7280, %v7276
        %v7282 = vmul.f32 1.0, %v7281
        %v7283 = vrcp.pop %v7055
        %v7284 = vmul.f32 %v7055, %v7283
        %v7285 = vsub.f32 1.0, %v7284
        %v7286 = vmul.f32 %v7283, %v7285
        %v7287 = vadd.f32 %v7283, %v7286
        %vm7288 = vweird.f32 %v7055
        %vm7289 = vweird.f32 %v7283
        %vm7290 = vmor %vm7288, %vm7289
        %v7291 = vsel %vm7290, %v7283, %v7287
        %v7292 = vand.u32 2147483647, %v7055
        %vm7293 = vcmp.eq.f32.partialorder %v7292, 8.507059e+37
        %v7294 = vand.u32 %v7055, 2147483648
        %v7295 = vor.u32 1.1754944e-38, %v7294
        %v7296 = vsel %vm7293, %v7295, %v7291
        %v7297 = vmul.f32 1.0, %v7296
        %v7298 = vrcp.pop %v7056
        %v7299 = vmul.f32 %v7056, %v7298
        %v7300 = vsub.f32 1.0, %v7299
        %v7301 = vmul.f32 %v7298, %v7300
        %v7302 = vadd.f32 %v7298, %v7301
        %vm7303 = vweird.f32 %v7056
        %vm7304 = vweird.f32 %v7298
        %vm7305 = vmor %vm7303, %vm7304
        %v7306 = vsel %vm7305, %v7298, %v7302
        %v7307 = vand.u32 2147483647, %v7056
        %vm7308 = vcmp.eq.f32.partialorder %v7307, 8.507059e+37
        %v7309 = vand.u32 %v7056, 2147483648
        %v7310 = vor.u32 1.1754944e-38, %v7309
        %v7311 = vsel %vm7308, %v7310, %v7306
        %v7312 = vmul.f32 1.0, %v7311
        %v7313 = vrcp.pop %v7057
        %v7314 = vmul.f32 %v7057, %v7313
        %v7315 = vsub.f32 1.0, %v7314
        %v7316 = vmul.f32 %v7313, %v7315
        %v7317 = vadd.f32 %v7313, %v7316
        %vm7318 = vweird.f32 %v7057
        %vm7319 = vweird.f32 %v7313
        %vm7320 = vmor %vm7318, %vm7319
        %v7321 = vsel %vm7320, %v7313, %v7317
        %v7322 = vand.u32 2147483647, %v7057
        %vm7323 = vcmp.eq.f32.partialorder %v7322, 8.507059e+37
        %v7324 = vand.u32 %v7057, 2147483648
        %v7325 = vor.u32 1.1754944e-38, %v7324
        %v7326 = vsel %vm7323, %v7325, %v7321
        %v7327 = vmul.f32 1.0, %v7326
        %v7328 = vrcp.pop %v7058
        %v7329 = vmul.f32 %v7058, %v7328
        %v7330 = vsub.f32 1.0, %v7329
        %v7331 = vmul.f32 %v7328, %v7330
        %v7332 = vadd.f32 %v7328, %v7331
        %vm7333 = vweird.f32 %v7058
        %vm7334 = vweird.f32 %v7328
        %vm7335 = vmor %vm7333, %vm7334
        %v7336 = vsel %vm7335, %v7328, %v7332
        %v7337 = vand.u32 2147483647, %v7058
        %vm7338 = vcmp.eq.f32.partialorder %v7337, 8.507059e+37
        %v7339 = vand.u32 %v7058, 2147483648
        %v7340 = vor.u32 1.1754944e-38, %v7339
        %v7341 = vsel %vm7338, %v7340, %v7336
        %v7342 = vmul.f32 1.0, %v7341
        %v7343 = vrcp.pop %v7059
        %v7344 = vmul.f32 %v7059, %v7343
        %v7345 = vsub.f32 1.0, %v7344
        %v7346 = vmul.f32 %v7343, %v7345
        %v7347 = vadd.f32 %v7343, %v7346
        %vm7348 = vweird.f32 %v7059
        %vm7349 = vweird.f32 %v7343
        %vm7350 = vmor %vm7348, %vm7349
        %v7351 = vsel %vm7350, %v7343, %v7347
        %v7352 = vand.u32 2147483647, %v7059
        %vm7353 = vcmp.eq.f32.partialorder %v7352, 8.507059e+37
        %v7354 = vand.u32 %v7059, 2147483648
        %v7355 = vor.u32 1.1754944e-38, %v7354
        %v7356 = vsel %vm7353, %v7355, %v7351
        %v7357 = vmul.f32 1.0, %v7356
        %v7358 = vrcp.pop %v7060
        %v7359 = vmul.f32 %v7060, %v7358
        %v7360 = vsub.f32 1.0, %v7359
        %v7361 = vmul.f32 %v7358, %v7360
        %v7362 = vadd.f32 %v7358, %v7361
        %vm7363 = vweird.f32 %v7060
        %vm7364 = vweird.f32 %v7358
        %vm7365 = vmor %vm7363, %vm7364
        %v7366 = vsel %vm7365, %v7358, %v7362
        %v7367 = vand.u32 2147483647, %v7060
        %vm7368 = vcmp.eq.f32.partialorder %v7367, 8.507059e+37
        %v7369 = vand.u32 %v7060, 2147483648
        %v7370 = vor.u32 1.1754944e-38, %v7369
        %v7371 = vsel %vm7368, %v7370, %v7366
        %v7372 = vmul.f32 1.0, %v7371
        %v7373 = vrcp.pop %v7061
        %v7374 = vmul.f32 %v7061, %v7373
        %v7375 = vsub.f32 1.0, %v7374
        %v7376 = vmul.f32 %v7373, %v7375
        %v7377 = vadd.f32 %v7373, %v7376
        %vm7378 = vweird.f32 %v7061
        %vm7379 = vweird.f32 %v7373
        %vm7380 = vmor %vm7378, %vm7379
        %v7381 = vsel %vm7380, %v7373, %v7377
        %v7382 = vand.u32 2147483647, %v7061
        %vm7383 = vcmp.eq.f32.partialorder %v7382, 8.507059e+37
        %v7384 = vand.u32 %v7061, 2147483648
        %v7385 = vor.u32 1.1754944e-38, %v7384
        %v7386 = vsel %vm7383, %v7385, %v7381
        %v7387 = vmul.f32 1.0, %v7386
        %v7388 = vrcp.pop %v7062
        %v7389 = vmul.f32 %v7062, %v7388
        %v7390 = vsub.f32 1.0, %v7389
        %v7391 = vmul.f32 %v7388, %v7390
        %v7392 = vadd.f32 %v7388, %v7391
        %vm7393 = vweird.f32 %v7062
        %vm7394 = vweird.f32 %v7388
        %vm7395 = vmor %vm7393, %vm7394
        %v7396 = vsel %vm7395, %v7388, %v7392
        %v7397 = vand.u32 2147483647, %v7062
        %vm7398 = vcmp.eq.f32.partialorder %v7397, 8.507059e+37
        %v7399 = vand.u32 %v7062, 2147483648
        %v7400 = vor.u32 1.1754944e-38, %v7399
        %v7401 = vsel %vm7398, %v7400, %v7396
        %v7402 = vmul.f32 1.0, %v7401
        %v7403 = vrcp.pop %v7063
        %v7404 = vmul.f32 %v7063, %v7403
        %v7405 = vsub.f32 1.0, %v7404
        %v7406 = vmul.f32 %v7403, %v7405
        %v7407 = vadd.f32 %v7403, %v7406
        %vm7408 = vweird.f32 %v7063
        %vm7409 = vweird.f32 %v7403
        %vm7410 = vmor %vm7408, %vm7409
        %v7411 = vsel %vm7410, %v7403, %v7407
        %v7412 = vand.u32 2147483647, %v7063
        %vm7413 = vcmp.eq.f32.partialorder %v7412, 8.507059e+37
        %v7414 = vand.u32 %v7063, 2147483648
        %v7415 = vor.u32 1.1754944e-38, %v7414
        %v7416 = vsel %vm7413, %v7415, %v7411
        %v7417 = vmul.f32 1.0, %v7416
        %v7418 = vrcp.pop %v7064
        %v7419 = vmul.f32 %v7064, %v7418
        %v7420 = vsub.f32 1.0, %v7419
        %v7421 = vmul.f32 %v7418, %v7420
        %v7422 = vadd.f32 %v7418, %v7421
        %vm7423 = vweird.f32 %v7064
        %vm7424 = vweird.f32 %v7418
        %vm7425 = vmor %vm7423, %vm7424
        %v7426 = vsel %vm7425, %v7418, %v7422
        %v7427 = vand.u32 2147483647, %v7064
        %vm7428 = vcmp.eq.f32.partialorder %v7427, 8.507059e+37
        %v7429 = vand.u32 %v7064, 2147483648
        %v7430 = vor.u32 1.1754944e-38, %v7429
        %v7431 = vsel %vm7428, %v7430, %v7426
        %v7432 = vmul.f32 1.0, %v7431
        %v7433 = vrcp.pop %v7065
        %v7434 = vmul.f32 %v7065, %v7433
        %v7435 = vsub.f32 1.0, %v7434
        %v7436 = vmul.f32 %v7433, %v7435
        %v7437 = vadd.f32 %v7433, %v7436
        %vm7438 = vweird.f32 %v7065
        %vm7439 = vweird.f32 %v7433
        %vm7440 = vmor %vm7438, %vm7439
        %v7441 = vsel %vm7440, %v7433, %v7437
        %v7442 = vand.u32 2147483647, %v7065
        %vm7443 = vcmp.eq.f32.partialorder %v7442, 8.507059e+37
        %v7444 = vand.u32 %v7065, 2147483648
        %v7445 = vor.u32 1.1754944e-38, %v7444
        %v7446 = vsel %vm7443, %v7445, %v7441
        %v7447 = vmul.f32 1.0, %v7446
        %v7448 = vrcp.pop %v7066
        %v7449 = vmul.f32 %v7066, %v7448
        %v7450 = vsub.f32 1.0, %v7449
        %v7451 = vmul.f32 %v7448, %v7450
        %v7452 = vadd.f32 %v7448, %v7451
        %vm7453 = vweird.f32 %v7066
        %vm7454 = vweird.f32 %v7448
        %vm7455 = vmor %vm7453, %vm7454
        %v7456 = vsel %vm7455, %v7448, %v7452
        %v7457 = vand.u32 2147483647, %v7066
        %vm7458 = vcmp.eq.f32.partialorder %v7457, 8.507059e+37
        %v7459 = vand.u32 %v7066, 2147483648
        %v7460 = vor.u32 1.1754944e-38, %v7459
        %v7461 = vsel %vm7458, %v7460, %v7456
        %v7462 = vmul.f32 1.0, %v7461
        %v7463 = vrcp.pop %v7067
        %v7464 = vmul.f32 %v7067, %v7463
        %v7465 = vsub.f32 1.0, %v7464
        %v7466 = vmul.f32 %v7463, %v7465
        %v7467 = vadd.f32 %v7463, %v7466
        %vm7468 = vweird.f32 %v7067
        %vm7469 = vweird.f32 %v7463
        %vm7470 = vmor %vm7468, %vm7469
        %v7471 = vsel %vm7470, %v7463, %v7467
        %v7472 = vand.u32 2147483647, %v7067
        %vm7473 = vcmp.eq.f32.partialorder %v7472, 8.507059e+37
        %v7474 = vand.u32 %v7067, 2147483648
        %v7475 = vor.u32 1.1754944e-38, %v7474
        %v7476 = vsel %vm7473, %v7475, %v7471
        %v7477 = vmul.f32 1.0, %v7476
        %v7478 = vrcp.pop %v7068
        %v7479 = vmul.f32 %v7068, %v7478
        %v7480 = vsub.f32 1.0, %v7479
        %v7481 = vmul.f32 %v7478, %v7480
        %v7482 = vadd.f32 %v7478, %v7481
        %vm7483 = vweird.f32 %v7068
        %vm7484 = vweird.f32 %v7478
        %vm7485 = vmor %vm7483, %vm7484
        %v7486 = vsel %vm7485, %v7478, %v7482
        %v7487 = vand.u32 2147483647, %v7068
        %vm7488 = vcmp.eq.f32.partialorder %v7487, 8.507059e+37
        %v7489 = vand.u32 %v7068, 2147483648
        %v7490 = vor.u32 1.1754944e-38, %v7489
        %v7491 = vsel %vm7488, %v7490, %v7486
        %v7492 = vmul.f32 1.0, %v7491
        %v7493 = vrcp.pop %v7069
        %v7494 = vmul.f32 %v7069, %v7493
        %v7495 = vsub.f32 1.0, %v7494
        %v7496 = vmul.f32 %v7493, %v7495
        %v7497 = vadd.f32 %v7493, %v7496
        %vm7498 = vweird.f32 %v7069
        %vm7499 = vweird.f32 %v7493
        %vm7500 = vmor %vm7498, %vm7499
        %v7501 = vsel %vm7500, %v7493, %v7497
        %v7502 = vand.u32 2147483647, %v7069
        %vm7503 = vcmp.eq.f32.partialorder %v7502, 8.507059e+37
        %v7504 = vand.u32 %v7069, 2147483648
        %v7505 = vor.u32 1.1754944e-38, %v7504
        %v7506 = vsel %vm7503, %v7505, %v7501
        %v7507 = vmul.f32 1.0, %v7506
        %v7508 = vrcp.pop %v7070
        %v7509 = vmul.f32 %v7070, %v7508
        %v7510 = vsub.f32 1.0, %v7509
        %v7511 = vmul.f32 %v7508, %v7510
        %v7512 = vadd.f32 %v7508, %v7511
        %vm7513 = vweird.f32 %v7070
        %vm7514 = vweird.f32 %v7508
        %vm7515 = vmor %vm7513, %vm7514
        %v7516 = vsel %vm7515, %v7508, %v7512
        %v7517 = vand.u32 2147483647, %v7070
        %vm7518 = vcmp.eq.f32.partialorder %v7517, 8.507059e+37
        %v7519 = vand.u32 %v7070, 2147483648
        %v7520 = vor.u32 1.1754944e-38, %v7519
        %v7521 = vsel %vm7518, %v7520, %v7516
        %v7522 = vmul.f32 1.0, %v7521
        %v7523 = vrcp.pop %v7071
        %v7524 = vmul.f32 %v7071, %v7523
        %v7525 = vsub.f32 1.0, %v7524
        %v7526 = vmul.f32 %v7523, %v7525
        %v7527 = vadd.f32 %v7523, %v7526
        %vm7528 = vweird.f32 %v7071
        %vm7529 = vweird.f32 %v7523
        %vm7530 = vmor %vm7528, %vm7529
        %v7531 = vsel %vm7530, %v7523, %v7527
        %v7532 = vand.u32 2147483647, %v7071
        %vm7533 = vcmp.eq.f32.partialorder %v7532, 8.507059e+37
        %v7534 = vand.u32 %v7071, 2147483648
        %v7535 = vor.u32 1.1754944e-38, %v7534
        %v7536 = vsel %vm7533, %v7535, %v7531
        %v7537 = vmul.f32 1.0, %v7536
        %v7538 = vrcp.pop %v7072
        %v7539 = vmul.f32 %v7072, %v7538
        %v7540 = vsub.f32 1.0, %v7539
        %v7541 = vmul.f32 %v7538, %v7540
        %v7542 = vadd.f32 %v7538, %v7541
        %vm7543 = vweird.f32 %v7072
        %vm7544 = vweird.f32 %v7538
        %vm7545 = vmor %vm7543, %vm7544
        %v7546 = vsel %vm7545, %v7538, %v7542
        %v7547 = vand.u32 2147483647, %v7072
        %vm7548 = vcmp.eq.f32.partialorder %v7547, 8.507059e+37
        %v7549 = vand.u32 %v7072, 2147483648
        %v7550 = vor.u32 1.1754944e-38, %v7549
        %v7551 = vsel %vm7548, %v7550, %v7546
        %v7552 = vmul.f32 1.0, %v7551
        %v7553 = vmul.f32 %v6913, %v7087
        %v7554 = vmul.f32 %v6914, %v7102
        %v7555 = vmul.f32 %v6915, %v7117
        %v7556 = vmul.f32 %v6916, %v7132
        %v7557 = vmul.f32 %v6917, %v7147
        %v7558 = vmul.f32 %v6918, %v7162
        %v7559 = vmul.f32 %v6919, %v7177
        %v7560 = vmul.f32 %v6920, %v7192
        %v7561 = vmul.f32 %v6921, %v7207
        %v7562 = vmul.f32 %v6922, %v7222
        %v7563 = vmul.f32 %v6923, %v7237
        %v7564 = vmul.f32 %v6924, %v7252
        %v7565 = vmul.f32 %v6925, %v7267
        %v7566 = vmul.f32 %v6926, %v7282
        %v7567 = vmul.f32 %v6927, %v7297
        %v7568 = vmul.f32 %v6928, %v7312
        %v7569 = vmul.f32 %v6929, %v7327
        %v7570 = vmul.f32 %v6930, %v7342
        %v7571 = vmul.f32 %v6931, %v7357
        %v7572 = vmul.f32 %v6932, %v7372
        %v7573 = vmul.f32 %v6933, %v7387
        %v7574 = vmul.f32 %v6934, %v7402
        %v7575 = vmul.f32 %v6935, %v7417
        %v7576 = vmul.f32 %v6936, %v7432
        %v7577 = vmul.f32 %v6937, %v7447
        %v7578 = vmul.f32 %v6938, %v7462
        %v7579 = vmul.f32 %v6939, %v7477
        %v7580 = vmul.f32 %v6940, %v7492
        %v7581 = vmul.f32 %v6941, %v7507
        %v7582 = vmul.f32 %v6942, %v7522
        %v7583 = vmul.f32 %v6943, %v7537
        %v7584 = vmul.f32 %v6944, %v7552
        %7585 = vst.msk [vmem:[%s244] sm:$0xff] %vm285, %v7553
        %7586 = vst.msk [vmem:[%s244 + $0x8] sm:$0xff] %vm285, %v7554
        %7587 = vst.msk [vmem:[%s244 + $0x10] sm:$0xff] %vm285, %v7555
        %7588 = vst.msk [vmem:[%s244 + $0x18] sm:$0xff] %vm285, %v7556
        %7589 = vst.msk [vmem:[%s244 + $0x20] sm:$0xff] %vm285, %v7557
        %7590 = vst.msk [vmem:[%s244 + $0x28] sm:$0xff] %vm285, %v7558
        %7591 = vst.msk [vmem:[%s244 + $0x30] sm:$0xff] %vm285, %v7559
        %7592 = vst.msk [vmem:[%s244 + $0x38] sm:$0xff] %vm285, %v7560
        %7593 = vst.msk [vmem:[%s244 + $0x40] sm:$0xff] %vm285, %v7561
        %7594 = vst.msk [vmem:[%s244 + $0x48] sm:$0xff] %vm285, %v7562
        %7595 = vst.msk [vmem:[%s244 + $0x50] sm:$0xff] %vm285, %v7563
        %7596 = vst.msk [vmem:[%s244 + $0x58] sm:$0xff] %vm285, %v7564
        %7597 = vst.msk [vmem:[%s244 + $0x60] sm:$0xff] %vm285, %v7565
        %7598 = vst.msk [vmem:[%s244 + $0x68] sm:$0xff] %vm285, %v7566
        %7599 = vst.msk [vmem:[%s244 + $0x70] sm:$0xff] %vm285, %v7567
        %7600 = vst.msk [vmem:[%s244 + $0x78] sm:$0xff] %vm285, %v7568
        %7601 = vst.msk [vmem:[%s244 + $0x80] sm:$0xff] %vm285, %v7569
        %7602 = vst.msk [vmem:[%s244 + $0x88] sm:$0xff] %vm285, %v7570
        %7603 = vst.msk [vmem:[%s244 + $0x90] sm:$0xff] %vm285, %v7571
        %7604 = vst.msk [vmem:[%s244 + $0x98] sm:$0xff] %vm285, %v7572
        %7605 = vst.msk [vmem:[%s244 + $0xa0] sm:$0xff] %vm285, %v7573
        %7606 = vst.msk [vmem:[%s244 + $0xa8] sm:$0xff] %vm285, %v7574
        %7607 = vst.msk [vmem:[%s244 + $0xb0] sm:$0xff] %vm285, %v7575
        %7608 = vst.msk [vmem:[%s244 + $0xb8] sm:$0xff] %vm285, %v7576
        %7609 = vst.msk [vmem:[%s244 + $0xc0] sm:$0xff] %vm285, %v7577
        %7610 = vst.msk [vmem:[%s244 + $0xc8] sm:$0xff] %vm285, %v7578
        %7611 = vst.msk [vmem:[%s244 + $0xd0] sm:$0xff] %vm285, %v7579
        %7612 = vst.msk [vmem:[%s244 + $0xd8] sm:$0xff] %vm285, %v7580
        %7613 = vst.msk [vmem:[%s244 + $0xe0] sm:$0xff] %vm285, %v7581
        %7614 = vst.msk [vmem:[%s244 + $0xe8] sm:$0xff] %vm285, %v7582
        %7615 = vst.msk [vmem:[%s244 + $0xf0] sm:$0xff] %vm285, %v7583
        %7616 = vst.msk [vmem:[%s244 + $0xf8] sm:$0xff] %vm285, %v7584
        %s7617 = sand.u32 %s140, 1
        %s7618 = scalar_lea.sflag [#allocation5], %s7617
        %s7619 = sand.u32 %s140, 1
        %s7620 = smul.addr %s7619, 256
        %s7621 = scalar_lea.vmem [#allocation6], %s7620
        // Predicated region
        $region45: #{tpu_custom_call.1} parent=39 // pred_check
          %p7622 = pneg %p150
        $region46: #{tpu_custom_call.1} parent=39 // pred_check_branch
          %7624 = sbr.rel (%p7622) target = $region48
        $region47: #{tpu_custom_call.1} parent=39 // pred_region
          %7626 = vsyncadd %s7618, 0
          %s7627 = smul.addr %s22, 32
          %s7628 = smul.addr %s7627, 8
          %s7629 = scalar_lea.hbm %s5, %s7628
          %s7630 = sshll.u32 %s7621, 4
          %s7631 = int_to_ptr.vmem [resolvable:$true] %s7630
          %s7632 = sshll.u32 %s7629, 4
          %s7633 = int_to_ptr.hbm [resolvable:$true] %s7632
          %7638 = dma.vmem_to_hbm [thread:$0]  %s7631, 4096, %s7633, %s7618, 128, 128, 8
        $region48: #{tpu_custom_call.1} parent=39 // pred_fallthru
          _
      $region40: #{tpu_custom_call.1} parent=5 // pred_fallthru
        _
      %p7639 = scmp.le.s32.totalorder 2, %s17
      // Predicated region
      $region49: #{tpu_custom_call.1} parent=5 // pred_check
        %p7640 = pneg %p7639
      $region50: #{tpu_custom_call.1} parent=5 // pred_check_branch
        %7642 = sbr.rel (%p7640) target = $region52
      $region51: #{tpu_custom_call.1} parent=5 // pred_region
        %s7643 = ssub.s32 %s17, 2
        // Predicated region
        $region53: #{tpu_custom_call.1} parent=51 // pred_check
          %p7644 = pneg %p156
        $region54: #{tpu_custom_call.1} parent=51 // pred_check_branch
          %7646 = sbr.rel (%p7644) target = $region56
        $region55: #{tpu_custom_call.1} parent=51 // pred_region
          %s7647 = sand.u32 %s141, 1
          %s7648 = scalar_lea.sflag [#allocation5], %s7647
          %s7649 = sand.u32 %s141, 1
          %s7650 = smul.addr %s7649, 256
          %s7651 = scalar_lea.vmem [#allocation6], %s7650
          %7653 = dma.done %s7648, 4096
        $region56: #{tpu_custom_call.1} parent=51 // pred_fallthru
          _
      $region52: #{tpu_custom_call.1} parent=5 // pred_fallthru
        _
    $region6: #{tpu_custom_call.1} parent=1 // loop_footer
      %s21 = sadd.s32 1, %s17
    $region7: #{tpu_custom_call.1} parent=1 // loop_footer_branch
      %16 = sbr.rel target = $region3
    $region8: #{tpu_custom_call.1} parent=1 // loop_exit
      _
    %7654 = vsyncpa [#allocation4], 1
    %s7655 = scalar_lea.sflag [#allocation4], 1
    %7656 = vsyncpa %s7655, 1
    %7657 = vsyncpa [#allocation5], 1
    %s7658 = scalar_lea.sflag [#allocation5], 1
    %7659 = vsyncpa %s7658, 1

</llo_original>
